<compile_context>
chip_gen: v7x
topology: tpu7x:2x2x1
jax: 0.10.0
libtpu: 0.0.40
codegen_flags: <defaults>
</compile_context>

<pallas_src>
import functools

import jax
import jax.numpy as jnp
from jax.experimental import pallas as pl
from jax.experimental.pallas import tpu as pltpu

LANES = 128


def _round_up(x, m):
    return (x + m - 1) // m * m


def basic_block_kernel(x_ref, w1_ref, s1_ref, b1_ref, w2_ref, s2_ref, b2_ref,
                       out_ref, mid_ref, *, H, W):
    """One batch image per grid step.

    x_ref  : ((H+2)*W, Cp) f32   flattened rows: one zero halo row-block of W
                                 rows above and below the image; channels
                                 already padded to Cp (multiple of 128).
    w*_ref : (3, 3, Cp, Cp) bf16 conv weights (HWIO, channel-padded).
    s*,b*  : (1, Cp) f32         folded inference-BN scale / bias.
    out_ref: (H*W, Cp) f32
    mid_ref: ((H+2)*W, Cp) f32   VMEM scratch for the padded conv1 output.
    """
    HW = H * W
    rows = (H + 2) * W
    Cp = out_ref.shape[-1]

    # Periodic (period W) column masks for the horizontal (kw) shifts.
    col = jax.lax.broadcasted_iota(jnp.int32, (rows, 1), 0) % W
    is_first_col = col == 0          # value shifted from w-1 is invalid at w==0
    is_last_col = col == (W - 1)     # value shifted from w+1 is invalid at w==W-1

    def conv3x3(buf, w_ref):
        """buf: (rows, Cp) f32 with zero halo rows -> (H*W, Cp) f32 accumulator."""
        # Horizontal neighbours, built once per conv on the XLU; the mask also
        # kills the circular wrap of the roll.
        from_wm1 = jnp.where(is_first_col, 0.0, pltpu.roll(buf, 1, axis=0))
        from_wp1 = jnp.where(is_last_col, 0.0, pltpu.roll(buf, rows - 1, axis=0))
        taps = (from_wm1.astype(jnp.bfloat16),   # kw = 0 -> x[., w-1]
                buf.astype(jnp.bfloat16),        # kw = 1 -> x[., w  ]
                from_wp1.astype(jnp.bfloat16))   # kw = 2 -> x[., w+1]

        acc = jnp.zeros((HW, Cp), jnp.float32)
        for kh in range(3):
            base = kh * W                        # multiple of 8 -> aligned view
            for kw in range(3):
                patch = taps[kw][base:base + HW, :]
                acc = acc + jnp.dot(patch, w_ref[kh, kw],
                                    preferred_element_type=jnp.float32)
        return acc

    x = x_ref[...]                               # (rows, Cp) f32

    # ---- conv1 + bn1 + relu ----
    acc1 = conv3x3(x, w1_ref)
    mid = jnp.maximum(acc1 * s1_ref[...] + b1_ref[...], 0.0)

    # Stage the padded intermediate for conv2: zero only the two halo row
    # blocks; the interior is fully overwritten every grid step.
    zero_rows = jnp.zeros((W, Cp), jnp.float32)
    mid_ref[0:W, :] = zero_rows
    mid_ref[W + HW:W + HW + W, :] = zero_rows
    mid_ref[W:W + HW, :] = mid

    # ---- conv2 + bn2 + residual add + relu ----
    acc2 = conv3x3(mid_ref[...], w2_ref)
    identity = x_ref[W:W + HW, :]                # aligned view of the interior
    out = acc2 * s2_ref[...] + b2_ref[...] + identity
    out_ref[...] = jnp.maximum(out, 0.0).astype(out_ref.dtype)


def basic_block_pallas(x_nchw, w1_oihw, g1, be1, m1, v1,
                       w2_oihw, g2, be2, m2, v2, eps=1e-5):
    """x_nchw: (N, C, H, W) f32; conv weights in PyTorch OIHW layout."""
    N, Cin, H, W = x_nchw.shape
    Cout = w1_oihw.shape[0]
    assert Cin == Cout, "identity residual requires inplanes == planes"
    assert W % 8 == 0, "W must be a multiple of 8 (sublane-aligned row shifts)"
    Cp = _round_up(max(Cin, LANES), LANES)       # lane-dense channel padding

    # NCHW -> NHWC, pad channels to Cp, add one zero halo row above and below,
    # then flatten the (H+2, W) rows so the kernel works on (rows, Cp) tiles.
    x = jnp.transpose(x_nchw, (0, 2, 3, 1)).astype(jnp.float32)
    x = jnp.pad(x, ((0, 0), (1, 1), (0, 0), (0, Cp - Cin)))
    x = x.reshape(N, (H + 2) * W, Cp)

    def prep_w(w_oihw):                          # OIHW -> HWIO, pad, bf16
        w = jnp.transpose(w_oihw, (2, 3, 1, 0)).astype(jnp.float32)
        w = jnp.pad(w, ((0, 0), (0, 0), (0, Cp - Cin), (0, Cp - Cout)))
        return w.astype(jnp.bfloat16)

    def fold_bn(g, be, m, v):                    # inference BN -> scale / bias
        s = (g / jnp.sqrt(v + eps)).astype(jnp.float32)
        b = (be - m * s).astype(jnp.float32)
        s = jnp.pad(s, (0, Cp - Cout)).reshape(1, Cp)
        b = jnp.pad(b, (0, Cp - Cout)).reshape(1, Cp)
        return s, b

    w1 = prep_w(w1_oihw)
    w2 = prep_w(w2_oihw)
    s1, b1 = fold_bn(g1, be1, m1, v1)
    s2, b2 = fold_bn(g2, be2, m2, v2)

    kernel = functools.partial(basic_block_kernel, H=H, W=W)
    rows = (H + 2) * W

    out = pl.pallas_call(
        kernel,
        out_shape=jax.ShapeDtypeStruct((N, H * W, Cp), jnp.float32),
        grid_spec=pltpu.PrefetchScalarGridSpec(
            num_scalar_prefetch=0,
            grid=(N,),
            in_specs=[
                pl.BlockSpec((None, rows, Cp), lambda n: (n, 0, 0)),
                pl.BlockSpec((3, 3, Cp, Cp), lambda n: (0, 0, 0, 0)),
                pl.BlockSpec((1, Cp), lambda n: (0, 0)),
                pl.BlockSpec((1, Cp), lambda n: (0, 0)),
                pl.BlockSpec((3, 3, Cp, Cp), lambda n: (0, 0, 0, 0)),
                pl.BlockSpec((1, Cp), lambda n: (0, 0)),
                pl.BlockSpec((1, Cp), lambda n: (0, 0)),
            ],
            out_specs=pl.BlockSpec((None, H * W, Cp), lambda n: (n, 0, 0)),
            scratch_shapes=[pltpu.VMEM((rows, Cp), jnp.float32)],
        ),
        compiler_params=pltpu.CompilerParams(
            dimension_semantics=("parallel",),       # split batch across TCs (v7x)
            vmem_limit_bytes=32 * 1024 * 1024),
    )(x, w1, s1, b1, w2, s2, b2)

    out = out.reshape(N, H, W, Cp)[:, :, :, :Cout]
    return jnp.transpose(out, (0, 3, 1, 2))          # back to NCHW


def basic_block_ref(x_nchw, w1_oihw, g1, be1, m1, v1,
                    w2_oihw, g2, be2, m2, v2, eps=1e-5,
                    matmul_dtype=jnp.float32):
    """Pure-JAX reference (inference-mode BN).  matmul_dtype=bf16 mirrors the
    kernel's mixed-precision MXU operands with f32 accumulation."""
    x = jnp.transpose(x_nchw, (0, 2, 3, 1)).astype(jnp.float32)
    w1 = jnp.transpose(w1_oihw, (2, 3, 1, 0)).astype(jnp.float32)
    w2 = jnp.transpose(w2_oihw, (2, 3, 1, 0)).astype(jnp.float32)
    dn = ("NHWC", "HWIO", "NHWC")

    def conv(a, w):
        return jax.lax.conv_general_dilated(
            a.astype(matmul_dtype), w.astype(matmul_dtype), (1, 1),
            ((1, 1), (1, 1)), dimension_numbers=dn,
            preferred_element_type=jnp.float32)

    o = conv(x, w1)
    o = (o - m1) / jnp.sqrt(v1 + eps) * g1 + be1
    o = jnp.maximum(o, 0.0)
    o = conv(o, w2)
    o = (o - m2) / jnp.sqrt(v2 + eps) * g2 + be2
    o = jnp.maximum(o + x, 0.0)
    return jnp.transpose(o, (0, 3, 1, 2))


if __name__ == "__main__":
    N, C, H, W = 2, 32, 16, 16          # inplanes = planes = 32, stride = 1

    key = jax.random.PRNGKey(0)
    ks = jax.random.split(key, 12)
    x = jax.random.normal(ks[0], (N, C, H, W), jnp.float32)

    w1 = 0.05 * jax.random.normal(ks[1], (C, C, 3, 3), jnp.float32)   # OIHW
    w2 = 0.05 * jax.random.normal(ks[2], (C, C, 3, 3), jnp.float32)

    g1 = 1.0 + 0.1 * jax.random.normal(ks[3], (C,), jnp.float32)
    be1 = 0.1 * jax.random.normal(ks[4], (C,), jnp.float32)
    m1 = 0.1 * jax.random.normal(ks[5], (C,), jnp.float32)
    v1 = 0.5 + 0.5 * jnp.abs(jax.random.normal(ks[6], (C,), jnp.float32))

    g2 = 1.0 + 0.1 * jax.random.normal(ks[7], (C,), jnp.float32)
    be2 = 0.1 * jax.random.normal(ks[8], (C,), jnp.float32)
    m2 = 0.1 * jax.random.normal(ks[9], (C,), jnp.float32)
    v2 = 0.5 + 0.5 * jnp.abs(jax.random.normal(ks[10], (C,), jnp.float32))

    args = (x, w1, g1, be1, m1, v1, w2, g2, be2, m2, v2)

    out = jax.block_until_ready(basic_block_pallas(*args))
    assert out.shape == (N, C, H, W)

    # Tight check vs. a reference using the same bf16 MXU operands / f32 acc.
    ref_bf16 = jax.block_until_ready(
        basic_block_ref(*args, matmul_dtype=jnp.bfloat16))
    assert jnp.allclose(out, ref_bf16, atol=2e-3, rtol=2e-3), (
        float(jnp.max(jnp.abs(out - ref_bf16))))

    # Looser check vs. the pure-f32 reference (difference = bf16 matmul rounding).
    ref_f32 = jax.block_until_ready(
        basic_block_ref(*args, matmul_dtype=jnp.float32))
    assert jnp.allclose(out, ref_f32, atol=1e-1, rtol=1e-1), (
        float(jnp.max(jnp.abs(out - ref_f32))))

    print("KERNEL_OK")
</pallas_src>

<mosaic_0001>
module attributes {stable_mosaic.version = 11 : i64} {
  func.func @basic_block_kernel(%arg0: i32, %arg1: memref<1x288x128xf32, #tpu.memory_space<vmem>>, %arg2: memref<3x3x128x128xbf16, #tpu.memory_space<vmem>>, %arg3: memref<1x128xf32, #tpu.memory_space<vmem>>, %arg4: memref<1x128xf32, #tpu.memory_space<vmem>>, %arg5: memref<3x3x128x128xbf16, #tpu.memory_space<vmem>>, %arg6: memref<1x128xf32, #tpu.memory_space<vmem>>, %arg7: memref<1x128xf32, #tpu.memory_space<vmem>>, %arg8: memref<1x256x128xf32, #tpu.memory_space<vmem>>, %arg9: memref<288x128xf32, #tpu.memory_space<vmem>>) attributes {dimension_semantics = [#tpu.dimension_semantics<parallel>], iteration_bounds = array<i64: 2>, scalar_prefetch = 0 : i64, scratch_operands = 1 : i64, tpu.core_type = #tpu.core_type<tc>, window_params = [{transform_indices = @transform_0, window_bounds = array<i64: 1, 288, 128>}, {pipeline_mode = #tpu.pipeline_mode<synchronous>, transform_indices = @transform_1, window_bounds = array<i64: 3, 3, 128, 128>}, {pipeline_mode = #tpu.pipeline_mode<synchronous>, transform_indices = @transform_2, window_bounds = array<i64: 1, 128>}, {pipeline_mode = #tpu.pipeline_mode<synchronous>, transform_indices = @transform_3, window_bounds = array<i64: 1, 128>}, {pipeline_mode = #tpu.pipeline_mode<synchronous>, transform_indices = @transform_4, window_bounds = array<i64: 3, 3, 128, 128>}, {pipeline_mode = #tpu.pipeline_mode<synchronous>, transform_indices = @transform_5, window_bounds = array<i64: 1, 128>}, {pipeline_mode = #tpu.pipeline_mode<synchronous>, transform_indices = @transform_6, window_bounds = array<i64: 1, 128>}, {transform_indices = @transform_7, window_bounds = array<i64: 1, 256, 128>}]} {
    %0 = tpu.iota {dimensions = array<i32: 0>} : vector<288x1xi32>
    %c16_i32 = arith.constant 16 : i32
    %c0_i32 = arith.constant 0 : i32
    %1 = arith.cmpi eq, %c16_i32, %c0_i32 : i32
    %c1_i32 = arith.constant 1 : i32
    %2 = arith.select %1, %c1_i32, %c16_i32 : i32
    %3 = vector.broadcast %2 : i32 to vector<288x1xi32>
    %4 = arith.remsi %0, %3 : vector<288x1xi32>
    %c0_i32_0 = arith.constant 0 : i32
    %5 = vector.broadcast %c0_i32_0 : i32 to vector<288x1xi32>
    %6 = arith.cmpi ne, %4, %5 : vector<288x1xi32>
    %c0_i32_1 = arith.constant 0 : i32
    %7 = vector.broadcast %c0_i32_1 : i32 to vector<288x1xi32>
    %8 = arith.cmpi slt, %4, %7 : vector<288x1xi32>
    %c0_i32_2 = arith.constant 0 : i32
    %9 = arith.cmpi slt, %2, %c0_i32_2 : i32
    %10 = vector.broadcast %9 : i1 to vector<288x1xi1>
    %11 = vector.broadcast %10 : vector<288x1xi1> to vector<288x1xi1>
    %12 = arith.xori %8, %11 : vector<288x1xi1>
    %13 = arith.andi %12, %6 : vector<288x1xi1>
    %14 = vector.broadcast %2 : i32 to vector<288x1xi32>
    %15 = arith.addi %4, %14 : vector<288x1xi32>
    %16 = arith.select %13, %15, %4 : vector<288x1xi1>, vector<288x1xi32>
    %c0_i32_3 = arith.constant 0 : i32
    %17 = vector.broadcast %c0_i32_3 : i32 to vector<288x1xi32>
    %18 = arith.cmpi eq, %16, %17 : vector<288x1xi32>
    %c15_i32 = arith.constant 15 : i32
    %19 = vector.broadcast %c15_i32 : i32 to vector<288x1xi32>
    %20 = arith.cmpi eq, %16, %19 : vector<288x1xi32>
    %c0 = arith.constant 0 : index
    %c0_4 = arith.constant 0 : index
    %c0_5 = arith.constant 0 : index
    %21 = vector.load %arg1[%c0, %c0_4, %c0_5] : memref<1x288x128xf32, #tpu.memory_space<vmem>>, vector<1x288x128xf32>
    %22 = vector.shape_cast %21 : vector<1x288x128xf32> to vector<288x128xf32>
    %c1_i32_6 = arith.constant 1 : i32
    %23 = tpu.dynamic_rotate %22 by %c1_i32_6 dim 0 : vector<288x128xf32>, i32 -> vector<288x128xf32>
    %cst = arith.constant 0.000000e+00 : f32
    %24 = vector.shape_cast %18 : vector<288x1xi1> to vector<288x1xi1>
    %25 = vector.broadcast %24 : vector<288x1xi1> to vector<288x128xi1>
    %26 = vector.broadcast %cst : f32 to vector<288x128xf32>
    %27 = arith.select %25, %26, %23 : vector<288x128xi1>, vector<288x128xf32>
    %c287_i32 = arith.constant 287 : i32
    %28 = tpu.dynamic_rotate %22 by %c287_i32 dim 0 : vector<288x128xf32>, i32 -> vector<288x128xf32>
    %cst_7 = arith.constant 0.000000e+00 : f32
    %29 = vector.shape_cast %20 : vector<288x1xi1> to vector<288x1xi1>
    %30 = vector.broadcast %29 : vector<288x1xi1> to vector<288x128xi1>
    %31 = vector.broadcast %cst_7 : f32 to vector<288x128xf32>
    %32 = arith.select %30, %31, %28 : vector<288x128xi1>, vector<288x128xf32>
    %33 = arith.truncf %27 : vector<288x128xf32> to vector<288x128xbf16>
    %34 = arith.truncf %22 : vector<288x128xf32> to vector<288x128xbf16>
    %35 = arith.truncf %32 : vector<288x128xf32> to vector<288x128xbf16>
    %cst_8 = arith.constant 0.000000e+00 : f32
    %36 = vector.broadcast %cst_8 : f32 to vector<256x128xf32>
    %37 = vector.extract_strided_slice %33 {offsets = [0, 0], sizes = [256, 128], strides = [1, 1]} : vector<288x128xbf16> to vector<256x128xbf16>
    %c0_9 = arith.constant 0 : index
    %c0_10 = arith.constant 0 : index
    %c0_11 = arith.constant 0 : index
    %c0_12 = arith.constant 0 : index
    %38 = vector.load %arg2[%c0_9, %c0_10, %c0_11, %c0_12] : memref<3x3x128x128xbf16, #tpu.memory_space<vmem>>, vector<1x1x128x128xbf16>
    %39 = vector.shape_cast %38 : vector<1x1x128x128xbf16> to vector<128x128xbf16>
    %cst_13 = arith.constant dense<0.000000e+00> : vector<256x128xf32>
    %40 = tpu.matmul %37, %39, %cst_13 {dimension_numbers = #tpu.dot_dimension_numbers<[1], [0], [0], [1], [0, 0, 1, 1], [], []>} : vector<256x128xbf16>, vector<128x128xbf16>, vector<256x128xf32> -> vector<256x128xf32>
    %41 = arith.addf %36, %40 : vector<256x128xf32>
    %42 = vector.extract_strided_slice %34 {offsets = [0, 0], sizes = [256, 128], strides = [1, 1]} : vector<288x128xbf16> to vector<256x128xbf16>
    %c0_14 = arith.constant 0 : index
    %c1 = arith.constant 1 : index
    %c0_15 = arith.constant 0 : index
    %c0_16 = arith.constant 0 : index
    %43 = vector.load %arg2[%c0_14, %c1, %c0_15, %c0_16] : memref<3x3x128x128xbf16, #tpu.memory_space<vmem>>, vector<1x1x128x128xbf16>
    %44 = vector.shape_cast %43 : vector<1x1x128x128xbf16> to vector<128x128xbf16>
    %cst_17 = arith.constant dense<0.000000e+00> : vector<256x128xf32>
    %45 = tpu.matmul %42, %44, %cst_17 {dimension_numbers = #tpu.dot_dimension_numbers<[1], [0], [0], [1], [0, 0, 1, 1], [], []>} : vector<256x128xbf16>, vector<128x128xbf16>, vector<256x128xf32> -> vector<256x128xf32>
    %46 = arith.addf %41, %45 : vector<256x128xf32>
    %47 = vector.extract_strided_slice %35 {offsets = [0, 0], sizes = [256, 128], strides = [1, 1]} : vector<288x128xbf16> to vector<256x128xbf16>
    %c0_18 = arith.constant 0 : index
    %c2 = arith.constant 2 : index
    %c0_19 = arith.constant 0 : index
    %c0_20 = arith.constant 0 : index
    %48 = vector.load %arg2[%c0_18, %c2, %c0_19, %c0_20] : memref<3x3x128x128xbf16, #tpu.memory_space<vmem>>, vector<1x1x128x128xbf16>
    %49 = vector.shape_cast %48 : vector<1x1x128x128xbf16> to vector<128x128xbf16>
    %cst_21 = arith.constant dense<0.000000e+00> : vector<256x128xf32>
    %50 = tpu.matmul %47, %49, %cst_21 {dimension_numbers = #tpu.dot_dimension_numbers<[1], [0], [0], [1], [0, 0, 1, 1], [], []>} : vector<256x128xbf16>, vector<128x128xbf16>, vector<256x128xf32> -> vector<256x128xf32>
    %51 = arith.addf %46, %50 : vector<256x128xf32>
    %52 = vector.extract_strided_slice %33 {offsets = [16, 0], sizes = [256, 128], strides = [1, 1]} : vector<288x128xbf16> to vector<256x128xbf16>
    %c1_22 = arith.constant 1 : index
    %c0_23 = arith.constant 0 : index
    %c0_24 = arith.constant 0 : index
    %c0_25 = arith.constant 0 : index
    %53 = vector.load %arg2[%c1_22, %c0_23, %c0_24, %c0_25] : memref<3x3x128x128xbf16, #tpu.memory_space<vmem>>, vector<1x1x128x128xbf16>
    %54 = vector.shape_cast %53 : vector<1x1x128x128xbf16> to vector<128x128xbf16>
    %cst_26 = arith.constant dense<0.000000e+00> : vector<256x128xf32>
    %55 = tpu.matmul %52, %54, %cst_26 {dimension_numbers = #tpu.dot_dimension_numbers<[1], [0], [0], [1], [0, 0, 1, 1], [], []>} : vector<256x128xbf16>, vector<128x128xbf16>, vector<256x128xf32> -> vector<256x128xf32>
    %56 = arith.addf %51, %55 : vector<256x128xf32>
    %57 = vector.extract_strided_slice %34 {offsets = [16, 0], sizes = [256, 128], strides = [1, 1]} : vector<288x128xbf16> to vector<256x128xbf16>
    %c1_27 = arith.constant 1 : index
    %c1_28 = arith.constant 1 : index
    %c0_29 = arith.constant 0 : index
    %c0_30 = arith.constant 0 : index
    %58 = vector.load %arg2[%c1_27, %c1_28, %c0_29, %c0_30] : memref<3x3x128x128xbf16, #tpu.memory_space<vmem>>, vector<1x1x128x128xbf16>
    %59 = vector.shape_cast %58 : vector<1x1x128x128xbf16> to vector<128x128xbf16>
    %cst_31 = arith.constant dense<0.000000e+00> : vector<256x128xf32>
    %60 = tpu.matmul %57, %59, %cst_31 {dimension_numbers = #tpu.dot_dimension_numbers<[1], [0], [0], [1], [0, 0, 1, 1], [], []>} : vector<256x128xbf16>, vector<128x128xbf16>, vector<256x128xf32> -> vector<256x128xf32>
    %61 = arith.addf %56, %60 : vector<256x128xf32>
    %62 = vector.extract_strided_slice %35 {offsets = [16, 0], sizes = [256, 128], strides = [1, 1]} : vector<288x128xbf16> to vector<256x128xbf16>
    %c1_32 = arith.constant 1 : index
    %c2_33 = arith.constant 2 : index
    %c0_34 = arith.constant 0 : index
    %c0_35 = arith.constant 0 : index
    %63 = vector.load %arg2[%c1_32, %c2_33, %c0_34, %c0_35] : memref<3x3x128x128xbf16, #tpu.memory_space<vmem>>, vector<1x1x128x128xbf16>
    %64 = vector.shape_cast %63 : vector<1x1x128x128xbf16> to vector<128x128xbf16>
    %cst_36 = arith.constant dense<0.000000e+00> : vector<256x128xf32>
    %65 = tpu.matmul %62, %64, %cst_36 {dimension_numbers = #tpu.dot_dimension_numbers<[1], [0], [0], [1], [0, 0, 1, 1], [], []>} : vector<256x128xbf16>, vector<128x128xbf16>, vector<256x128xf32> -> vector<256x128xf32>
    %66 = arith.addf %61, %65 : vector<256x128xf32>
    %67 = vector.extract_strided_slice %33 {offsets = [32, 0], sizes = [256, 128], strides = [1, 1]} : vector<288x128xbf16> to vector<256x128xbf16>
    %c2_37 = arith.constant 2 : index
    %c0_38 = arith.constant 0 : index
    %c0_39 = arith.constant 0 : index
    %c0_40 = arith.constant 0 : index
    %68 = vector.load %arg2[%c2_37, %c0_38, %c0_39, %c0_40] : memref<3x3x128x128xbf16, #tpu.memory_space<vmem>>, vector<1x1x128x128xbf16>
    %69 = vector.shape_cast %68 : vector<1x1x128x128xbf16> to vector<128x128xbf16>
    %cst_41 = arith.constant dense<0.000000e+00> : vector<256x128xf32>
    %70 = tpu.matmul %67, %69, %cst_41 {dimension_numbers = #tpu.dot_dimension_numbers<[1], [0], [0], [1], [0, 0, 1, 1], [], []>} : vector<256x128xbf16>, vector<128x128xbf16>, vector<256x128xf32> -> vector<256x128xf32>
    %71 = arith.addf %66, %70 : vector<256x128xf32>
    %72 = vector.extract_strided_slice %34 {offsets = [32, 0], sizes = [256, 128], strides = [1, 1]} : vector<288x128xbf16> to vector<256x128xbf16>
    %c2_42 = arith.constant 2 : index
    %c1_43 = arith.constant 1 : index
    %c0_44 = arith.constant 0 : index
    %c0_45 = arith.constant 0 : index
    %73 = vector.load %arg2[%c2_42, %c1_43, %c0_44, %c0_45] : memref<3x3x128x128xbf16, #tpu.memory_space<vmem>>, vector<1x1x128x128xbf16>
    %74 = vector.shape_cast %73 : vector<1x1x128x128xbf16> to vector<128x128xbf16>
    %cst_46 = arith.constant dense<0.000000e+00> : vector<256x128xf32>
    %75 = tpu.matmul %72, %74, %cst_46 {dimension_numbers = #tpu.dot_dimension_numbers<[1], [0], [0], [1], [0, 0, 1, 1], [], []>} : vector<256x128xbf16>, vector<128x128xbf16>, vector<256x128xf32> -> vector<256x128xf32>
    %76 = arith.addf %71, %75 : vector<256x128xf32>
    %77 = vector.extract_strided_slice %35 {offsets = [32, 0], sizes = [256, 128], strides = [1, 1]} : vector<288x128xbf16> to vector<256x128xbf16>
    %c2_47 = arith.constant 2 : index
    %c2_48 = arith.constant 2 : index
    %c0_49 = arith.constant 0 : index
    %c0_50 = arith.constant 0 : index
    %78 = vector.load %arg2[%c2_47, %c2_48, %c0_49, %c0_50] : memref<3x3x128x128xbf16, #tpu.memory_space<vmem>>, vector<1x1x128x128xbf16>
    %79 = vector.shape_cast %78 : vector<1x1x128x128xbf16> to vector<128x128xbf16>
    %cst_51 = arith.constant dense<0.000000e+00> : vector<256x128xf32>
    %80 = tpu.matmul %77, %79, %cst_51 {dimension_numbers = #tpu.dot_dimension_numbers<[1], [0], [0], [1], [0, 0, 1, 1], [], []>} : vector<256x128xbf16>, vector<128x128xbf16>, vector<256x128xf32> -> vector<256x128xf32>
    %81 = arith.addf %76, %80 : vector<256x128xf32>
    %c0_52 = arith.constant 0 : index
    %c0_53 = arith.constant 0 : index
    %82 = vector.load %arg3[%c0_52, %c0_53] : memref<1x128xf32, #tpu.memory_space<vmem>>, vector<1x128xf32>
    %83 = vector.broadcast %82 : vector<1x128xf32> to vector<256x128xf32>
    %84 = arith.mulf %81, %83 : vector<256x128xf32>
    %c0_54 = arith.constant 0 : index
    %c0_55 = arith.constant 0 : index
    %85 = vector.load %arg4[%c0_54, %c0_55] : memref<1x128xf32, #tpu.memory_space<vmem>>, vector<1x128xf32>
    %86 = vector.broadcast %85 : vector<1x128xf32> to vector<256x128xf32>
    %87 = arith.addf %84, %86 : vector<256x128xf32>
    %cst_56 = arith.constant 0.000000e+00 : f32
    %88 = vector.broadcast %cst_56 : f32 to vector<256x128xf32>
    %89 = arith.maximumf %87, %88 : vector<256x128xf32>
    %cst_57 = arith.constant 0.000000e+00 : f32
    %90 = vector.broadcast %cst_57 : f32 to vector<16x128xf32>
    %c0_58 = arith.constant 0 : index
    %c0_59 = arith.constant 0 : index
    %91 = vector.load %arg9[%c0_58, %c0_59] : memref<288x128xf32, #tpu.memory_space<vmem>>, vector<16x128xf32>
    tpu.vector_store %arg9[%c0_58, %c0_59], %90 {strides = array<i32>} : memref<288x128xf32, #tpu.memory_space<vmem>>, vector<16x128xf32>,
    %c272 = arith.constant 272 : index
    %c0_60 = arith.constant 0 : index
    %92 = vector.load %arg9[%c272, %c0_60] : memref<288x128xf32, #tpu.memory_space<vmem>>, vector<16x128xf32>
    tpu.vector_store %arg9[%c272, %c0_60], %90 {strides = array<i32>} : memref<288x128xf32, #tpu.memory_space<vmem>>, vector<16x128xf32>,
    %c16 = arith.constant 16 : index
    %c0_61 = arith.constant 0 : index
    %93 = vector.load %arg9[%c16, %c0_61] : memref<288x128xf32, #tpu.memory_space<vmem>>, vector<256x128xf32>
    tpu.vector_store %arg9[%c16, %c0_61], %89 {strides = array<i32>} : memref<288x128xf32, #tpu.memory_space<vmem>>, vector<256x128xf32>,
    %c0_62 = arith.constant 0 : index
    %c0_63 = arith.constant 0 : index
    %94 = vector.load %arg9[%c0_62, %c0_63] : memref<288x128xf32, #tpu.memory_space<vmem>>, vector<288x128xf32>
    %c1_i32_64 = arith.constant 1 : i32
    %95 = tpu.dynamic_rotate %94 by %c1_i32_64 dim 0 : vector<288x128xf32>, i32 -> vector<288x128xf32>
    %cst_65 = arith.constant 0.000000e+00 : f32
    %96 = vector.shape_cast %18 : vector<288x1xi1> to vector<288x1xi1>
    %97 = vector.broadcast %96 : vector<288x1xi1> to vector<288x128xi1>
    %98 = vector.broadcast %cst_65 : f32 to vector<288x128xf32>
    %99 = arith.select %97, %98, %95 : vector<288x128xi1>, vector<288x128xf32>
    %c287_i32_66 = arith.constant 287 : i32
    %100 = tpu.dynamic_rotate %94 by %c287_i32_66 dim 0 : vector<288x128xf32>, i32 -> vector<288x128xf32>
    %cst_67 = arith.constant 0.000000e+00 : f32
    %101 = vector.shape_cast %20 : vector<288x1xi1> to vector<288x1xi1>
    %102 = vector.broadcast %101 : vector<288x1xi1> to vector<288x128xi1>
    %103 = vector.broadcast %cst_67 : f32 to vector<288x128xf32>
    %104 = arith.select %102, %103, %100 : vector<288x128xi1>, vector<288x128xf32>
    %105 = arith.truncf %99 : vector<288x128xf32> to vector<288x128xbf16>
    %106 = arith.truncf %94 : vector<288x128xf32> to vector<288x128xbf16>
    %107 = arith.truncf %104 : vector<288x128xf32> to vector<288x128xbf16>
    %cst_68 = arith.constant 0.000000e+00 : f32
    %108 = vector.broadcast %cst_68 : f32 to vector<256x128xf32>
    %109 = vector.extract_strided_slice %105 {offsets = [0, 0], sizes = [256, 128], strides = [1, 1]} : vector<288x128xbf16> to vector<256x128xbf16>
    %c0_69 = arith.constant 0 : index
    %c0_70 = arith.constant 0 : index
    %c0_71 = arith.constant 0 : index
    %c0_72 = arith.constant 0 : index
    %110 = vector.load %arg5[%c0_69, %c0_70, %c0_71, %c0_72] : memref<3x3x128x128xbf16, #tpu.memory_space<vmem>>, vector<1x1x128x128xbf16>
    %111 = vector.shape_cast %110 : vector<1x1x128x128xbf16> to vector<128x128xbf16>
    %cst_73 = arith.constant dense<0.000000e+00> : vector<256x128xf32>
    %112 = tpu.matmul %109, %111, %cst_73 {dimension_numbers = #tpu.dot_dimension_numbers<[1], [0], [0], [1], [0, 0, 1, 1], [], []>} : vector<256x128xbf16>, vector<128x128xbf16>, vector<256x128xf32> -> vector<256x128xf32>
    %113 = arith.addf %108, %112 : vector<256x128xf32>
    %114 = vector.extract_strided_slice %106 {offsets = [0, 0], sizes = [256, 128], strides = [1, 1]} : vector<288x128xbf16> to vector<256x128xbf16>
    %c0_74 = arith.constant 0 : index
    %c1_75 = arith.constant 1 : index
    %c0_76 = arith.constant 0 : index
    %c0_77 = arith.constant 0 : index
    %115 = vector.load %arg5[%c0_74, %c1_75, %c0_76, %c0_77] : memref<3x3x128x128xbf16, #tpu.memory_space<vmem>>, vector<1x1x128x128xbf16>
    %116 = vector.shape_cast %115 : vector<1x1x128x128xbf16> to vector<128x128xbf16>
    %cst_78 = arith.constant dense<0.000000e+00> : vector<256x128xf32>
    %117 = tpu.matmul %114, %116, %cst_78 {dimension_numbers = #tpu.dot_dimension_numbers<[1], [0], [0], [1], [0, 0, 1, 1], [], []>} : vector<256x128xbf16>, vector<128x128xbf16>, vector<256x128xf32> -> vector<256x128xf32>
    %118 = arith.addf %113, %117 : vector<256x128xf32>
    %119 = vector.extract_strided_slice %107 {offsets = [0, 0], sizes = [256, 128], strides = [1, 1]} : vector<288x128xbf16> to vector<256x128xbf16>
    %c0_79 = arith.constant 0 : index
    %c2_80 = arith.constant 2 : index
    %c0_81 = arith.constant 0 : index
    %c0_82 = arith.constant 0 : index
    %120 = vector.load %arg5[%c0_79, %c2_80, %c0_81, %c0_82] : memref<3x3x128x128xbf16, #tpu.memory_space<vmem>>, vector<1x1x128x128xbf16>
    %121 = vector.shape_cast %120 : vector<1x1x128x128xbf16> to vector<128x128xbf16>
    %cst_83 = arith.constant dense<0.000000e+00> : vector<256x128xf32>
    %122 = tpu.matmul %119, %121, %cst_83 {dimension_numbers = #tpu.dot_dimension_numbers<[1], [0], [0], [1], [0, 0, 1, 1], [], []>} : vector<256x128xbf16>, vector<128x128xbf16>, vector<256x128xf32> -> vector<256x128xf32>
    %123 = arith.addf %118, %122 : vector<256x128xf32>
    %124 = vector.extract_strided_slice %105 {offsets = [16, 0], sizes = [256, 128], strides = [1, 1]} : vector<288x128xbf16> to vector<256x128xbf16>
    %c1_84 = arith.constant 1 : index
    %c0_85 = arith.constant 0 : index
    %c0_86 = arith.constant 0 : index
    %c0_87 = arith.constant 0 : index
    %125 = vector.load %arg5[%c1_84, %c0_85, %c0_86, %c0_87] : memref<3x3x128x128xbf16, #tpu.memory_space<vmem>>, vector<1x1x128x128xbf16>
    %126 = vector.shape_cast %125 : vector<1x1x128x128xbf16> to vector<128x128xbf16>
    %cst_88 = arith.constant dense<0.000000e+00> : vector<256x128xf32>
    %127 = tpu.matmul %124, %126, %cst_88 {dimension_numbers = #tpu.dot_dimension_numbers<[1], [0], [0], [1], [0, 0, 1, 1], [], []>} : vector<256x128xbf16>, vector<128x128xbf16>, vector<256x128xf32> -> vector<256x128xf32>
    %128 = arith.addf %123, %127 : vector<256x128xf32>
    %129 = vector.extract_strided_slice %106 {offsets = [16, 0], sizes = [256, 128], strides = [1, 1]} : vector<288x128xbf16> to vector<256x128xbf16>
    %c1_89 = arith.constant 1 : index
    %c1_90 = arith.constant 1 : index
    %c0_91 = arith.constant 0 : index
    %c0_92 = arith.constant 0 : index
    %130 = vector.load %arg5[%c1_89, %c1_90, %c0_91, %c0_92] : memref<3x3x128x128xbf16, #tpu.memory_space<vmem>>, vector<1x1x128x128xbf16>
    %131 = vector.shape_cast %130 : vector<1x1x128x128xbf16> to vector<128x128xbf16>
    %cst_93 = arith.constant dense<0.000000e+00> : vector<256x128xf32>
    %132 = tpu.matmul %129, %131, %cst_93 {dimension_numbers = #tpu.dot_dimension_numbers<[1], [0], [0], [1], [0, 0, 1, 1], [], []>} : vector<256x128xbf16>, vector<128x128xbf16>, vector<256x128xf32> -> vector<256x128xf32>
    %133 = arith.addf %128, %132 : vector<256x128xf32>
    %134 = vector.extract_strided_slice %107 {offsets = [16, 0], sizes = [256, 128], strides = [1, 1]} : vector<288x128xbf16> to vector<256x128xbf16>
    %c1_94 = arith.constant 1 : index
    %c2_95 = arith.constant 2 : index
    %c0_96 = arith.constant 0 : index
    %c0_97 = arith.constant 0 : index
    %135 = vector.load %arg5[%c1_94, %c2_95, %c0_96, %c0_97] : memref<3x3x128x128xbf16, #tpu.memory_space<vmem>>, vector<1x1x128x128xbf16>
    %136 = vector.shape_cast %135 : vector<1x1x128x128xbf16> to vector<128x128xbf16>
    %cst_98 = arith.constant dense<0.000000e+00> : vector<256x128xf32>
    %137 = tpu.matmul %134, %136, %cst_98 {dimension_numbers = #tpu.dot_dimension_numbers<[1], [0], [0], [1], [0, 0, 1, 1], [], []>} : vector<256x128xbf16>, vector<128x128xbf16>, vector<256x128xf32> -> vector<256x128xf32>
    %138 = arith.addf %133, %137 : vector<256x128xf32>
    %139 = vector.extract_strided_slice %105 {offsets = [32, 0], sizes = [256, 128], strides = [1, 1]} : vector<288x128xbf16> to vector<256x128xbf16>
    %c2_99 = arith.constant 2 : index
    %c0_100 = arith.constant 0 : index
    %c0_101 = arith.constant 0 : index
    %c0_102 = arith.constant 0 : index
    %140 = vector.load %arg5[%c2_99, %c0_100, %c0_101, %c0_102] : memref<3x3x128x128xbf16, #tpu.memory_space<vmem>>, vector<1x1x128x128xbf16>
    %141 = vector.shape_cast %140 : vector<1x1x128x128xbf16> to vector<128x128xbf16>
    %cst_103 = arith.constant dense<0.000000e+00> : vector<256x128xf32>
    %142 = tpu.matmul %139, %141, %cst_103 {dimension_numbers = #tpu.dot_dimension_numbers<[1], [0], [0], [1], [0, 0, 1, 1], [], []>} : vector<256x128xbf16>, vector<128x128xbf16>, vector<256x128xf32> -> vector<256x128xf32>
    %143 = arith.addf %138, %142 : vector<256x128xf32>
    %144 = vector.extract_strided_slice %106 {offsets = [32, 0], sizes = [256, 128], strides = [1, 1]} : vector<288x128xbf16> to vector<256x128xbf16>
    %c2_104 = arith.constant 2 : index
    %c1_105 = arith.constant 1 : index
    %c0_106 = arith.constant 0 : index
    %c0_107 = arith.constant 0 : index
    %145 = vector.load %arg5[%c2_104, %c1_105, %c0_106, %c0_107] : memref<3x3x128x128xbf16, #tpu.memory_space<vmem>>, vector<1x1x128x128xbf16>
    %146 = vector.shape_cast %145 : vector<1x1x128x128xbf16> to vector<128x128xbf16>
    %cst_108 = arith.constant dense<0.000000e+00> : vector<256x128xf32>
    %147 = tpu.matmul %144, %146, %cst_108 {dimension_numbers = #tpu.dot_dimension_numbers<[1], [0], [0], [1], [0, 0, 1, 1], [], []>} : vector<256x128xbf16>, vector<128x128xbf16>, vector<256x128xf32> -> vector<256x128xf32>
    %148 = arith.addf %143, %147 : vector<256x128xf32>
    %149 = vector.extract_strided_slice %107 {offsets = [32, 0], sizes = [256, 128], strides = [1, 1]} : vector<288x128xbf16> to vector<256x128xbf16>
    %c2_109 = arith.constant 2 : index
    %c2_110 = arith.constant 2 : index
    %c0_111 = arith.constant 0 : index
    %c0_112 = arith.constant 0 : index
    %150 = vector.load %arg5[%c2_109, %c2_110, %c0_111, %c0_112] : memref<3x3x128x128xbf16, #tpu.memory_space<vmem>>, vector<1x1x128x128xbf16>
    %151 = vector.shape_cast %150 : vector<1x1x128x128xbf16> to vector<128x128xbf16>
    %cst_113 = arith.constant dense<0.000000e+00> : vector<256x128xf32>
    %152 = tpu.matmul %149, %151, %cst_113 {dimension_numbers = #tpu.dot_dimension_numbers<[1], [0], [0], [1], [0, 0, 1, 1], [], []>} : vector<256x128xbf16>, vector<128x128xbf16>, vector<256x128xf32> -> vector<256x128xf32>
    %153 = arith.addf %148, %152 : vector<256x128xf32>
    %c0_114 = arith.constant 0 : index
    %c16_115 = arith.constant 16 : index
    %c0_116 = arith.constant 0 : index
    %154 = vector.load %arg1[%c0_114, %c16_115, %c0_116] : memref<1x288x128xf32, #tpu.memory_space<vmem>>, vector<1x256x128xf32>
    %155 = vector.shape_cast %154 : vector<1x256x128xf32> to vector<256x128xf32>
    %c0_117 = arith.constant 0 : index
    %c0_118 = arith.constant 0 : index
    %156 = vector.load %arg6[%c0_117, %c0_118] : memref<1x128xf32, #tpu.memory_space<vmem>>, vector<1x128xf32>
    %157 = vector.broadcast %156 : vector<1x128xf32> to vector<256x128xf32>
    %158 = arith.mulf %153, %157 : vector<256x128xf32>
    %c0_119 = arith.constant 0 : index
    %c0_120 = arith.constant 0 : index
    %159 = vector.load %arg7[%c0_119, %c0_120] : memref<1x128xf32, #tpu.memory_space<vmem>>, vector<1x128xf32>
    %160 = vector.broadcast %159 : vector<1x128xf32> to vector<256x128xf32>
    %161 = arith.addf %158, %160 : vector<256x128xf32>
    %162 = arith.addf %161, %155 : vector<256x128xf32>
    %cst_121 = arith.constant 0.000000e+00 : f32
    %163 = vector.broadcast %cst_121 : f32 to vector<256x128xf32>
    %164 = arith.maximumf %162, %163 : vector<256x128xf32>
    %c0_122 = arith.constant 0 : index
    %c0_123 = arith.constant 0 : index
    %c0_124 = arith.constant 0 : index
    %165 = vector.load %arg8[%c0_122, %c0_123, %c0_124] : memref<1x256x128xf32, #tpu.memory_space<vmem>>, vector<1x256x128xf32>
    %166 = vector.shape_cast %165 : vector<1x256x128xf32> to vector<256x128xf32>
    %167 = vector.shape_cast %164 : vector<256x128xf32> to vector<1x256x128xf32>
    tpu.vector_store %arg8[%c0_122, %c0_123, %c0_124], %167 {strides = array<i32>} : memref<1x256x128xf32, #tpu.memory_space<vmem>>, vector<1x256x128xf32>,
    return
  }
  func.func @transform_0(%arg0: i32) -> (i32, i32, i32) {
    %c0_i32 = arith.constant 0 : i32
    %c0_i32_0 = arith.constant 0 : i32
    %c0_i32_1 = arith.constant 0 : i32
    return %arg0, %c0_i32, %c0_i32_0 : i32, i32, i32
  }
  func.func @transform_1(%arg0: i32) -> (i32, i32, i32, i32) {
    %c0_i32 = arith.constant 0 : i32
    %c0_i32_0 = arith.constant 0 : i32
    %c0_i32_1 = arith.constant 0 : i32
    %c0_i32_2 = arith.constant 0 : i32
    %c0_i32_3 = arith.constant 0 : i32
    return %c0_i32, %c0_i32_0, %c0_i32_1, %c0_i32_2 : i32, i32, i32, i32
  }
  func.func @transform_2(%arg0: i32) -> (i32, i32) {
    %c0_i32 = arith.constant 0 : i32
    %c0_i32_0 = arith.constant 0 : i32
    %c0_i32_1 = arith.constant 0 : i32
    return %c0_i32, %c0_i32_0 : i32, i32
  }
  func.func @transform_3(%arg0: i32) -> (i32, i32) {
    %c0_i32 = arith.constant 0 : i32
    %c0_i32_0 = arith.constant 0 : i32
    %c0_i32_1 = arith.constant 0 : i32
    return %c0_i32, %c0_i32_0 : i32, i32
  }
  func.func @transform_4(%arg0: i32) -> (i32, i32, i32, i32) {
    %c0_i32 = arith.constant 0 : i32
    %c0_i32_0 = arith.constant 0 : i32
    %c0_i32_1 = arith.constant 0 : i32
    %c0_i32_2 = arith.constant 0 : i32
    %c0_i32_3 = arith.constant 0 : i32
    return %c0_i32, %c0_i32_0, %c0_i32_1, %c0_i32_2 : i32, i32, i32, i32
  }
  func.func @transform_5(%arg0: i32) -> (i32, i32) {
    %c0_i32 = arith.constant 0 : i32
    %c0_i32_0 = arith.constant 0 : i32
    %c0_i32_1 = arith.constant 0 : i32
    return %c0_i32, %c0_i32_0 : i32, i32
  }
  func.func @transform_6(%arg0: i32) -> (i32, i32) {
    %c0_i32 = arith.constant 0 : i32
    %c0_i32_0 = arith.constant 0 : i32
    %c0_i32_1 = arith.constant 0 : i32
    return %c0_i32, %c0_i32_0 : i32, i32
  }
  func.func @transform_7(%arg0: i32) -> (i32, i32, i32) {
    %c0_i32 = arith.constant 0 : i32
    %c0_i32_0 = arith.constant 0 : i32
    %c0_i32_1 = arith.constant 0 : i32
    return %arg0, %c0_i32, %c0_i32_0 : i32, i32, i32
  }
}

</mosaic_0001>

<llo_original>
// kernel: tpu_custom_call.1
$region0: #{tpu_custom_call.1}
  #allocation0 [shape = 'u32[]', space=smem, size = 0x4, offset = 0x4, fixed_abs, tag = 'smem constant byte address 0x4 - core index']
  #allocation1 [shape = 'u32[144,128]{1,0:T(1,128)}', space=vmem, size = 0x12000, scoped, tag = 'internal scratch']
  #allocation2 [shape = 'f32[288,128]{1,0:T(8,128)}', space=vmem, size = 0x24000, scoped, tag = 'scratch operand']
  %s0 = inlined_call_operand.hbm [shape: f32[2,288,128], index: 0, kind: input, shape index: {}]
  %s1 = inlined_call_operand.hbm [shape: bf16[3,3,128,128], index: 1, kind: input, shape index: {}]
  %s2 = inlined_call_operand.vmem [shape: f32[1,128], index: 2, kind: input, shape index: {}]
  %s3 = inlined_call_operand.vmem [shape: f32[1,128], index: 3, kind: input, shape index: {}]
  %s4 = inlined_call_operand.hbm [shape: bf16[3,3,128,128], index: 4, kind: input, shape index: {}]
  %s5 = inlined_call_operand.vmem [shape: f32[1,128], index: 5, kind: input, shape index: {}]
  %s6 = inlined_call_operand.vmem [shape: f32[1,128], index: 6, kind: input, shape index: {}]
  %s7 = inlined_call_operand.hbm [shape: f32[2,256,128], index: 7, kind: output, shape index: {}]
  %s8 = sld [smem:[#allocation0]]
  $region73: #{tpu_custom_call.1} parent=0
    _
  %s10 = ssub.s32 1, %s8
  %s11 = scalar_select 0, %s10, %s8
  $region1: #{tpu_custom_call.1} parent=0
    #allocation3 [shape = 'u8[294912]{0}', space=vmem, size = 0x48000, scoped, tag = 'input window, operand 0']
    #allocation4 [shape = 's32[2]{0}', space=sflag, size = 0x8, scoped, tag = 'scoped memory for tpu_custom_call.1']
    #allocation5 [shape = 's32[2]{0}', space=sflag, size = 0x8, scoped, tag = 'scoped memory for tpu_custom_call.1']
    #allocation6 [shape = 'u8[294912]{0}', space=vmem, size = 0x48000, scoped, tag = 'input window, operand 1, single buffered']
    #allocation7 [shape = 's32[1]{0}', space=sflag, size = 0x4, scoped, tag = 'scoped memory for tpu_custom_call.1']
    #allocation8 [shape = 'u8[294912]{0}', space=vmem, size = 0x48000, scoped, tag = 'input window, operand 4, single buffered']
    #allocation9 [shape = 'u8[262144]{0}', space=vmem, size = 0x40000, scoped, tag = 'output window, operand 0']
    %12 = vsyncpa [#allocation4], 0
    %s13 = scalar_lea.sflag [#allocation4], 1
    %14 = vsyncpa %s13, 0
    %15 = vsyncpa [#allocation7], 0
    %16 = vsyncpa [#allocation5], 0
    %s17 = scalar_lea.sflag [#allocation5], 1
    %18 = vsyncpa %s17, 0
    loop: start=0, step=1, limit=4
    $region2: #{tpu_custom_call.1} parent=1 // loop_pre_header
      _
    $region3: #{tpu_custom_call.1} parent=1 // loop_header
      %s20 = sphi 0, %s24
      %p21 = scmp.ge.s32.totalorder %s20, 4
      %s30 = sphi 0, %s32
      %s33 = sphi 0, %s30
      %s34 = sphi 0, %s33
      %s50 = sphi 0, %s34
      %s54 = sphi 0, %s54
      %s56 = sphi 0, %s54
      %s57 = sphi 0, %s56
      %s71 = sphi 0, %s57
      %s75 = sphi 0, %s75
      %s77 = sphi 0, %s75
      %s78 = sphi 0, %s77
      %s92 = sphi 0, %s78
      %s96 = sphi 0, %s96
      %s98 = sphi 0, %s96
      %s99 = sphi 0, %s98
      %s113 = sphi 0, %s99
      %s117 = sphi 0, %s117
      %s119 = sphi 0, %s117
      %s120 = sphi 0, %s119
      %s134 = sphi 0, %s120
      %s138 = sphi 0, %s138
      %s140 = sphi 0, %s138
      %s141 = sphi 0, %s140
      %s155 = sphi 0, %s141
      %s159 = sphi 0, %s159
      %s161 = sphi 0, %s159
      %s162 = sphi 0, %s161
      %s176 = sphi 0, %s162
      %s182 = sphi 0, %s184
      %s185 = sphi 0, %s182
      %s186 = sphi 0, %s185
      %s202 = sphi 0, %s186
    $region4: #{tpu_custom_call.1} parent=1 // loop_header_branch
      %23 = sbr.rel (%p21) target = $region8
    $region5: #{tpu_custom_call.1} parent=1 // loop_body
      %s25 = ssub.s32 %s20, 1
      %s26 = ssub.s32 %s20, 2
      %s27 = sadd.s32 %s20, 1
      %s28 = ssub.s32 %s20, %s27
      %p29 = scmp.eq.s32.totalorder %s28, 0
      %s31 = sadd.s32 %s30, 1
      %s32 = scalar_select %p29, %s30, %s31
      %p35 = pneg %p29
      %p36 = scmp.eq.s32.totalorder %s20, 1
      %p37 = por %p35, %p36
      %p38 = scmp.ne.s32.totalorder %s30, %s33
      %p39 = scmp.eq.s32.totalorder %s20, 0
      %p40 = por %p38, %p39
      %p41 = scmp.ne.s32.totalorder %s30, %s33
      %p42 = scmp.eq.s32.totalorder %s25, 1
      %p43 = por %p41, %p42
      %p44 = scmp.ne.s32.totalorder %s33, %s34
      %p45 = scmp.eq.s32.totalorder %s25, 0
      %p46 = por %p44, %p45
      %p47 = scmp.ne.s32.totalorder %s33, %s34
      %p48 = scmp.eq.s32.totalorder %s26, 1
      %p49 = por %p47, %p48
      %p51 = scmp.ne.s32.totalorder %s34, %s50
      %p52 = scmp.eq.s32.totalorder %s26, 0
      %p53 = por %p51, %p52
      %s55 = sadd.s32 %s54, 1
      %p58 = scmp.eq.s32.totalorder %s20, 1
      %p59 = scmp.ne.s32.totalorder %s54, %s56
      %p60 = scmp.eq.s32.totalorder %s20, 0
      %p61 = por %p59, %p60
      %p62 = scmp.ne.s32.totalorder %s54, %s56
      %p63 = scmp.eq.s32.totalorder %s25, 1
      %p64 = por %p62, %p63
      %p65 = scmp.ne.s32.totalorder %s56, %s57
      %p66 = scmp.eq.s32.totalorder %s25, 0
      %p67 = por %p65, %p66
      %p68 = scmp.ne.s32.totalorder %s56, %s57
      %p69 = scmp.eq.s32.totalorder %s26, 1
      %p70 = por %p68, %p69
      %p72 = scmp.ne.s32.totalorder %s57, %s71
      %p73 = scmp.eq.s32.totalorder %s26, 0
      %p74 = por %p72, %p73
      %s76 = sadd.s32 %s75, 1
      %p79 = scmp.eq.s32.totalorder %s20, 1
      %p80 = scmp.ne.s32.totalorder %s75, %s77
      %p81 = scmp.eq.s32.totalorder %s20, 0
      %p82 = por %p80, %p81
      %p83 = scmp.ne.s32.totalorder %s75, %s77
      %p84 = scmp.eq.s32.totalorder %s25, 1
      %p85 = por %p83, %p84
      %p86 = scmp.ne.s32.totalorder %s77, %s78
      %p87 = scmp.eq.s32.totalorder %s25, 0
      %p88 = por %p86, %p87
      %p89 = scmp.ne.s32.totalorder %s77, %s78
      %p90 = scmp.eq.s32.totalorder %s26, 1
      %p91 = por %p89, %p90
      %p93 = scmp.ne.s32.totalorder %s78, %s92
      %p94 = scmp.eq.s32.totalorder %s26, 0
      %p95 = por %p93, %p94
      %s97 = sadd.s32 %s96, 1
      %p100 = scmp.eq.s32.totalorder %s20, 1
      %p101 = scmp.ne.s32.totalorder %s96, %s98
      %p102 = scmp.eq.s32.totalorder %s20, 0
      %p103 = por %p101, %p102
      %p104 = scmp.ne.s32.totalorder %s96, %s98
      %p105 = scmp.eq.s32.totalorder %s25, 1
      %p106 = por %p104, %p105
      %p107 = scmp.ne.s32.totalorder %s98, %s99
      %p108 = scmp.eq.s32.totalorder %s25, 0
      %p109 = por %p107, %p108
      %p110 = scmp.ne.s32.totalorder %s98, %s99
      %p111 = scmp.eq.s32.totalorder %s26, 1
      %p112 = por %p110, %p111
      %p114 = scmp.ne.s32.totalorder %s99, %s113
      %p115 = scmp.eq.s32.totalorder %s26, 0
      %p116 = por %p114, %p115
      %s118 = sadd.s32 %s117, 1
      %p121 = scmp.eq.s32.totalorder %s20, 1
      %p122 = scmp.ne.s32.totalorder %s117, %s119
      %p123 = scmp.eq.s32.totalorder %s20, 0
      %p124 = por %p122, %p123
      %p125 = scmp.ne.s32.totalorder %s117, %s119
      %p126 = scmp.eq.s32.totalorder %s25, 1
      %p127 = por %p125, %p126
      %p128 = scmp.ne.s32.totalorder %s119, %s120
      %p129 = scmp.eq.s32.totalorder %s25, 0
      %p130 = por %p128, %p129
      %p131 = scmp.ne.s32.totalorder %s119, %s120
      %p132 = scmp.eq.s32.totalorder %s26, 1
      %p133 = por %p131, %p132
      %p135 = scmp.ne.s32.totalorder %s120, %s134
      %p136 = scmp.eq.s32.totalorder %s26, 0
      %p137 = por %p135, %p136
      %s139 = sadd.s32 %s138, 1
      %p142 = scmp.eq.s32.totalorder %s20, 1
      %p143 = scmp.ne.s32.totalorder %s138, %s140
      %p144 = scmp.eq.s32.totalorder %s20, 0
      %p145 = por %p143, %p144
      %p146 = scmp.ne.s32.totalorder %s138, %s140
      %p147 = scmp.eq.s32.totalorder %s25, 1
      %p148 = por %p146, %p147
      %p149 = scmp.ne.s32.totalorder %s140, %s141
      %p150 = scmp.eq.s32.totalorder %s25, 0
      %p151 = por %p149, %p150
      %p152 = scmp.ne.s32.totalorder %s140, %s141
      %p153 = scmp.eq.s32.totalorder %s26, 1
      %p154 = por %p152, %p153
      %p156 = scmp.ne.s32.totalorder %s141, %s155
      %p157 = scmp.eq.s32.totalorder %s26, 0
      %p158 = por %p156, %p157
      %s160 = sadd.s32 %s159, 1
      %p163 = scmp.eq.s32.totalorder %s20, 1
      %p164 = scmp.ne.s32.totalorder %s159, %s161
      %p165 = scmp.eq.s32.totalorder %s20, 0
      %p166 = por %p164, %p165
      %p167 = scmp.ne.s32.totalorder %s159, %s161
      %p168 = scmp.eq.s32.totalorder %s25, 1
      %p169 = por %p167, %p168
      %p170 = scmp.ne.s32.totalorder %s161, %s162
      %p171 = scmp.eq.s32.totalorder %s25, 0
      %p172 = por %p170, %p171
      %p173 = scmp.ne.s32.totalorder %s161, %s162
      %p174 = scmp.eq.s32.totalorder %s26, 1
      %p175 = por %p173, %p174
      %p177 = scmp.ne.s32.totalorder %s162, %s176
      %p178 = scmp.eq.s32.totalorder %s26, 0
      %p179 = por %p177, %p178
      %s180 = ssub.s32 %s20, %s27
      %p181 = scmp.eq.s32.totalorder %s180, 0
      %s183 = sadd.s32 %s182, 1
      %s184 = scalar_select %p181, %s182, %s183
      %p187 = pneg %p181
      %p188 = scmp.eq.s32.totalorder %s20, 1
      %p189 = por %p187, %p188
      %p190 = scmp.ne.s32.totalorder %s182, %s185
      %p191 = scmp.eq.s32.totalorder %s20, 0
      %p192 = por %p190, %p191
      %p193 = scmp.ne.s32.totalorder %s182, %s185
      %p194 = scmp.eq.s32.totalorder %s25, 1
      %p195 = por %p193, %p194
      %p196 = scmp.ne.s32.totalorder %s185, %s186
      %p197 = scmp.eq.s32.totalorder %s25, 0
      %p198 = por %p196, %p197
      %p199 = scmp.ne.s32.totalorder %s185, %s186
      %p200 = scmp.eq.s32.totalorder %s26, 1
      %p201 = por %p199, %p200
      %p203 = scmp.ne.s32.totalorder %s186, %s202
      %p204 = scmp.eq.s32.totalorder %s26, 0
      %p205 = por %p203, %p204
      %p206 = scmp.le.s32.totalorder 1, %s20
      %p207 = scmp.lt.s32.totalorder %s20, 3
      %p208 = pnand %p206, %p207
      %p209 = pneg %p208
      // Predicated region
      $region9: #{tpu_custom_call.1} parent=5 // pred_check
        _
      $region10: #{tpu_custom_call.1} parent=5 // pred_check_branch
        %211 = sbr.rel (%p208) target = $region12
      $region11: #{tpu_custom_call.1} parent=5 // pred_region
        %s212 = ssub.s32 %s20, 1
        // Predicated region
        $region13: #{tpu_custom_call.1} parent=11 // pred_check
          %p213 = pneg %p67
        $region14: #{tpu_custom_call.1} parent=11 // pred_check_branch
          %215 = sbr.rel (%p213) target = $region16
        $region15: #{tpu_custom_call.1} parent=11 // pred_region
          %s217 = ssub.s32 9216, 9216
          %218 = vsyncadd [#allocation7], %s217
          %s219 = sshll.u32 [#allocation6], 4
          %s220 = int_to_ptr.vmem [resolvable:$true] %s219
          %225 = dma.hbm_to_vmem [thread:$0]  %s1, 9216, %s220, [#allocation7], 64, 64, 4
        $region16: #{tpu_custom_call.1} parent=11 // pred_fallthru
          _
        // Predicated region
        $region17: #{tpu_custom_call.1} parent=11 // pred_check
          %p226 = pneg %p88
        $region18: #{tpu_custom_call.1} parent=11 // pred_check_branch
          %228 = sbr.rel (%p226) target = $region20
        $region19: #{tpu_custom_call.1} parent=11 // pred_region
          _
        $region20: #{tpu_custom_call.1} parent=11 // pred_fallthru
          _
        // Predicated region
        $region21: #{tpu_custom_call.1} parent=11 // pred_check
          %p229 = pneg %p109
        $region22: #{tpu_custom_call.1} parent=11 // pred_check_branch
          %231 = sbr.rel (%p229) target = $region24
        $region23: #{tpu_custom_call.1} parent=11 // pred_region
          _
        $region24: #{tpu_custom_call.1} parent=11 // pred_fallthru
          _
        // Predicated region
        $region25: #{tpu_custom_call.1} parent=11 // pred_check
          %p232 = pneg %p130
        $region26: #{tpu_custom_call.1} parent=11 // pred_check_branch
          %234 = sbr.rel (%p232) target = $region28
        $region27: #{tpu_custom_call.1} parent=11 // pred_region
          %s236 = ssub.s32 9216, 9216
          %237 = vsyncadd [#allocation7], %s236
          %s238 = sshll.u32 [#allocation8], 4
          %s239 = int_to_ptr.vmem [resolvable:$true] %s238
          %244 = dma.hbm_to_vmem [thread:$0]  %s4, 9216, %s239, [#allocation7], 64, 64, 4
        $region28: #{tpu_custom_call.1} parent=11 // pred_fallthru
          _
        // Predicated region
        $region29: #{tpu_custom_call.1} parent=11 // pred_check
          %p245 = pneg %p151
        $region30: #{tpu_custom_call.1} parent=11 // pred_check_branch
          %247 = sbr.rel (%p245) target = $region32
        $region31: #{tpu_custom_call.1} parent=11 // pred_region
          _
        $region32: #{tpu_custom_call.1} parent=11 // pred_fallthru
          _
        // Predicated region
        $region33: #{tpu_custom_call.1} parent=11 // pred_check
          %p248 = pneg %p172
        $region34: #{tpu_custom_call.1} parent=11 // pred_check_branch
          %250 = sbr.rel (%p248) target = $region36
        $region35: #{tpu_custom_call.1} parent=11 // pred_region
          _
        $region36: #{tpu_custom_call.1} parent=11 // pred_fallthru
          _
      $region12: #{tpu_custom_call.1} parent=5 // pred_fallthru
        _
      %p251 = scmp.lt.s32.totalorder %s20, 2
      // Predicated region
      $region37: #{tpu_custom_call.1} parent=5 // pred_check
        %p252 = pneg %p251
      $region38: #{tpu_custom_call.1} parent=5 // pred_check_branch
        %254 = sbr.rel (%p252) target = $region40
      $region39: #{tpu_custom_call.1} parent=5 // pred_region
        // Predicated region
        $region41: #{tpu_custom_call.1} parent=39 // pred_check
          %p255 = pneg %p40
        $region42: #{tpu_custom_call.1} parent=39 // pred_check_branch
          %257 = sbr.rel (%p255) target = $region44
        $region43: #{tpu_custom_call.1} parent=39 // pred_region
          %s258 = sand.u32 %s30, 1
          %s259 = scalar_lea.sflag [#allocation4], %s258
          %s260 = sand.u32 %s30, 1
          %s261 = smul.addr %s260, 288
          %s262 = scalar_lea.vmem [#allocation3], %s261
          %s264 = ssub.s32 4608, 4608
          %265 = vsyncadd %s259, %s264
          %s266 = smul.addr %s20, 36
          %s267 = smul.addr %s266, 128
          %s268 = scalar_lea.hbm %s0, %s267
          %s269 = sshll.u32 %s262, 4
          %s270 = int_to_ptr.vmem [resolvable:$true] %s269
          %275 = dma.hbm_to_vmem [thread:$0]  %s268, 4608, %s270, %s259, 128, 128, 8
        $region44: #{tpu_custom_call.1} parent=39 // pred_fallthru
          _
      $region40: #{tpu_custom_call.1} parent=5 // pred_fallthru
        _
      %p276 = scmp.le.s32.totalorder 1, %s20
      %p277 = scmp.lt.s32.totalorder %s20, 3
      %p278 = pnand %p276, %p277
      %p279 = pneg %p278
      // Predicated region
      $region45: #{tpu_custom_call.1} parent=5 // pred_check
        _
      $region46: #{tpu_custom_call.1} parent=5 // pred_check_branch
        %281 = sbr.rel (%p278) target = $region48
      $region47: #{tpu_custom_call.1} parent=5 // pred_region
        %s282 = ssub.s32 %s20, 1
        %s283 = sand.u32 %s33, 1
        %s284 = scalar_lea.sflag [#allocation4], %s283
        %s285 = sand.u32 %s33, 1
        %s286 = smul.addr %s285, 288
        %s287 = scalar_lea.vmem [#allocation3], %s286
        // Predicated region
        $region49: #{tpu_custom_call.1} parent=47 // pred_check
          %p288 = pneg %p46
        $region50: #{tpu_custom_call.1} parent=47 // pred_check_branch
          %290 = sbr.rel (%p288) target = $region52
        $region51: #{tpu_custom_call.1} parent=47 // pred_region
          %291 = dma.done %s284, 4608
        $region52: #{tpu_custom_call.1} parent=47 // pred_fallthru
          _
        // Predicated region
        $region53: #{tpu_custom_call.1} parent=47 // pred_check
          %p292 = pneg %p67
        $region54: #{tpu_custom_call.1} parent=47 // pred_check_branch
          %294 = sbr.rel (%p292) target = $region56
        $region55: #{tpu_custom_call.1} parent=47 // pred_region
          %295 = dma.done [#allocation7], 9216
        $region56: #{tpu_custom_call.1} parent=47 // pred_fallthru
          _
        // Predicated region
        $region57: #{tpu_custom_call.1} parent=47 // pred_check
          %p296 = pneg %p130
        $region58: #{tpu_custom_call.1} parent=47 // pred_check_branch
          %298 = sbr.rel (%p296) target = $region60
        $region59: #{tpu_custom_call.1} parent=47 // pred_region
          %299 = dma.done [#allocation7], 9216
        $region60: #{tpu_custom_call.1} parent=47 // pred_fallthru
          _
        %s300 = sand.u32 %s33, 1
        %s301 = scalar_lea.sflag [#allocation4], %s300
        %s302 = sand.u32 %s33, 1
        %s303 = smul.addr %s302, 288
        %s304 = scalar_lea.vmem [#allocation3], %s303
        %p305 = pneg %p46
        %p306 = pneg %p43
        %p307 = pneg %p67
        %p308 = pneg %p64
        %p309 = pneg %p88
        %p310 = pneg %p85
        %p311 = pneg %p109
        %p312 = pneg %p106
        %p313 = pneg %p130
        %p314 = pneg %p127
        %p315 = pneg %p151
        %p316 = pneg %p148
        %p317 = pneg %p172
        %p318 = pneg %p169
        %p319 = pneg %p198
        %p320 = pneg %p195
        %s321 = sand.u32 %s185, 1
        %s322 = scalar_lea.sflag [#allocation5], %s321
        %s323 = sand.u32 %s185, 1
        %s324 = smul.addr %s323, 256
        %s325 = scalar_lea.vmem [#allocation9], %s324
        %v327 = vlaneseq
        %v328 = vshrl.u32 %v327, 7
        %v329 = vadd.s32 %v328, 8
        %v330 = vadd.s32 %v328, 16
        %v331 = vadd.s32 %v328, 24
        %v332 = vadd.s32 %v328, 32
        %v333 = vadd.s32 %v328, 40
        %v334 = vadd.s32 %v328, 48
        %v335 = vadd.s32 %v328, 56
        %v336 = vadd.s32 %v328, 64
        %v337 = vadd.s32 %v328, 72
        %v338 = vadd.s32 %v328, 80
        %v339 = vadd.s32 %v328, 88
        %v340 = vadd.s32 %v328, 96
        %v341 = vadd.s32 %v328, 104
        %v342 = vadd.s32 %v328, 112
        %v343 = vadd.s32 %v328, 120
        %v344 = vadd.s32 %v328, 128
        %v345 = vadd.s32 %v328, 136
        %v346 = vadd.s32 %v328, 144
        %v347 = vadd.s32 %v328, 152
        %v348 = vadd.s32 %v328, 160
        %v349 = vadd.s32 %v328, 168
        %v350 = vadd.s32 %v328, 176
        %v351 = vadd.s32 %v328, 184
        %v352 = vadd.s32 %v328, 192
        %v353 = vadd.s32 %v328, 200
        %v354 = vadd.s32 %v328, 208
        %v355 = vadd.s32 %v328, 216
        %v356 = vadd.s32 %v328, 224
        %v357 = vadd.s32 %v328, 232
        %v358 = vadd.s32 %v328, 240
        %v359 = vadd.s32 %v328, 248
        %v360 = vadd.s32 %v328, 256
        %v361 = vadd.s32 %v328, 264
        %v362 = vadd.s32 %v328, 272
        %v363 = vadd.s32 %v328, 280
        %vm364 = vcmp.lt.s32.totalorder %v328, 0
        %v365 = vsub.s32 0, %v328
        %v366 = vsel %vm364, %v365, %v328
        %v367 = vshrl.u32 %v366, 4
        %v368 = vand.u32 %v366, 15
        %v369 = vsub.s32 0, %v368
        %v370 = vsel %vm364, %v369, %v368
        %vm371 = vcmp.lt.s32.totalorder %v329, 0
        %v372 = vsub.s32 0, %v329
        %v373 = vsel %vm371, %v372, %v329
        %v374 = vshrl.u32 %v373, 4
        %v375 = vand.u32 %v373, 15
        %v376 = vsub.s32 0, %v375
        %v377 = vsel %vm371, %v376, %v375
        %vm378 = vcmp.lt.s32.totalorder %v330, 0
        %v379 = vsub.s32 0, %v330
        %v380 = vsel %vm378, %v379, %v330
        %v381 = vshrl.u32 %v380, 4
        %v382 = vand.u32 %v380, 15
        %v383 = vsub.s32 0, %v382
        %v384 = vsel %vm378, %v383, %v382
        %vm385 = vcmp.lt.s32.totalorder %v331, 0
        %v386 = vsub.s32 0, %v331
        %v387 = vsel %vm385, %v386, %v331
        %v388 = vshrl.u32 %v387, 4
        %v389 = vand.u32 %v387, 15
        %v390 = vsub.s32 0, %v389
        %v391 = vsel %vm385, %v390, %v389
        %vm392 = vcmp.lt.s32.totalorder %v332, 0
        %v393 = vsub.s32 0, %v332
        %v394 = vsel %vm392, %v393, %v332
        %v395 = vshrl.u32 %v394, 4
        %v396 = vand.u32 %v394, 15
        %v397 = vsub.s32 0, %v396
        %v398 = vsel %vm392, %v397, %v396
        %vm399 = vcmp.lt.s32.totalorder %v333, 0
        %v400 = vsub.s32 0, %v333
        %v401 = vsel %vm399, %v400, %v333
        %v402 = vshrl.u32 %v401, 4
        %v403 = vand.u32 %v401, 15
        %v404 = vsub.s32 0, %v403
        %v405 = vsel %vm399, %v404, %v403
        %vm406 = vcmp.lt.s32.totalorder %v334, 0
        %v407 = vsub.s32 0, %v334
        %v408 = vsel %vm406, %v407, %v334
        %v409 = vshrl.u32 %v408, 4
        %v410 = vand.u32 %v408, 15
        %v411 = vsub.s32 0, %v410
        %v412 = vsel %vm406, %v411, %v410
        %vm413 = vcmp.lt.s32.totalorder %v335, 0
        %v414 = vsub.s32 0, %v335
        %v415 = vsel %vm413, %v414, %v335
        %v416 = vshrl.u32 %v415, 4
        %v417 = vand.u32 %v415, 15
        %v418 = vsub.s32 0, %v417
        %v419 = vsel %vm413, %v418, %v417
        %vm420 = vcmp.lt.s32.totalorder %v336, 0
        %v421 = vsub.s32 0, %v336
        %v422 = vsel %vm420, %v421, %v336
        %v423 = vshrl.u32 %v422, 4
        %v424 = vand.u32 %v422, 15
        %v425 = vsub.s32 0, %v424
        %v426 = vsel %vm420, %v425, %v424
        %vm427 = vcmp.lt.s32.totalorder %v337, 0
        %v428 = vsub.s32 0, %v337
        %v429 = vsel %vm427, %v428, %v337
        %v430 = vshrl.u32 %v429, 4
        %v431 = vand.u32 %v429, 15
        %v432 = vsub.s32 0, %v431
        %v433 = vsel %vm427, %v432, %v431
        %vm434 = vcmp.lt.s32.totalorder %v338, 0
        %v435 = vsub.s32 0, %v338
        %v436 = vsel %vm434, %v435, %v338
        %v437 = vshrl.u32 %v436, 4
        %v438 = vand.u32 %v436, 15
        %v439 = vsub.s32 0, %v438
        %v440 = vsel %vm434, %v439, %v438
        %vm441 = vcmp.lt.s32.totalorder %v339, 0
        %v442 = vsub.s32 0, %v339
        %v443 = vsel %vm441, %v442, %v339
        %v444 = vshrl.u32 %v443, 4
        %v445 = vand.u32 %v443, 15
        %v446 = vsub.s32 0, %v445
        %v447 = vsel %vm441, %v446, %v445
        %vm448 = vcmp.lt.s32.totalorder %v340, 0
        %v449 = vsub.s32 0, %v340
        %v450 = vsel %vm448, %v449, %v340
        %v451 = vshrl.u32 %v450, 4
        %v452 = vand.u32 %v450, 15
        %v453 = vsub.s32 0, %v452
        %v454 = vsel %vm448, %v453, %v452
        %vm455 = vcmp.lt.s32.totalorder %v341, 0
        %v456 = vsub.s32 0, %v341
        %v457 = vsel %vm455, %v456, %v341
        %v458 = vshrl.u32 %v457, 4
        %v459 = vand.u32 %v457, 15
        %v460 = vsub.s32 0, %v459
        %v461 = vsel %vm455, %v460, %v459
        %vm462 = vcmp.lt.s32.totalorder %v342, 0
        %v463 = vsub.s32 0, %v342
        %v464 = vsel %vm462, %v463, %v342
        %v465 = vshrl.u32 %v464, 4
        %v466 = vand.u32 %v464, 15
        %v467 = vsub.s32 0, %v466
        %v468 = vsel %vm462, %v467, %v466
        %vm469 = vcmp.lt.s32.totalorder %v343, 0
        %v470 = vsub.s32 0, %v343
        %v471 = vsel %vm469, %v470, %v343
        %v472 = vshrl.u32 %v471, 4
        %v473 = vand.u32 %v471, 15
        %v474 = vsub.s32 0, %v473
        %v475 = vsel %vm469, %v474, %v473
        %vm476 = vcmp.lt.s32.totalorder %v344, 0
        %v477 = vsub.s32 0, %v344
        %v478 = vsel %vm476, %v477, %v344
        %v479 = vshrl.u32 %v478, 4
        %v480 = vand.u32 %v478, 15
        %v481 = vsub.s32 0, %v480
        %v482 = vsel %vm476, %v481, %v480
        %vm483 = vcmp.lt.s32.totalorder %v345, 0
        %v484 = vsub.s32 0, %v345
        %v485 = vsel %vm483, %v484, %v345
        %v486 = vshrl.u32 %v485, 4
        %v487 = vand.u32 %v485, 15
        %v488 = vsub.s32 0, %v487
        %v489 = vsel %vm483, %v488, %v487
        %vm490 = vcmp.lt.s32.totalorder %v346, 0
        %v491 = vsub.s32 0, %v346
        %v492 = vsel %vm490, %v491, %v346
        %v493 = vshrl.u32 %v492, 4
        %v494 = vand.u32 %v492, 15
        %v495 = vsub.s32 0, %v494
        %v496 = vsel %vm490, %v495, %v494
        %vm497 = vcmp.lt.s32.totalorder %v347, 0
        %v498 = vsub.s32 0, %v347
        %v499 = vsel %vm497, %v498, %v347
        %v500 = vshrl.u32 %v499, 4
        %v501 = vand.u32 %v499, 15
        %v502 = vsub.s32 0, %v501
        %v503 = vsel %vm497, %v502, %v501
        %vm504 = vcmp.lt.s32.totalorder %v348, 0
        %v505 = vsub.s32 0, %v348
        %v506 = vsel %vm504, %v505, %v348
        %v507 = vshrl.u32 %v506, 4
        %v508 = vand.u32 %v506, 15
        %v509 = vsub.s32 0, %v508
        %v510 = vsel %vm504, %v509, %v508
        %vm511 = vcmp.lt.s32.totalorder %v349, 0
        %v512 = vsub.s32 0, %v349
        %v513 = vsel %vm511, %v512, %v349
        %v514 = vshrl.u32 %v513, 4
        %v515 = vand.u32 %v513, 15
        %v516 = vsub.s32 0, %v515
        %v517 = vsel %vm511, %v516, %v515
        %vm518 = vcmp.lt.s32.totalorder %v350, 0
        %v519 = vsub.s32 0, %v350
        %v520 = vsel %vm518, %v519, %v350
        %v521 = vshrl.u32 %v520, 4
        %v522 = vand.u32 %v520, 15
        %v523 = vsub.s32 0, %v522
        %v524 = vsel %vm518, %v523, %v522
        %vm525 = vcmp.lt.s32.totalorder %v351, 0
        %v526 = vsub.s32 0, %v351
        %v527 = vsel %vm525, %v526, %v351
        %v528 = vshrl.u32 %v527, 4
        %v529 = vand.u32 %v527, 15
        %v530 = vsub.s32 0, %v529
        %v531 = vsel %vm525, %v530, %v529
        %vm532 = vcmp.lt.s32.totalorder %v352, 0
        %v533 = vsub.s32 0, %v352
        %v534 = vsel %vm532, %v533, %v352
        %v535 = vshrl.u32 %v534, 4
        %v536 = vand.u32 %v534, 15
        %v537 = vsub.s32 0, %v536
        %v538 = vsel %vm532, %v537, %v536
        %vm539 = vcmp.lt.s32.totalorder %v353, 0
        %v540 = vsub.s32 0, %v353
        %v541 = vsel %vm539, %v540, %v353
        %v542 = vshrl.u32 %v541, 4
        %v543 = vand.u32 %v541, 15
        %v544 = vsub.s32 0, %v543
        %v545 = vsel %vm539, %v544, %v543
        %vm546 = vcmp.lt.s32.totalorder %v354, 0
        %v547 = vsub.s32 0, %v354
        %v548 = vsel %vm546, %v547, %v354
        %v549 = vshrl.u32 %v548, 4
        %v550 = vand.u32 %v548, 15
        %v551 = vsub.s32 0, %v550
        %v552 = vsel %vm546, %v551, %v550
        %vm553 = vcmp.lt.s32.totalorder %v355, 0
        %v554 = vsub.s32 0, %v355
        %v555 = vsel %vm553, %v554, %v355
        %v556 = vshrl.u32 %v555, 4
        %v557 = vand.u32 %v555, 15
        %v558 = vsub.s32 0, %v557
        %v559 = vsel %vm553, %v558, %v557
        %vm560 = vcmp.lt.s32.totalorder %v356, 0
        %v561 = vsub.s32 0, %v356
        %v562 = vsel %vm560, %v561, %v356
        %v563 = vshrl.u32 %v562, 4
        %v564 = vand.u32 %v562, 15
        %v565 = vsub.s32 0, %v564
        %v566 = vsel %vm560, %v565, %v564
        %vm567 = vcmp.lt.s32.totalorder %v357, 0
        %v568 = vsub.s32 0, %v357
        %v569 = vsel %vm567, %v568, %v357
        %v570 = vshrl.u32 %v569, 4
        %v571 = vand.u32 %v569, 15
        %v572 = vsub.s32 0, %v571
        %v573 = vsel %vm567, %v572, %v571
        %vm574 = vcmp.lt.s32.totalorder %v358, 0
        %v575 = vsub.s32 0, %v358
        %v576 = vsel %vm574, %v575, %v358
        %v577 = vshrl.u32 %v576, 4
        %v578 = vand.u32 %v576, 15
        %v579 = vsub.s32 0, %v578
        %v580 = vsel %vm574, %v579, %v578
        %vm581 = vcmp.lt.s32.totalorder %v359, 0
        %v582 = vsub.s32 0, %v359
        %v583 = vsel %vm581, %v582, %v359
        %v584 = vshrl.u32 %v583, 4
        %v585 = vand.u32 %v583, 15
        %v586 = vsub.s32 0, %v585
        %v587 = vsel %vm581, %v586, %v585
        %vm588 = vcmp.lt.s32.totalorder %v360, 0
        %v589 = vsub.s32 0, %v360
        %v590 = vsel %vm588, %v589, %v360
        %v591 = vshrl.u32 %v590, 4
        %v592 = vand.u32 %v590, 15
        %v593 = vsub.s32 0, %v592
        %v594 = vsel %vm588, %v593, %v592
        %vm595 = vcmp.lt.s32.totalorder %v361, 0
        %v596 = vsub.s32 0, %v361
        %v597 = vsel %vm595, %v596, %v361
        %v598 = vshrl.u32 %v597, 4
        %v599 = vand.u32 %v597, 15
        %v600 = vsub.s32 0, %v599
        %v601 = vsel %vm595, %v600, %v599
        %vm602 = vcmp.lt.s32.totalorder %v362, 0
        %v603 = vsub.s32 0, %v362
        %v604 = vsel %vm602, %v603, %v362
        %v605 = vshrl.u32 %v604, 4
        %v606 = vand.u32 %v604, 15
        %v607 = vsub.s32 0, %v606
        %v608 = vsel %vm602, %v607, %v606
        %vm609 = vcmp.lt.s32.totalorder %v363, 0
        %v610 = vsub.s32 0, %v363
        %v611 = vsel %vm609, %v610, %v363
        %v612 = vshrl.u32 %v611, 4
        %v613 = vand.u32 %v611, 15
        %v614 = vsub.s32 0, %v613
        %v615 = vsel %vm609, %v614, %v613
        %vm616 = vcmp.ne.s32.totalorder %v370, 0
        %vm617 = vcmp.ne.s32.totalorder %v377, 0
        %vm618 = vcmp.ne.s32.totalorder %v384, 0
        %vm619 = vcmp.ne.s32.totalorder %v391, 0
        %vm620 = vcmp.ne.s32.totalorder %v398, 0
        %vm621 = vcmp.ne.s32.totalorder %v405, 0
        %vm622 = vcmp.ne.s32.totalorder %v412, 0
        %vm623 = vcmp.ne.s32.totalorder %v419, 0
        %vm624 = vcmp.ne.s32.totalorder %v426, 0
        %vm625 = vcmp.ne.s32.totalorder %v433, 0
        %vm626 = vcmp.ne.s32.totalorder %v440, 0
        %vm627 = vcmp.ne.s32.totalorder %v447, 0
        %vm628 = vcmp.ne.s32.totalorder %v454, 0
        %vm629 = vcmp.ne.s32.totalorder %v461, 0
        %vm630 = vcmp.ne.s32.totalorder %v468, 0
        %vm631 = vcmp.ne.s32.totalorder %v475, 0
        %vm632 = vcmp.ne.s32.totalorder %v482, 0
        %vm633 = vcmp.ne.s32.totalorder %v489, 0
        %vm634 = vcmp.ne.s32.totalorder %v496, 0
        %vm635 = vcmp.ne.s32.totalorder %v503, 0
        %vm636 = vcmp.ne.s32.totalorder %v510, 0
        %vm637 = vcmp.ne.s32.totalorder %v517, 0
        %vm638 = vcmp.ne.s32.totalorder %v524, 0
        %vm639 = vcmp.ne.s32.totalorder %v531, 0
        %vm640 = vcmp.ne.s32.totalorder %v538, 0
        %vm641 = vcmp.ne.s32.totalorder %v545, 0
        %vm642 = vcmp.ne.s32.totalorder %v552, 0
        %vm643 = vcmp.ne.s32.totalorder %v559, 0
        %vm644 = vcmp.ne.s32.totalorder %v566, 0
        %vm645 = vcmp.ne.s32.totalorder %v573, 0
        %vm646 = vcmp.ne.s32.totalorder %v580, 0
        %vm647 = vcmp.ne.s32.totalorder %v587, 0
        %vm648 = vcmp.ne.s32.totalorder %v594, 0
        %vm649 = vcmp.ne.s32.totalorder %v601, 0
        %vm650 = vcmp.ne.s32.totalorder %v608, 0
        %vm651 = vcmp.ne.s32.totalorder %v615, 0
        %vm652 = vcmp.lt.s32.totalorder %v370, 0
        %vm653 = vcmp.lt.s32.totalorder %v377, 0
        %vm654 = vcmp.lt.s32.totalorder %v384, 0
        %vm655 = vcmp.lt.s32.totalorder %v391, 0
        %vm656 = vcmp.lt.s32.totalorder %v398, 0
        %vm657 = vcmp.lt.s32.totalorder %v405, 0
        %vm658 = vcmp.lt.s32.totalorder %v412, 0
        %vm659 = vcmp.lt.s32.totalorder %v419, 0
        %vm660 = vcmp.lt.s32.totalorder %v426, 0
        %vm661 = vcmp.lt.s32.totalorder %v433, 0
        %vm662 = vcmp.lt.s32.totalorder %v440, 0
        %vm663 = vcmp.lt.s32.totalorder %v447, 0
        %vm664 = vcmp.lt.s32.totalorder %v454, 0
        %vm665 = vcmp.lt.s32.totalorder %v461, 0
        %vm666 = vcmp.lt.s32.totalorder %v468, 0
        %vm667 = vcmp.lt.s32.totalorder %v475, 0
        %vm668 = vcmp.lt.s32.totalorder %v482, 0
        %vm669 = vcmp.lt.s32.totalorder %v489, 0
        %vm670 = vcmp.lt.s32.totalorder %v496, 0
        %vm671 = vcmp.lt.s32.totalorder %v503, 0
        %vm672 = vcmp.lt.s32.totalorder %v510, 0
        %vm673 = vcmp.lt.s32.totalorder %v517, 0
        %vm674 = vcmp.lt.s32.totalorder %v524, 0
        %vm675 = vcmp.lt.s32.totalorder %v531, 0
        %vm676 = vcmp.lt.s32.totalorder %v538, 0
        %vm677 = vcmp.lt.s32.totalorder %v545, 0
        %vm678 = vcmp.lt.s32.totalorder %v552, 0
        %vm679 = vcmp.lt.s32.totalorder %v559, 0
        %vm680 = vcmp.lt.s32.totalorder %v566, 0
        %vm681 = vcmp.lt.s32.totalorder %v573, 0
        %vm682 = vcmp.lt.s32.totalorder %v580, 0
        %vm683 = vcmp.lt.s32.totalorder %v587, 0
        %vm684 = vcmp.lt.s32.totalorder %v594, 0
        %vm685 = vcmp.lt.s32.totalorder %v601, 0
        %vm686 = vcmp.lt.s32.totalorder %v608, 0
        %vm687 = vcmp.lt.s32.totalorder %v615, 0
        %vm688 = vmand %vm652, %vm616
        %vm689 = vmand %vm653, %vm617
        %vm690 = vmand %vm654, %vm618
        %vm691 = vmand %vm655, %vm619
        %vm692 = vmand %vm656, %vm620
        %vm693 = vmand %vm657, %vm621
        %vm694 = vmand %vm658, %vm622
        %vm695 = vmand %vm659, %vm623
        %vm696 = vmand %vm660, %vm624
        %vm697 = vmand %vm661, %vm625
        %vm698 = vmand %vm662, %vm626
        %vm699 = vmand %vm663, %vm627
        %vm700 = vmand %vm664, %vm628
        %vm701 = vmand %vm665, %vm629
        %vm702 = vmand %vm666, %vm630
        %vm703 = vmand %vm667, %vm631
        %vm704 = vmand %vm668, %vm632
        %vm705 = vmand %vm669, %vm633
        %vm706 = vmand %vm670, %vm634
        %vm707 = vmand %vm671, %vm635
        %vm708 = vmand %vm672, %vm636
        %vm709 = vmand %vm673, %vm637
        %vm710 = vmand %vm674, %vm638
        %vm711 = vmand %vm675, %vm639
        %vm712 = vmand %vm676, %vm640
        %vm713 = vmand %vm677, %vm641
        %vm714 = vmand %vm678, %vm642
        %vm715 = vmand %vm679, %vm643
        %vm716 = vmand %vm680, %vm644
        %vm717 = vmand %vm681, %vm645
        %vm718 = vmand %vm682, %vm646
        %vm719 = vmand %vm683, %vm647
        %vm720 = vmand %vm684, %vm648
        %vm721 = vmand %vm685, %vm649
        %vm722 = vmand %vm686, %vm650
        %vm723 = vmand %vm687, %vm651
        %v724 = vadd.s32 %v370, 16
        %v725 = vadd.s32 %v377, 16
        %v726 = vadd.s32 %v384, 16
        %v727 = vadd.s32 %v391, 16
        %v728 = vadd.s32 %v398, 16
        %v729 = vadd.s32 %v405, 16
        %v730 = vadd.s32 %v412, 16
        %v731 = vadd.s32 %v419, 16
        %v732 = vadd.s32 %v426, 16
        %v733 = vadd.s32 %v433, 16
        %v734 = vadd.s32 %v440, 16
        %v735 = vadd.s32 %v447, 16
        %v736 = vadd.s32 %v454, 16
        %v737 = vadd.s32 %v461, 16
        %v738 = vadd.s32 %v468, 16
        %v739 = vadd.s32 %v475, 16
        %v740 = vadd.s32 %v482, 16
        %v741 = vadd.s32 %v489, 16
        %v742 = vadd.s32 %v496, 16
        %v743 = vadd.s32 %v503, 16
        %v744 = vadd.s32 %v510, 16
        %v745 = vadd.s32 %v517, 16
        %v746 = vadd.s32 %v524, 16
        %v747 = vadd.s32 %v531, 16
        %v748 = vadd.s32 %v538, 16
        %v749 = vadd.s32 %v545, 16
        %v750 = vadd.s32 %v552, 16
        %v751 = vadd.s32 %v559, 16
        %v752 = vadd.s32 %v566, 16
        %v753 = vadd.s32 %v573, 16
        %v754 = vadd.s32 %v580, 16
        %v755 = vadd.s32 %v587, 16
        %v756 = vadd.s32 %v594, 16
        %v757 = vadd.s32 %v601, 16
        %v758 = vadd.s32 %v608, 16
        %v759 = vadd.s32 %v615, 16
        %v760 = vsel %vm688, %v724, %v370
        %v761 = vsel %vm689, %v725, %v377
        %v762 = vsel %vm690, %v726, %v384
        %v763 = vsel %vm691, %v727, %v391
        %v764 = vsel %vm692, %v728, %v398
        %v765 = vsel %vm693, %v729, %v405
        %v766 = vsel %vm694, %v730, %v412
        %v767 = vsel %vm695, %v731, %v419
        %v768 = vsel %vm696, %v732, %v426
        %v769 = vsel %vm697, %v733, %v433
        %v770 = vsel %vm698, %v734, %v440
        %v771 = vsel %vm699, %v735, %v447
        %v772 = vsel %vm700, %v736, %v454
        %v773 = vsel %vm701, %v737, %v461
        %v774 = vsel %vm702, %v738, %v468
        %v775 = vsel %vm703, %v739, %v475
        %v776 = vsel %vm704, %v740, %v482
        %v777 = vsel %vm705, %v741, %v489
        %v778 = vsel %vm706, %v742, %v496
        %v779 = vsel %vm707, %v743, %v503
        %v780 = vsel %vm708, %v744, %v510
        %v781 = vsel %vm709, %v745, %v517
        %v782 = vsel %vm710, %v746, %v524
        %v783 = vsel %vm711, %v747, %v531
        %v784 = vsel %vm712, %v748, %v538
        %v785 = vsel %vm713, %v749, %v545
        %v786 = vsel %vm714, %v750, %v552
        %v787 = vsel %vm715, %v751, %v559
        %v788 = vsel %vm716, %v752, %v566
        %v789 = vsel %vm717, %v753, %v573
        %v790 = vsel %vm718, %v754, %v580
        %v791 = vsel %vm719, %v755, %v587
        %v792 = vsel %vm720, %v756, %v594
        %v793 = vsel %vm721, %v757, %v601
        %v794 = vsel %vm722, %v758, %v608
        %v795 = vsel %vm723, %v759, %v615
        %vm796 = vcmp.eq.s32.totalorder %v760, 0
        %vm797 = vcmp.eq.s32.totalorder %v761, 0
        %vm798 = vcmp.eq.s32.totalorder %v762, 0
        %vm799 = vcmp.eq.s32.totalorder %v763, 0
        %vm800 = vcmp.eq.s32.totalorder %v764, 0
        %vm801 = vcmp.eq.s32.totalorder %v765, 0
        %vm802 = vcmp.eq.s32.totalorder %v766, 0
        %vm803 = vcmp.eq.s32.totalorder %v767, 0
        %vm804 = vcmp.eq.s32.totalorder %v768, 0
        %vm805 = vcmp.eq.s32.totalorder %v769, 0
        %vm806 = vcmp.eq.s32.totalorder %v770, 0
        %vm807 = vcmp.eq.s32.totalorder %v771, 0
        %vm808 = vcmp.eq.s32.totalorder %v772, 0
        %vm809 = vcmp.eq.s32.totalorder %v773, 0
        %vm810 = vcmp.eq.s32.totalorder %v774, 0
        %vm811 = vcmp.eq.s32.totalorder %v775, 0
        %vm812 = vcmp.eq.s32.totalorder %v776, 0
        %vm813 = vcmp.eq.s32.totalorder %v777, 0
        %vm814 = vcmp.eq.s32.totalorder %v778, 0
        %vm815 = vcmp.eq.s32.totalorder %v779, 0
        %vm816 = vcmp.eq.s32.totalorder %v780, 0
        %vm817 = vcmp.eq.s32.totalorder %v781, 0
        %vm818 = vcmp.eq.s32.totalorder %v782, 0
        %vm819 = vcmp.eq.s32.totalorder %v783, 0
        %vm820 = vcmp.eq.s32.totalorder %v784, 0
        %vm821 = vcmp.eq.s32.totalorder %v785, 0
        %vm822 = vcmp.eq.s32.totalorder %v786, 0
        %vm823 = vcmp.eq.s32.totalorder %v787, 0
        %vm824 = vcmp.eq.s32.totalorder %v788, 0
        %vm825 = vcmp.eq.s32.totalorder %v789, 0
        %vm826 = vcmp.eq.s32.totalorder %v790, 0
        %vm827 = vcmp.eq.s32.totalorder %v791, 0
        %vm828 = vcmp.eq.s32.totalorder %v792, 0
        %vm829 = vcmp.eq.s32.totalorder %v793, 0
        %vm830 = vcmp.eq.s32.totalorder %v794, 0
        %vm831 = vcmp.eq.s32.totalorder %v795, 0
        %vm832 = vcmp.eq.s32.totalorder %v760, 15
        %vm833 = vcmp.eq.s32.totalorder %v761, 15
        %vm834 = vcmp.eq.s32.totalorder %v762, 15
        %vm835 = vcmp.eq.s32.totalorder %v763, 15
        %vm836 = vcmp.eq.s32.totalorder %v764, 15
        %vm837 = vcmp.eq.s32.totalorder %v765, 15
        %vm838 = vcmp.eq.s32.totalorder %v766, 15
        %vm839 = vcmp.eq.s32.totalorder %v767, 15
        %vm840 = vcmp.eq.s32.totalorder %v768, 15
        %vm841 = vcmp.eq.s32.totalorder %v769, 15
        %vm842 = vcmp.eq.s32.totalorder %v770, 15
        %vm843 = vcmp.eq.s32.totalorder %v771, 15
        %vm844 = vcmp.eq.s32.totalorder %v772, 15
        %vm845 = vcmp.eq.s32.totalorder %v773, 15
        %vm846 = vcmp.eq.s32.totalorder %v774, 15
        %vm847 = vcmp.eq.s32.totalorder %v775, 15
        %vm848 = vcmp.eq.s32.totalorder %v776, 15
        %vm849 = vcmp.eq.s32.totalorder %v777, 15
        %vm850 = vcmp.eq.s32.totalorder %v778, 15
        %vm851 = vcmp.eq.s32.totalorder %v779, 15
        %vm852 = vcmp.eq.s32.totalorder %v780, 15
        %vm853 = vcmp.eq.s32.totalorder %v781, 15
        %vm854 = vcmp.eq.s32.totalorder %v782, 15
        %vm855 = vcmp.eq.s32.totalorder %v783, 15
        %vm856 = vcmp.eq.s32.totalorder %v784, 15
        %vm857 = vcmp.eq.s32.totalorder %v785, 15
        %vm858 = vcmp.eq.s32.totalorder %v786, 15
        %vm859 = vcmp.eq.s32.totalorder %v787, 15
        %vm860 = vcmp.eq.s32.totalorder %v788, 15
        %vm861 = vcmp.eq.s32.totalorder %v789, 15
        %vm862 = vcmp.eq.s32.totalorder %v790, 15
        %vm863 = vcmp.eq.s32.totalorder %v791, 15
        %vm864 = vcmp.eq.s32.totalorder %v792, 15
        %vm865 = vcmp.eq.s32.totalorder %v793, 15
        %vm866 = vcmp.eq.s32.totalorder %v794, 15
        %vm867 = vcmp.eq.s32.totalorder %v795, 15
        %v868 = vld [vmem:[%s287] sm:$0xff]
        %v869 = vld [vmem:[%s287 + $0x8] sm:$0xff]
        %v870 = vld [vmem:[%s287 + $0x10] sm:$0xff]
        %v871 = vld [vmem:[%s287 + $0x18] sm:$0xff]
        %v872 = vld [vmem:[%s287 + $0x20] sm:$0xff]
        %v873 = vld [vmem:[%s287 + $0x28] sm:$0xff]
        %v874 = vld [vmem:[%s287 + $0x30] sm:$0xff]
        %v875 = vld [vmem:[%s287 + $0x38] sm:$0xff]
        %v876 = vld [vmem:[%s287 + $0x40] sm:$0xff]
        %v877 = vld [vmem:[%s287 + $0x48] sm:$0xff]
        %v878 = vld [vmem:[%s287 + $0x50] sm:$0xff]
        %v879 = vld [vmem:[%s287 + $0x58] sm:$0xff]
        %v880 = vld [vmem:[%s287 + $0x60] sm:$0xff]
        %v881 = vld [vmem:[%s287 + $0x68] sm:$0xff]
        %v882 = vld [vmem:[%s287 + $0x70] sm:$0xff]
        %v883 = vld [vmem:[%s287 + $0x78] sm:$0xff]
        %v884 = vld [vmem:[%s287 + $0x80] sm:$0xff]
        %v885 = vld [vmem:[%s287 + $0x88] sm:$0xff]
        %v886 = vld [vmem:[%s287 + $0x90] sm:$0xff]
        %v887 = vld [vmem:[%s287 + $0x98] sm:$0xff]
        %v888 = vld [vmem:[%s287 + $0xa0] sm:$0xff]
        %v889 = vld [vmem:[%s287 + $0xa8] sm:$0xff]
        %v890 = vld [vmem:[%s287 + $0xb0] sm:$0xff]
        %v891 = vld [vmem:[%s287 + $0xb8] sm:$0xff]
        %v892 = vld [vmem:[%s287 + $0xc0] sm:$0xff]
        %v893 = vld [vmem:[%s287 + $0xc8] sm:$0xff]
        %v894 = vld [vmem:[%s287 + $0xd0] sm:$0xff]
        %v895 = vld [vmem:[%s287 + $0xd8] sm:$0xff]
        %v896 = vld [vmem:[%s287 + $0xe0] sm:$0xff]
        %v897 = vld [vmem:[%s287 + $0xe8] sm:$0xff]
        %v898 = vld [vmem:[%s287 + $0xf0] sm:$0xff]
        %v899 = vld [vmem:[%s287 + $0xf8] sm:$0xff]
        %v900 = vld [vmem:[%s287 + $0x100] sm:$0xff]
        %v901 = vld [vmem:[%s287 + $0x108] sm:$0xff]
        %v902 = vld [vmem:[%s287 + $0x110] sm:$0xff]
        %v903 = vld [vmem:[%s287 + $0x118] sm:$0xff]
        %v904 = vrot.slane %v868, 7
        %v905 = vrot.slane %v869, 7
        %v906 = vrot.slane %v870, 7
        %v907 = vrot.slane %v871, 7
        %v908 = vrot.slane %v872, 7
        %v909 = vrot.slane %v873, 7
        %v910 = vrot.slane %v874, 7
        %v911 = vrot.slane %v875, 7
        %v912 = vrot.slane %v876, 7
        %v913 = vrot.slane %v877, 7
        %v914 = vrot.slane %v878, 7
        %v915 = vrot.slane %v879, 7
        %v916 = vrot.slane %v880, 7
        %v917 = vrot.slane %v881, 7
        %v918 = vrot.slane %v882, 7
        %v919 = vrot.slane %v883, 7
        %v920 = vrot.slane %v884, 7
        %v921 = vrot.slane %v885, 7
        %v922 = vrot.slane %v886, 7
        %v923 = vrot.slane %v887, 7
        %v924 = vrot.slane %v888, 7
        %v925 = vrot.slane %v889, 7
        %v926 = vrot.slane %v890, 7
        %v927 = vrot.slane %v891, 7
        %v928 = vrot.slane %v892, 7
        %v929 = vrot.slane %v893, 7
        %v930 = vrot.slane %v894, 7
        %v931 = vrot.slane %v895, 7
        %v932 = vrot.slane %v896, 7
        %v933 = vrot.slane %v897, 7
        %v934 = vrot.slane %v898, 7
        %v935 = vrot.slane %v899, 7
        %v936 = vrot.slane %v900, 7
        %v937 = vrot.slane %v901, 7
        %v938 = vrot.slane %v902, 7
        %v939 = vrot.slane %v903, 7
        %vm940 = vcmp.lt.s32.totalorder %v328, 1
        %v941 = vsel %vm940, %v938, %v939
        %v942 = vsel %vm940, %v937, %v938
        %v943 = vsel %vm940, %v936, %v937
        %v944 = vsel %vm940, %v935, %v936
        %v945 = vsel %vm940, %v934, %v935
        %v946 = vsel %vm940, %v933, %v934
        %v947 = vsel %vm940, %v932, %v933
        %v948 = vsel %vm940, %v931, %v932
        %v949 = vsel %vm940, %v930, %v931
        %v950 = vsel %vm940, %v929, %v930
        %v951 = vsel %vm940, %v928, %v929
        %v952 = vsel %vm940, %v927, %v928
        %v953 = vsel %vm940, %v926, %v927
        %v954 = vsel %vm940, %v925, %v926
        %v955 = vsel %vm940, %v924, %v925
        %v956 = vsel %vm940, %v923, %v924
        %v957 = vsel %vm940, %v922, %v923
        %v958 = vsel %vm940, %v921, %v922
        %v959 = vsel %vm940, %v920, %v921
        %v960 = vsel %vm940, %v919, %v920
        %v961 = vsel %vm940, %v918, %v919
        %v962 = vsel %vm940, %v917, %v918
        %v963 = vsel %vm940, %v916, %v917
        %v964 = vsel %vm940, %v915, %v916
        %v965 = vsel %vm940, %v914, %v915
        %v966 = vsel %vm940, %v913, %v914
        %v967 = vsel %vm940, %v912, %v913
        %v968 = vsel %vm940, %v911, %v912
        %v969 = vsel %vm940, %v910, %v911
        %v970 = vsel %vm940, %v909, %v910
        %v971 = vsel %vm940, %v908, %v909
        %v972 = vsel %vm940, %v907, %v908
        %v973 = vsel %vm940, %v906, %v907
        %v974 = vsel %vm940, %v905, %v906
        %v975 = vsel %vm940, %v904, %v905
        %v976 = vsel %vm940, %v939, %v904
        %v977 = vsel %vm796, 1, 0
        %v978 = vsel %vm797, 1, 0
        %v979 = vsel %vm798, 1, 0
        %v980 = vsel %vm799, 1, 0
        %v981 = vsel %vm800, 1, 0
        %v982 = vsel %vm801, 1, 0
        %v983 = vsel %vm802, 1, 0
        %v984 = vsel %vm803, 1, 0
        %v985 = vsel %vm804, 1, 0
        %v986 = vsel %vm805, 1, 0
        %v987 = vsel %vm806, 1, 0
        %v988 = vsel %vm807, 1, 0
        %v989 = vsel %vm808, 1, 0
        %v990 = vsel %vm809, 1, 0
        %v991 = vsel %vm810, 1, 0
        %v992 = vsel %vm811, 1, 0
        %v993 = vsel %vm812, 1, 0
        %v994 = vsel %vm813, 1, 0
        %v995 = vsel %vm814, 1, 0
        %v996 = vsel %vm815, 1, 0
        %v997 = vsel %vm816, 1, 0
        %v998 = vsel %vm817, 1, 0
        %v999 = vsel %vm818, 1, 0
        %v1000 = vsel %vm819, 1, 0
        %v1001 = vsel %vm820, 1, 0
        %v1002 = vsel %vm821, 1, 0
        %v1003 = vsel %vm822, 1, 0
        %v1004 = vsel %vm823, 1, 0
        %v1005 = vsel %vm824, 1, 0
        %v1006 = vsel %vm825, 1, 0
        %v1007 = vsel %vm826, 1, 0
        %v1008 = vsel %vm827, 1, 0
        %v1009 = vsel %vm828, 1, 0
        %v1010 = vsel %vm829, 1, 0
        %v1011 = vsel %vm830, 1, 0
        %v1012 = vsel %vm831, 1, 0
        %vm1013 = vcmp.eq.s32.totalorder %v977, 1
        %vm1014 = vcmp.eq.s32.totalorder %v978, 1
        %vm1015 = vcmp.eq.s32.totalorder %v979, 1
        %vm1016 = vcmp.eq.s32.totalorder %v980, 1
        %vm1017 = vcmp.eq.s32.totalorder %v981, 1
        %vm1018 = vcmp.eq.s32.totalorder %v982, 1
        %vm1019 = vcmp.eq.s32.totalorder %v983, 1
        %vm1020 = vcmp.eq.s32.totalorder %v984, 1
        %vm1021 = vcmp.eq.s32.totalorder %v985, 1
        %vm1022 = vcmp.eq.s32.totalorder %v986, 1
        %vm1023 = vcmp.eq.s32.totalorder %v987, 1
        %vm1024 = vcmp.eq.s32.totalorder %v988, 1
        %vm1025 = vcmp.eq.s32.totalorder %v989, 1
        %vm1026 = vcmp.eq.s32.totalorder %v990, 1
        %vm1027 = vcmp.eq.s32.totalorder %v991, 1
        %vm1028 = vcmp.eq.s32.totalorder %v992, 1
        %vm1029 = vcmp.eq.s32.totalorder %v993, 1
        %vm1030 = vcmp.eq.s32.totalorder %v994, 1
        %vm1031 = vcmp.eq.s32.totalorder %v995, 1
        %vm1032 = vcmp.eq.s32.totalorder %v996, 1
        %vm1033 = vcmp.eq.s32.totalorder %v997, 1
        %vm1034 = vcmp.eq.s32.totalorder %v998, 1
        %vm1035 = vcmp.eq.s32.totalorder %v999, 1
        %vm1036 = vcmp.eq.s32.totalorder %v1000, 1
        %vm1037 = vcmp.eq.s32.totalorder %v1001, 1
        %vm1038 = vcmp.eq.s32.totalorder %v1002, 1
        %vm1039 = vcmp.eq.s32.totalorder %v1003, 1
        %vm1040 = vcmp.eq.s32.totalorder %v1004, 1
        %vm1041 = vcmp.eq.s32.totalorder %v1005, 1
        %vm1042 = vcmp.eq.s32.totalorder %v1006, 1
        %vm1043 = vcmp.eq.s32.totalorder %v1007, 1
        %vm1044 = vcmp.eq.s32.totalorder %v1008, 1
        %vm1045 = vcmp.eq.s32.totalorder %v1009, 1
        %vm1046 = vcmp.eq.s32.totalorder %v1010, 1
        %vm1047 = vcmp.eq.s32.totalorder %v1011, 1
        %vm1048 = vcmp.eq.s32.totalorder %v1012, 1
        %v1049 = vsel %vm1013, 0.0, %v976
        %v1050 = vsel %vm1014, 0.0, %v975
        %v1051 = vsel %vm1015, 0.0, %v974
        %v1052 = vsel %vm1016, 0.0, %v973
        %v1053 = vsel %vm1017, 0.0, %v972
        %v1054 = vsel %vm1018, 0.0, %v971
        %v1055 = vsel %vm1019, 0.0, %v970
        %v1056 = vsel %vm1020, 0.0, %v969
        %v1057 = vsel %vm1021, 0.0, %v968
        %v1058 = vsel %vm1022, 0.0, %v967
        %v1059 = vsel %vm1023, 0.0, %v966
        %v1060 = vsel %vm1024, 0.0, %v965
        %v1061 = vsel %vm1025, 0.0, %v964
        %v1062 = vsel %vm1026, 0.0, %v963
        %v1063 = vsel %vm1027, 0.0, %v962
        %v1064 = vsel %vm1028, 0.0, %v961
        %v1065 = vsel %vm1029, 0.0, %v960
        %v1066 = vsel %vm1030, 0.0, %v959
        %v1067 = vsel %vm1031, 0.0, %v958
        %v1068 = vsel %vm1032, 0.0, %v957
        %v1069 = vsel %vm1033, 0.0, %v956
        %v1070 = vsel %vm1034, 0.0, %v955
        %v1071 = vsel %vm1035, 0.0, %v954
        %v1072 = vsel %vm1036, 0.0, %v953
        %v1073 = vsel %vm1037, 0.0, %v952
        %v1074 = vsel %vm1038, 0.0, %v951
        %v1075 = vsel %vm1039, 0.0, %v950
        %v1076 = vsel %vm1040, 0.0, %v949
        %v1077 = vsel %vm1041, 0.0, %v948
        %v1078 = vsel %vm1042, 0.0, %v947
        %v1079 = vsel %vm1043, 0.0, %v946
        %v1080 = vsel %vm1044, 0.0, %v945
        %v1081 = vsel %vm1045, 0.0, %v944
        %v1082 = vsel %vm1046, 0.0, %v943
        %v1083 = vsel %vm1047, 0.0, %v942
        %v1084 = vsel %vm1048, 0.0, %v941
        %v1085 = vrot.slane %v868, 1
        %v1086 = vrot.slane %v869, 1
        %v1087 = vrot.slane %v870, 1
        %v1088 = vrot.slane %v871, 1
        %v1089 = vrot.slane %v872, 1
        %v1090 = vrot.slane %v873, 1
        %v1091 = vrot.slane %v874, 1
        %v1092 = vrot.slane %v875, 1
        %v1093 = vrot.slane %v876, 1
        %v1094 = vrot.slane %v877, 1
        %v1095 = vrot.slane %v878, 1
        %v1096 = vrot.slane %v879, 1
        %v1097 = vrot.slane %v880, 1
        %v1098 = vrot.slane %v881, 1
        %v1099 = vrot.slane %v882, 1
        %v1100 = vrot.slane %v883, 1
        %v1101 = vrot.slane %v884, 1
        %v1102 = vrot.slane %v885, 1
        %v1103 = vrot.slane %v886, 1
        %v1104 = vrot.slane %v887, 1
        %v1105 = vrot.slane %v888, 1
        %v1106 = vrot.slane %v889, 1
        %v1107 = vrot.slane %v890, 1
        %v1108 = vrot.slane %v891, 1
        %v1109 = vrot.slane %v892, 1
        %v1110 = vrot.slane %v893, 1
        %v1111 = vrot.slane %v894, 1
        %v1112 = vrot.slane %v895, 1
        %v1113 = vrot.slane %v896, 1
        %v1114 = vrot.slane %v897, 1
        %v1115 = vrot.slane %v898, 1
        %v1116 = vrot.slane %v899, 1
        %v1117 = vrot.slane %v900, 1
        %v1118 = vrot.slane %v901, 1
        %v1119 = vrot.slane %v902, 1
        %v1120 = vrot.slane %v903, 1
        %vm1121 = vcmp.lt.s32.totalorder %v328, 7
        %v1122 = vsel %vm1121, %v1119, %v1120
        %v1123 = vsel %vm1121, %v1118, %v1119
        %v1124 = vsel %vm1121, %v1117, %v1118
        %v1125 = vsel %vm1121, %v1116, %v1117
        %v1126 = vsel %vm1121, %v1115, %v1116
        %v1127 = vsel %vm1121, %v1114, %v1115
        %v1128 = vsel %vm1121, %v1113, %v1114
        %v1129 = vsel %vm1121, %v1112, %v1113
        %v1130 = vsel %vm1121, %v1111, %v1112
        %v1131 = vsel %vm1121, %v1110, %v1111
        %v1132 = vsel %vm1121, %v1109, %v1110
        %v1133 = vsel %vm1121, %v1108, %v1109
        %v1134 = vsel %vm1121, %v1107, %v1108
        %v1135 = vsel %vm1121, %v1106, %v1107
        %v1136 = vsel %vm1121, %v1105, %v1106
        %v1137 = vsel %vm1121, %v1104, %v1105
        %v1138 = vsel %vm1121, %v1103, %v1104
        %v1139 = vsel %vm1121, %v1102, %v1103
        %v1140 = vsel %vm1121, %v1101, %v1102
        %v1141 = vsel %vm1121, %v1100, %v1101
        %v1142 = vsel %vm1121, %v1099, %v1100
        %v1143 = vsel %vm1121, %v1098, %v1099
        %v1144 = vsel %vm1121, %v1097, %v1098
        %v1145 = vsel %vm1121, %v1096, %v1097
        %v1146 = vsel %vm1121, %v1095, %v1096
        %v1147 = vsel %vm1121, %v1094, %v1095
        %v1148 = vsel %vm1121, %v1093, %v1094
        %v1149 = vsel %vm1121, %v1092, %v1093
        %v1150 = vsel %vm1121, %v1091, %v1092
        %v1151 = vsel %vm1121, %v1090, %v1091
        %v1152 = vsel %vm1121, %v1089, %v1090
        %v1153 = vsel %vm1121, %v1088, %v1089
        %v1154 = vsel %vm1121, %v1087, %v1088
        %v1155 = vsel %vm1121, %v1086, %v1087
        %v1156 = vsel %vm1121, %v1085, %v1086
        %v1157 = vsel %vm1121, %v1120, %v1085
        %v1158 = vsel %vm832, 1, 0
        %v1159 = vsel %vm833, 1, 0
        %v1160 = vsel %vm834, 1, 0
        %v1161 = vsel %vm835, 1, 0
        %v1162 = vsel %vm836, 1, 0
        %v1163 = vsel %vm837, 1, 0
        %v1164 = vsel %vm838, 1, 0
        %v1165 = vsel %vm839, 1, 0
        %v1166 = vsel %vm840, 1, 0
        %v1167 = vsel %vm841, 1, 0
        %v1168 = vsel %vm842, 1, 0
        %v1169 = vsel %vm843, 1, 0
        %v1170 = vsel %vm844, 1, 0
        %v1171 = vsel %vm845, 1, 0
        %v1172 = vsel %vm846, 1, 0
        %v1173 = vsel %vm847, 1, 0
        %v1174 = vsel %vm848, 1, 0
        %v1175 = vsel %vm849, 1, 0
        %v1176 = vsel %vm850, 1, 0
        %v1177 = vsel %vm851, 1, 0
        %v1178 = vsel %vm852, 1, 0
        %v1179 = vsel %vm853, 1, 0
        %v1180 = vsel %vm854, 1, 0
        %v1181 = vsel %vm855, 1, 0
        %v1182 = vsel %vm856, 1, 0
        %v1183 = vsel %vm857, 1, 0
        %v1184 = vsel %vm858, 1, 0
        %v1185 = vsel %vm859, 1, 0
        %v1186 = vsel %vm860, 1, 0
        %v1187 = vsel %vm861, 1, 0
        %v1188 = vsel %vm862, 1, 0
        %v1189 = vsel %vm863, 1, 0
        %v1190 = vsel %vm864, 1, 0
        %v1191 = vsel %vm865, 1, 0
        %v1192 = vsel %vm866, 1, 0
        %v1193 = vsel %vm867, 1, 0
        %vm1194 = vcmp.eq.s32.totalorder %v1158, 1
        %vm1195 = vcmp.eq.s32.totalorder %v1159, 1
        %vm1196 = vcmp.eq.s32.totalorder %v1160, 1
        %vm1197 = vcmp.eq.s32.totalorder %v1161, 1
        %vm1198 = vcmp.eq.s32.totalorder %v1162, 1
        %vm1199 = vcmp.eq.s32.totalorder %v1163, 1
        %vm1200 = vcmp.eq.s32.totalorder %v1164, 1
        %vm1201 = vcmp.eq.s32.totalorder %v1165, 1
        %vm1202 = vcmp.eq.s32.totalorder %v1166, 1
        %vm1203 = vcmp.eq.s32.totalorder %v1167, 1
        %vm1204 = vcmp.eq.s32.totalorder %v1168, 1
        %vm1205 = vcmp.eq.s32.totalorder %v1169, 1
        %vm1206 = vcmp.eq.s32.totalorder %v1170, 1
        %vm1207 = vcmp.eq.s32.totalorder %v1171, 1
        %vm1208 = vcmp.eq.s32.totalorder %v1172, 1
        %vm1209 = vcmp.eq.s32.totalorder %v1173, 1
        %vm1210 = vcmp.eq.s32.totalorder %v1174, 1
        %vm1211 = vcmp.eq.s32.totalorder %v1175, 1
        %vm1212 = vcmp.eq.s32.totalorder %v1176, 1
        %vm1213 = vcmp.eq.s32.totalorder %v1177, 1
        %vm1214 = vcmp.eq.s32.totalorder %v1178, 1
        %vm1215 = vcmp.eq.s32.totalorder %v1179, 1
        %vm1216 = vcmp.eq.s32.totalorder %v1180, 1
        %vm1217 = vcmp.eq.s32.totalorder %v1181, 1
        %vm1218 = vcmp.eq.s32.totalorder %v1182, 1
        %vm1219 = vcmp.eq.s32.totalorder %v1183, 1
        %vm1220 = vcmp.eq.s32.totalorder %v1184, 1
        %vm1221 = vcmp.eq.s32.totalorder %v1185, 1
        %vm1222 = vcmp.eq.s32.totalorder %v1186, 1
        %vm1223 = vcmp.eq.s32.totalorder %v1187, 1
        %vm1224 = vcmp.eq.s32.totalorder %v1188, 1
        %vm1225 = vcmp.eq.s32.totalorder %v1189, 1
        %vm1226 = vcmp.eq.s32.totalorder %v1190, 1
        %vm1227 = vcmp.eq.s32.totalorder %v1191, 1
        %vm1228 = vcmp.eq.s32.totalorder %v1192, 1
        %vm1229 = vcmp.eq.s32.totalorder %v1193, 1
        %v1230 = vsel %vm1194, 0.0, %v1156
        %v1231 = vsel %vm1195, 0.0, %v1155
        %v1232 = vsel %vm1196, 0.0, %v1154
        %v1233 = vsel %vm1197, 0.0, %v1153
        %v1234 = vsel %vm1198, 0.0, %v1152
        %v1235 = vsel %vm1199, 0.0, %v1151
        %v1236 = vsel %vm1200, 0.0, %v1150
        %v1237 = vsel %vm1201, 0.0, %v1149
        %v1238 = vsel %vm1202, 0.0, %v1148
        %v1239 = vsel %vm1203, 0.0, %v1147
        %v1240 = vsel %vm1204, 0.0, %v1146
        %v1241 = vsel %vm1205, 0.0, %v1145
        %v1242 = vsel %vm1206, 0.0, %v1144
        %v1243 = vsel %vm1207, 0.0, %v1143
        %v1244 = vsel %vm1208, 0.0, %v1142
        %v1245 = vsel %vm1209, 0.0, %v1141
        %v1246 = vsel %vm1210, 0.0, %v1140
        %v1247 = vsel %vm1211, 0.0, %v1139
        %v1248 = vsel %vm1212, 0.0, %v1138
        %v1249 = vsel %vm1213, 0.0, %v1137
        %v1250 = vsel %vm1214, 0.0, %v1136
        %v1251 = vsel %vm1215, 0.0, %v1135
        %v1252 = vsel %vm1216, 0.0, %v1134
        %v1253 = vsel %vm1217, 0.0, %v1133
        %v1254 = vsel %vm1218, 0.0, %v1132
        %v1255 = vsel %vm1219, 0.0, %v1131
        %v1256 = vsel %vm1220, 0.0, %v1130
        %v1257 = vsel %vm1221, 0.0, %v1129
        %v1258 = vsel %vm1222, 0.0, %v1128
        %v1259 = vsel %vm1223, 0.0, %v1127
        %v1260 = vsel %vm1224, 0.0, %v1126
        %v1261 = vsel %vm1225, 0.0, %v1125
        %v1262 = vsel %vm1226, 0.0, %v1124
        %v1263 = vsel %vm1227, 0.0, %v1123
        %v1264 = vsel %vm1228, 0.0, %v1122
        %v1265 = vsel %vm1229, 0.0, %v1157
        %v1266 = vpack.c.bf16 %v1050, %v1049
        %v1267 = vpack.c.bf16 %v1052, %v1051
        %v1268 = vpack.c.bf16 %v1054, %v1053
        %v1269 = vpack.c.bf16 %v1056, %v1055
        %v1270 = vpack.c.bf16 %v1058, %v1057
        %v1271 = vpack.c.bf16 %v1060, %v1059
        %v1272 = vpack.c.bf16 %v1062, %v1061
        %v1273 = vpack.c.bf16 %v1064, %v1063
        %v1274 = vpack.c.bf16 %v1066, %v1065
        %v1275 = vpack.c.bf16 %v1068, %v1067
        %v1276 = vpack.c.bf16 %v1070, %v1069
        %v1277 = vpack.c.bf16 %v1072, %v1071
        %v1278 = vpack.c.bf16 %v1074, %v1073
        %v1279 = vpack.c.bf16 %v1076, %v1075
        %v1280 = vpack.c.bf16 %v1078, %v1077
        %v1281 = vpack.c.bf16 %v1080, %v1079
        %v1282 = vpack.c.bf16 %v1082, %v1081
        %v1283 = vpack.c.bf16 %v1084, %v1083
        %v1284 = vpack.c.bf16 %v869, %v868
        %v1285 = vpack.c.bf16 %v871, %v870
        %v1286 = vpack.c.bf16 %v873, %v872
        %v1287 = vpack.c.bf16 %v875, %v874
        %v1288 = vpack.c.bf16 %v877, %v876
        %v1289 = vpack.c.bf16 %v879, %v878
        %v1290 = vpack.c.bf16 %v881, %v880
        %v1291 = vpack.c.bf16 %v883, %v882
        %v1292 = vpack.c.bf16 %v885, %v884
        %v1293 = vpack.c.bf16 %v887, %v886
        %v1294 = vpack.c.bf16 %v889, %v888
        %v1295 = vpack.c.bf16 %v891, %v890
        %v1296 = vpack.c.bf16 %v893, %v892
        %v1297 = vpack.c.bf16 %v895, %v894
        %v1298 = vpack.c.bf16 %v897, %v896
        %v1299 = vpack.c.bf16 %v899, %v898
        %v1300 = vpack.c.bf16 %v901, %v900
        %v1301 = vpack.c.bf16 %v903, %v902
        %v1302 = vpack.c.bf16 %v1231, %v1230
        %v1303 = vpack.c.bf16 %v1233, %v1232
        %v1304 = vpack.c.bf16 %v1235, %v1234
        %v1305 = vpack.c.bf16 %v1237, %v1236
        %v1306 = vpack.c.bf16 %v1239, %v1238
        %v1307 = vpack.c.bf16 %v1241, %v1240
        %v1308 = vpack.c.bf16 %v1243, %v1242
        %v1309 = vpack.c.bf16 %v1245, %v1244
        %v1310 = vpack.c.bf16 %v1247, %v1246
        %v1311 = vpack.c.bf16 %v1249, %v1248
        %v1312 = vpack.c.bf16 %v1251, %v1250
        %v1313 = vpack.c.bf16 %v1253, %v1252
        %v1314 = vpack.c.bf16 %v1255, %v1254
        %v1315 = vpack.c.bf16 %v1257, %v1256
        %v1316 = vpack.c.bf16 %v1259, %v1258
        %v1317 = vpack.c.bf16 %v1261, %v1260
        %v1318 = vpack.c.bf16 %v1263, %v1262
        %v1319 = vpack.c.bf16 %v1265, %v1264
        %v1320 = vld [vmem:[#allocation6] sm:$0xf]
        %v1321 = vld [vmem:[#allocation6 + $0x4] sm:$0xf]
        %v1322 = vld [vmem:[#allocation6 + $0x8] sm:$0xf]
        %v1323 = vld [vmem:[#allocation6 + $0xc] sm:$0xf]
        %v1324 = vld [vmem:[#allocation6 + $0x10] sm:$0xf]
        %v1325 = vld [vmem:[#allocation6 + $0x14] sm:$0xf]
        %v1326 = vld [vmem:[#allocation6 + $0x18] sm:$0xf]
        %v1327 = vld [vmem:[#allocation6 + $0x1c] sm:$0xf]
        %v1328 = vld [vmem:[#allocation6 + $0x20] sm:$0xf]
        %v1329 = vld [vmem:[#allocation6 + $0x24] sm:$0xf]
        %v1330 = vld [vmem:[#allocation6 + $0x28] sm:$0xf]
        %v1331 = vld [vmem:[#allocation6 + $0x2c] sm:$0xf]
        %v1332 = vld [vmem:[#allocation6 + $0x30] sm:$0xf]
        %v1333 = vld [vmem:[#allocation6 + $0x34] sm:$0xf]
        %v1334 = vld [vmem:[#allocation6 + $0x38] sm:$0xf]
        %v1335 = vld [vmem:[#allocation6 + $0x3c] sm:$0xf]
        %s1336 = scalar_lea.vmem [#allocation6], 64
        %v1337 = vld [vmem:[%s1336] sm:$0xf]
        %v1338 = vld [vmem:[%s1336 + $0x4] sm:$0xf]
        %v1339 = vld [vmem:[%s1336 + $0x8] sm:$0xf]
        %v1340 = vld [vmem:[%s1336 + $0xc] sm:$0xf]
        %v1341 = vld [vmem:[%s1336 + $0x10] sm:$0xf]
        %v1342 = vld [vmem:[%s1336 + $0x14] sm:$0xf]
        %v1343 = vld [vmem:[%s1336 + $0x18] sm:$0xf]
        %v1344 = vld [vmem:[%s1336 + $0x1c] sm:$0xf]
        %v1345 = vld [vmem:[%s1336 + $0x20] sm:$0xf]
        %v1346 = vld [vmem:[%s1336 + $0x24] sm:$0xf]
        %v1347 = vld [vmem:[%s1336 + $0x28] sm:$0xf]
        %v1348 = vld [vmem:[%s1336 + $0x2c] sm:$0xf]
        %v1349 = vld [vmem:[%s1336 + $0x30] sm:$0xf]
        %v1350 = vld [vmem:[%s1336 + $0x34] sm:$0xf]
        %v1351 = vld [vmem:[%s1336 + $0x38] sm:$0xf]
        %v1352 = vld [vmem:[%s1336 + $0x3c] sm:$0xf]
        %v1369 = vunpack.c.l.b16 %v1337
        %v1370 = vunpack.c.l.b16 %v1338
        %v1371 = vunpack.c.l.b16 %v1339
        %v1372 = vunpack.c.l.b16 %v1340
        %v1373 = vunpack.c.l.b16 %v1341
        %v1374 = vunpack.c.l.b16 %v1342
        %v1375 = vunpack.c.l.b16 %v1343
        %v1376 = vunpack.c.l.b16 %v1344
        %v1377 = vunpack.c.l.b16 %v1345
        %v1378 = vunpack.c.l.b16 %v1346
        %v1379 = vunpack.c.l.b16 %v1347
        %v1380 = vunpack.c.l.b16 %v1348
        %v1381 = vunpack.c.l.b16 %v1349
        %v1382 = vunpack.c.l.b16 %v1350
        %v1383 = vunpack.c.l.b16 %v1351
        %v1384 = vunpack.c.l.b16 %v1352
        %v1385 = vpack.c.b16 %v1370, %v1369
        %v1386 = vpack.c.b16 %v1372, %v1371
        %v1387 = vpack.c.b16 %v1374, %v1373
        %v1388 = vpack.c.b16 %v1376, %v1375
        %v1389 = vpack.c.b16 %v1378, %v1377
        %v1390 = vpack.c.b16 %v1380, %v1379
        %v1391 = vpack.c.b16 %v1382, %v1381
        %v1392 = vpack.c.b16 %v1384, %v1383
        %1401 = vmatprep.subr.bf16.mxu0 0
        %1402 = vmatpush1.bf16.msra.mxu0 %v1385
        %1403 = vmatprep.subr.bf16.mxu0 0
        %1404 = vmatpush1.bf16.msra.mxu0 %v1386
        %1405 = vmatprep.subr.bf16.mxu0 0
        %1406 = vmatpush1.bf16.msra.mxu0 %v1387
        %1407 = vmatprep.subr.bf16.mxu0 0
        %1408 = vmatpush1.bf16.msra.mxu0 %v1388
        %1409 = vmatprep.subr.bf16.mxu0 0
        %1410 = vmatpush1.bf16.msra.mxu0 %v1389
        %1411 = vmatprep.subr.bf16.mxu0 0
        %1412 = vmatpush1.bf16.msra.mxu0 %v1390
        %1413 = vmatprep.subr.bf16.mxu0 0
        %1414 = vmatpush1.bf16.msra.mxu0 %v1391
        %1415 = vmatprep.subr.bf16.mxu0 0
        %1416 = vmatpush1.bf16.msra.mxu0 %v1392
        %1417 = vmatprep.subr.bf16.mxu0 0
        %1418 = vmatpush1.bf16.msra.mxu0 0
        %1419 = vmatprep.subr.bf16.mxu0 0
        %1420 = vmatpush1.bf16.msra.mxu0 0
        %1421 = vmatprep.subr.bf16.mxu0 0
        %1422 = vmatpush1.bf16.msra.mxu0 0
        %1423 = vmatprep.subr.bf16.mxu0 0
        %1424 = vmatpush1.bf16.msra.mxu0 0
        %1425 = vmatprep.subr.bf16.mxu0 0
        %1426 = vmatpush1.bf16.msra.mxu0 0
        %1427 = vmatprep.subr.bf16.mxu0 0
        %1428 = vmatpush1.bf16.msra.mxu0 0
        %1429 = vmatprep.subr.bf16.mxu0 0
        %1430 = vmatpush1.bf16.msra.mxu0 0
        %1431 = vmatprep.subr.bf16.mxu0 0
        %1432 = vmatpush1.bf16.msra.mxu0 0
        %1433 = vmatprep.mubr.bf16.mxu0 0
        %1434 = vmatmul.mubr.bf16.gmra.mrb[0].mxu0 %v1284
        %v1435 = vpop.f32.mrb[0].mxu0
        %v1436 = vadd.f32 0.0, %v1435
        %v1437 = vpop.f32.mrb[0].mxu0
        %v1438 = vpop.f32.mrb[0].mxu0
        %v1439 = vadd.f32 0.0, %v1438
        %v1440 = vpop.f32.mrb[0].mxu0
        %1441 = vmatprep.mubr.bf16.mxu0 0
        %1442 = vmatmul.mubr.bf16.gmra.mrb[0].mxu0 %v1285
        %v1443 = vpop.f32.mrb[0].mxu0
        %v1444 = vadd.f32 0.0, %v1443
        %v1445 = vpop.f32.mrb[0].mxu0
        %v1446 = vpop.f32.mrb[0].mxu0
        %v1447 = vadd.f32 0.0, %v1446
        %v1448 = vpop.f32.mrb[0].mxu0
        %1449 = vmatprep.mubr.bf16.mxu0 0
        %1450 = vmatmul.mubr.bf16.gmra.mrb[0].mxu0 %v1286
        %v1451 = vpop.f32.mrb[0].mxu0
        %v1452 = vadd.f32 0.0, %v1451
        %v1453 = vpop.f32.mrb[0].mxu0
        %v1454 = vpop.f32.mrb[0].mxu0
        %v1455 = vadd.f32 0.0, %v1454
        %v1456 = vpop.f32.mrb[0].mxu0
        %1457 = vmatprep.mubr.bf16.mxu0 0
        %1458 = vmatmul.mubr.bf16.gmra.mrb[0].mxu0 %v1287
        %v1459 = vpop.f32.mrb[0].mxu0
        %v1460 = vadd.f32 0.0, %v1459
        %v1461 = vpop.f32.mrb[0].mxu0
        %v1462 = vpop.f32.mrb[0].mxu0
        %v1463 = vadd.f32 0.0, %v1462
        %v1464 = vpop.f32.mrb[0].mxu0
        %1465 = vmatprep.mubr.bf16.mxu0 0
        %1466 = vmatmul.mubr.bf16.gmra.mrb[0].mxu0 %v1288
        %v1467 = vpop.f32.mrb[0].mxu0
        %v1468 = vadd.f32 0.0, %v1467
        %v1469 = vpop.f32.mrb[0].mxu0
        %v1470 = vpop.f32.mrb[0].mxu0
        %v1471 = vadd.f32 0.0, %v1470
        %v1472 = vpop.f32.mrb[0].mxu0
        %1473 = vmatprep.mubr.bf16.mxu0 0
        %1474 = vmatmul.mubr.bf16.gmra.mrb[0].mxu0 %v1289
        %v1475 = vpop.f32.mrb[0].mxu0
        %v1476 = vadd.f32 0.0, %v1475
        %v1477 = vpop.f32.mrb[0].mxu0
        %v1478 = vpop.f32.mrb[0].mxu0
        %v1479 = vadd.f32 0.0, %v1478
        %v1480 = vpop.f32.mrb[0].mxu0
        %1481 = vmatprep.mubr.bf16.mxu0 0
        %1482 = vmatmul.mubr.bf16.gmra.mrb[0].mxu0 %v1290
        %v1483 = vpop.f32.mrb[0].mxu0
        %v1484 = vadd.f32 0.0, %v1483
        %v1485 = vpop.f32.mrb[0].mxu0
        %v1486 = vpop.f32.mrb[0].mxu0
        %v1487 = vadd.f32 0.0, %v1486
        %v1488 = vpop.f32.mrb[0].mxu0
        %1489 = vmatprep.mubr.bf16.mxu0 0
        %1490 = vmatmul.mubr.bf16.gmra.mrb[0].mxu0 %v1291
        %v1491 = vpop.f32.mrb[0].mxu0
        %v1492 = vadd.f32 0.0, %v1491
        %v1493 = vpop.f32.mrb[0].mxu0
        %v1494 = vpop.f32.mrb[0].mxu0
        %v1495 = vadd.f32 0.0, %v1494
        %v1496 = vpop.f32.mrb[0].mxu0
        %1497 = vmatprep.mubr.bf16.mxu0 0
        %1498 = vmatmul.mubr.bf16.gmra.mrb[0].mxu0 %v1292
        %v1499 = vpop.f32.mrb[0].mxu0
        %v1500 = vadd.f32 0.0, %v1499
        %v1501 = vpop.f32.mrb[0].mxu0
        %v1502 = vpop.f32.mrb[0].mxu0
        %v1503 = vadd.f32 0.0, %v1502
        %v1504 = vpop.f32.mrb[0].mxu0
        %1505 = vmatprep.mubr.bf16.mxu0 0
        %1506 = vmatmul.mubr.bf16.gmra.mrb[0].mxu0 %v1293
        %v1507 = vpop.f32.mrb[0].mxu0
        %v1508 = vadd.f32 0.0, %v1507
        %v1509 = vpop.f32.mrb[0].mxu0
        %v1510 = vpop.f32.mrb[0].mxu0
        %v1511 = vadd.f32 0.0, %v1510
        %v1512 = vpop.f32.mrb[0].mxu0
        %1513 = vmatprep.mubr.bf16.mxu0 0
        %1514 = vmatmul.mubr.bf16.gmra.mrb[0].mxu0 %v1294
        %v1515 = vpop.f32.mrb[0].mxu0
        %v1516 = vadd.f32 0.0, %v1515
        %v1517 = vpop.f32.mrb[0].mxu0
        %v1518 = vpop.f32.mrb[0].mxu0
        %v1519 = vadd.f32 0.0, %v1518
        %v1520 = vpop.f32.mrb[0].mxu0
        %1521 = vmatprep.mubr.bf16.mxu0 0
        %1522 = vmatmul.mubr.bf16.gmra.mrb[0].mxu0 %v1295
        %v1523 = vpop.f32.mrb[0].mxu0
        %v1524 = vadd.f32 0.0, %v1523
        %v1525 = vpop.f32.mrb[0].mxu0
        %v1526 = vpop.f32.mrb[0].mxu0
        %v1527 = vadd.f32 0.0, %v1526
        %v1528 = vpop.f32.mrb[0].mxu0
        %1529 = vmatprep.mubr.bf16.mxu0 0
        %1530 = vmatmul.mubr.bf16.gmra.mrb[0].mxu0 %v1296
        %v1531 = vpop.f32.mrb[0].mxu0
        %v1532 = vadd.f32 0.0, %v1531
        %v1533 = vpop.f32.mrb[0].mxu0
        %v1534 = vpop.f32.mrb[0].mxu0
        %v1535 = vadd.f32 0.0, %v1534
        %v1536 = vpop.f32.mrb[0].mxu0
        %1537 = vmatprep.mubr.bf16.mxu0 0
        %1538 = vmatmul.mubr.bf16.gmra.mrb[0].mxu0 %v1297
        %v1539 = vpop.f32.mrb[0].mxu0
        %v1540 = vadd.f32 0.0, %v1539
        %v1541 = vpop.f32.mrb[0].mxu0
        %v1542 = vpop.f32.mrb[0].mxu0
        %v1543 = vadd.f32 0.0, %v1542
        %v1544 = vpop.f32.mrb[0].mxu0
        %1545 = vmatprep.mubr.bf16.mxu0 0
        %1546 = vmatmul.mubr.bf16.gmra.mrb[0].mxu0 %v1298
        %v1547 = vpop.f32.mrb[0].mxu0
        %v1548 = vadd.f32 0.0, %v1547
        %v1549 = vpop.f32.mrb[0].mxu0
        %v1550 = vpop.f32.mrb[0].mxu0
        %v1551 = vadd.f32 0.0, %v1550
        %v1552 = vpop.f32.mrb[0].mxu0
        %1553 = vmatprep.mubr.bf16.mxu0 0
        %1554 = vmatmul.mubr.bf16.gmra.mrb[0].mxu0 %v1299
        %v1555 = vpop.f32.mrb[0].mxu0
        %v1556 = vadd.f32 0.0, %v1555
        %v1557 = vpop.f32.mrb[0].mxu0
        %v1558 = vpop.f32.mrb[0].mxu0
        %v1559 = vadd.f32 0.0, %v1558
        %v1560 = vpop.f32.mrb[0].mxu0
        %1561 = vdwg.mxu0
        %v1578 = vunpack.c.l.b16 %v1320
        %v1579 = vunpack.c.l.b16 %v1321
        %v1580 = vunpack.c.l.b16 %v1322
        %v1581 = vunpack.c.l.b16 %v1323
        %v1582 = vunpack.c.l.b16 %v1324
        %v1583 = vunpack.c.l.b16 %v1325
        %v1584 = vunpack.c.l.b16 %v1326
        %v1585 = vunpack.c.l.b16 %v1327
        %v1586 = vunpack.c.l.b16 %v1328
        %v1587 = vunpack.c.l.b16 %v1329
        %v1588 = vunpack.c.l.b16 %v1330
        %v1589 = vunpack.c.l.b16 %v1331
        %v1590 = vunpack.c.l.b16 %v1332
        %v1591 = vunpack.c.l.b16 %v1333
        %v1592 = vunpack.c.l.b16 %v1334
        %v1593 = vunpack.c.l.b16 %v1335
        %v1594 = vpack.c.b16 %v1579, %v1578
        %v1595 = vpack.c.b16 %v1581, %v1580
        %v1596 = vpack.c.b16 %v1583, %v1582
        %v1597 = vpack.c.b16 %v1585, %v1584
        %v1598 = vpack.c.b16 %v1587, %v1586
        %v1599 = vpack.c.b16 %v1589, %v1588
        %v1600 = vpack.c.b16 %v1591, %v1590
        %v1601 = vpack.c.b16 %v1593, %v1592
        %1610 = vmatprep.subr.bf16.mxu0 0
        %1611 = vmatpush1.bf16.msra.mxu0 %v1594
        %1612 = vmatprep.subr.bf16.mxu0 0
        %1613 = vmatpush1.bf16.msra.mxu0 %v1595
        %1614 = vmatprep.subr.bf16.mxu0 0
        %1615 = vmatpush1.bf16.msra.mxu0 %v1596
        %1616 = vmatprep.subr.bf16.mxu0 0
        %1617 = vmatpush1.bf16.msra.mxu0 %v1597
        %1618 = vmatprep.subr.bf16.mxu0 0
        %1619 = vmatpush1.bf16.msra.mxu0 %v1598
        %1620 = vmatprep.subr.bf16.mxu0 0
        %1621 = vmatpush1.bf16.msra.mxu0 %v1599
        %1622 = vmatprep.subr.bf16.mxu0 0
        %1623 = vmatpush1.bf16.msra.mxu0 %v1600
        %1624 = vmatprep.subr.bf16.mxu0 0
        %1625 = vmatpush1.bf16.msra.mxu0 %v1601
        %1626 = vmatprep.subr.bf16.mxu0 0
        %1627 = vmatpush1.bf16.msra.mxu0 0
        %1628 = vmatprep.subr.bf16.mxu0 0
        %1629 = vmatpush1.bf16.msra.mxu0 0
        %1630 = vmatprep.subr.bf16.mxu0 0
        %1631 = vmatpush1.bf16.msra.mxu0 0
        %1632 = vmatprep.subr.bf16.mxu0 0
        %1633 = vmatpush1.bf16.msra.mxu0 0
        %1634 = vmatprep.subr.bf16.mxu0 0
        %1635 = vmatpush1.bf16.msra.mxu0 0
        %1636 = vmatprep.subr.bf16.mxu0 0
        %1637 = vmatpush1.bf16.msra.mxu0 0
        %1638 = vmatprep.subr.bf16.mxu0 0
        %1639 = vmatpush1.bf16.msra.mxu0 0
        %1640 = vmatprep.subr.bf16.mxu0 0
        %1641 = vmatpush1.bf16.msra.mxu0 0
        %1642 = vmatprep.mubr.bf16.mxu0 0
        %1643 = vmatmul.mubr.bf16.gmra.mrb[0].mxu0 %v1266
        %v1644 = vpop.f32.mrb[0].mxu0
        %v1645 = vadd.f32 %v1436, %v1644
        %v1646 = vpop.f32.mrb[0].mxu0
        %v1647 = vpop.f32.mrb[0].mxu0
        %v1648 = vadd.f32 %v1439, %v1647
        %v1649 = vpop.f32.mrb[0].mxu0
        %1650 = vmatprep.mubr.bf16.mxu0 0
        %1651 = vmatmul.mubr.bf16.gmra.mrb[0].mxu0 %v1267
        %v1652 = vpop.f32.mrb[0].mxu0
        %v1653 = vadd.f32 %v1444, %v1652
        %v1654 = vpop.f32.mrb[0].mxu0
        %v1655 = vpop.f32.mrb[0].mxu0
        %v1656 = vadd.f32 %v1447, %v1655
        %v1657 = vpop.f32.mrb[0].mxu0
        %1658 = vmatprep.mubr.bf16.mxu0 0
        %1659 = vmatmul.mubr.bf16.gmra.mrb[0].mxu0 %v1268
        %v1660 = vpop.f32.mrb[0].mxu0
        %v1661 = vadd.f32 %v1452, %v1660
        %v1662 = vpop.f32.mrb[0].mxu0
        %v1663 = vpop.f32.mrb[0].mxu0
        %v1664 = vadd.f32 %v1455, %v1663
        %v1665 = vpop.f32.mrb[0].mxu0
        %1666 = vmatprep.mubr.bf16.mxu0 0
        %1667 = vmatmul.mubr.bf16.gmra.mrb[0].mxu0 %v1269
        %v1668 = vpop.f32.mrb[0].mxu0
        %v1669 = vadd.f32 %v1460, %v1668
        %v1670 = vpop.f32.mrb[0].mxu0
        %v1671 = vpop.f32.mrb[0].mxu0
        %v1672 = vadd.f32 %v1463, %v1671
        %v1673 = vpop.f32.mrb[0].mxu0
        %1674 = vmatprep.mubr.bf16.mxu0 0
        %1675 = vmatmul.mubr.bf16.gmra.mrb[0].mxu0 %v1270
        %v1676 = vpop.f32.mrb[0].mxu0
        %v1677 = vadd.f32 %v1468, %v1676
        %v1678 = vpop.f32.mrb[0].mxu0
        %v1679 = vpop.f32.mrb[0].mxu0
        %v1680 = vadd.f32 %v1471, %v1679
        %v1681 = vpop.f32.mrb[0].mxu0
        %1682 = vmatprep.mubr.bf16.mxu0 0
        %1683 = vmatmul.mubr.bf16.gmra.mrb[0].mxu0 %v1271
        %v1684 = vpop.f32.mrb[0].mxu0
        %v1685 = vadd.f32 %v1476, %v1684
        %v1686 = vpop.f32.mrb[0].mxu0
        %v1687 = vpop.f32.mrb[0].mxu0
        %v1688 = vadd.f32 %v1479, %v1687
        %v1689 = vpop.f32.mrb[0].mxu0
        %1690 = vmatprep.mubr.bf16.mxu0 0
        %1691 = vmatmul.mubr.bf16.gmra.mrb[0].mxu0 %v1272
        %v1692 = vpop.f32.mrb[0].mxu0
        %v1693 = vadd.f32 %v1484, %v1692
        %v1694 = vpop.f32.mrb[0].mxu0
        %v1695 = vpop.f32.mrb[0].mxu0
        %v1696 = vadd.f32 %v1487, %v1695
        %v1697 = vpop.f32.mrb[0].mxu0
        %1698 = vmatprep.mubr.bf16.mxu0 0
        %1699 = vmatmul.mubr.bf16.gmra.mrb[0].mxu0 %v1273
        %v1700 = vpop.f32.mrb[0].mxu0
        %v1701 = vadd.f32 %v1492, %v1700
        %v1702 = vpop.f32.mrb[0].mxu0
        %v1703 = vpop.f32.mrb[0].mxu0
        %v1704 = vadd.f32 %v1495, %v1703
        %v1705 = vpop.f32.mrb[0].mxu0
        %1706 = vmatprep.mubr.bf16.mxu0 0
        %1707 = vmatmul.mubr.bf16.gmra.mrb[0].mxu0 %v1274
        %v1708 = vpop.f32.mrb[0].mxu0
        %v1709 = vadd.f32 %v1500, %v1708
        %v1710 = vpop.f32.mrb[0].mxu0
        %v1711 = vpop.f32.mrb[0].mxu0
        %v1712 = vadd.f32 %v1503, %v1711
        %v1713 = vpop.f32.mrb[0].mxu0
        %1714 = vmatprep.mubr.bf16.mxu0 0
        %1715 = vmatmul.mubr.bf16.gmra.mrb[0].mxu0 %v1275
        %v1716 = vpop.f32.mrb[0].mxu0
        %v1717 = vadd.f32 %v1508, %v1716
        %v1718 = vpop.f32.mrb[0].mxu0
        %v1719 = vpop.f32.mrb[0].mxu0
        %v1720 = vadd.f32 %v1511, %v1719
        %v1721 = vpop.f32.mrb[0].mxu0
        %1722 = vmatprep.mubr.bf16.mxu0 0
        %1723 = vmatmul.mubr.bf16.gmra.mrb[0].mxu0 %v1276
        %v1724 = vpop.f32.mrb[0].mxu0
        %v1725 = vadd.f32 %v1516, %v1724
        %v1726 = vpop.f32.mrb[0].mxu0
        %v1727 = vpop.f32.mrb[0].mxu0
        %v1728 = vadd.f32 %v1519, %v1727
        %v1729 = vpop.f32.mrb[0].mxu0
        %1730 = vmatprep.mubr.bf16.mxu0 0
        %1731 = vmatmul.mubr.bf16.gmra.mrb[0].mxu0 %v1277
        %v1732 = vpop.f32.mrb[0].mxu0
        %v1733 = vadd.f32 %v1524, %v1732
        %v1734 = vpop.f32.mrb[0].mxu0
        %v1735 = vpop.f32.mrb[0].mxu0
        %v1736 = vadd.f32 %v1527, %v1735
        %v1737 = vpop.f32.mrb[0].mxu0
        %1738 = vmatprep.mubr.bf16.mxu0 0
        %1739 = vmatmul.mubr.bf16.gmra.mrb[0].mxu0 %v1278
        %v1740 = vpop.f32.mrb[0].mxu0
        %v1741 = vadd.f32 %v1532, %v1740
        %v1742 = vpop.f32.mrb[0].mxu0
        %v1743 = vpop.f32.mrb[0].mxu0
        %v1744 = vadd.f32 %v1535, %v1743
        %v1745 = vpop.f32.mrb[0].mxu0
        %1746 = vmatprep.mubr.bf16.mxu0 0
        %1747 = vmatmul.mubr.bf16.gmra.mrb[0].mxu0 %v1279
        %v1748 = vpop.f32.mrb[0].mxu0
        %v1749 = vadd.f32 %v1540, %v1748
        %v1750 = vpop.f32.mrb[0].mxu0
        %v1751 = vpop.f32.mrb[0].mxu0
        %v1752 = vadd.f32 %v1543, %v1751
        %v1753 = vpop.f32.mrb[0].mxu0
        %1754 = vmatprep.mubr.bf16.mxu0 0
        %1755 = vmatmul.mubr.bf16.gmra.mrb[0].mxu0 %v1280
        %v1756 = vpop.f32.mrb[0].mxu0
        %v1757 = vadd.f32 %v1548, %v1756
        %v1758 = vpop.f32.mrb[0].mxu0
        %v1759 = vpop.f32.mrb[0].mxu0
        %v1760 = vadd.f32 %v1551, %v1759
        %v1761 = vpop.f32.mrb[0].mxu0
        %1762 = vmatprep.mubr.bf16.mxu0 0
        %1763 = vmatmul.mubr.bf16.gmra.mrb[0].mxu0 %v1281
        %v1764 = vpop.f32.mrb[0].mxu0
        %v1765 = vadd.f32 %v1556, %v1764
        %v1766 = vpop.f32.mrb[0].mxu0
        %v1767 = vpop.f32.mrb[0].mxu0
        %v1768 = vadd.f32 %v1559, %v1767
        %v1769 = vpop.f32.mrb[0].mxu0
        %1770 = vdwg.mxu0
        %s1771 = scalar_lea.vmem [#allocation6], 128
        %v1772 = vld [vmem:[%s1771] sm:$0xf]
        %v1773 = vld [vmem:[%s1771 + $0x4] sm:$0xf]
        %v1774 = vld [vmem:[%s1771 + $0x8] sm:$0xf]
        %v1775 = vld [vmem:[%s1771 + $0xc] sm:$0xf]
        %v1776 = vld [vmem:[%s1771 + $0x10] sm:$0xf]
        %v1777 = vld [vmem:[%s1771 + $0x14] sm:$0xf]
        %v1778 = vld [vmem:[%s1771 + $0x18] sm:$0xf]
        %v1779 = vld [vmem:[%s1771 + $0x1c] sm:$0xf]
        %v1780 = vld [vmem:[%s1771 + $0x20] sm:$0xf]
        %v1781 = vld [vmem:[%s1771 + $0x24] sm:$0xf]
        %v1782 = vld [vmem:[%s1771 + $0x28] sm:$0xf]
        %v1783 = vld [vmem:[%s1771 + $0x2c] sm:$0xf]
        %v1784 = vld [vmem:[%s1771 + $0x30] sm:$0xf]
        %v1785 = vld [vmem:[%s1771 + $0x34] sm:$0xf]
        %v1786 = vld [vmem:[%s1771 + $0x38] sm:$0xf]
        %v1787 = vld [vmem:[%s1771 + $0x3c] sm:$0xf]
        %v1804 = vunpack.c.l.b16 %v1772
        %v1805 = vunpack.c.l.b16 %v1773
        %v1806 = vunpack.c.l.b16 %v1774
        %v1807 = vunpack.c.l.b16 %v1775
        %v1808 = vunpack.c.l.b16 %v1776
        %v1809 = vunpack.c.l.b16 %v1777
        %v1810 = vunpack.c.l.b16 %v1778
        %v1811 = vunpack.c.l.b16 %v1779
        %v1812 = vunpack.c.l.b16 %v1780
        %v1813 = vunpack.c.l.b16 %v1781
        %v1814 = vunpack.c.l.b16 %v1782
        %v1815 = vunpack.c.l.b16 %v1783
        %v1816 = vunpack.c.l.b16 %v1784
        %v1817 = vunpack.c.l.b16 %v1785
        %v1818 = vunpack.c.l.b16 %v1786
        %v1819 = vunpack.c.l.b16 %v1787
        %v1820 = vpack.c.b16 %v1805, %v1804
        %v1821 = vpack.c.b16 %v1807, %v1806
        %v1822 = vpack.c.b16 %v1809, %v1808
        %v1823 = vpack.c.b16 %v1811, %v1810
        %v1824 = vpack.c.b16 %v1813, %v1812
        %v1825 = vpack.c.b16 %v1815, %v1814
        %v1826 = vpack.c.b16 %v1817, %v1816
        %v1827 = vpack.c.b16 %v1819, %v1818
        %1836 = vmatprep.subr.bf16.mxu0 0
        %1837 = vmatpush1.bf16.msra.mxu0 %v1820
        %1838 = vmatprep.subr.bf16.mxu0 0
        %1839 = vmatpush1.bf16.msra.mxu0 %v1821
        %1840 = vmatprep.subr.bf16.mxu0 0
        %1841 = vmatpush1.bf16.msra.mxu0 %v1822
        %1842 = vmatprep.subr.bf16.mxu0 0
        %1843 = vmatpush1.bf16.msra.mxu0 %v1823
        %1844 = vmatprep.subr.bf16.mxu0 0
        %1845 = vmatpush1.bf16.msra.mxu0 %v1824
        %1846 = vmatprep.subr.bf16.mxu0 0
        %1847 = vmatpush1.bf16.msra.mxu0 %v1825
        %1848 = vmatprep.subr.bf16.mxu0 0
        %1849 = vmatpush1.bf16.msra.mxu0 %v1826
        %1850 = vmatprep.subr.bf16.mxu0 0
        %1851 = vmatpush1.bf16.msra.mxu0 %v1827
        %1852 = vmatprep.subr.bf16.mxu0 0
        %1853 = vmatpush1.bf16.msra.mxu0 0
        %1854 = vmatprep.subr.bf16.mxu0 0
        %1855 = vmatpush1.bf16.msra.mxu0 0
        %1856 = vmatprep.subr.bf16.mxu0 0
        %1857 = vmatpush1.bf16.msra.mxu0 0
        %1858 = vmatprep.subr.bf16.mxu0 0
        %1859 = vmatpush1.bf16.msra.mxu0 0
        %1860 = vmatprep.subr.bf16.mxu0 0
        %1861 = vmatpush1.bf16.msra.mxu0 0
        %1862 = vmatprep.subr.bf16.mxu0 0
        %1863 = vmatpush1.bf16.msra.mxu0 0
        %1864 = vmatprep.subr.bf16.mxu0 0
        %1865 = vmatpush1.bf16.msra.mxu0 0
        %1866 = vmatprep.subr.bf16.mxu0 0
        %1867 = vmatpush1.bf16.msra.mxu0 0
        %1868 = vmatprep.mubr.bf16.mxu0 0
        %1869 = vmatmul.mubr.bf16.gmra.mrb[0].mxu0 %v1302
        %v1870 = vpop.f32.mrb[0].mxu0
        %v1871 = vadd.f32 0.0, %v1870
        %v1872 = vpop.f32.mrb[0].mxu0
        %v1873 = vpop.f32.mrb[0].mxu0
        %v1874 = vadd.f32 0.0, %v1873
        %v1875 = vpop.f32.mrb[0].mxu0
        %1876 = vmatprep.mubr.bf16.mxu0 0
        %1877 = vmatmul.mubr.bf16.gmra.mrb[0].mxu0 %v1303
        %v1878 = vpop.f32.mrb[0].mxu0
        %v1879 = vadd.f32 0.0, %v1878
        %v1880 = vpop.f32.mrb[0].mxu0
        %v1881 = vpop.f32.mrb[0].mxu0
        %v1882 = vadd.f32 0.0, %v1881
        %v1883 = vpop.f32.mrb[0].mxu0
        %1884 = vmatprep.mubr.bf16.mxu0 0
        %1885 = vmatmul.mubr.bf16.gmra.mrb[0].mxu0 %v1304
        %v1886 = vpop.f32.mrb[0].mxu0
        %v1887 = vadd.f32 0.0, %v1886
        %v1888 = vpop.f32.mrb[0].mxu0
        %v1889 = vpop.f32.mrb[0].mxu0
        %v1890 = vadd.f32 0.0, %v1889
        %v1891 = vpop.f32.mrb[0].mxu0
        %1892 = vmatprep.mubr.bf16.mxu0 0
        %1893 = vmatmul.mubr.bf16.gmra.mrb[0].mxu0 %v1305
        %v1894 = vpop.f32.mrb[0].mxu0
        %v1895 = vadd.f32 0.0, %v1894
        %v1896 = vpop.f32.mrb[0].mxu0
        %v1897 = vpop.f32.mrb[0].mxu0
        %v1898 = vadd.f32 0.0, %v1897
        %v1899 = vpop.f32.mrb[0].mxu0
        %1900 = vmatprep.mubr.bf16.mxu0 0
        %1901 = vmatmul.mubr.bf16.gmra.mrb[0].mxu0 %v1306
        %v1902 = vpop.f32.mrb[0].mxu0
        %v1903 = vadd.f32 0.0, %v1902
        %v1904 = vpop.f32.mrb[0].mxu0
        %v1905 = vpop.f32.mrb[0].mxu0
        %v1906 = vadd.f32 0.0, %v1905
        %v1907 = vpop.f32.mrb[0].mxu0
        %1908 = vmatprep.mubr.bf16.mxu0 0
        %1909 = vmatmul.mubr.bf16.gmra.mrb[0].mxu0 %v1307
        %v1910 = vpop.f32.mrb[0].mxu0
        %v1911 = vadd.f32 0.0, %v1910
        %v1912 = vpop.f32.mrb[0].mxu0
        %v1913 = vpop.f32.mrb[0].mxu0
        %v1914 = vadd.f32 0.0, %v1913
        %v1915 = vpop.f32.mrb[0].mxu0
        %1916 = vmatprep.mubr.bf16.mxu0 0
        %1917 = vmatmul.mubr.bf16.gmra.mrb[0].mxu0 %v1308
        %v1918 = vpop.f32.mrb[0].mxu0
        %v1919 = vadd.f32 0.0, %v1918
        %v1920 = vpop.f32.mrb[0].mxu0
        %v1921 = vpop.f32.mrb[0].mxu0
        %v1922 = vadd.f32 0.0, %v1921
        %v1923 = vpop.f32.mrb[0].mxu0
        %1924 = vmatprep.mubr.bf16.mxu0 0
        %1925 = vmatmul.mubr.bf16.gmra.mrb[0].mxu0 %v1309
        %v1926 = vpop.f32.mrb[0].mxu0
        %v1927 = vadd.f32 0.0, %v1926
        %v1928 = vpop.f32.mrb[0].mxu0
        %v1929 = vpop.f32.mrb[0].mxu0
        %v1930 = vadd.f32 0.0, %v1929
        %v1931 = vpop.f32.mrb[0].mxu0
        %1932 = vmatprep.mubr.bf16.mxu0 0
        %1933 = vmatmul.mubr.bf16.gmra.mrb[0].mxu0 %v1310
        %v1934 = vpop.f32.mrb[0].mxu0
        %v1935 = vadd.f32 0.0, %v1934
        %v1936 = vpop.f32.mrb[0].mxu0
        %v1937 = vpop.f32.mrb[0].mxu0
        %v1938 = vadd.f32 0.0, %v1937
        %v1939 = vpop.f32.mrb[0].mxu0
        %1940 = vmatprep.mubr.bf16.mxu0 0
        %1941 = vmatmul.mubr.bf16.gmra.mrb[0].mxu0 %v1311
        %v1942 = vpop.f32.mrb[0].mxu0
        %v1943 = vadd.f32 0.0, %v1942
        %v1944 = vpop.f32.mrb[0].mxu0
        %v1945 = vpop.f32.mrb[0].mxu0
        %v1946 = vadd.f32 0.0, %v1945
        %v1947 = vpop.f32.mrb[0].mxu0
        %1948 = vmatprep.mubr.bf16.mxu0 0
        %1949 = vmatmul.mubr.bf16.gmra.mrb[0].mxu0 %v1312
        %v1950 = vpop.f32.mrb[0].mxu0
        %v1951 = vadd.f32 0.0, %v1950
        %v1952 = vpop.f32.mrb[0].mxu0
        %v1953 = vpop.f32.mrb[0].mxu0
        %v1954 = vadd.f32 0.0, %v1953
        %v1955 = vpop.f32.mrb[0].mxu0
        %1956 = vmatprep.mubr.bf16.mxu0 0
        %1957 = vmatmul.mubr.bf16.gmra.mrb[0].mxu0 %v1313
        %v1958 = vpop.f32.mrb[0].mxu0
        %v1959 = vadd.f32 0.0, %v1958
        %v1960 = vpop.f32.mrb[0].mxu0
        %v1961 = vpop.f32.mrb[0].mxu0
        %v1962 = vadd.f32 0.0, %v1961
        %v1963 = vpop.f32.mrb[0].mxu0
        %1964 = vmatprep.mubr.bf16.mxu0 0
        %1965 = vmatmul.mubr.bf16.gmra.mrb[0].mxu0 %v1314
        %v1966 = vpop.f32.mrb[0].mxu0
        %v1967 = vadd.f32 0.0, %v1966
        %v1968 = vpop.f32.mrb[0].mxu0
        %v1969 = vpop.f32.mrb[0].mxu0
        %v1970 = vadd.f32 0.0, %v1969
        %v1971 = vpop.f32.mrb[0].mxu0
        %1972 = vmatprep.mubr.bf16.mxu0 0
        %1973 = vmatmul.mubr.bf16.gmra.mrb[0].mxu0 %v1315
        %v1974 = vpop.f32.mrb[0].mxu0
        %v1975 = vadd.f32 0.0, %v1974
        %v1976 = vpop.f32.mrb[0].mxu0
        %v1977 = vpop.f32.mrb[0].mxu0
        %v1978 = vadd.f32 0.0, %v1977
        %v1979 = vpop.f32.mrb[0].mxu0
        %1980 = vmatprep.mubr.bf16.mxu0 0
        %1981 = vmatmul.mubr.bf16.gmra.mrb[0].mxu0 %v1316
        %v1982 = vpop.f32.mrb[0].mxu0
        %v1983 = vadd.f32 0.0, %v1982
        %v1984 = vpop.f32.mrb[0].mxu0
        %v1985 = vpop.f32.mrb[0].mxu0
        %v1986 = vadd.f32 0.0, %v1985
        %v1987 = vpop.f32.mrb[0].mxu0
        %1988 = vmatprep.mubr.bf16.mxu0 0
        %1989 = vmatmul.mubr.bf16.gmra.mrb[0].mxu0 %v1317
        %v1990 = vpop.f32.mrb[0].mxu0
        %v1991 = vadd.f32 0.0, %v1990
        %v1992 = vpop.f32.mrb[0].mxu0
        %v1993 = vpop.f32.mrb[0].mxu0
        %v1994 = vadd.f32 0.0, %v1993
        %v1995 = vpop.f32.mrb[0].mxu0
        %1996 = vdwg.mxu0
        %v1997 = vadd.f32 %v1645, %v1871
        %v1998 = vadd.f32 %v1648, %v1874
        %v1999 = vadd.f32 %v1653, %v1879
        %v2000 = vadd.f32 %v1656, %v1882
        %v2001 = vadd.f32 %v1661, %v1887
        %v2002 = vadd.f32 %v1664, %v1890
        %v2003 = vadd.f32 %v1669, %v1895
        %v2004 = vadd.f32 %v1672, %v1898
        %v2005 = vadd.f32 %v1677, %v1903
        %v2006 = vadd.f32 %v1680, %v1906
        %v2007 = vadd.f32 %v1685, %v1911
        %v2008 = vadd.f32 %v1688, %v1914
        %v2009 = vadd.f32 %v1693, %v1919
        %v2010 = vadd.f32 %v1696, %v1922
        %v2011 = vadd.f32 %v1701, %v1927
        %v2012 = vadd.f32 %v1704, %v1930
        %v2013 = vadd.f32 %v1709, %v1935
        %v2014 = vadd.f32 %v1712, %v1938
        %v2015 = vadd.f32 %v1717, %v1943
        %v2016 = vadd.f32 %v1720, %v1946
        %v2017 = vadd.f32 %v1725, %v1951
        %v2018 = vadd.f32 %v1728, %v1954
        %v2019 = vadd.f32 %v1733, %v1959
        %v2020 = vadd.f32 %v1736, %v1962
        %v2021 = vadd.f32 %v1741, %v1967
        %v2022 = vadd.f32 %v1744, %v1970
        %v2023 = vadd.f32 %v1749, %v1975
        %v2024 = vadd.f32 %v1752, %v1978
        %v2025 = vadd.f32 %v1757, %v1983
        %v2026 = vadd.f32 %v1760, %v1986
        %v2027 = vadd.f32 %v1765, %v1991
        %v2028 = vadd.f32 %v1768, %v1994
        %s2029 = scalar_lea.vmem [#allocation6], 192
        %v2030 = vld [vmem:[%s2029] sm:$0xf]
        %v2031 = vld [vmem:[%s2029 + $0x4] sm:$0xf]
        %v2032 = vld [vmem:[%s2029 + $0x8] sm:$0xf]
        %v2033 = vld [vmem:[%s2029 + $0xc] sm:$0xf]
        %v2034 = vld [vmem:[%s2029 + $0x10] sm:$0xf]
        %v2035 = vld [vmem:[%s2029 + $0x14] sm:$0xf]
        %v2036 = vld [vmem:[%s2029 + $0x18] sm:$0xf]
        %v2037 = vld [vmem:[%s2029 + $0x1c] sm:$0xf]
        %v2038 = vld [vmem:[%s2029 + $0x20] sm:$0xf]
        %v2039 = vld [vmem:[%s2029 + $0x24] sm:$0xf]
        %v2040 = vld [vmem:[%s2029 + $0x28] sm:$0xf]
        %v2041 = vld [vmem:[%s2029 + $0x2c] sm:$0xf]
        %v2042 = vld [vmem:[%s2029 + $0x30] sm:$0xf]
        %v2043 = vld [vmem:[%s2029 + $0x34] sm:$0xf]
        %v2044 = vld [vmem:[%s2029 + $0x38] sm:$0xf]
        %v2045 = vld [vmem:[%s2029 + $0x3c] sm:$0xf]
        %v2062 = vunpack.c.l.b16 %v2030
        %v2063 = vunpack.c.l.b16 %v2031
        %v2064 = vunpack.c.l.b16 %v2032
        %v2065 = vunpack.c.l.b16 %v2033
        %v2066 = vunpack.c.l.b16 %v2034
        %v2067 = vunpack.c.l.b16 %v2035
        %v2068 = vunpack.c.l.b16 %v2036
        %v2069 = vunpack.c.l.b16 %v2037
        %v2070 = vunpack.c.l.b16 %v2038
        %v2071 = vunpack.c.l.b16 %v2039
        %v2072 = vunpack.c.l.b16 %v2040
        %v2073 = vunpack.c.l.b16 %v2041
        %v2074 = vunpack.c.l.b16 %v2042
        %v2075 = vunpack.c.l.b16 %v2043
        %v2076 = vunpack.c.l.b16 %v2044
        %v2077 = vunpack.c.l.b16 %v2045
        %v2078 = vpack.c.b16 %v2063, %v2062
        %v2079 = vpack.c.b16 %v2065, %v2064
        %v2080 = vpack.c.b16 %v2067, %v2066
        %v2081 = vpack.c.b16 %v2069, %v2068
        %v2082 = vpack.c.b16 %v2071, %v2070
        %v2083 = vpack.c.b16 %v2073, %v2072
        %v2084 = vpack.c.b16 %v2075, %v2074
        %v2085 = vpack.c.b16 %v2077, %v2076
        %2094 = vmatprep.subr.bf16.mxu0 0
        %2095 = vmatpush1.bf16.msra.mxu0 %v2078
        %2096 = vmatprep.subr.bf16.mxu0 0
        %2097 = vmatpush1.bf16.msra.mxu0 %v2079
        %2098 = vmatprep.subr.bf16.mxu0 0
        %2099 = vmatpush1.bf16.msra.mxu0 %v2080
        %2100 = vmatprep.subr.bf16.mxu0 0
        %2101 = vmatpush1.bf16.msra.mxu0 %v2081
        %2102 = vmatprep.subr.bf16.mxu0 0
        %2103 = vmatpush1.bf16.msra.mxu0 %v2082
        %2104 = vmatprep.subr.bf16.mxu0 0
        %2105 = vmatpush1.bf16.msra.mxu0 %v2083
        %2106 = vmatprep.subr.bf16.mxu0 0
        %2107 = vmatpush1.bf16.msra.mxu0 %v2084
        %2108 = vmatprep.subr.bf16.mxu0 0
        %2109 = vmatpush1.bf16.msra.mxu0 %v2085
        %2110 = vmatprep.subr.bf16.mxu0 0
        %2111 = vmatpush1.bf16.msra.mxu0 0
        %2112 = vmatprep.subr.bf16.mxu0 0
        %2113 = vmatpush1.bf16.msra.mxu0 0
        %2114 = vmatprep.subr.bf16.mxu0 0
        %2115 = vmatpush1.bf16.msra.mxu0 0
        %2116 = vmatprep.subr.bf16.mxu0 0
        %2117 = vmatpush1.bf16.msra.mxu0 0
        %2118 = vmatprep.subr.bf16.mxu0 0
        %2119 = vmatpush1.bf16.msra.mxu0 0
        %2120 = vmatprep.subr.bf16.mxu0 0
        %2121 = vmatpush1.bf16.msra.mxu0 0
        %2122 = vmatprep.subr.bf16.mxu0 0
        %2123 = vmatpush1.bf16.msra.mxu0 0
        %2124 = vmatprep.subr.bf16.mxu0 0
        %2125 = vmatpush1.bf16.msra.mxu0 0
        %2126 = vmatprep.mubr.bf16.mxu0 0
        %2127 = vmatmul.mubr.bf16.gmra.mrb[0].mxu0 %v1267
        %v2128 = vpop.f32.mrb[0].mxu0
        %v2129 = vadd.f32 0.0, %v2128
        %v2130 = vpop.f32.mrb[0].mxu0
        %v2131 = vpop.f32.mrb[0].mxu0
        %v2132 = vadd.f32 0.0, %v2131
        %v2133 = vpop.f32.mrb[0].mxu0
        %2134 = vmatprep.mubr.bf16.mxu0 0
        %2135 = vmatmul.mubr.bf16.gmra.mrb[0].mxu0 %v1268
        %v2136 = vpop.f32.mrb[0].mxu0
        %v2137 = vadd.f32 0.0, %v2136
        %v2138 = vpop.f32.mrb[0].mxu0
        %v2139 = vpop.f32.mrb[0].mxu0
        %v2140 = vadd.f32 0.0, %v2139
        %v2141 = vpop.f32.mrb[0].mxu0
        %2142 = vmatprep.mubr.bf16.mxu0 0
        %2143 = vmatmul.mubr.bf16.gmra.mrb[0].mxu0 %v1269
        %v2144 = vpop.f32.mrb[0].mxu0
        %v2145 = vadd.f32 0.0, %v2144
        %v2146 = vpop.f32.mrb[0].mxu0
        %v2147 = vpop.f32.mrb[0].mxu0
        %v2148 = vadd.f32 0.0, %v2147
        %v2149 = vpop.f32.mrb[0].mxu0
        %2150 = vmatprep.mubr.bf16.mxu0 0
        %2151 = vmatmul.mubr.bf16.gmra.mrb[0].mxu0 %v1270
        %v2152 = vpop.f32.mrb[0].mxu0
        %v2153 = vadd.f32 0.0, %v2152
        %v2154 = vpop.f32.mrb[0].mxu0
        %v2155 = vpop.f32.mrb[0].mxu0
        %v2156 = vadd.f32 0.0, %v2155
        %v2157 = vpop.f32.mrb[0].mxu0
        %2158 = vmatprep.mubr.bf16.mxu0 0
        %2159 = vmatmul.mubr.bf16.gmra.mrb[0].mxu0 %v1271
        %v2160 = vpop.f32.mrb[0].mxu0
        %v2161 = vadd.f32 0.0, %v2160
        %v2162 = vpop.f32.mrb[0].mxu0
        %v2163 = vpop.f32.mrb[0].mxu0
        %v2164 = vadd.f32 0.0, %v2163
        %v2165 = vpop.f32.mrb[0].mxu0
        %2166 = vmatprep.mubr.bf16.mxu0 0
        %2167 = vmatmul.mubr.bf16.gmra.mrb[0].mxu0 %v1272
        %v2168 = vpop.f32.mrb[0].mxu0
        %v2169 = vadd.f32 0.0, %v2168
        %v2170 = vpop.f32.mrb[0].mxu0
        %v2171 = vpop.f32.mrb[0].mxu0
        %v2172 = vadd.f32 0.0, %v2171
        %v2173 = vpop.f32.mrb[0].mxu0
        %2174 = vmatprep.mubr.bf16.mxu0 0
        %2175 = vmatmul.mubr.bf16.gmra.mrb[0].mxu0 %v1273
        %v2176 = vpop.f32.mrb[0].mxu0
        %v2177 = vadd.f32 0.0, %v2176
        %v2178 = vpop.f32.mrb[0].mxu0
        %v2179 = vpop.f32.mrb[0].mxu0
        %v2180 = vadd.f32 0.0, %v2179
        %v2181 = vpop.f32.mrb[0].mxu0
        %2182 = vmatprep.mubr.bf16.mxu0 0
        %2183 = vmatmul.mubr.bf16.gmra.mrb[0].mxu0 %v1274
        %v2184 = vpop.f32.mrb[0].mxu0
        %v2185 = vadd.f32 0.0, %v2184
        %v2186 = vpop.f32.mrb[0].mxu0
        %v2187 = vpop.f32.mrb[0].mxu0
        %v2188 = vadd.f32 0.0, %v2187
        %v2189 = vpop.f32.mrb[0].mxu0
        %2190 = vmatprep.mubr.bf16.mxu0 0
        %2191 = vmatmul.mubr.bf16.gmra.mrb[0].mxu0 %v1275
        %v2192 = vpop.f32.mrb[0].mxu0
        %v2193 = vadd.f32 0.0, %v2192
        %v2194 = vpop.f32.mrb[0].mxu0
        %v2195 = vpop.f32.mrb[0].mxu0
        %v2196 = vadd.f32 0.0, %v2195
        %v2197 = vpop.f32.mrb[0].mxu0
        %2198 = vmatprep.mubr.bf16.mxu0 0
        %2199 = vmatmul.mubr.bf16.gmra.mrb[0].mxu0 %v1276
        %v2200 = vpop.f32.mrb[0].mxu0
        %v2201 = vadd.f32 0.0, %v2200
        %v2202 = vpop.f32.mrb[0].mxu0
        %v2203 = vpop.f32.mrb[0].mxu0
        %v2204 = vadd.f32 0.0, %v2203
        %v2205 = vpop.f32.mrb[0].mxu0
        %2206 = vmatprep.mubr.bf16.mxu0 0
        %2207 = vmatmul.mubr.bf16.gmra.mrb[0].mxu0 %v1277
        %v2208 = vpop.f32.mrb[0].mxu0
        %v2209 = vadd.f32 0.0, %v2208
        %v2210 = vpop.f32.mrb[0].mxu0
        %v2211 = vpop.f32.mrb[0].mxu0
        %v2212 = vadd.f32 0.0, %v2211
        %v2213 = vpop.f32.mrb[0].mxu0
        %2214 = vmatprep.mubr.bf16.mxu0 0
        %2215 = vmatmul.mubr.bf16.gmra.mrb[0].mxu0 %v1278
        %v2216 = vpop.f32.mrb[0].mxu0
        %v2217 = vadd.f32 0.0, %v2216
        %v2218 = vpop.f32.mrb[0].mxu0
        %v2219 = vpop.f32.mrb[0].mxu0
        %v2220 = vadd.f32 0.0, %v2219
        %v2221 = vpop.f32.mrb[0].mxu0
        %2222 = vmatprep.mubr.bf16.mxu0 0
        %2223 = vmatmul.mubr.bf16.gmra.mrb[0].mxu0 %v1279
        %v2224 = vpop.f32.mrb[0].mxu0
        %v2225 = vadd.f32 0.0, %v2224
        %v2226 = vpop.f32.mrb[0].mxu0
        %v2227 = vpop.f32.mrb[0].mxu0
        %v2228 = vadd.f32 0.0, %v2227
        %v2229 = vpop.f32.mrb[0].mxu0
        %2230 = vmatprep.mubr.bf16.mxu0 0
        %2231 = vmatmul.mubr.bf16.gmra.mrb[0].mxu0 %v1280
        %v2232 = vpop.f32.mrb[0].mxu0
        %v2233 = vadd.f32 0.0, %v2232
        %v2234 = vpop.f32.mrb[0].mxu0
        %v2235 = vpop.f32.mrb[0].mxu0
        %v2236 = vadd.f32 0.0, %v2235
        %v2237 = vpop.f32.mrb[0].mxu0
        %2238 = vmatprep.mubr.bf16.mxu0 0
        %2239 = vmatmul.mubr.bf16.gmra.mrb[0].mxu0 %v1281
        %v2240 = vpop.f32.mrb[0].mxu0
        %v2241 = vadd.f32 0.0, %v2240
        %v2242 = vpop.f32.mrb[0].mxu0
        %v2243 = vpop.f32.mrb[0].mxu0
        %v2244 = vadd.f32 0.0, %v2243
        %v2245 = vpop.f32.mrb[0].mxu0
        %2246 = vmatprep.mubr.bf16.mxu0 0
        %2247 = vmatmul.mubr.bf16.gmra.mrb[0].mxu0 %v1282
        %v2248 = vpop.f32.mrb[0].mxu0
        %v2249 = vadd.f32 0.0, %v2248
        %v2250 = vpop.f32.mrb[0].mxu0
        %v2251 = vpop.f32.mrb[0].mxu0
        %v2252 = vadd.f32 0.0, %v2251
        %v2253 = vpop.f32.mrb[0].mxu0
        %2254 = vdwg.mxu0
        %v2255 = vadd.f32 %v1997, %v2129
        %v2256 = vadd.f32 %v1998, %v2132
        %v2257 = vadd.f32 %v1999, %v2137
        %v2258 = vadd.f32 %v2000, %v2140
        %v2259 = vadd.f32 %v2001, %v2145
        %v2260 = vadd.f32 %v2002, %v2148
        %v2261 = vadd.f32 %v2003, %v2153
        %v2262 = vadd.f32 %v2004, %v2156
        %v2263 = vadd.f32 %v2005, %v2161
        %v2264 = vadd.f32 %v2006, %v2164
        %v2265 = vadd.f32 %v2007, %v2169
        %v2266 = vadd.f32 %v2008, %v2172
        %v2267 = vadd.f32 %v2009, %v2177
        %v2268 = vadd.f32 %v2010, %v2180
        %v2269 = vadd.f32 %v2011, %v2185
        %v2270 = vadd.f32 %v2012, %v2188
        %v2271 = vadd.f32 %v2013, %v2193
        %v2272 = vadd.f32 %v2014, %v2196
        %v2273 = vadd.f32 %v2015, %v2201
        %v2274 = vadd.f32 %v2016, %v2204
        %v2275 = vadd.f32 %v2017, %v2209
        %v2276 = vadd.f32 %v2018, %v2212
        %v2277 = vadd.f32 %v2019, %v2217
        %v2278 = vadd.f32 %v2020, %v2220
        %v2279 = vadd.f32 %v2021, %v2225
        %v2280 = vadd.f32 %v2022, %v2228
        %v2281 = vadd.f32 %v2023, %v2233
        %v2282 = vadd.f32 %v2024, %v2236
        %v2283 = vadd.f32 %v2025, %v2241
        %v2284 = vadd.f32 %v2026, %v2244
        %v2285 = vadd.f32 %v2027, %v2249
        %v2286 = vadd.f32 %v2028, %v2252
        %s2287 = scalar_lea.vmem [#allocation6], 256
        %v2288 = vld [vmem:[%s2287] sm:$0xf]
        %v2289 = vld [vmem:[%s2287 + $0x4] sm:$0xf]
        %v2290 = vld [vmem:[%s2287 + $0x8] sm:$0xf]
        %v2291 = vld [vmem:[%s2287 + $0xc] sm:$0xf]
        %v2292 = vld [vmem:[%s2287 + $0x10] sm:$0xf]
        %v2293 = vld [vmem:[%s2287 + $0x14] sm:$0xf]
        %v2294 = vld [vmem:[%s2287 + $0x18] sm:$0xf]
        %v2295 = vld [vmem:[%s2287 + $0x1c] sm:$0xf]
        %v2296 = vld [vmem:[%s2287 + $0x20] sm:$0xf]
        %v2297 = vld [vmem:[%s2287 + $0x24] sm:$0xf]
        %v2298 = vld [vmem:[%s2287 + $0x28] sm:$0xf]
        %v2299 = vld [vmem:[%s2287 + $0x2c] sm:$0xf]
        %v2300 = vld [vmem:[%s2287 + $0x30] sm:$0xf]
        %v2301 = vld [vmem:[%s2287 + $0x34] sm:$0xf]
        %v2302 = vld [vmem:[%s2287 + $0x38] sm:$0xf]
        %v2303 = vld [vmem:[%s2287 + $0x3c] sm:$0xf]
        %v2320 = vunpack.c.l.b16 %v2288
        %v2321 = vunpack.c.l.b16 %v2289
        %v2322 = vunpack.c.l.b16 %v2290
        %v2323 = vunpack.c.l.b16 %v2291
        %v2324 = vunpack.c.l.b16 %v2292
        %v2325 = vunpack.c.l.b16 %v2293
        %v2326 = vunpack.c.l.b16 %v2294
        %v2327 = vunpack.c.l.b16 %v2295
        %v2328 = vunpack.c.l.b16 %v2296
        %v2329 = vunpack.c.l.b16 %v2297
        %v2330 = vunpack.c.l.b16 %v2298
        %v2331 = vunpack.c.l.b16 %v2299
        %v2332 = vunpack.c.l.b16 %v2300
        %v2333 = vunpack.c.l.b16 %v2301
        %v2334 = vunpack.c.l.b16 %v2302
        %v2335 = vunpack.c.l.b16 %v2303
        %v2336 = vpack.c.b16 %v2321, %v2320
        %v2337 = vpack.c.b16 %v2323, %v2322
        %v2338 = vpack.c.b16 %v2325, %v2324
        %v2339 = vpack.c.b16 %v2327, %v2326
        %v2340 = vpack.c.b16 %v2329, %v2328
        %v2341 = vpack.c.b16 %v2331, %v2330
        %v2342 = vpack.c.b16 %v2333, %v2332
        %v2343 = vpack.c.b16 %v2335, %v2334
        %2352 = vmatprep.subr.bf16.mxu0 0
        %2353 = vmatpush1.bf16.msra.mxu0 %v2336
        %2354 = vmatprep.subr.bf16.mxu0 0
        %2355 = vmatpush1.bf16.msra.mxu0 %v2337
        %2356 = vmatprep.subr.bf16.mxu0 0
        %2357 = vmatpush1.bf16.msra.mxu0 %v2338
        %2358 = vmatprep.subr.bf16.mxu0 0
        %2359 = vmatpush1.bf16.msra.mxu0 %v2339
        %2360 = vmatprep.subr.bf16.mxu0 0
        %2361 = vmatpush1.bf16.msra.mxu0 %v2340
        %2362 = vmatprep.subr.bf16.mxu0 0
        %2363 = vmatpush1.bf16.msra.mxu0 %v2341
        %2364 = vmatprep.subr.bf16.mxu0 0
        %2365 = vmatpush1.bf16.msra.mxu0 %v2342
        %2366 = vmatprep.subr.bf16.mxu0 0
        %2367 = vmatpush1.bf16.msra.mxu0 %v2343
        %2368 = vmatprep.subr.bf16.mxu0 0
        %2369 = vmatpush1.bf16.msra.mxu0 0
        %2370 = vmatprep.subr.bf16.mxu0 0
        %2371 = vmatpush1.bf16.msra.mxu0 0
        %2372 = vmatprep.subr.bf16.mxu0 0
        %2373 = vmatpush1.bf16.msra.mxu0 0
        %2374 = vmatprep.subr.bf16.mxu0 0
        %2375 = vmatpush1.bf16.msra.mxu0 0
        %2376 = vmatprep.subr.bf16.mxu0 0
        %2377 = vmatpush1.bf16.msra.mxu0 0
        %2378 = vmatprep.subr.bf16.mxu0 0
        %2379 = vmatpush1.bf16.msra.mxu0 0
        %2380 = vmatprep.subr.bf16.mxu0 0
        %2381 = vmatpush1.bf16.msra.mxu0 0
        %2382 = vmatprep.subr.bf16.mxu0 0
        %2383 = vmatpush1.bf16.msra.mxu0 0
        %2384 = vmatprep.mubr.bf16.mxu0 0
        %2385 = vmatmul.mubr.bf16.gmra.mrb[0].mxu0 %v1285
        %v2386 = vpop.f32.mrb[0].mxu0
        %v2387 = vadd.f32 0.0, %v2386
        %v2388 = vpop.f32.mrb[0].mxu0
        %v2389 = vpop.f32.mrb[0].mxu0
        %v2390 = vadd.f32 0.0, %v2389
        %v2391 = vpop.f32.mrb[0].mxu0
        %2392 = vmatprep.mubr.bf16.mxu0 0
        %2393 = vmatmul.mubr.bf16.gmra.mrb[0].mxu0 %v1286
        %v2394 = vpop.f32.mrb[0].mxu0
        %v2395 = vadd.f32 0.0, %v2394
        %v2396 = vpop.f32.mrb[0].mxu0
        %v2397 = vpop.f32.mrb[0].mxu0
        %v2398 = vadd.f32 0.0, %v2397
        %v2399 = vpop.f32.mrb[0].mxu0
        %2400 = vmatprep.mubr.bf16.mxu0 0
        %2401 = vmatmul.mubr.bf16.gmra.mrb[0].mxu0 %v1287
        %v2402 = vpop.f32.mrb[0].mxu0
        %v2403 = vadd.f32 0.0, %v2402
        %v2404 = vpop.f32.mrb[0].mxu0
        %v2405 = vpop.f32.mrb[0].mxu0
        %v2406 = vadd.f32 0.0, %v2405
        %v2407 = vpop.f32.mrb[0].mxu0
        %2408 = vmatprep.mubr.bf16.mxu0 0
        %2409 = vmatmul.mubr.bf16.gmra.mrb[0].mxu0 %v1288
        %v2410 = vpop.f32.mrb[0].mxu0
        %v2411 = vadd.f32 0.0, %v2410
        %v2412 = vpop.f32.mrb[0].mxu0
        %v2413 = vpop.f32.mrb[0].mxu0
        %v2414 = vadd.f32 0.0, %v2413
        %v2415 = vpop.f32.mrb[0].mxu0
        %2416 = vmatprep.mubr.bf16.mxu0 0
        %2417 = vmatmul.mubr.bf16.gmra.mrb[0].mxu0 %v1289
        %v2418 = vpop.f32.mrb[0].mxu0
        %v2419 = vadd.f32 0.0, %v2418
        %v2420 = vpop.f32.mrb[0].mxu0
        %v2421 = vpop.f32.mrb[0].mxu0
        %v2422 = vadd.f32 0.0, %v2421
        %v2423 = vpop.f32.mrb[0].mxu0
        %2424 = vmatprep.mubr.bf16.mxu0 0
        %2425 = vmatmul.mubr.bf16.gmra.mrb[0].mxu0 %v1290
        %v2426 = vpop.f32.mrb[0].mxu0
        %v2427 = vadd.f32 0.0, %v2426
        %v2428 = vpop.f32.mrb[0].mxu0
        %v2429 = vpop.f32.mrb[0].mxu0
        %v2430 = vadd.f32 0.0, %v2429
        %v2431 = vpop.f32.mrb[0].mxu0
        %2432 = vmatprep.mubr.bf16.mxu0 0
        %2433 = vmatmul.mubr.bf16.gmra.mrb[0].mxu0 %v1291
        %v2434 = vpop.f32.mrb[0].mxu0
        %v2435 = vadd.f32 0.0, %v2434
        %v2436 = vpop.f32.mrb[0].mxu0
        %v2437 = vpop.f32.mrb[0].mxu0
        %v2438 = vadd.f32 0.0, %v2437
        %v2439 = vpop.f32.mrb[0].mxu0
        %2440 = vmatprep.mubr.bf16.mxu0 0
        %2441 = vmatmul.mubr.bf16.gmra.mrb[0].mxu0 %v1292
        %v2442 = vpop.f32.mrb[0].mxu0
        %v2443 = vadd.f32 0.0, %v2442
        %v2444 = vpop.f32.mrb[0].mxu0
        %v2445 = vpop.f32.mrb[0].mxu0
        %v2446 = vadd.f32 0.0, %v2445
        %v2447 = vpop.f32.mrb[0].mxu0
        %2448 = vmatprep.mubr.bf16.mxu0 0
        %2449 = vmatmul.mubr.bf16.gmra.mrb[0].mxu0 %v1293
        %v2450 = vpop.f32.mrb[0].mxu0
        %v2451 = vadd.f32 0.0, %v2450
        %v2452 = vpop.f32.mrb[0].mxu0
        %v2453 = vpop.f32.mrb[0].mxu0
        %v2454 = vadd.f32 0.0, %v2453
        %v2455 = vpop.f32.mrb[0].mxu0
        %2456 = vmatprep.mubr.bf16.mxu0 0
        %2457 = vmatmul.mubr.bf16.gmra.mrb[0].mxu0 %v1294
        %v2458 = vpop.f32.mrb[0].mxu0
        %v2459 = vadd.f32 0.0, %v2458
        %v2460 = vpop.f32.mrb[0].mxu0
        %v2461 = vpop.f32.mrb[0].mxu0
        %v2462 = vadd.f32 0.0, %v2461
        %v2463 = vpop.f32.mrb[0].mxu0
        %2464 = vmatprep.mubr.bf16.mxu0 0
        %2465 = vmatmul.mubr.bf16.gmra.mrb[0].mxu0 %v1295
        %v2466 = vpop.f32.mrb[0].mxu0
        %v2467 = vadd.f32 0.0, %v2466
        %v2468 = vpop.f32.mrb[0].mxu0
        %v2469 = vpop.f32.mrb[0].mxu0
        %v2470 = vadd.f32 0.0, %v2469
        %v2471 = vpop.f32.mrb[0].mxu0
        %2472 = vmatprep.mubr.bf16.mxu0 0
        %2473 = vmatmul.mubr.bf16.gmra.mrb[0].mxu0 %v1296
        %v2474 = vpop.f32.mrb[0].mxu0
        %v2475 = vadd.f32 0.0, %v2474
        %v2476 = vpop.f32.mrb[0].mxu0
        %v2477 = vpop.f32.mrb[0].mxu0
        %v2478 = vadd.f32 0.0, %v2477
        %v2479 = vpop.f32.mrb[0].mxu0
        %2480 = vmatprep.mubr.bf16.mxu0 0
        %2481 = vmatmul.mubr.bf16.gmra.mrb[0].mxu0 %v1297
        %v2482 = vpop.f32.mrb[0].mxu0
        %v2483 = vadd.f32 0.0, %v2482
        %v2484 = vpop.f32.mrb[0].mxu0
        %v2485 = vpop.f32.mrb[0].mxu0
        %v2486 = vadd.f32 0.0, %v2485
        %v2487 = vpop.f32.mrb[0].mxu0
        %2488 = vmatprep.mubr.bf16.mxu0 0
        %2489 = vmatmul.mubr.bf16.gmra.mrb[0].mxu0 %v1298
        %v2490 = vpop.f32.mrb[0].mxu0
        %v2491 = vadd.f32 0.0, %v2490
        %v2492 = vpop.f32.mrb[0].mxu0
        %v2493 = vpop.f32.mrb[0].mxu0
        %v2494 = vadd.f32 0.0, %v2493
        %v2495 = vpop.f32.mrb[0].mxu0
        %2496 = vmatprep.mubr.bf16.mxu0 0
        %2497 = vmatmul.mubr.bf16.gmra.mrb[0].mxu0 %v1299
        %v2498 = vpop.f32.mrb[0].mxu0
        %v2499 = vadd.f32 0.0, %v2498
        %v2500 = vpop.f32.mrb[0].mxu0
        %v2501 = vpop.f32.mrb[0].mxu0
        %v2502 = vadd.f32 0.0, %v2501
        %v2503 = vpop.f32.mrb[0].mxu0
        %2504 = vmatprep.mubr.bf16.mxu0 0
        %2505 = vmatmul.mubr.bf16.gmra.mrb[0].mxu0 %v1300
        %v2506 = vpop.f32.mrb[0].mxu0
        %v2507 = vadd.f32 0.0, %v2506
        %v2508 = vpop.f32.mrb[0].mxu0
        %v2509 = vpop.f32.mrb[0].mxu0
        %v2510 = vadd.f32 0.0, %v2509
        %v2511 = vpop.f32.mrb[0].mxu0
        %2512 = vdwg.mxu0
        %v2513 = vadd.f32 %v2255, %v2387
        %v2514 = vadd.f32 %v2256, %v2390
        %v2515 = vadd.f32 %v2257, %v2395
        %v2516 = vadd.f32 %v2258, %v2398
        %v2517 = vadd.f32 %v2259, %v2403
        %v2518 = vadd.f32 %v2260, %v2406
        %v2519 = vadd.f32 %v2261, %v2411
        %v2520 = vadd.f32 %v2262, %v2414
        %v2521 = vadd.f32 %v2263, %v2419
        %v2522 = vadd.f32 %v2264, %v2422
        %v2523 = vadd.f32 %v2265, %v2427
        %v2524 = vadd.f32 %v2266, %v2430
        %v2525 = vadd.f32 %v2267, %v2435
        %v2526 = vadd.f32 %v2268, %v2438
        %v2527 = vadd.f32 %v2269, %v2443
        %v2528 = vadd.f32 %v2270, %v2446
        %v2529 = vadd.f32 %v2271, %v2451
        %v2530 = vadd.f32 %v2272, %v2454
        %v2531 = vadd.f32 %v2273, %v2459
        %v2532 = vadd.f32 %v2274, %v2462
        %v2533 = vadd.f32 %v2275, %v2467
        %v2534 = vadd.f32 %v2276, %v2470
        %v2535 = vadd.f32 %v2277, %v2475
        %v2536 = vadd.f32 %v2278, %v2478
        %v2537 = vadd.f32 %v2279, %v2483
        %v2538 = vadd.f32 %v2280, %v2486
        %v2539 = vadd.f32 %v2281, %v2491
        %v2540 = vadd.f32 %v2282, %v2494
        %v2541 = vadd.f32 %v2283, %v2499
        %v2542 = vadd.f32 %v2284, %v2502
        %v2543 = vadd.f32 %v2285, %v2507
        %v2544 = vadd.f32 %v2286, %v2510
        %s2545 = scalar_lea.vmem [#allocation6], 320
        %v2546 = vld [vmem:[%s2545] sm:$0xf]
        %v2547 = vld [vmem:[%s2545 + $0x4] sm:$0xf]
        %v2548 = vld [vmem:[%s2545 + $0x8] sm:$0xf]
        %v2549 = vld [vmem:[%s2545 + $0xc] sm:$0xf]
        %v2550 = vld [vmem:[%s2545 + $0x10] sm:$0xf]
        %v2551 = vld [vmem:[%s2545 + $0x14] sm:$0xf]
        %v2552 = vld [vmem:[%s2545 + $0x18] sm:$0xf]
        %v2553 = vld [vmem:[%s2545 + $0x1c] sm:$0xf]
        %v2554 = vld [vmem:[%s2545 + $0x20] sm:$0xf]
        %v2555 = vld [vmem:[%s2545 + $0x24] sm:$0xf]
        %v2556 = vld [vmem:[%s2545 + $0x28] sm:$0xf]
        %v2557 = vld [vmem:[%s2545 + $0x2c] sm:$0xf]
        %v2558 = vld [vmem:[%s2545 + $0x30] sm:$0xf]
        %v2559 = vld [vmem:[%s2545 + $0x34] sm:$0xf]
        %v2560 = vld [vmem:[%s2545 + $0x38] sm:$0xf]
        %v2561 = vld [vmem:[%s2545 + $0x3c] sm:$0xf]
        %v2578 = vunpack.c.l.b16 %v2546
        %v2579 = vunpack.c.l.b16 %v2547
        %v2580 = vunpack.c.l.b16 %v2548
        %v2581 = vunpack.c.l.b16 %v2549
        %v2582 = vunpack.c.l.b16 %v2550
        %v2583 = vunpack.c.l.b16 %v2551
        %v2584 = vunpack.c.l.b16 %v2552
        %v2585 = vunpack.c.l.b16 %v2553
        %v2586 = vunpack.c.l.b16 %v2554
        %v2587 = vunpack.c.l.b16 %v2555
        %v2588 = vunpack.c.l.b16 %v2556
        %v2589 = vunpack.c.l.b16 %v2557
        %v2590 = vunpack.c.l.b16 %v2558
        %v2591 = vunpack.c.l.b16 %v2559
        %v2592 = vunpack.c.l.b16 %v2560
        %v2593 = vunpack.c.l.b16 %v2561
        %v2594 = vpack.c.b16 %v2579, %v2578
        %v2595 = vpack.c.b16 %v2581, %v2580
        %v2596 = vpack.c.b16 %v2583, %v2582
        %v2597 = vpack.c.b16 %v2585, %v2584
        %v2598 = vpack.c.b16 %v2587, %v2586
        %v2599 = vpack.c.b16 %v2589, %v2588
        %v2600 = vpack.c.b16 %v2591, %v2590
        %v2601 = vpack.c.b16 %v2593, %v2592
        %2610 = vmatprep.subr.bf16.mxu0 0
        %2611 = vmatpush1.bf16.msra.mxu0 %v2594
        %2612 = vmatprep.subr.bf16.mxu0 0
        %2613 = vmatpush1.bf16.msra.mxu0 %v2595
        %2614 = vmatprep.subr.bf16.mxu0 0
        %2615 = vmatpush1.bf16.msra.mxu0 %v2596
        %2616 = vmatprep.subr.bf16.mxu0 0
        %2617 = vmatpush1.bf16.msra.mxu0 %v2597
        %2618 = vmatprep.subr.bf16.mxu0 0
        %2619 = vmatpush1.bf16.msra.mxu0 %v2598
        %2620 = vmatprep.subr.bf16.mxu0 0
        %2621 = vmatpush1.bf16.msra.mxu0 %v2599
        %2622 = vmatprep.subr.bf16.mxu0 0
        %2623 = vmatpush1.bf16.msra.mxu0 %v2600
        %2624 = vmatprep.subr.bf16.mxu0 0
        %2625 = vmatpush1.bf16.msra.mxu0 %v2601
        %2626 = vmatprep.subr.bf16.mxu0 0
        %2627 = vmatpush1.bf16.msra.mxu0 0
        %2628 = vmatprep.subr.bf16.mxu0 0
        %2629 = vmatpush1.bf16.msra.mxu0 0
        %2630 = vmatprep.subr.bf16.mxu0 0
        %2631 = vmatpush1.bf16.msra.mxu0 0
        %2632 = vmatprep.subr.bf16.mxu0 0
        %2633 = vmatpush1.bf16.msra.mxu0 0
        %2634 = vmatprep.subr.bf16.mxu0 0
        %2635 = vmatpush1.bf16.msra.mxu0 0
        %2636 = vmatprep.subr.bf16.mxu0 0
        %2637 = vmatpush1.bf16.msra.mxu0 0
        %2638 = vmatprep.subr.bf16.mxu0 0
        %2639 = vmatpush1.bf16.msra.mxu0 0
        %2640 = vmatprep.subr.bf16.mxu0 0
        %2641 = vmatpush1.bf16.msra.mxu0 0
        %2642 = vmatprep.mubr.bf16.mxu0 0
        %2643 = vmatmul.mubr.bf16.gmra.mrb[0].mxu0 %v1303
        %v2644 = vpop.f32.mrb[0].mxu0
        %v2645 = vadd.f32 0.0, %v2644
        %v2646 = vpop.f32.mrb[0].mxu0
        %v2647 = vpop.f32.mrb[0].mxu0
        %v2648 = vadd.f32 0.0, %v2647
        %v2649 = vpop.f32.mrb[0].mxu0
        %2650 = vmatprep.mubr.bf16.mxu0 0
        %2651 = vmatmul.mubr.bf16.gmra.mrb[0].mxu0 %v1304
        %v2652 = vpop.f32.mrb[0].mxu0
        %v2653 = vadd.f32 0.0, %v2652
        %v2654 = vpop.f32.mrb[0].mxu0
        %v2655 = vpop.f32.mrb[0].mxu0
        %v2656 = vadd.f32 0.0, %v2655
        %v2657 = vpop.f32.mrb[0].mxu0
        %2658 = vmatprep.mubr.bf16.mxu0 0
        %2659 = vmatmul.mubr.bf16.gmra.mrb[0].mxu0 %v1305
        %v2660 = vpop.f32.mrb[0].mxu0
        %v2661 = vadd.f32 0.0, %v2660
        %v2662 = vpop.f32.mrb[0].mxu0
        %v2663 = vpop.f32.mrb[0].mxu0
        %v2664 = vadd.f32 0.0, %v2663
        %v2665 = vpop.f32.mrb[0].mxu0
        %2666 = vmatprep.mubr.bf16.mxu0 0
        %2667 = vmatmul.mubr.bf16.gmra.mrb[0].mxu0 %v1306
        %v2668 = vpop.f32.mrb[0].mxu0
        %v2669 = vadd.f32 0.0, %v2668
        %v2670 = vpop.f32.mrb[0].mxu0
        %v2671 = vpop.f32.mrb[0].mxu0
        %v2672 = vadd.f32 0.0, %v2671
        %v2673 = vpop.f32.mrb[0].mxu0
        %2674 = vmatprep.mubr.bf16.mxu0 0
        %2675 = vmatmul.mubr.bf16.gmra.mrb[0].mxu0 %v1307
        %v2676 = vpop.f32.mrb[0].mxu0
        %v2677 = vadd.f32 0.0, %v2676
        %v2678 = vpop.f32.mrb[0].mxu0
        %v2679 = vpop.f32.mrb[0].mxu0
        %v2680 = vadd.f32 0.0, %v2679
        %v2681 = vpop.f32.mrb[0].mxu0
        %2682 = vmatprep.mubr.bf16.mxu0 0
        %2683 = vmatmul.mubr.bf16.gmra.mrb[0].mxu0 %v1308
        %v2684 = vpop.f32.mrb[0].mxu0
        %v2685 = vadd.f32 0.0, %v2684
        %v2686 = vpop.f32.mrb[0].mxu0
        %v2687 = vpop.f32.mrb[0].mxu0
        %v2688 = vadd.f32 0.0, %v2687
        %v2689 = vpop.f32.mrb[0].mxu0
        %2690 = vmatprep.mubr.bf16.mxu0 0
        %2691 = vmatmul.mubr.bf16.gmra.mrb[0].mxu0 %v1309
        %v2692 = vpop.f32.mrb[0].mxu0
        %v2693 = vadd.f32 0.0, %v2692
        %v2694 = vpop.f32.mrb[0].mxu0
        %v2695 = vpop.f32.mrb[0].mxu0
        %v2696 = vadd.f32 0.0, %v2695
        %v2697 = vpop.f32.mrb[0].mxu0
        %2698 = vmatprep.mubr.bf16.mxu0 0
        %2699 = vmatmul.mubr.bf16.gmra.mrb[0].mxu0 %v1310
        %v2700 = vpop.f32.mrb[0].mxu0
        %v2701 = vadd.f32 0.0, %v2700
        %v2702 = vpop.f32.mrb[0].mxu0
        %v2703 = vpop.f32.mrb[0].mxu0
        %v2704 = vadd.f32 0.0, %v2703
        %v2705 = vpop.f32.mrb[0].mxu0
        %2706 = vmatprep.mubr.bf16.mxu0 0
        %2707 = vmatmul.mubr.bf16.gmra.mrb[0].mxu0 %v1311
        %v2708 = vpop.f32.mrb[0].mxu0
        %v2709 = vadd.f32 0.0, %v2708
        %v2710 = vpop.f32.mrb[0].mxu0
        %v2711 = vpop.f32.mrb[0].mxu0
        %v2712 = vadd.f32 0.0, %v2711
        %v2713 = vpop.f32.mrb[0].mxu0
        %2714 = vmatprep.mubr.bf16.mxu0 0
        %2715 = vmatmul.mubr.bf16.gmra.mrb[0].mxu0 %v1312
        %v2716 = vpop.f32.mrb[0].mxu0
        %v2717 = vadd.f32 0.0, %v2716
        %v2718 = vpop.f32.mrb[0].mxu0
        %v2719 = vpop.f32.mrb[0].mxu0
        %v2720 = vadd.f32 0.0, %v2719
        %v2721 = vpop.f32.mrb[0].mxu0
        %2722 = vmatprep.mubr.bf16.mxu0 0
        %2723 = vmatmul.mubr.bf16.gmra.mrb[0].mxu0 %v1313
        %v2724 = vpop.f32.mrb[0].mxu0
        %v2725 = vadd.f32 0.0, %v2724
        %v2726 = vpop.f32.mrb[0].mxu0
        %v2727 = vpop.f32.mrb[0].mxu0
        %v2728 = vadd.f32 0.0, %v2727
        %v2729 = vpop.f32.mrb[0].mxu0
        %2730 = vmatprep.mubr.bf16.mxu0 0
        %2731 = vmatmul.mubr.bf16.gmra.mrb[0].mxu0 %v1314
        %v2732 = vpop.f32.mrb[0].mxu0
        %v2733 = vadd.f32 0.0, %v2732
        %v2734 = vpop.f32.mrb[0].mxu0
        %v2735 = vpop.f32.mrb[0].mxu0
        %v2736 = vadd.f32 0.0, %v2735
        %v2737 = vpop.f32.mrb[0].mxu0
        %2738 = vmatprep.mubr.bf16.mxu0 0
        %2739 = vmatmul.mubr.bf16.gmra.mrb[0].mxu0 %v1315
        %v2740 = vpop.f32.mrb[0].mxu0
        %v2741 = vadd.f32 0.0, %v2740
        %v2742 = vpop.f32.mrb[0].mxu0
        %v2743 = vpop.f32.mrb[0].mxu0
        %v2744 = vadd.f32 0.0, %v2743
        %v2745 = vpop.f32.mrb[0].mxu0
        %2746 = vmatprep.mubr.bf16.mxu0 0
        %2747 = vmatmul.mubr.bf16.gmra.mrb[0].mxu0 %v1316
        %v2748 = vpop.f32.mrb[0].mxu0
        %v2749 = vadd.f32 0.0, %v2748
        %v2750 = vpop.f32.mrb[0].mxu0
        %v2751 = vpop.f32.mrb[0].mxu0
        %v2752 = vadd.f32 0.0, %v2751
        %v2753 = vpop.f32.mrb[0].mxu0
        %2754 = vmatprep.mubr.bf16.mxu0 0
        %2755 = vmatmul.mubr.bf16.gmra.mrb[0].mxu0 %v1317
        %v2756 = vpop.f32.mrb[0].mxu0
        %v2757 = vadd.f32 0.0, %v2756
        %v2758 = vpop.f32.mrb[0].mxu0
        %v2759 = vpop.f32.mrb[0].mxu0
        %v2760 = vadd.f32 0.0, %v2759
        %v2761 = vpop.f32.mrb[0].mxu0
        %2762 = vmatprep.mubr.bf16.mxu0 0
        %2763 = vmatmul.mubr.bf16.gmra.mrb[0].mxu0 %v1318
        %v2764 = vpop.f32.mrb[0].mxu0
        %v2765 = vadd.f32 0.0, %v2764
        %v2766 = vpop.f32.mrb[0].mxu0
        %v2767 = vpop.f32.mrb[0].mxu0
        %v2768 = vadd.f32 0.0, %v2767
        %v2769 = vpop.f32.mrb[0].mxu0
        %2770 = vdwg.mxu0
        %v2771 = vadd.f32 %v2513, %v2645
        %v2772 = vadd.f32 %v2514, %v2648
        %v2773 = vadd.f32 %v2515, %v2653
        %v2774 = vadd.f32 %v2516, %v2656
        %v2775 = vadd.f32 %v2517, %v2661
        %v2776 = vadd.f32 %v2518, %v2664
        %v2777 = vadd.f32 %v2519, %v2669
        %v2778 = vadd.f32 %v2520, %v2672
        %v2779 = vadd.f32 %v2521, %v2677
        %v2780 = vadd.f32 %v2522, %v2680
        %v2781 = vadd.f32 %v2523, %v2685
        %v2782 = vadd.f32 %v2524, %v2688
        %v2783 = vadd.f32 %v2525, %v2693
        %v2784 = vadd.f32 %v2526, %v2696
        %v2785 = vadd.f32 %v2527, %v2701
        %v2786 = vadd.f32 %v2528, %v2704
        %v2787 = vadd.f32 %v2529, %v2709
        %v2788 = vadd.f32 %v2530, %v2712
        %v2789 = vadd.f32 %v2531, %v2717
        %v2790 = vadd.f32 %v2532, %v2720
        %v2791 = vadd.f32 %v2533, %v2725
        %v2792 = vadd.f32 %v2534, %v2728
        %v2793 = vadd.f32 %v2535, %v2733
        %v2794 = vadd.f32 %v2536, %v2736
        %v2795 = vadd.f32 %v2537, %v2741
        %v2796 = vadd.f32 %v2538, %v2744
        %v2797 = vadd.f32 %v2539, %v2749
        %v2798 = vadd.f32 %v2540, %v2752
        %v2799 = vadd.f32 %v2541, %v2757
        %v2800 = vadd.f32 %v2542, %v2760
        %v2801 = vadd.f32 %v2543, %v2765
        %v2802 = vadd.f32 %v2544, %v2768
        %s2803 = scalar_lea.vmem [#allocation6], 384
        %v2804 = vld [vmem:[%s2803] sm:$0xf]
        %v2805 = vld [vmem:[%s2803 + $0x4] sm:$0xf]
        %v2806 = vld [vmem:[%s2803 + $0x8] sm:$0xf]
        %v2807 = vld [vmem:[%s2803 + $0xc] sm:$0xf]
        %v2808 = vld [vmem:[%s2803 + $0x10] sm:$0xf]
        %v2809 = vld [vmem:[%s2803 + $0x14] sm:$0xf]
        %v2810 = vld [vmem:[%s2803 + $0x18] sm:$0xf]
        %v2811 = vld [vmem:[%s2803 + $0x1c] sm:$0xf]
        %v2812 = vld [vmem:[%s2803 + $0x20] sm:$0xf]
        %v2813 = vld [vmem:[%s2803 + $0x24] sm:$0xf]
        %v2814 = vld [vmem:[%s2803 + $0x28] sm:$0xf]
        %v2815 = vld [vmem:[%s2803 + $0x2c] sm:$0xf]
        %v2816 = vld [vmem:[%s2803 + $0x30] sm:$0xf]
        %v2817 = vld [vmem:[%s2803 + $0x34] sm:$0xf]
        %v2818 = vld [vmem:[%s2803 + $0x38] sm:$0xf]
        %v2819 = vld [vmem:[%s2803 + $0x3c] sm:$0xf]
        %v2836 = vunpack.c.l.b16 %v2804
        %v2837 = vunpack.c.l.b16 %v2805
        %v2838 = vunpack.c.l.b16 %v2806
        %v2839 = vunpack.c.l.b16 %v2807
        %v2840 = vunpack.c.l.b16 %v2808
        %v2841 = vunpack.c.l.b16 %v2809
        %v2842 = vunpack.c.l.b16 %v2810
        %v2843 = vunpack.c.l.b16 %v2811
        %v2844 = vunpack.c.l.b16 %v2812
        %v2845 = vunpack.c.l.b16 %v2813
        %v2846 = vunpack.c.l.b16 %v2814
        %v2847 = vunpack.c.l.b16 %v2815
        %v2848 = vunpack.c.l.b16 %v2816
        %v2849 = vunpack.c.l.b16 %v2817
        %v2850 = vunpack.c.l.b16 %v2818
        %v2851 = vunpack.c.l.b16 %v2819
        %v2852 = vpack.c.b16 %v2837, %v2836
        %v2853 = vpack.c.b16 %v2839, %v2838
        %v2854 = vpack.c.b16 %v2841, %v2840
        %v2855 = vpack.c.b16 %v2843, %v2842
        %v2856 = vpack.c.b16 %v2845, %v2844
        %v2857 = vpack.c.b16 %v2847, %v2846
        %v2858 = vpack.c.b16 %v2849, %v2848
        %v2859 = vpack.c.b16 %v2851, %v2850
        %2868 = vmatprep.subr.bf16.mxu0 0
        %2869 = vmatpush1.bf16.msra.mxu0 %v2852
        %2870 = vmatprep.subr.bf16.mxu0 0
        %2871 = vmatpush1.bf16.msra.mxu0 %v2853
        %2872 = vmatprep.subr.bf16.mxu0 0
        %2873 = vmatpush1.bf16.msra.mxu0 %v2854
        %2874 = vmatprep.subr.bf16.mxu0 0
        %2875 = vmatpush1.bf16.msra.mxu0 %v2855
        %2876 = vmatprep.subr.bf16.mxu0 0
        %2877 = vmatpush1.bf16.msra.mxu0 %v2856
        %2878 = vmatprep.subr.bf16.mxu0 0
        %2879 = vmatpush1.bf16.msra.mxu0 %v2857
        %2880 = vmatprep.subr.bf16.mxu0 0
        %2881 = vmatpush1.bf16.msra.mxu0 %v2858
        %2882 = vmatprep.subr.bf16.mxu0 0
        %2883 = vmatpush1.bf16.msra.mxu0 %v2859
        %2884 = vmatprep.subr.bf16.mxu0 0
        %2885 = vmatpush1.bf16.msra.mxu0 0
        %2886 = vmatprep.subr.bf16.mxu0 0
        %2887 = vmatpush1.bf16.msra.mxu0 0
        %2888 = vmatprep.subr.bf16.mxu0 0
        %2889 = vmatpush1.bf16.msra.mxu0 0
        %2890 = vmatprep.subr.bf16.mxu0 0
        %2891 = vmatpush1.bf16.msra.mxu0 0
        %2892 = vmatprep.subr.bf16.mxu0 0
        %2893 = vmatpush1.bf16.msra.mxu0 0
        %2894 = vmatprep.subr.bf16.mxu0 0
        %2895 = vmatpush1.bf16.msra.mxu0 0
        %2896 = vmatprep.subr.bf16.mxu0 0
        %2897 = vmatpush1.bf16.msra.mxu0 0
        %2898 = vmatprep.subr.bf16.mxu0 0
        %2899 = vmatpush1.bf16.msra.mxu0 0
        %2900 = vmatprep.mubr.bf16.mxu0 0
        %2901 = vmatmul.mubr.bf16.gmra.mrb[0].mxu0 %v1268
        %v2902 = vpop.f32.mrb[0].mxu0
        %v2903 = vadd.f32 0.0, %v2902
        %v2904 = vpop.f32.mrb[0].mxu0
        %v2905 = vpop.f32.mrb[0].mxu0
        %v2906 = vadd.f32 0.0, %v2905
        %v2907 = vpop.f32.mrb[0].mxu0
        %2908 = vmatprep.mubr.bf16.mxu0 0
        %2909 = vmatmul.mubr.bf16.gmra.mrb[0].mxu0 %v1269
        %v2910 = vpop.f32.mrb[0].mxu0
        %v2911 = vadd.f32 0.0, %v2910
        %v2912 = vpop.f32.mrb[0].mxu0
        %v2913 = vpop.f32.mrb[0].mxu0
        %v2914 = vadd.f32 0.0, %v2913
        %v2915 = vpop.f32.mrb[0].mxu0
        %2916 = vmatprep.mubr.bf16.mxu0 0
        %2917 = vmatmul.mubr.bf16.gmra.mrb[0].mxu0 %v1270
        %v2918 = vpop.f32.mrb[0].mxu0
        %v2919 = vadd.f32 0.0, %v2918
        %v2920 = vpop.f32.mrb[0].mxu0
        %v2921 = vpop.f32.mrb[0].mxu0
        %v2922 = vadd.f32 0.0, %v2921
        %v2923 = vpop.f32.mrb[0].mxu0
        %2924 = vmatprep.mubr.bf16.mxu0 0
        %2925 = vmatmul.mubr.bf16.gmra.mrb[0].mxu0 %v1271
        %v2926 = vpop.f32.mrb[0].mxu0
        %v2927 = vadd.f32 0.0, %v2926
        %v2928 = vpop.f32.mrb[0].mxu0
        %v2929 = vpop.f32.mrb[0].mxu0
        %v2930 = vadd.f32 0.0, %v2929
        %v2931 = vpop.f32.mrb[0].mxu0
        %2932 = vmatprep.mubr.bf16.mxu0 0
        %2933 = vmatmul.mubr.bf16.gmra.mrb[0].mxu0 %v1272
        %v2934 = vpop.f32.mrb[0].mxu0
        %v2935 = vadd.f32 0.0, %v2934
        %v2936 = vpop.f32.mrb[0].mxu0
        %v2937 = vpop.f32.mrb[0].mxu0
        %v2938 = vadd.f32 0.0, %v2937
        %v2939 = vpop.f32.mrb[0].mxu0
        %2940 = vmatprep.mubr.bf16.mxu0 0
        %2941 = vmatmul.mubr.bf16.gmra.mrb[0].mxu0 %v1273
        %v2942 = vpop.f32.mrb[0].mxu0
        %v2943 = vadd.f32 0.0, %v2942
        %v2944 = vpop.f32.mrb[0].mxu0
        %v2945 = vpop.f32.mrb[0].mxu0
        %v2946 = vadd.f32 0.0, %v2945
        %v2947 = vpop.f32.mrb[0].mxu0
        %2948 = vmatprep.mubr.bf16.mxu0 0
        %2949 = vmatmul.mubr.bf16.gmra.mrb[0].mxu0 %v1274
        %v2950 = vpop.f32.mrb[0].mxu0
        %v2951 = vadd.f32 0.0, %v2950
        %v2952 = vpop.f32.mrb[0].mxu0
        %v2953 = vpop.f32.mrb[0].mxu0
        %v2954 = vadd.f32 0.0, %v2953
        %v2955 = vpop.f32.mrb[0].mxu0
        %2956 = vmatprep.mubr.bf16.mxu0 0
        %2957 = vmatmul.mubr.bf16.gmra.mrb[0].mxu0 %v1275
        %v2958 = vpop.f32.mrb[0].mxu0
        %v2959 = vadd.f32 0.0, %v2958
        %v2960 = vpop.f32.mrb[0].mxu0
        %v2961 = vpop.f32.mrb[0].mxu0
        %v2962 = vadd.f32 0.0, %v2961
        %v2963 = vpop.f32.mrb[0].mxu0
        %2964 = vmatprep.mubr.bf16.mxu0 0
        %2965 = vmatmul.mubr.bf16.gmra.mrb[0].mxu0 %v1276
        %v2966 = vpop.f32.mrb[0].mxu0
        %v2967 = vadd.f32 0.0, %v2966
        %v2968 = vpop.f32.mrb[0].mxu0
        %v2969 = vpop.f32.mrb[0].mxu0
        %v2970 = vadd.f32 0.0, %v2969
        %v2971 = vpop.f32.mrb[0].mxu0
        %2972 = vmatprep.mubr.bf16.mxu0 0
        %2973 = vmatmul.mubr.bf16.gmra.mrb[0].mxu0 %v1277
        %v2974 = vpop.f32.mrb[0].mxu0
        %v2975 = vadd.f32 0.0, %v2974
        %v2976 = vpop.f32.mrb[0].mxu0
        %v2977 = vpop.f32.mrb[0].mxu0
        %v2978 = vadd.f32 0.0, %v2977
        %v2979 = vpop.f32.mrb[0].mxu0
        %2980 = vmatprep.mubr.bf16.mxu0 0
        %2981 = vmatmul.mubr.bf16.gmra.mrb[0].mxu0 %v1278
        %v2982 = vpop.f32.mrb[0].mxu0
        %v2983 = vadd.f32 0.0, %v2982
        %v2984 = vpop.f32.mrb[0].mxu0
        %v2985 = vpop.f32.mrb[0].mxu0
        %v2986 = vadd.f32 0.0, %v2985
        %v2987 = vpop.f32.mrb[0].mxu0
        %2988 = vmatprep.mubr.bf16.mxu0 0
        %2989 = vmatmul.mubr.bf16.gmra.mrb[0].mxu0 %v1279
        %v2990 = vpop.f32.mrb[0].mxu0
        %v2991 = vadd.f32 0.0, %v2990
        %v2992 = vpop.f32.mrb[0].mxu0
        %v2993 = vpop.f32.mrb[0].mxu0
        %v2994 = vadd.f32 0.0, %v2993
        %v2995 = vpop.f32.mrb[0].mxu0
        %2996 = vmatprep.mubr.bf16.mxu0 0
        %2997 = vmatmul.mubr.bf16.gmra.mrb[0].mxu0 %v1280
        %v2998 = vpop.f32.mrb[0].mxu0
        %v2999 = vadd.f32 0.0, %v2998
        %v3000 = vpop.f32.mrb[0].mxu0
        %v3001 = vpop.f32.mrb[0].mxu0
        %v3002 = vadd.f32 0.0, %v3001
        %v3003 = vpop.f32.mrb[0].mxu0
        %3004 = vmatprep.mubr.bf16.mxu0 0
        %3005 = vmatmul.mubr.bf16.gmra.mrb[0].mxu0 %v1281
        %v3006 = vpop.f32.mrb[0].mxu0
        %v3007 = vadd.f32 0.0, %v3006
        %v3008 = vpop.f32.mrb[0].mxu0
        %v3009 = vpop.f32.mrb[0].mxu0
        %v3010 = vadd.f32 0.0, %v3009
        %v3011 = vpop.f32.mrb[0].mxu0
        %3012 = vmatprep.mubr.bf16.mxu0 0
        %3013 = vmatmul.mubr.bf16.gmra.mrb[0].mxu0 %v1282
        %v3014 = vpop.f32.mrb[0].mxu0
        %v3015 = vadd.f32 0.0, %v3014
        %v3016 = vpop.f32.mrb[0].mxu0
        %v3017 = vpop.f32.mrb[0].mxu0
        %v3018 = vadd.f32 0.0, %v3017
        %v3019 = vpop.f32.mrb[0].mxu0
        %3020 = vmatprep.mubr.bf16.mxu0 0
        %3021 = vmatmul.mubr.bf16.gmra.mrb[0].mxu0 %v1283
        %v3022 = vpop.f32.mrb[0].mxu0
        %v3023 = vadd.f32 0.0, %v3022
        %v3024 = vpop.f32.mrb[0].mxu0
        %v3025 = vpop.f32.mrb[0].mxu0
        %v3026 = vadd.f32 0.0, %v3025
        %v3027 = vpop.f32.mrb[0].mxu0
        %3028 = vdwg.mxu0
        %v3029 = vadd.f32 %v2771, %v2903
        %v3030 = vadd.f32 %v2772, %v2906
        %v3031 = vadd.f32 %v2773, %v2911
        %v3032 = vadd.f32 %v2774, %v2914
        %v3033 = vadd.f32 %v2775, %v2919
        %v3034 = vadd.f32 %v2776, %v2922
        %v3035 = vadd.f32 %v2777, %v2927
        %v3036 = vadd.f32 %v2778, %v2930
        %v3037 = vadd.f32 %v2779, %v2935
        %v3038 = vadd.f32 %v2780, %v2938
        %v3039 = vadd.f32 %v2781, %v2943
        %v3040 = vadd.f32 %v2782, %v2946
        %v3041 = vadd.f32 %v2783, %v2951
        %v3042 = vadd.f32 %v2784, %v2954
        %v3043 = vadd.f32 %v2785, %v2959
        %v3044 = vadd.f32 %v2786, %v2962
        %v3045 = vadd.f32 %v2787, %v2967
        %v3046 = vadd.f32 %v2788, %v2970
        %v3047 = vadd.f32 %v2789, %v2975
        %v3048 = vadd.f32 %v2790, %v2978
        %v3049 = vadd.f32 %v2791, %v2983
        %v3050 = vadd.f32 %v2792, %v2986
        %v3051 = vadd.f32 %v2793, %v2991
        %v3052 = vadd.f32 %v2794, %v2994
        %v3053 = vadd.f32 %v2795, %v2999
        %v3054 = vadd.f32 %v2796, %v3002
        %v3055 = vadd.f32 %v2797, %v3007
        %v3056 = vadd.f32 %v2798, %v3010
        %v3057 = vadd.f32 %v2799, %v3015
        %v3058 = vadd.f32 %v2800, %v3018
        %v3059 = vadd.f32 %v2801, %v3023
        %v3060 = vadd.f32 %v2802, %v3026
        %s3061 = scalar_lea.vmem [#allocation6], 448
        %v3062 = vld [vmem:[%s3061] sm:$0xf]
        %v3063 = vld [vmem:[%s3061 + $0x4] sm:$0xf]
        %v3064 = vld [vmem:[%s3061 + $0x8] sm:$0xf]
        %v3065 = vld [vmem:[%s3061 + $0xc] sm:$0xf]
        %v3066 = vld [vmem:[%s3061 + $0x10] sm:$0xf]
        %v3067 = vld [vmem:[%s3061 + $0x14] sm:$0xf]
        %v3068 = vld [vmem:[%s3061 + $0x18] sm:$0xf]
        %v3069 = vld [vmem:[%s3061 + $0x1c] sm:$0xf]
        %v3070 = vld [vmem:[%s3061 + $0x20] sm:$0xf]
        %v3071 = vld [vmem:[%s3061 + $0x24] sm:$0xf]
        %v3072 = vld [vmem:[%s3061 + $0x28] sm:$0xf]
        %v3073 = vld [vmem:[%s3061 + $0x2c] sm:$0xf]
        %v3074 = vld [vmem:[%s3061 + $0x30] sm:$0xf]
        %v3075 = vld [vmem:[%s3061 + $0x34] sm:$0xf]
        %v3076 = vld [vmem:[%s3061 + $0x38] sm:$0xf]
        %v3077 = vld [vmem:[%s3061 + $0x3c] sm:$0xf]
        %v3094 = vunpack.c.l.b16 %v3062
        %v3095 = vunpack.c.l.b16 %v3063
        %v3096 = vunpack.c.l.b16 %v3064
        %v3097 = vunpack.c.l.b16 %v3065
        %v3098 = vunpack.c.l.b16 %v3066
        %v3099 = vunpack.c.l.b16 %v3067
        %v3100 = vunpack.c.l.b16 %v3068
        %v3101 = vunpack.c.l.b16 %v3069
        %v3102 = vunpack.c.l.b16 %v3070
        %v3103 = vunpack.c.l.b16 %v3071
        %v3104 = vunpack.c.l.b16 %v3072
        %v3105 = vunpack.c.l.b16 %v3073
        %v3106 = vunpack.c.l.b16 %v3074
        %v3107 = vunpack.c.l.b16 %v3075
        %v3108 = vunpack.c.l.b16 %v3076
        %v3109 = vunpack.c.l.b16 %v3077
        %v3110 = vpack.c.b16 %v3095, %v3094
        %v3111 = vpack.c.b16 %v3097, %v3096
        %v3112 = vpack.c.b16 %v3099, %v3098
        %v3113 = vpack.c.b16 %v3101, %v3100
        %v3114 = vpack.c.b16 %v3103, %v3102
        %v3115 = vpack.c.b16 %v3105, %v3104
        %v3116 = vpack.c.b16 %v3107, %v3106
        %v3117 = vpack.c.b16 %v3109, %v3108
        %3126 = vmatprep.subr.bf16.mxu0 0
        %3127 = vmatpush1.bf16.msra.mxu0 %v3110
        %3128 = vmatprep.subr.bf16.mxu0 0
        %3129 = vmatpush1.bf16.msra.mxu0 %v3111
        %3130 = vmatprep.subr.bf16.mxu0 0
        %3131 = vmatpush1.bf16.msra.mxu0 %v3112
        %3132 = vmatprep.subr.bf16.mxu0 0
        %3133 = vmatpush1.bf16.msra.mxu0 %v3113
        %3134 = vmatprep.subr.bf16.mxu0 0
        %3135 = vmatpush1.bf16.msra.mxu0 %v3114
        %3136 = vmatprep.subr.bf16.mxu0 0
        %3137 = vmatpush1.bf16.msra.mxu0 %v3115
        %3138 = vmatprep.subr.bf16.mxu0 0
        %3139 = vmatpush1.bf16.msra.mxu0 %v3116
        %3140 = vmatprep.subr.bf16.mxu0 0
        %3141 = vmatpush1.bf16.msra.mxu0 %v3117
        %3142 = vmatprep.subr.bf16.mxu0 0
        %3143 = vmatpush1.bf16.msra.mxu0 0
        %3144 = vmatprep.subr.bf16.mxu0 0
        %3145 = vmatpush1.bf16.msra.mxu0 0
        %3146 = vmatprep.subr.bf16.mxu0 0
        %3147 = vmatpush1.bf16.msra.mxu0 0
        %3148 = vmatprep.subr.bf16.mxu0 0
        %3149 = vmatpush1.bf16.msra.mxu0 0
        %3150 = vmatprep.subr.bf16.mxu0 0
        %3151 = vmatpush1.bf16.msra.mxu0 0
        %3152 = vmatprep.subr.bf16.mxu0 0
        %3153 = vmatpush1.bf16.msra.mxu0 0
        %3154 = vmatprep.subr.bf16.mxu0 0
        %3155 = vmatpush1.bf16.msra.mxu0 0
        %3156 = vmatprep.subr.bf16.mxu0 0
        %3157 = vmatpush1.bf16.msra.mxu0 0
        %3158 = vmatprep.mubr.bf16.mxu0 0
        %3159 = vmatmul.mubr.bf16.gmra.mrb[0].mxu0 %v1286
        %v3160 = vpop.f32.mrb[0].mxu0
        %v3161 = vadd.f32 0.0, %v3160
        %v3162 = vpop.f32.mrb[0].mxu0
        %v3163 = vpop.f32.mrb[0].mxu0
        %v3164 = vadd.f32 0.0, %v3163
        %v3165 = vpop.f32.mrb[0].mxu0
        %3166 = vmatprep.mubr.bf16.mxu0 0
        %3167 = vmatmul.mubr.bf16.gmra.mrb[0].mxu0 %v1287
        %v3168 = vpop.f32.mrb[0].mxu0
        %v3169 = vadd.f32 0.0, %v3168
        %v3170 = vpop.f32.mrb[0].mxu0
        %v3171 = vpop.f32.mrb[0].mxu0
        %v3172 = vadd.f32 0.0, %v3171
        %v3173 = vpop.f32.mrb[0].mxu0
        %3174 = vmatprep.mubr.bf16.mxu0 0
        %3175 = vmatmul.mubr.bf16.gmra.mrb[0].mxu0 %v1288
        %v3176 = vpop.f32.mrb[0].mxu0
        %v3177 = vadd.f32 0.0, %v3176
        %v3178 = vpop.f32.mrb[0].mxu0
        %v3179 = vpop.f32.mrb[0].mxu0
        %v3180 = vadd.f32 0.0, %v3179
        %v3181 = vpop.f32.mrb[0].mxu0
        %3182 = vmatprep.mubr.bf16.mxu0 0
        %3183 = vmatmul.mubr.bf16.gmra.mrb[0].mxu0 %v1289
        %v3184 = vpop.f32.mrb[0].mxu0
        %v3185 = vadd.f32 0.0, %v3184
        %v3186 = vpop.f32.mrb[0].mxu0
        %v3187 = vpop.f32.mrb[0].mxu0
        %v3188 = vadd.f32 0.0, %v3187
        %v3189 = vpop.f32.mrb[0].mxu0
        %3190 = vmatprep.mubr.bf16.mxu0 0
        %3191 = vmatmul.mubr.bf16.gmra.mrb[0].mxu0 %v1290
        %v3192 = vpop.f32.mrb[0].mxu0
        %v3193 = vadd.f32 0.0, %v3192
        %v3194 = vpop.f32.mrb[0].mxu0
        %v3195 = vpop.f32.mrb[0].mxu0
        %v3196 = vadd.f32 0.0, %v3195
        %v3197 = vpop.f32.mrb[0].mxu0
        %3198 = vmatprep.mubr.bf16.mxu0 0
        %3199 = vmatmul.mubr.bf16.gmra.mrb[0].mxu0 %v1291
        %v3200 = vpop.f32.mrb[0].mxu0
        %v3201 = vadd.f32 0.0, %v3200
        %v3202 = vpop.f32.mrb[0].mxu0
        %v3203 = vpop.f32.mrb[0].mxu0
        %v3204 = vadd.f32 0.0, %v3203
        %v3205 = vpop.f32.mrb[0].mxu0
        %3206 = vmatprep.mubr.bf16.mxu0 0
        %3207 = vmatmul.mubr.bf16.gmra.mrb[0].mxu0 %v1292
        %v3208 = vpop.f32.mrb[0].mxu0
        %v3209 = vadd.f32 0.0, %v3208
        %v3210 = vpop.f32.mrb[0].mxu0
        %v3211 = vpop.f32.mrb[0].mxu0
        %v3212 = vadd.f32 0.0, %v3211
        %v3213 = vpop.f32.mrb[0].mxu0
        %3214 = vmatprep.mubr.bf16.mxu0 0
        %3215 = vmatmul.mubr.bf16.gmra.mrb[0].mxu0 %v1293
        %v3216 = vpop.f32.mrb[0].mxu0
        %v3217 = vadd.f32 0.0, %v3216
        %v3218 = vpop.f32.mrb[0].mxu0
        %v3219 = vpop.f32.mrb[0].mxu0
        %v3220 = vadd.f32 0.0, %v3219
        %v3221 = vpop.f32.mrb[0].mxu0
        %3222 = vmatprep.mubr.bf16.mxu0 0
        %3223 = vmatmul.mubr.bf16.gmra.mrb[0].mxu0 %v1294
        %v3224 = vpop.f32.mrb[0].mxu0
        %v3225 = vadd.f32 0.0, %v3224
        %v3226 = vpop.f32.mrb[0].mxu0
        %v3227 = vpop.f32.mrb[0].mxu0
        %v3228 = vadd.f32 0.0, %v3227
        %v3229 = vpop.f32.mrb[0].mxu0
        %3230 = vmatprep.mubr.bf16.mxu0 0
        %3231 = vmatmul.mubr.bf16.gmra.mrb[0].mxu0 %v1295
        %v3232 = vpop.f32.mrb[0].mxu0
        %v3233 = vadd.f32 0.0, %v3232
        %v3234 = vpop.f32.mrb[0].mxu0
        %v3235 = vpop.f32.mrb[0].mxu0
        %v3236 = vadd.f32 0.0, %v3235
        %v3237 = vpop.f32.mrb[0].mxu0
        %3238 = vmatprep.mubr.bf16.mxu0 0
        %3239 = vmatmul.mubr.bf16.gmra.mrb[0].mxu0 %v1296
        %v3240 = vpop.f32.mrb[0].mxu0
        %v3241 = vadd.f32 0.0, %v3240
        %v3242 = vpop.f32.mrb[0].mxu0
        %v3243 = vpop.f32.mrb[0].mxu0
        %v3244 = vadd.f32 0.0, %v3243
        %v3245 = vpop.f32.mrb[0].mxu0
        %3246 = vmatprep.mubr.bf16.mxu0 0
        %3247 = vmatmul.mubr.bf16.gmra.mrb[0].mxu0 %v1297
        %v3248 = vpop.f32.mrb[0].mxu0
        %v3249 = vadd.f32 0.0, %v3248
        %v3250 = vpop.f32.mrb[0].mxu0
        %v3251 = vpop.f32.mrb[0].mxu0
        %v3252 = vadd.f32 0.0, %v3251
        %v3253 = vpop.f32.mrb[0].mxu0
        %3254 = vmatprep.mubr.bf16.mxu0 0
        %3255 = vmatmul.mubr.bf16.gmra.mrb[0].mxu0 %v1298
        %v3256 = vpop.f32.mrb[0].mxu0
        %v3257 = vadd.f32 0.0, %v3256
        %v3258 = vpop.f32.mrb[0].mxu0
        %v3259 = vpop.f32.mrb[0].mxu0
        %v3260 = vadd.f32 0.0, %v3259
        %v3261 = vpop.f32.mrb[0].mxu0
        %3262 = vmatprep.mubr.bf16.mxu0 0
        %3263 = vmatmul.mubr.bf16.gmra.mrb[0].mxu0 %v1299
        %v3264 = vpop.f32.mrb[0].mxu0
        %v3265 = vadd.f32 0.0, %v3264
        %v3266 = vpop.f32.mrb[0].mxu0
        %v3267 = vpop.f32.mrb[0].mxu0
        %v3268 = vadd.f32 0.0, %v3267
        %v3269 = vpop.f32.mrb[0].mxu0
        %3270 = vmatprep.mubr.bf16.mxu0 0
        %3271 = vmatmul.mubr.bf16.gmra.mrb[0].mxu0 %v1300
        %v3272 = vpop.f32.mrb[0].mxu0
        %v3273 = vadd.f32 0.0, %v3272
        %v3274 = vpop.f32.mrb[0].mxu0
        %v3275 = vpop.f32.mrb[0].mxu0
        %v3276 = vadd.f32 0.0, %v3275
        %v3277 = vpop.f32.mrb[0].mxu0
        %3278 = vmatprep.mubr.bf16.mxu0 0
        %3279 = vmatmul.mubr.bf16.gmra.mrb[0].mxu0 %v1301
        %v3280 = vpop.f32.mrb[0].mxu0
        %v3281 = vadd.f32 0.0, %v3280
        %v3282 = vpop.f32.mrb[0].mxu0
        %v3283 = vpop.f32.mrb[0].mxu0
        %v3284 = vadd.f32 0.0, %v3283
        %v3285 = vpop.f32.mrb[0].mxu0
        %3286 = vdwg.mxu0
        %v3287 = vadd.f32 %v3029, %v3161
        %v3288 = vadd.f32 %v3030, %v3164
        %v3289 = vadd.f32 %v3031, %v3169
        %v3290 = vadd.f32 %v3032, %v3172
        %v3291 = vadd.f32 %v3033, %v3177
        %v3292 = vadd.f32 %v3034, %v3180
        %v3293 = vadd.f32 %v3035, %v3185
        %v3294 = vadd.f32 %v3036, %v3188
        %v3295 = vadd.f32 %v3037, %v3193
        %v3296 = vadd.f32 %v3038, %v3196
        %v3297 = vadd.f32 %v3039, %v3201
        %v3298 = vadd.f32 %v3040, %v3204
        %v3299 = vadd.f32 %v3041, %v3209
        %v3300 = vadd.f32 %v3042, %v3212
        %v3301 = vadd.f32 %v3043, %v3217
        %v3302 = vadd.f32 %v3044, %v3220
        %v3303 = vadd.f32 %v3045, %v3225
        %v3304 = vadd.f32 %v3046, %v3228
        %v3305 = vadd.f32 %v3047, %v3233
        %v3306 = vadd.f32 %v3048, %v3236
        %v3307 = vadd.f32 %v3049, %v3241
        %v3308 = vadd.f32 %v3050, %v3244
        %v3309 = vadd.f32 %v3051, %v3249
        %v3310 = vadd.f32 %v3052, %v3252
        %v3311 = vadd.f32 %v3053, %v3257
        %v3312 = vadd.f32 %v3054, %v3260
        %v3313 = vadd.f32 %v3055, %v3265
        %v3314 = vadd.f32 %v3056, %v3268
        %v3315 = vadd.f32 %v3057, %v3273
        %v3316 = vadd.f32 %v3058, %v3276
        %v3317 = vadd.f32 %v3059, %v3281
        %v3318 = vadd.f32 %v3060, %v3284
        %s3319 = scalar_lea.vmem [#allocation6], 512
        %v3320 = vld [vmem:[%s3319] sm:$0xf]
        %v3321 = vld [vmem:[%s3319 + $0x4] sm:$0xf]
        %v3322 = vld [vmem:[%s3319 + $0x8] sm:$0xf]
        %v3323 = vld [vmem:[%s3319 + $0xc] sm:$0xf]
        %v3324 = vld [vmem:[%s3319 + $0x10] sm:$0xf]
        %v3325 = vld [vmem:[%s3319 + $0x14] sm:$0xf]
        %v3326 = vld [vmem:[%s3319 + $0x18] sm:$0xf]
        %v3327 = vld [vmem:[%s3319 + $0x1c] sm:$0xf]
        %v3328 = vld [vmem:[%s3319 + $0x20] sm:$0xf]
        %v3329 = vld [vmem:[%s3319 + $0x24] sm:$0xf]
        %v3330 = vld [vmem:[%s3319 + $0x28] sm:$0xf]
        %v3331 = vld [vmem:[%s3319 + $0x2c] sm:$0xf]
        %v3332 = vld [vmem:[%s3319 + $0x30] sm:$0xf]
        %v3333 = vld [vmem:[%s3319 + $0x34] sm:$0xf]
        %v3334 = vld [vmem:[%s3319 + $0x38] sm:$0xf]
        %v3335 = vld [vmem:[%s3319 + $0x3c] sm:$0xf]
        %v3352 = vunpack.c.l.b16 %v3320
        %v3353 = vunpack.c.l.b16 %v3321
        %v3354 = vunpack.c.l.b16 %v3322
        %v3355 = vunpack.c.l.b16 %v3323
        %v3356 = vunpack.c.l.b16 %v3324
        %v3357 = vunpack.c.l.b16 %v3325
        %v3358 = vunpack.c.l.b16 %v3326
        %v3359 = vunpack.c.l.b16 %v3327
        %v3360 = vunpack.c.l.b16 %v3328
        %v3361 = vunpack.c.l.b16 %v3329
        %v3362 = vunpack.c.l.b16 %v3330
        %v3363 = vunpack.c.l.b16 %v3331
        %v3364 = vunpack.c.l.b16 %v3332
        %v3365 = vunpack.c.l.b16 %v3333
        %v3366 = vunpack.c.l.b16 %v3334
        %v3367 = vunpack.c.l.b16 %v3335
        %v3368 = vpack.c.b16 %v3353, %v3352
        %v3369 = vpack.c.b16 %v3355, %v3354
        %v3370 = vpack.c.b16 %v3357, %v3356
        %v3371 = vpack.c.b16 %v3359, %v3358
        %v3372 = vpack.c.b16 %v3361, %v3360
        %v3373 = vpack.c.b16 %v3363, %v3362
        %v3374 = vpack.c.b16 %v3365, %v3364
        %v3375 = vpack.c.b16 %v3367, %v3366
        %3384 = vmatprep.subr.bf16.mxu0 0
        %3385 = vmatpush1.bf16.msra.mxu0 %v3368
        %3386 = vmatprep.subr.bf16.mxu0 0
        %3387 = vmatpush1.bf16.msra.mxu0 %v3369
        %3388 = vmatprep.subr.bf16.mxu0 0
        %3389 = vmatpush1.bf16.msra.mxu0 %v3370
        %3390 = vmatprep.subr.bf16.mxu0 0
        %3391 = vmatpush1.bf16.msra.mxu0 %v3371
        %3392 = vmatprep.subr.bf16.mxu0 0
        %3393 = vmatpush1.bf16.msra.mxu0 %v3372
        %3394 = vmatprep.subr.bf16.mxu0 0
        %3395 = vmatpush1.bf16.msra.mxu0 %v3373
        %3396 = vmatprep.subr.bf16.mxu0 0
        %3397 = vmatpush1.bf16.msra.mxu0 %v3374
        %3398 = vmatprep.subr.bf16.mxu0 0
        %3399 = vmatpush1.bf16.msra.mxu0 %v3375
        %3400 = vmatprep.subr.bf16.mxu0 0
        %3401 = vmatpush1.bf16.msra.mxu0 0
        %3402 = vmatprep.subr.bf16.mxu0 0
        %3403 = vmatpush1.bf16.msra.mxu0 0
        %3404 = vmatprep.subr.bf16.mxu0 0
        %3405 = vmatpush1.bf16.msra.mxu0 0
        %3406 = vmatprep.subr.bf16.mxu0 0
        %3407 = vmatpush1.bf16.msra.mxu0 0
        %3408 = vmatprep.subr.bf16.mxu0 0
        %3409 = vmatpush1.bf16.msra.mxu0 0
        %3410 = vmatprep.subr.bf16.mxu0 0
        %3411 = vmatpush1.bf16.msra.mxu0 0
        %3412 = vmatprep.subr.bf16.mxu0 0
        %3413 = vmatpush1.bf16.msra.mxu0 0
        %3414 = vmatprep.subr.bf16.mxu0 0
        %3415 = vmatpush1.bf16.msra.mxu0 0
        %3416 = vmatprep.mubr.bf16.mxu0 0
        %3417 = vmatmul.mubr.bf16.gmra.mrb[0].mxu0 %v1304
        %v3418 = vpop.f32.mrb[0].mxu0
        %v3419 = vadd.f32 0.0, %v3418
        %v3420 = vpop.f32.mrb[0].mxu0
        %v3421 = vpop.f32.mrb[0].mxu0
        %v3422 = vadd.f32 0.0, %v3421
        %v3423 = vpop.f32.mrb[0].mxu0
        %3424 = vmatprep.mubr.bf16.mxu0 0
        %3425 = vmatmul.mubr.bf16.gmra.mrb[0].mxu0 %v1305
        %v3426 = vpop.f32.mrb[0].mxu0
        %v3427 = vadd.f32 0.0, %v3426
        %v3428 = vpop.f32.mrb[0].mxu0
        %v3429 = vpop.f32.mrb[0].mxu0
        %v3430 = vadd.f32 0.0, %v3429
        %v3431 = vpop.f32.mrb[0].mxu0
        %3432 = vmatprep.mubr.bf16.mxu0 0
        %3433 = vmatmul.mubr.bf16.gmra.mrb[0].mxu0 %v1306
        %v3434 = vpop.f32.mrb[0].mxu0
        %v3435 = vadd.f32 0.0, %v3434
        %v3436 = vpop.f32.mrb[0].mxu0
        %v3437 = vpop.f32.mrb[0].mxu0
        %v3438 = vadd.f32 0.0, %v3437
        %v3439 = vpop.f32.mrb[0].mxu0
        %3440 = vmatprep.mubr.bf16.mxu0 0
        %3441 = vmatmul.mubr.bf16.gmra.mrb[0].mxu0 %v1307
        %v3442 = vpop.f32.mrb[0].mxu0
        %v3443 = vadd.f32 0.0, %v3442
        %v3444 = vpop.f32.mrb[0].mxu0
        %v3445 = vpop.f32.mrb[0].mxu0
        %v3446 = vadd.f32 0.0, %v3445
        %v3447 = vpop.f32.mrb[0].mxu0
        %3448 = vmatprep.mubr.bf16.mxu0 0
        %3449 = vmatmul.mubr.bf16.gmra.mrb[0].mxu0 %v1308
        %v3450 = vpop.f32.mrb[0].mxu0
        %v3451 = vadd.f32 0.0, %v3450
        %v3452 = vpop.f32.mrb[0].mxu0
        %v3453 = vpop.f32.mrb[0].mxu0
        %v3454 = vadd.f32 0.0, %v3453
        %v3455 = vpop.f32.mrb[0].mxu0
        %3456 = vmatprep.mubr.bf16.mxu0 0
        %3457 = vmatmul.mubr.bf16.gmra.mrb[0].mxu0 %v1309
        %v3458 = vpop.f32.mrb[0].mxu0
        %v3459 = vadd.f32 0.0, %v3458
        %v3460 = vpop.f32.mrb[0].mxu0
        %v3461 = vpop.f32.mrb[0].mxu0
        %v3462 = vadd.f32 0.0, %v3461
        %v3463 = vpop.f32.mrb[0].mxu0
        %3464 = vmatprep.mubr.bf16.mxu0 0
        %3465 = vmatmul.mubr.bf16.gmra.mrb[0].mxu0 %v1310
        %v3466 = vpop.f32.mrb[0].mxu0
        %v3467 = vadd.f32 0.0, %v3466
        %v3468 = vpop.f32.mrb[0].mxu0
        %v3469 = vpop.f32.mrb[0].mxu0
        %v3470 = vadd.f32 0.0, %v3469
        %v3471 = vpop.f32.mrb[0].mxu0
        %3472 = vmatprep.mubr.bf16.mxu0 0
        %3473 = vmatmul.mubr.bf16.gmra.mrb[0].mxu0 %v1311
        %v3474 = vpop.f32.mrb[0].mxu0
        %v3475 = vadd.f32 0.0, %v3474
        %v3476 = vpop.f32.mrb[0].mxu0
        %v3477 = vpop.f32.mrb[0].mxu0
        %v3478 = vadd.f32 0.0, %v3477
        %v3479 = vpop.f32.mrb[0].mxu0
        %3480 = vmatprep.mubr.bf16.mxu0 0
        %3481 = vmatmul.mubr.bf16.gmra.mrb[0].mxu0 %v1312
        %v3482 = vpop.f32.mrb[0].mxu0
        %v3483 = vadd.f32 0.0, %v3482
        %v3484 = vpop.f32.mrb[0].mxu0
        %v3485 = vpop.f32.mrb[0].mxu0
        %v3486 = vadd.f32 0.0, %v3485
        %v3487 = vpop.f32.mrb[0].mxu0
        %3488 = vmatprep.mubr.bf16.mxu0 0
        %3489 = vmatmul.mubr.bf16.gmra.mrb[0].mxu0 %v1313
        %v3490 = vpop.f32.mrb[0].mxu0
        %v3491 = vadd.f32 0.0, %v3490
        %v3492 = vpop.f32.mrb[0].mxu0
        %v3493 = vpop.f32.mrb[0].mxu0
        %v3494 = vadd.f32 0.0, %v3493
        %v3495 = vpop.f32.mrb[0].mxu0
        %3496 = vmatprep.mubr.bf16.mxu0 0
        %3497 = vmatmul.mubr.bf16.gmra.mrb[0].mxu0 %v1314
        %v3498 = vpop.f32.mrb[0].mxu0
        %v3499 = vadd.f32 0.0, %v3498
        %v3500 = vpop.f32.mrb[0].mxu0
        %v3501 = vpop.f32.mrb[0].mxu0
        %v3502 = vadd.f32 0.0, %v3501
        %v3503 = vpop.f32.mrb[0].mxu0
        %3504 = vmatprep.mubr.bf16.mxu0 0
        %3505 = vmatmul.mubr.bf16.gmra.mrb[0].mxu0 %v1315
        %v3506 = vpop.f32.mrb[0].mxu0
        %v3507 = vadd.f32 0.0, %v3506
        %v3508 = vpop.f32.mrb[0].mxu0
        %v3509 = vpop.f32.mrb[0].mxu0
        %v3510 = vadd.f32 0.0, %v3509
        %v3511 = vpop.f32.mrb[0].mxu0
        %3512 = vmatprep.mubr.bf16.mxu0 0
        %3513 = vmatmul.mubr.bf16.gmra.mrb[0].mxu0 %v1316
        %v3514 = vpop.f32.mrb[0].mxu0
        %v3515 = vadd.f32 0.0, %v3514
        %v3516 = vpop.f32.mrb[0].mxu0
        %v3517 = vpop.f32.mrb[0].mxu0
        %v3518 = vadd.f32 0.0, %v3517
        %v3519 = vpop.f32.mrb[0].mxu0
        %3520 = vmatprep.mubr.bf16.mxu0 0
        %3521 = vmatmul.mubr.bf16.gmra.mrb[0].mxu0 %v1317
        %v3522 = vpop.f32.mrb[0].mxu0
        %v3523 = vadd.f32 0.0, %v3522
        %v3524 = vpop.f32.mrb[0].mxu0
        %v3525 = vpop.f32.mrb[0].mxu0
        %v3526 = vadd.f32 0.0, %v3525
        %v3527 = vpop.f32.mrb[0].mxu0
        %3528 = vmatprep.mubr.bf16.mxu0 0
        %3529 = vmatmul.mubr.bf16.gmra.mrb[0].mxu0 %v1318
        %v3530 = vpop.f32.mrb[0].mxu0
        %v3531 = vadd.f32 0.0, %v3530
        %v3532 = vpop.f32.mrb[0].mxu0
        %v3533 = vpop.f32.mrb[0].mxu0
        %v3534 = vadd.f32 0.0, %v3533
        %v3535 = vpop.f32.mrb[0].mxu0
        %3536 = vmatprep.mubr.bf16.mxu0 0
        %3537 = vmatmul.mubr.bf16.gmra.mrb[0].mxu0 %v1319
        %v3538 = vpop.f32.mrb[0].mxu0
        %v3539 = vadd.f32 0.0, %v3538
        %v3540 = vpop.f32.mrb[0].mxu0
        %v3541 = vpop.f32.mrb[0].mxu0
        %v3542 = vadd.f32 0.0, %v3541
        %v3543 = vpop.f32.mrb[0].mxu0
        %3544 = vdwg.mxu0
        %v3545 = vadd.f32 %v3287, %v3419
        %v3546 = vadd.f32 %v3288, %v3422
        %v3547 = vadd.f32 %v3289, %v3427
        %v3548 = vadd.f32 %v3290, %v3430
        %v3549 = vadd.f32 %v3291, %v3435
        %v3550 = vadd.f32 %v3292, %v3438
        %v3551 = vadd.f32 %v3293, %v3443
        %v3552 = vadd.f32 %v3294, %v3446
        %v3553 = vadd.f32 %v3295, %v3451
        %v3554 = vadd.f32 %v3296, %v3454
        %v3555 = vadd.f32 %v3297, %v3459
        %v3556 = vadd.f32 %v3298, %v3462
        %v3557 = vadd.f32 %v3299, %v3467
        %v3558 = vadd.f32 %v3300, %v3470
        %v3559 = vadd.f32 %v3301, %v3475
        %v3560 = vadd.f32 %v3302, %v3478
        %v3561 = vadd.f32 %v3303, %v3483
        %v3562 = vadd.f32 %v3304, %v3486
        %v3563 = vadd.f32 %v3305, %v3491
        %v3564 = vadd.f32 %v3306, %v3494
        %v3565 = vadd.f32 %v3307, %v3499
        %v3566 = vadd.f32 %v3308, %v3502
        %v3567 = vadd.f32 %v3309, %v3507
        %v3568 = vadd.f32 %v3310, %v3510
        %v3569 = vadd.f32 %v3311, %v3515
        %v3570 = vadd.f32 %v3312, %v3518
        %v3571 = vadd.f32 %v3313, %v3523
        %v3572 = vadd.f32 %v3314, %v3526
        %v3573 = vadd.f32 %v3315, %v3531
        %v3574 = vadd.f32 %v3316, %v3534
        %v3575 = vadd.f32 %v3317, %v3539
        %v3576 = vadd.f32 %v3318, %v3542
        %v3577 = vld [vmem:[%s2] sm:$0x1]
        %v3579 = vlaneseq
        %v3580 = vshrl.u32 %v3579, 7
        %v3581 = vsub.s32 0, %v3580
        %v3582 = vrot.slane %v3577, %v3581
        %v3584 = vmul.f32 %v3545, %v3582
        %v3585 = vmul.f32 %v3546, %v3582
        %v3586 = vmul.f32 %v3547, %v3582
        %v3587 = vmul.f32 %v3548, %v3582
        %v3588 = vmul.f32 %v3549, %v3582
        %v3589 = vmul.f32 %v3550, %v3582
        %v3590 = vmul.f32 %v3551, %v3582
        %v3591 = vmul.f32 %v3552, %v3582
        %v3592 = vmul.f32 %v3553, %v3582
        %v3593 = vmul.f32 %v3554, %v3582
        %v3594 = vmul.f32 %v3555, %v3582
        %v3595 = vmul.f32 %v3556, %v3582
        %v3596 = vmul.f32 %v3557, %v3582
        %v3597 = vmul.f32 %v3558, %v3582
        %v3598 = vmul.f32 %v3559, %v3582
        %v3599 = vmul.f32 %v3560, %v3582
        %v3600 = vmul.f32 %v3561, %v3582
        %v3601 = vmul.f32 %v3562, %v3582
        %v3602 = vmul.f32 %v3563, %v3582
        %v3603 = vmul.f32 %v3564, %v3582
        %v3604 = vmul.f32 %v3565, %v3582
        %v3605 = vmul.f32 %v3566, %v3582
        %v3606 = vmul.f32 %v3567, %v3582
        %v3607 = vmul.f32 %v3568, %v3582
        %v3608 = vmul.f32 %v3569, %v3582
        %v3609 = vmul.f32 %v3570, %v3582
        %v3610 = vmul.f32 %v3571, %v3582
        %v3611 = vmul.f32 %v3572, %v3582
        %v3612 = vmul.f32 %v3573, %v3582
        %v3613 = vmul.f32 %v3574, %v3582
        %v3614 = vmul.f32 %v3575, %v3582
        %v3615 = vmul.f32 %v3576, %v3582
        %v3616 = vld [vmem:[%s3] sm:$0x1]
        %v3618 = vlaneseq
        %v3619 = vshrl.u32 %v3618, 7
        %v3620 = vsub.s32 0, %v3619
        %v3621 = vrot.slane %v3616, %v3620
        %v3623 = vadd.f32 %v3584, %v3621
        %v3624 = vadd.f32 %v3585, %v3621
        %v3625 = vadd.f32 %v3586, %v3621
        %v3626 = vadd.f32 %v3587, %v3621
        %v3627 = vadd.f32 %v3588, %v3621
        %v3628 = vadd.f32 %v3589, %v3621
        %v3629 = vadd.f32 %v3590, %v3621
        %v3630 = vadd.f32 %v3591, %v3621
        %v3631 = vadd.f32 %v3592, %v3621
        %v3632 = vadd.f32 %v3593, %v3621
        %v3633 = vadd.f32 %v3594, %v3621
        %v3634 = vadd.f32 %v3595, %v3621
        %v3635 = vadd.f32 %v3596, %v3621
        %v3636 = vadd.f32 %v3597, %v3621
        %v3637 = vadd.f32 %v3598, %v3621
        %v3638 = vadd.f32 %v3599, %v3621
        %v3639 = vadd.f32 %v3600, %v3621
        %v3640 = vadd.f32 %v3601, %v3621
        %v3641 = vadd.f32 %v3602, %v3621
        %v3642 = vadd.f32 %v3603, %v3621
        %v3643 = vadd.f32 %v3604, %v3621
        %v3644 = vadd.f32 %v3605, %v3621
        %v3645 = vadd.f32 %v3606, %v3621
        %v3646 = vadd.f32 %v3607, %v3621
        %v3647 = vadd.f32 %v3608, %v3621
        %v3648 = vadd.f32 %v3609, %v3621
        %v3649 = vadd.f32 %v3610, %v3621
        %v3650 = vadd.f32 %v3611, %v3621
        %v3651 = vadd.f32 %v3612, %v3621
        %v3652 = vadd.f32 %v3613, %v3621
        %v3653 = vadd.f32 %v3614, %v3621
        %v3654 = vadd.f32 %v3615, %v3621
        %v3655 = vmax.f32 %v3623, 0.0
        %v3656 = vmax.f32 %v3624, 0.0
        %v3657 = vmax.f32 %v3625, 0.0
        %v3658 = vmax.f32 %v3626, 0.0
        %v3659 = vmax.f32 %v3627, 0.0
        %v3660 = vmax.f32 %v3628, 0.0
        %v3661 = vmax.f32 %v3629, 0.0
        %v3662 = vmax.f32 %v3630, 0.0
        %v3663 = vmax.f32 %v3631, 0.0
        %v3664 = vmax.f32 %v3632, 0.0
        %v3665 = vmax.f32 %v3633, 0.0
        %v3666 = vmax.f32 %v3634, 0.0
        %v3667 = vmax.f32 %v3635, 0.0
        %v3668 = vmax.f32 %v3636, 0.0
        %v3669 = vmax.f32 %v3637, 0.0
        %v3670 = vmax.f32 %v3638, 0.0
        %v3671 = vmax.f32 %v3639, 0.0
        %v3672 = vmax.f32 %v3640, 0.0
        %v3673 = vmax.f32 %v3641, 0.0
        %v3674 = vmax.f32 %v3642, 0.0
        %v3675 = vmax.f32 %v3643, 0.0
        %v3676 = vmax.f32 %v3644, 0.0
        %v3677 = vmax.f32 %v3645, 0.0
        %v3678 = vmax.f32 %v3646, 0.0
        %v3679 = vmax.f32 %v3647, 0.0
        %v3680 = vmax.f32 %v3648, 0.0
        %v3681 = vmax.f32 %v3649, 0.0
        %v3682 = vmax.f32 %v3650, 0.0
        %v3683 = vmax.f32 %v3651, 0.0
        %v3684 = vmax.f32 %v3652, 0.0
        %v3685 = vmax.f32 %v3653, 0.0
        %v3686 = vmax.f32 %v3654, 0.0
        %3687 = vst [vmem:[#allocation2] sm:$0xff] 0.0
        %3688 = vst [vmem:[#allocation2 + $0x8] sm:$0xff] 0.0
        %3689 = vst [vmem:[#allocation2 + $0x110] sm:$0xff] 0.0
        %3690 = vst [vmem:[#allocation2 + $0x118] sm:$0xff] 0.0
        %3691 = vst [vmem:[#allocation2 + $0x10] sm:$0xff] %v3655
        %3692 = vst [vmem:[#allocation2 + $0x18] sm:$0xff] %v3656
        %3693 = vst [vmem:[#allocation2 + $0x20] sm:$0xff] %v3657
        %3694 = vst [vmem:[#allocation2 + $0x28] sm:$0xff] %v3658
        %3695 = vst [vmem:[#allocation2 + $0x30] sm:$0xff] %v3659
        %3696 = vst [vmem:[#allocation2 + $0x38] sm:$0xff] %v3660
        %3697 = vst [vmem:[#allocation2 + $0x40] sm:$0xff] %v3661
        %3698 = vst [vmem:[#allocation2 + $0x48] sm:$0xff] %v3662
        %3699 = vst [vmem:[#allocation2 + $0x50] sm:$0xff] %v3663
        %3700 = vst [vmem:[#allocation2 + $0x58] sm:$0xff] %v3664
        %3701 = vst [vmem:[#allocation2 + $0x60] sm:$0xff] %v3665
        %3702 = vst [vmem:[#allocation2 + $0x68] sm:$0xff] %v3666
        %3703 = vst [vmem:[#allocation2 + $0x70] sm:$0xff] %v3667
        %3704 = vst [vmem:[#allocation2 + $0x78] sm:$0xff] %v3668
        %3705 = vst [vmem:[#allocation2 + $0x80] sm:$0xff] %v3669
        %3706 = vst [vmem:[#allocation2 + $0x88] sm:$0xff] %v3670
        %3707 = vst [vmem:[#allocation2 + $0x90] sm:$0xff] %v3671
        %3708 = vst [vmem:[#allocation2 + $0x98] sm:$0xff] %v3672
        %3709 = vst [vmem:[#allocation2 + $0xa0] sm:$0xff] %v3673
        %3710 = vst [vmem:[#allocation2 + $0xa8] sm:$0xff] %v3674
        %3711 = vst [vmem:[#allocation2 + $0xb0] sm:$0xff] %v3675
        %3712 = vst [vmem:[#allocation2 + $0xb8] sm:$0xff] %v3676
        %3713 = vst [vmem:[#allocation2 + $0xc0] sm:$0xff] %v3677
        %3714 = vst [vmem:[#allocation2 + $0xc8] sm:$0xff] %v3678
        %3715 = vst [vmem:[#allocation2 + $0xd0] sm:$0xff] %v3679
        %3716 = vst [vmem:[#allocation2 + $0xd8] sm:$0xff] %v3680
        %3717 = vst [vmem:[#allocation2 + $0xe0] sm:$0xff] %v3681
        %3718 = vst [vmem:[#allocation2 + $0xe8] sm:$0xff] %v3682
        %3719 = vst [vmem:[#allocation2 + $0xf0] sm:$0xff] %v3683
        %3720 = vst [vmem:[#allocation2 + $0xf8] sm:$0xff] %v3684
        %3721 = vst [vmem:[#allocation2 + $0x100] sm:$0xff] %v3685
        %3722 = vst [vmem:[#allocation2 + $0x108] sm:$0xff] %v3686
        %v3723 = vld [vmem:[#allocation2] sm:$0xff]
        %v3724 = vld [vmem:[#allocation2 + $0x8] sm:$0xff]
        %v3725 = vld [vmem:[#allocation2 + $0x10] sm:$0xff]
        %v3726 = vld [vmem:[#allocation2 + $0x18] sm:$0xff]
        %v3727 = vld [vmem:[#allocation2 + $0x20] sm:$0xff]
        %v3728 = vld [vmem:[#allocation2 + $0x28] sm:$0xff]
        %v3729 = vld [vmem:[#allocation2 + $0x30] sm:$0xff]
        %v3730 = vld [vmem:[#allocation2 + $0x38] sm:$0xff]
        %v3731 = vld [vmem:[#allocation2 + $0x40] sm:$0xff]
        %v3732 = vld [vmem:[#allocation2 + $0x48] sm:$0xff]
        %v3733 = vld [vmem:[#allocation2 + $0x50] sm:$0xff]
        %v3734 = vld [vmem:[#allocation2 + $0x58] sm:$0xff]
        %v3735 = vld [vmem:[#allocation2 + $0x60] sm:$0xff]
        %v3736 = vld [vmem:[#allocation2 + $0x68] sm:$0xff]
        %v3737 = vld [vmem:[#allocation2 + $0x70] sm:$0xff]
        %v3738 = vld [vmem:[#allocation2 + $0x78] sm:$0xff]
        %v3739 = vld [vmem:[#allocation2 + $0x80] sm:$0xff]
        %v3740 = vld [vmem:[#allocation2 + $0x88] sm:$0xff]
        %v3741 = vld [vmem:[#allocation2 + $0x90] sm:$0xff]
        %v3742 = vld [vmem:[#allocation2 + $0x98] sm:$0xff]
        %v3743 = vld [vmem:[#allocation2 + $0xa0] sm:$0xff]
        %v3744 = vld [vmem:[#allocation2 + $0xa8] sm:$0xff]
        %v3745 = vld [vmem:[#allocation2 + $0xb0] sm:$0xff]
        %v3746 = vld [vmem:[#allocation2 + $0xb8] sm:$0xff]
        %v3747 = vld [vmem:[#allocation2 + $0xc0] sm:$0xff]
        %v3748 = vld [vmem:[#allocation2 + $0xc8] sm:$0xff]
        %v3749 = vld [vmem:[#allocation2 + $0xd0] sm:$0xff]
        %v3750 = vld [vmem:[#allocation2 + $0xd8] sm:$0xff]
        %v3751 = vld [vmem:[#allocation2 + $0xe0] sm:$0xff]
        %v3752 = vld [vmem:[#allocation2 + $0xe8] sm:$0xff]
        %v3753 = vld [vmem:[#allocation2 + $0xf0] sm:$0xff]
        %v3754 = vld [vmem:[#allocation2 + $0xf8] sm:$0xff]
        %v3755 = vld [vmem:[#allocation2 + $0x100] sm:$0xff]
        %v3756 = vld [vmem:[#allocation2 + $0x108] sm:$0xff]
        %v3757 = vld [vmem:[#allocation2 + $0x110] sm:$0xff]
        %v3758 = vld [vmem:[#allocation2 + $0x118] sm:$0xff]
        %v3759 = vrot.slane %v3723, 7
        %v3760 = vrot.slane %v3724, 7
        %v3761 = vrot.slane %v3725, 7
        %v3762 = vrot.slane %v3726, 7
        %v3763 = vrot.slane %v3727, 7
        %v3764 = vrot.slane %v3728, 7
        %v3765 = vrot.slane %v3729, 7
        %v3766 = vrot.slane %v3730, 7
        %v3767 = vrot.slane %v3731, 7
        %v3768 = vrot.slane %v3732, 7
        %v3769 = vrot.slane %v3733, 7
        %v3770 = vrot.slane %v3734, 7
        %v3771 = vrot.slane %v3735, 7
        %v3772 = vrot.slane %v3736, 7
        %v3773 = vrot.slane %v3737, 7
        %v3774 = vrot.slane %v3738, 7
        %v3775 = vrot.slane %v3739, 7
        %v3776 = vrot.slane %v3740, 7
        %v3777 = vrot.slane %v3741, 7
        %v3778 = vrot.slane %v3742, 7
        %v3779 = vrot.slane %v3743, 7
        %v3780 = vrot.slane %v3744, 7
        %v3781 = vrot.slane %v3745, 7
        %v3782 = vrot.slane %v3746, 7
        %v3783 = vrot.slane %v3747, 7
        %v3784 = vrot.slane %v3748, 7
        %v3785 = vrot.slane %v3749, 7
        %v3786 = vrot.slane %v3750, 7
        %v3787 = vrot.slane %v3751, 7
        %v3788 = vrot.slane %v3752, 7
        %v3789 = vrot.slane %v3753, 7
        %v3790 = vrot.slane %v3754, 7
        %v3791 = vrot.slane %v3755, 7
        %v3792 = vrot.slane %v3756, 7
        %v3793 = vrot.slane %v3757, 7
        %v3794 = vrot.slane %v3758, 7
        %v3795 = vsel %vm940, %v3793, %v3794
        %v3796 = vsel %vm940, %v3792, %v3793
        %v3797 = vsel %vm940, %v3791, %v3792
        %v3798 = vsel %vm940, %v3790, %v3791
        %v3799 = vsel %vm940, %v3789, %v3790
        %v3800 = vsel %vm940, %v3788, %v3789
        %v3801 = vsel %vm940, %v3787, %v3788
        %v3802 = vsel %vm940, %v3786, %v3787
        %v3803 = vsel %vm940, %v3785, %v3786
        %v3804 = vsel %vm940, %v3784, %v3785
        %v3805 = vsel %vm940, %v3783, %v3784
        %v3806 = vsel %vm940, %v3782, %v3783
        %v3807 = vsel %vm940, %v3781, %v3782
        %v3808 = vsel %vm940, %v3780, %v3781
        %v3809 = vsel %vm940, %v3779, %v3780
        %v3810 = vsel %vm940, %v3778, %v3779
        %v3811 = vsel %vm940, %v3777, %v3778
        %v3812 = vsel %vm940, %v3776, %v3777
        %v3813 = vsel %vm940, %v3775, %v3776
        %v3814 = vsel %vm940, %v3774, %v3775
        %v3815 = vsel %vm940, %v3773, %v3774
        %v3816 = vsel %vm940, %v3772, %v3773
        %v3817 = vsel %vm940, %v3771, %v3772
        %v3818 = vsel %vm940, %v3770, %v3771
        %v3819 = vsel %vm940, %v3769, %v3770
        %v3820 = vsel %vm940, %v3768, %v3769
        %v3821 = vsel %vm940, %v3767, %v3768
        %v3822 = vsel %vm940, %v3766, %v3767
        %v3823 = vsel %vm940, %v3765, %v3766
        %v3824 = vsel %vm940, %v3764, %v3765
        %v3825 = vsel %vm940, %v3763, %v3764
        %v3826 = vsel %vm940, %v3762, %v3763
        %v3827 = vsel %vm940, %v3761, %v3762
        %v3828 = vsel %vm940, %v3760, %v3761
        %v3829 = vsel %vm940, %v3759, %v3760
        %v3830 = vsel %vm940, %v3794, %v3759
        %v3831 = vsel %vm1013, 0.0, %v3830
        %v3832 = vsel %vm1014, 0.0, %v3829
        %v3833 = vsel %vm1015, 0.0, %v3828
        %v3834 = vsel %vm1016, 0.0, %v3827
        %v3835 = vsel %vm1017, 0.0, %v3826
        %v3836 = vsel %vm1018, 0.0, %v3825
        %v3837 = vsel %vm1019, 0.0, %v3824
        %v3838 = vsel %vm1020, 0.0, %v3823
        %v3839 = vsel %vm1021, 0.0, %v3822
        %v3840 = vsel %vm1022, 0.0, %v3821
        %v3841 = vsel %vm1023, 0.0, %v3820
        %v3842 = vsel %vm1024, 0.0, %v3819
        %v3843 = vsel %vm1025, 0.0, %v3818
        %v3844 = vsel %vm1026, 0.0, %v3817
        %v3845 = vsel %vm1027, 0.0, %v3816
        %v3846 = vsel %vm1028, 0.0, %v3815
        %v3847 = vsel %vm1029, 0.0, %v3814
        %v3848 = vsel %vm1030, 0.0, %v3813
        %v3849 = vsel %vm1031, 0.0, %v3812
        %v3850 = vsel %vm1032, 0.0, %v3811
        %v3851 = vsel %vm1033, 0.0, %v3810
        %v3852 = vsel %vm1034, 0.0, %v3809
        %v3853 = vsel %vm1035, 0.0, %v3808
        %v3854 = vsel %vm1036, 0.0, %v3807
        %v3855 = vsel %vm1037, 0.0, %v3806
        %v3856 = vsel %vm1038, 0.0, %v3805
        %v3857 = vsel %vm1039, 0.0, %v3804
        %v3858 = vsel %vm1040, 0.0, %v3803
        %v3859 = vsel %vm1041, 0.0, %v3802
        %v3860 = vsel %vm1042, 0.0, %v3801
        %v3861 = vsel %vm1043, 0.0, %v3800
        %v3862 = vsel %vm1044, 0.0, %v3799
        %v3863 = vsel %vm1045, 0.0, %v3798
        %v3864 = vsel %vm1046, 0.0, %v3797
        %v3865 = vsel %vm1047, 0.0, %v3796
        %v3866 = vsel %vm1048, 0.0, %v3795
        %v3867 = vrot.slane %v3723, 1
        %v3868 = vrot.slane %v3724, 1
        %v3869 = vrot.slane %v3725, 1
        %v3870 = vrot.slane %v3726, 1
        %v3871 = vrot.slane %v3727, 1
        %v3872 = vrot.slane %v3728, 1
        %v3873 = vrot.slane %v3729, 1
        %v3874 = vrot.slane %v3730, 1
        %v3875 = vrot.slane %v3731, 1
        %v3876 = vrot.slane %v3732, 1
        %v3877 = vrot.slane %v3733, 1
        %v3878 = vrot.slane %v3734, 1
        %v3879 = vrot.slane %v3735, 1
        %v3880 = vrot.slane %v3736, 1
        %v3881 = vrot.slane %v3737, 1
        %v3882 = vrot.slane %v3738, 1
        %v3883 = vrot.slane %v3739, 1
        %v3884 = vrot.slane %v3740, 1
        %v3885 = vrot.slane %v3741, 1
        %v3886 = vrot.slane %v3742, 1
        %v3887 = vrot.slane %v3743, 1
        %v3888 = vrot.slane %v3744, 1
        %v3889 = vrot.slane %v3745, 1
        %v3890 = vrot.slane %v3746, 1
        %v3891 = vrot.slane %v3747, 1
        %v3892 = vrot.slane %v3748, 1
        %v3893 = vrot.slane %v3749, 1
        %v3894 = vrot.slane %v3750, 1
        %v3895 = vrot.slane %v3751, 1
        %v3896 = vrot.slane %v3752, 1
        %v3897 = vrot.slane %v3753, 1
        %v3898 = vrot.slane %v3754, 1
        %v3899 = vrot.slane %v3755, 1
        %v3900 = vrot.slane %v3756, 1
        %v3901 = vrot.slane %v3757, 1
        %v3902 = vrot.slane %v3758, 1
        %v3903 = vsel %vm1121, %v3901, %v3902
        %v3904 = vsel %vm1121, %v3900, %v3901
        %v3905 = vsel %vm1121, %v3899, %v3900
        %v3906 = vsel %vm1121, %v3898, %v3899
        %v3907 = vsel %vm1121, %v3897, %v3898
        %v3908 = vsel %vm1121, %v3896, %v3897
        %v3909 = vsel %vm1121, %v3895, %v3896
        %v3910 = vsel %vm1121, %v3894, %v3895
        %v3911 = vsel %vm1121, %v3893, %v3894
        %v3912 = vsel %vm1121, %v3892, %v3893
        %v3913 = vsel %vm1121, %v3891, %v3892
        %v3914 = vsel %vm1121, %v3890, %v3891
        %v3915 = vsel %vm1121, %v3889, %v3890
        %v3916 = vsel %vm1121, %v3888, %v3889
        %v3917 = vsel %vm1121, %v3887, %v3888
        %v3918 = vsel %vm1121, %v3886, %v3887
        %v3919 = vsel %vm1121, %v3885, %v3886
        %v3920 = vsel %vm1121, %v3884, %v3885
        %v3921 = vsel %vm1121, %v3883, %v3884
        %v3922 = vsel %vm1121, %v3882, %v3883
        %v3923 = vsel %vm1121, %v3881, %v3882
        %v3924 = vsel %vm1121, %v3880, %v3881
        %v3925 = vsel %vm1121, %v3879, %v3880
        %v3926 = vsel %vm1121, %v3878, %v3879
        %v3927 = vsel %vm1121, %v3877, %v3878
        %v3928 = vsel %vm1121, %v3876, %v3877
        %v3929 = vsel %vm1121, %v3875, %v3876
        %v3930 = vsel %vm1121, %v3874, %v3875
        %v3931 = vsel %vm1121, %v3873, %v3874
        %v3932 = vsel %vm1121, %v3872, %v3873
        %v3933 = vsel %vm1121, %v3871, %v3872
        %v3934 = vsel %vm1121, %v3870, %v3871
        %v3935 = vsel %vm1121, %v3869, %v3870
        %v3936 = vsel %vm1121, %v3868, %v3869
        %v3937 = vsel %vm1121, %v3867, %v3868
        %v3938 = vsel %vm1121, %v3902, %v3867
        %v3939 = vsel %vm1194, 0.0, %v3937
        %v3940 = vsel %vm1195, 0.0, %v3936
        %v3941 = vsel %vm1196, 0.0, %v3935
        %v3942 = vsel %vm1197, 0.0, %v3934
        %v3943 = vsel %vm1198, 0.0, %v3933
        %v3944 = vsel %vm1199, 0.0, %v3932
        %v3945 = vsel %vm1200, 0.0, %v3931
        %v3946 = vsel %vm1201, 0.0, %v3930
        %v3947 = vsel %vm1202, 0.0, %v3929
        %v3948 = vsel %vm1203, 0.0, %v3928
        %v3949 = vsel %vm1204, 0.0, %v3927
        %v3950 = vsel %vm1205, 0.0, %v3926
        %v3951 = vsel %vm1206, 0.0, %v3925
        %v3952 = vsel %vm1207, 0.0, %v3924
        %v3953 = vsel %vm1208, 0.0, %v3923
        %v3954 = vsel %vm1209, 0.0, %v3922
        %v3955 = vsel %vm1210, 0.0, %v3921
        %v3956 = vsel %vm1211, 0.0, %v3920
        %v3957 = vsel %vm1212, 0.0, %v3919
        %v3958 = vsel %vm1213, 0.0, %v3918
        %v3959 = vsel %vm1214, 0.0, %v3917
        %v3960 = vsel %vm1215, 0.0, %v3916
        %v3961 = vsel %vm1216, 0.0, %v3915
        %v3962 = vsel %vm1217, 0.0, %v3914
        %v3963 = vsel %vm1218, 0.0, %v3913
        %v3964 = vsel %vm1219, 0.0, %v3912
        %v3965 = vsel %vm1220, 0.0, %v3911
        %v3966 = vsel %vm1221, 0.0, %v3910
        %v3967 = vsel %vm1222, 0.0, %v3909
        %v3968 = vsel %vm1223, 0.0, %v3908
        %v3969 = vsel %vm1224, 0.0, %v3907
        %v3970 = vsel %vm1225, 0.0, %v3906
        %v3971 = vsel %vm1226, 0.0, %v3905
        %v3972 = vsel %vm1227, 0.0, %v3904
        %v3973 = vsel %vm1228, 0.0, %v3903
        %v3974 = vsel %vm1229, 0.0, %v3938
        %v3975 = vpack.c.bf16 %v3832, %v3831
        %v3976 = vpack.c.bf16 %v3834, %v3833
        %v3977 = vpack.c.bf16 %v3836, %v3835
        %v3978 = vpack.c.bf16 %v3838, %v3837
        %v3979 = vpack.c.bf16 %v3840, %v3839
        %v3980 = vpack.c.bf16 %v3842, %v3841
        %v3981 = vpack.c.bf16 %v3844, %v3843
        %v3982 = vpack.c.bf16 %v3846, %v3845
        %v3983 = vpack.c.bf16 %v3848, %v3847
        %v3984 = vpack.c.bf16 %v3850, %v3849
        %v3985 = vpack.c.bf16 %v3852, %v3851
        %v3986 = vpack.c.bf16 %v3854, %v3853
        %v3987 = vpack.c.bf16 %v3856, %v3855
        %v3988 = vpack.c.bf16 %v3858, %v3857
        %v3989 = vpack.c.bf16 %v3860, %v3859
        %v3990 = vpack.c.bf16 %v3862, %v3861
        %v3991 = vpack.c.bf16 %v3864, %v3863
        %v3992 = vpack.c.bf16 %v3866, %v3865
        %v3993 = vpack.c.bf16 %v3724, %v3723
        %v3994 = vpack.c.bf16 %v3726, %v3725
        %v3995 = vpack.c.bf16 %v3728, %v3727
        %v3996 = vpack.c.bf16 %v3730, %v3729
        %v3997 = vpack.c.bf16 %v3732, %v3731
        %v3998 = vpack.c.bf16 %v3734, %v3733
        %v3999 = vpack.c.bf16 %v3736, %v3735
        %v4000 = vpack.c.bf16 %v3738, %v3737
        %v4001 = vpack.c.bf16 %v3740, %v3739
        %v4002 = vpack.c.bf16 %v3742, %v3741
        %v4003 = vpack.c.bf16 %v3744, %v3743
        %v4004 = vpack.c.bf16 %v3746, %v3745
        %v4005 = vpack.c.bf16 %v3748, %v3747
        %v4006 = vpack.c.bf16 %v3750, %v3749
        %v4007 = vpack.c.bf16 %v3752, %v3751
        %v4008 = vpack.c.bf16 %v3754, %v3753
        %v4009 = vpack.c.bf16 %v3756, %v3755
        %v4010 = vpack.c.bf16 %v3758, %v3757
        %v4011 = vpack.c.bf16 %v3940, %v3939
        %v4012 = vpack.c.bf16 %v3942, %v3941
        %v4013 = vpack.c.bf16 %v3944, %v3943
        %v4014 = vpack.c.bf16 %v3946, %v3945
        %v4015 = vpack.c.bf16 %v3948, %v3947
        %v4016 = vpack.c.bf16 %v3950, %v3949
        %v4017 = vpack.c.bf16 %v3952, %v3951
        %v4018 = vpack.c.bf16 %v3954, %v3953
        %v4019 = vpack.c.bf16 %v3956, %v3955
        %v4020 = vpack.c.bf16 %v3958, %v3957
        %v4021 = vpack.c.bf16 %v3960, %v3959
        %v4022 = vpack.c.bf16 %v3962, %v3961
        %v4023 = vpack.c.bf16 %v3964, %v3963
        %v4024 = vpack.c.bf16 %v3966, %v3965
        %v4025 = vpack.c.bf16 %v3968, %v3967
        %v4026 = vpack.c.bf16 %v3970, %v3969
        %v4027 = vpack.c.bf16 %v3972, %v3971
        %v4028 = vpack.c.bf16 %v3974, %v3973
        %v4029 = vld [vmem:[#allocation8] sm:$0xf]
        %v4030 = vld [vmem:[#allocation8 + $0x4] sm:$0xf]
        %v4031 = vld [vmem:[#allocation8 + $0x8] sm:$0xf]
        %v4032 = vld [vmem:[#allocation8 + $0xc] sm:$0xf]
        %v4033 = vld [vmem:[#allocation8 + $0x10] sm:$0xf]
        %v4034 = vld [vmem:[#allocation8 + $0x14] sm:$0xf]
        %v4035 = vld [vmem:[#allocation8 + $0x18] sm:$0xf]
        %v4036 = vld [vmem:[#allocation8 + $0x1c] sm:$0xf]
        %v4037 = vld [vmem:[#allocation8 + $0x20] sm:$0xf]
        %v4038 = vld [vmem:[#allocation8 + $0x24] sm:$0xf]
        %v4039 = vld [vmem:[#allocation8 + $0x28] sm:$0xf]
        %v4040 = vld [vmem:[#allocation8 + $0x2c] sm:$0xf]
        %v4041 = vld [vmem:[#allocation8 + $0x30] sm:$0xf]
        %v4042 = vld [vmem:[#allocation8 + $0x34] sm:$0xf]
        %v4043 = vld [vmem:[#allocation8 + $0x38] sm:$0xf]
        %v4044 = vld [vmem:[#allocation8 + $0x3c] sm:$0xf]
        %s4045 = scalar_lea.vmem [#allocation8], 64
        %v4046 = vld [vmem:[%s4045] sm:$0xf]
        %v4047 = vld [vmem:[%s4045 + $0x4] sm:$0xf]
        %v4048 = vld [vmem:[%s4045 + $0x8] sm:$0xf]
        %v4049 = vld [vmem:[%s4045 + $0xc] sm:$0xf]
        %v4050 = vld [vmem:[%s4045 + $0x10] sm:$0xf]
        %v4051 = vld [vmem:[%s4045 + $0x14] sm:$0xf]
        %v4052 = vld [vmem:[%s4045 + $0x18] sm:$0xf]
        %v4053 = vld [vmem:[%s4045 + $0x1c] sm:$0xf]
        %v4054 = vld [vmem:[%s4045 + $0x20] sm:$0xf]
        %v4055 = vld [vmem:[%s4045 + $0x24] sm:$0xf]
        %v4056 = vld [vmem:[%s4045 + $0x28] sm:$0xf]
        %v4057 = vld [vmem:[%s4045 + $0x2c] sm:$0xf]
        %v4058 = vld [vmem:[%s4045 + $0x30] sm:$0xf]
        %v4059 = vld [vmem:[%s4045 + $0x34] sm:$0xf]
        %v4060 = vld [vmem:[%s4045 + $0x38] sm:$0xf]
        %v4061 = vld [vmem:[%s4045 + $0x3c] sm:$0xf]
        %v4078 = vunpack.c.l.b16 %v4046
        %v4079 = vunpack.c.l.b16 %v4047
        %v4080 = vunpack.c.l.b16 %v4048
        %v4081 = vunpack.c.l.b16 %v4049
        %v4082 = vunpack.c.l.b16 %v4050
        %v4083 = vunpack.c.l.b16 %v4051
        %v4084 = vunpack.c.l.b16 %v4052
        %v4085 = vunpack.c.l.b16 %v4053
        %v4086 = vunpack.c.l.b16 %v4054
        %v4087 = vunpack.c.l.b16 %v4055
        %v4088 = vunpack.c.l.b16 %v4056
        %v4089 = vunpack.c.l.b16 %v4057
        %v4090 = vunpack.c.l.b16 %v4058
        %v4091 = vunpack.c.l.b16 %v4059
        %v4092 = vunpack.c.l.b16 %v4060
        %v4093 = vunpack.c.l.b16 %v4061
        %v4094 = vpack.c.b16 %v4079, %v4078
        %v4095 = vpack.c.b16 %v4081, %v4080
        %v4096 = vpack.c.b16 %v4083, %v4082
        %v4097 = vpack.c.b16 %v4085, %v4084
        %v4098 = vpack.c.b16 %v4087, %v4086
        %v4099 = vpack.c.b16 %v4089, %v4088
        %v4100 = vpack.c.b16 %v4091, %v4090
        %v4101 = vpack.c.b16 %v4093, %v4092
        %4110 = vmatprep.subr.bf16.mxu0 0
        %4111 = vmatpush1.bf16.msra.mxu0 %v4094
        %4112 = vmatprep.subr.bf16.mxu0 0
        %4113 = vmatpush1.bf16.msra.mxu0 %v4095
        %4114 = vmatprep.subr.bf16.mxu0 0
        %4115 = vmatpush1.bf16.msra.mxu0 %v4096
        %4116 = vmatprep.subr.bf16.mxu0 0
        %4117 = vmatpush1.bf16.msra.mxu0 %v4097
        %4118 = vmatprep.subr.bf16.mxu0 0
        %4119 = vmatpush1.bf16.msra.mxu0 %v4098
        %4120 = vmatprep.subr.bf16.mxu0 0
        %4121 = vmatpush1.bf16.msra.mxu0 %v4099
        %4122 = vmatprep.subr.bf16.mxu0 0
        %4123 = vmatpush1.bf16.msra.mxu0 %v4100
        %4124 = vmatprep.subr.bf16.mxu0 0
        %4125 = vmatpush1.bf16.msra.mxu0 %v4101
        %4126 = vmatprep.subr.bf16.mxu0 0
        %4127 = vmatpush1.bf16.msra.mxu0 0
        %4128 = vmatprep.subr.bf16.mxu0 0
        %4129 = vmatpush1.bf16.msra.mxu0 0
        %4130 = vmatprep.subr.bf16.mxu0 0
        %4131 = vmatpush1.bf16.msra.mxu0 0
        %4132 = vmatprep.subr.bf16.mxu0 0
        %4133 = vmatpush1.bf16.msra.mxu0 0
        %4134 = vmatprep.subr.bf16.mxu0 0
        %4135 = vmatpush1.bf16.msra.mxu0 0
        %4136 = vmatprep.subr.bf16.mxu0 0
        %4137 = vmatpush1.bf16.msra.mxu0 0
        %4138 = vmatprep.subr.bf16.mxu0 0
        %4139 = vmatpush1.bf16.msra.mxu0 0
        %4140 = vmatprep.subr.bf16.mxu0 0
        %4141 = vmatpush1.bf16.msra.mxu0 0
        %4142 = vmatprep.mubr.bf16.mxu0 0
        %4143 = vmatmul.mubr.bf16.gmra.mrb[0].mxu0 %v3993
        %v4144 = vpop.f32.mrb[0].mxu0
        %v4145 = vadd.f32 0.0, %v4144
        %v4146 = vpop.f32.mrb[0].mxu0
        %v4147 = vpop.f32.mrb[0].mxu0
        %v4148 = vadd.f32 0.0, %v4147
        %v4149 = vpop.f32.mrb[0].mxu0
        %4150 = vmatprep.mubr.bf16.mxu0 0
        %4151 = vmatmul.mubr.bf16.gmra.mrb[0].mxu0 %v3994
        %v4152 = vpop.f32.mrb[0].mxu0
        %v4153 = vadd.f32 0.0, %v4152
        %v4154 = vpop.f32.mrb[0].mxu0
        %v4155 = vpop.f32.mrb[0].mxu0
        %v4156 = vadd.f32 0.0, %v4155
        %v4157 = vpop.f32.mrb[0].mxu0
        %4158 = vmatprep.mubr.bf16.mxu0 0
        %4159 = vmatmul.mubr.bf16.gmra.mrb[0].mxu0 %v3995
        %v4160 = vpop.f32.mrb[0].mxu0
        %v4161 = vadd.f32 0.0, %v4160
        %v4162 = vpop.f32.mrb[0].mxu0
        %v4163 = vpop.f32.mrb[0].mxu0
        %v4164 = vadd.f32 0.0, %v4163
        %v4165 = vpop.f32.mrb[0].mxu0
        %4166 = vmatprep.mubr.bf16.mxu0 0
        %4167 = vmatmul.mubr.bf16.gmra.mrb[0].mxu0 %v3996
        %v4168 = vpop.f32.mrb[0].mxu0
        %v4169 = vadd.f32 0.0, %v4168
        %v4170 = vpop.f32.mrb[0].mxu0
        %v4171 = vpop.f32.mrb[0].mxu0
        %v4172 = vadd.f32 0.0, %v4171
        %v4173 = vpop.f32.mrb[0].mxu0
        %4174 = vmatprep.mubr.bf16.mxu0 0
        %4175 = vmatmul.mubr.bf16.gmra.mrb[0].mxu0 %v3997
        %v4176 = vpop.f32.mrb[0].mxu0
        %v4177 = vadd.f32 0.0, %v4176
        %v4178 = vpop.f32.mrb[0].mxu0
        %v4179 = vpop.f32.mrb[0].mxu0
        %v4180 = vadd.f32 0.0, %v4179
        %v4181 = vpop.f32.mrb[0].mxu0
        %4182 = vmatprep.mubr.bf16.mxu0 0
        %4183 = vmatmul.mubr.bf16.gmra.mrb[0].mxu0 %v3998
        %v4184 = vpop.f32.mrb[0].mxu0
        %v4185 = vadd.f32 0.0, %v4184
        %v4186 = vpop.f32.mrb[0].mxu0
        %v4187 = vpop.f32.mrb[0].mxu0
        %v4188 = vadd.f32 0.0, %v4187
        %v4189 = vpop.f32.mrb[0].mxu0
        %4190 = vmatprep.mubr.bf16.mxu0 0
        %4191 = vmatmul.mubr.bf16.gmra.mrb[0].mxu0 %v3999
        %v4192 = vpop.f32.mrb[0].mxu0
        %v4193 = vadd.f32 0.0, %v4192
        %v4194 = vpop.f32.mrb[0].mxu0
        %v4195 = vpop.f32.mrb[0].mxu0
        %v4196 = vadd.f32 0.0, %v4195
        %v4197 = vpop.f32.mrb[0].mxu0
        %4198 = vmatprep.mubr.bf16.mxu0 0
        %4199 = vmatmul.mubr.bf16.gmra.mrb[0].mxu0 %v4000
        %v4200 = vpop.f32.mrb[0].mxu0
        %v4201 = vadd.f32 0.0, %v4200
        %v4202 = vpop.f32.mrb[0].mxu0
        %v4203 = vpop.f32.mrb[0].mxu0
        %v4204 = vadd.f32 0.0, %v4203
        %v4205 = vpop.f32.mrb[0].mxu0
        %4206 = vmatprep.mubr.bf16.mxu0 0
        %4207 = vmatmul.mubr.bf16.gmra.mrb[0].mxu0 %v4001
        %v4208 = vpop.f32.mrb[0].mxu0
        %v4209 = vadd.f32 0.0, %v4208
        %v4210 = vpop.f32.mrb[0].mxu0
        %v4211 = vpop.f32.mrb[0].mxu0
        %v4212 = vadd.f32 0.0, %v4211
        %v4213 = vpop.f32.mrb[0].mxu0
        %4214 = vmatprep.mubr.bf16.mxu0 0
        %4215 = vmatmul.mubr.bf16.gmra.mrb[0].mxu0 %v4002
        %v4216 = vpop.f32.mrb[0].mxu0
        %v4217 = vadd.f32 0.0, %v4216
        %v4218 = vpop.f32.mrb[0].mxu0
        %v4219 = vpop.f32.mrb[0].mxu0
        %v4220 = vadd.f32 0.0, %v4219
        %v4221 = vpop.f32.mrb[0].mxu0
        %4222 = vmatprep.mubr.bf16.mxu0 0
        %4223 = vmatmul.mubr.bf16.gmra.mrb[0].mxu0 %v4003
        %v4224 = vpop.f32.mrb[0].mxu0
        %v4225 = vadd.f32 0.0, %v4224
        %v4226 = vpop.f32.mrb[0].mxu0
        %v4227 = vpop.f32.mrb[0].mxu0
        %v4228 = vadd.f32 0.0, %v4227
        %v4229 = vpop.f32.mrb[0].mxu0
        %4230 = vmatprep.mubr.bf16.mxu0 0
        %4231 = vmatmul.mubr.bf16.gmra.mrb[0].mxu0 %v4004
        %v4232 = vpop.f32.mrb[0].mxu0
        %v4233 = vadd.f32 0.0, %v4232
        %v4234 = vpop.f32.mrb[0].mxu0
        %v4235 = vpop.f32.mrb[0].mxu0
        %v4236 = vadd.f32 0.0, %v4235
        %v4237 = vpop.f32.mrb[0].mxu0
        %4238 = vmatprep.mubr.bf16.mxu0 0
        %4239 = vmatmul.mubr.bf16.gmra.mrb[0].mxu0 %v4005
        %v4240 = vpop.f32.mrb[0].mxu0
        %v4241 = vadd.f32 0.0, %v4240
        %v4242 = vpop.f32.mrb[0].mxu0
        %v4243 = vpop.f32.mrb[0].mxu0
        %v4244 = vadd.f32 0.0, %v4243
        %v4245 = vpop.f32.mrb[0].mxu0
        %4246 = vmatprep.mubr.bf16.mxu0 0
        %4247 = vmatmul.mubr.bf16.gmra.mrb[0].mxu0 %v4006
        %v4248 = vpop.f32.mrb[0].mxu0
        %v4249 = vadd.f32 0.0, %v4248
        %v4250 = vpop.f32.mrb[0].mxu0
        %v4251 = vpop.f32.mrb[0].mxu0
        %v4252 = vadd.f32 0.0, %v4251
        %v4253 = vpop.f32.mrb[0].mxu0
        %4254 = vmatprep.mubr.bf16.mxu0 0
        %4255 = vmatmul.mubr.bf16.gmra.mrb[0].mxu0 %v4007
        %v4256 = vpop.f32.mrb[0].mxu0
        %v4257 = vadd.f32 0.0, %v4256
        %v4258 = vpop.f32.mrb[0].mxu0
        %v4259 = vpop.f32.mrb[0].mxu0
        %v4260 = vadd.f32 0.0, %v4259
        %v4261 = vpop.f32.mrb[0].mxu0
        %4262 = vmatprep.mubr.bf16.mxu0 0
        %4263 = vmatmul.mubr.bf16.gmra.mrb[0].mxu0 %v4008
        %v4264 = vpop.f32.mrb[0].mxu0
        %v4265 = vadd.f32 0.0, %v4264
        %v4266 = vpop.f32.mrb[0].mxu0
        %v4267 = vpop.f32.mrb[0].mxu0
        %v4268 = vadd.f32 0.0, %v4267
        %v4269 = vpop.f32.mrb[0].mxu0
        %4270 = vdwg.mxu0
        %v4287 = vunpack.c.l.b16 %v4029
        %v4288 = vunpack.c.l.b16 %v4030
        %v4289 = vunpack.c.l.b16 %v4031
        %v4290 = vunpack.c.l.b16 %v4032
        %v4291 = vunpack.c.l.b16 %v4033
        %v4292 = vunpack.c.l.b16 %v4034
        %v4293 = vunpack.c.l.b16 %v4035
        %v4294 = vunpack.c.l.b16 %v4036
        %v4295 = vunpack.c.l.b16 %v4037
        %v4296 = vunpack.c.l.b16 %v4038
        %v4297 = vunpack.c.l.b16 %v4039
        %v4298 = vunpack.c.l.b16 %v4040
        %v4299 = vunpack.c.l.b16 %v4041
        %v4300 = vunpack.c.l.b16 %v4042
        %v4301 = vunpack.c.l.b16 %v4043
        %v4302 = vunpack.c.l.b16 %v4044
        %v4303 = vpack.c.b16 %v4288, %v4287
        %v4304 = vpack.c.b16 %v4290, %v4289
        %v4305 = vpack.c.b16 %v4292, %v4291
        %v4306 = vpack.c.b16 %v4294, %v4293
        %v4307 = vpack.c.b16 %v4296, %v4295
        %v4308 = vpack.c.b16 %v4298, %v4297
        %v4309 = vpack.c.b16 %v4300, %v4299
        %v4310 = vpack.c.b16 %v4302, %v4301
        %4319 = vmatprep.subr.bf16.mxu0 0
        %4320 = vmatpush1.bf16.msra.mxu0 %v4303
        %4321 = vmatprep.subr.bf16.mxu0 0
        %4322 = vmatpush1.bf16.msra.mxu0 %v4304
        %4323 = vmatprep.subr.bf16.mxu0 0
        %4324 = vmatpush1.bf16.msra.mxu0 %v4305
        %4325 = vmatprep.subr.bf16.mxu0 0
        %4326 = vmatpush1.bf16.msra.mxu0 %v4306
        %4327 = vmatprep.subr.bf16.mxu0 0
        %4328 = vmatpush1.bf16.msra.mxu0 %v4307
        %4329 = vmatprep.subr.bf16.mxu0 0
        %4330 = vmatpush1.bf16.msra.mxu0 %v4308
        %4331 = vmatprep.subr.bf16.mxu0 0
        %4332 = vmatpush1.bf16.msra.mxu0 %v4309
        %4333 = vmatprep.subr.bf16.mxu0 0
        %4334 = vmatpush1.bf16.msra.mxu0 %v4310
        %4335 = vmatprep.subr.bf16.mxu0 0
        %4336 = vmatpush1.bf16.msra.mxu0 0
        %4337 = vmatprep.subr.bf16.mxu0 0
        %4338 = vmatpush1.bf16.msra.mxu0 0
        %4339 = vmatprep.subr.bf16.mxu0 0
        %4340 = vmatpush1.bf16.msra.mxu0 0
        %4341 = vmatprep.subr.bf16.mxu0 0
        %4342 = vmatpush1.bf16.msra.mxu0 0
        %4343 = vmatprep.subr.bf16.mxu0 0
        %4344 = vmatpush1.bf16.msra.mxu0 0
        %4345 = vmatprep.subr.bf16.mxu0 0
        %4346 = vmatpush1.bf16.msra.mxu0 0
        %4347 = vmatprep.subr.bf16.mxu0 0
        %4348 = vmatpush1.bf16.msra.mxu0 0
        %4349 = vmatprep.subr.bf16.mxu0 0
        %4350 = vmatpush1.bf16.msra.mxu0 0
        %4351 = vmatprep.mubr.bf16.mxu0 0
        %4352 = vmatmul.mubr.bf16.gmra.mrb[0].mxu0 %v3975
        %v4353 = vpop.f32.mrb[0].mxu0
        %v4354 = vadd.f32 %v4145, %v4353
        %v4355 = vpop.f32.mrb[0].mxu0
        %v4356 = vpop.f32.mrb[0].mxu0
        %v4357 = vadd.f32 %v4148, %v4356
        %v4358 = vpop.f32.mrb[0].mxu0
        %4359 = vmatprep.mubr.bf16.mxu0 0
        %4360 = vmatmul.mubr.bf16.gmra.mrb[0].mxu0 %v3976
        %v4361 = vpop.f32.mrb[0].mxu0
        %v4362 = vadd.f32 %v4153, %v4361
        %v4363 = vpop.f32.mrb[0].mxu0
        %v4364 = vpop.f32.mrb[0].mxu0
        %v4365 = vadd.f32 %v4156, %v4364
        %v4366 = vpop.f32.mrb[0].mxu0
        %4367 = vmatprep.mubr.bf16.mxu0 0
        %4368 = vmatmul.mubr.bf16.gmra.mrb[0].mxu0 %v3977
        %v4369 = vpop.f32.mrb[0].mxu0
        %v4370 = vadd.f32 %v4161, %v4369
        %v4371 = vpop.f32.mrb[0].mxu0
        %v4372 = vpop.f32.mrb[0].mxu0
        %v4373 = vadd.f32 %v4164, %v4372
        %v4374 = vpop.f32.mrb[0].mxu0
        %4375 = vmatprep.mubr.bf16.mxu0 0
        %4376 = vmatmul.mubr.bf16.gmra.mrb[0].mxu0 %v3978
        %v4377 = vpop.f32.mrb[0].mxu0
        %v4378 = vadd.f32 %v4169, %v4377
        %v4379 = vpop.f32.mrb[0].mxu0
        %v4380 = vpop.f32.mrb[0].mxu0
        %v4381 = vadd.f32 %v4172, %v4380
        %v4382 = vpop.f32.mrb[0].mxu0
        %4383 = vmatprep.mubr.bf16.mxu0 0
        %4384 = vmatmul.mubr.bf16.gmra.mrb[0].mxu0 %v3979
        %v4385 = vpop.f32.mrb[0].mxu0
        %v4386 = vadd.f32 %v4177, %v4385
        %v4387 = vpop.f32.mrb[0].mxu0
        %v4388 = vpop.f32.mrb[0].mxu0
        %v4389 = vadd.f32 %v4180, %v4388
        %v4390 = vpop.f32.mrb[0].mxu0
        %4391 = vmatprep.mubr.bf16.mxu0 0
        %4392 = vmatmul.mubr.bf16.gmra.mrb[0].mxu0 %v3980
        %v4393 = vpop.f32.mrb[0].mxu0
        %v4394 = vadd.f32 %v4185, %v4393
        %v4395 = vpop.f32.mrb[0].mxu0
        %v4396 = vpop.f32.mrb[0].mxu0
        %v4397 = vadd.f32 %v4188, %v4396
        %v4398 = vpop.f32.mrb[0].mxu0
        %4399 = vmatprep.mubr.bf16.mxu0 0
        %4400 = vmatmul.mubr.bf16.gmra.mrb[0].mxu0 %v3981
        %v4401 = vpop.f32.mrb[0].mxu0
        %v4402 = vadd.f32 %v4193, %v4401
        %v4403 = vpop.f32.mrb[0].mxu0
        %v4404 = vpop.f32.mrb[0].mxu0
        %v4405 = vadd.f32 %v4196, %v4404
        %v4406 = vpop.f32.mrb[0].mxu0
        %4407 = vmatprep.mubr.bf16.mxu0 0
        %4408 = vmatmul.mubr.bf16.gmra.mrb[0].mxu0 %v3982
        %v4409 = vpop.f32.mrb[0].mxu0
        %v4410 = vadd.f32 %v4201, %v4409
        %v4411 = vpop.f32.mrb[0].mxu0
        %v4412 = vpop.f32.mrb[0].mxu0
        %v4413 = vadd.f32 %v4204, %v4412
        %v4414 = vpop.f32.mrb[0].mxu0
        %4415 = vmatprep.mubr.bf16.mxu0 0
        %4416 = vmatmul.mubr.bf16.gmra.mrb[0].mxu0 %v3983
        %v4417 = vpop.f32.mrb[0].mxu0
        %v4418 = vadd.f32 %v4209, %v4417
        %v4419 = vpop.f32.mrb[0].mxu0
        %v4420 = vpop.f32.mrb[0].mxu0
        %v4421 = vadd.f32 %v4212, %v4420
        %v4422 = vpop.f32.mrb[0].mxu0
        %4423 = vmatprep.mubr.bf16.mxu0 0
        %4424 = vmatmul.mubr.bf16.gmra.mrb[0].mxu0 %v3984
        %v4425 = vpop.f32.mrb[0].mxu0
        %v4426 = vadd.f32 %v4217, %v4425
        %v4427 = vpop.f32.mrb[0].mxu0
        %v4428 = vpop.f32.mrb[0].mxu0
        %v4429 = vadd.f32 %v4220, %v4428
        %v4430 = vpop.f32.mrb[0].mxu0
        %4431 = vmatprep.mubr.bf16.mxu0 0
        %4432 = vmatmul.mubr.bf16.gmra.mrb[0].mxu0 %v3985
        %v4433 = vpop.f32.mrb[0].mxu0
        %v4434 = vadd.f32 %v4225, %v4433
        %v4435 = vpop.f32.mrb[0].mxu0
        %v4436 = vpop.f32.mrb[0].mxu0
        %v4437 = vadd.f32 %v4228, %v4436
        %v4438 = vpop.f32.mrb[0].mxu0
        %4439 = vmatprep.mubr.bf16.mxu0 0
        %4440 = vmatmul.mubr.bf16.gmra.mrb[0].mxu0 %v3986
        %v4441 = vpop.f32.mrb[0].mxu0
        %v4442 = vadd.f32 %v4233, %v4441
        %v4443 = vpop.f32.mrb[0].mxu0
        %v4444 = vpop.f32.mrb[0].mxu0
        %v4445 = vadd.f32 %v4236, %v4444
        %v4446 = vpop.f32.mrb[0].mxu0
        %4447 = vmatprep.mubr.bf16.mxu0 0
        %4448 = vmatmul.mubr.bf16.gmra.mrb[0].mxu0 %v3987
        %v4449 = vpop.f32.mrb[0].mxu0
        %v4450 = vadd.f32 %v4241, %v4449
        %v4451 = vpop.f32.mrb[0].mxu0
        %v4452 = vpop.f32.mrb[0].mxu0
        %v4453 = vadd.f32 %v4244, %v4452
        %v4454 = vpop.f32.mrb[0].mxu0
        %4455 = vmatprep.mubr.bf16.mxu0 0
        %4456 = vmatmul.mubr.bf16.gmra.mrb[0].mxu0 %v3988
        %v4457 = vpop.f32.mrb[0].mxu0
        %v4458 = vadd.f32 %v4249, %v4457
        %v4459 = vpop.f32.mrb[0].mxu0
        %v4460 = vpop.f32.mrb[0].mxu0
        %v4461 = vadd.f32 %v4252, %v4460
        %v4462 = vpop.f32.mrb[0].mxu0
        %4463 = vmatprep.mubr.bf16.mxu0 0
        %4464 = vmatmul.mubr.bf16.gmra.mrb[0].mxu0 %v3989
        %v4465 = vpop.f32.mrb[0].mxu0
        %v4466 = vadd.f32 %v4257, %v4465
        %v4467 = vpop.f32.mrb[0].mxu0
        %v4468 = vpop.f32.mrb[0].mxu0
        %v4469 = vadd.f32 %v4260, %v4468
        %v4470 = vpop.f32.mrb[0].mxu0
        %4471 = vmatprep.mubr.bf16.mxu0 0
        %4472 = vmatmul.mubr.bf16.gmra.mrb[0].mxu0 %v3990
        %v4473 = vpop.f32.mrb[0].mxu0
        %v4474 = vadd.f32 %v4265, %v4473
        %v4475 = vpop.f32.mrb[0].mxu0
        %v4476 = vpop.f32.mrb[0].mxu0
        %v4477 = vadd.f32 %v4268, %v4476
        %v4478 = vpop.f32.mrb[0].mxu0
        %4479 = vdwg.mxu0
        %s4480 = scalar_lea.vmem [#allocation8], 128
        %v4481 = vld [vmem:[%s4480] sm:$0xf]
        %v4482 = vld [vmem:[%s4480 + $0x4] sm:$0xf]
        %v4483 = vld [vmem:[%s4480 + $0x8] sm:$0xf]
        %v4484 = vld [vmem:[%s4480 + $0xc] sm:$0xf]
        %v4485 = vld [vmem:[%s4480 + $0x10] sm:$0xf]
        %v4486 = vld [vmem:[%s4480 + $0x14] sm:$0xf]
        %v4487 = vld [vmem:[%s4480 + $0x18] sm:$0xf]
        %v4488 = vld [vmem:[%s4480 + $0x1c] sm:$0xf]
        %v4489 = vld [vmem:[%s4480 + $0x20] sm:$0xf]
        %v4490 = vld [vmem:[%s4480 + $0x24] sm:$0xf]
        %v4491 = vld [vmem:[%s4480 + $0x28] sm:$0xf]
        %v4492 = vld [vmem:[%s4480 + $0x2c] sm:$0xf]
        %v4493 = vld [vmem:[%s4480 + $0x30] sm:$0xf]
        %v4494 = vld [vmem:[%s4480 + $0x34] sm:$0xf]
        %v4495 = vld [vmem:[%s4480 + $0x38] sm:$0xf]
        %v4496 = vld [vmem:[%s4480 + $0x3c] sm:$0xf]
        %v4513 = vunpack.c.l.b16 %v4481
        %v4514 = vunpack.c.l.b16 %v4482
        %v4515 = vunpack.c.l.b16 %v4483
        %v4516 = vunpack.c.l.b16 %v4484
        %v4517 = vunpack.c.l.b16 %v4485
        %v4518 = vunpack.c.l.b16 %v4486
        %v4519 = vunpack.c.l.b16 %v4487
        %v4520 = vunpack.c.l.b16 %v4488
        %v4521 = vunpack.c.l.b16 %v4489
        %v4522 = vunpack.c.l.b16 %v4490
        %v4523 = vunpack.c.l.b16 %v4491
        %v4524 = vunpack.c.l.b16 %v4492
        %v4525 = vunpack.c.l.b16 %v4493
        %v4526 = vunpack.c.l.b16 %v4494
        %v4527 = vunpack.c.l.b16 %v4495
        %v4528 = vunpack.c.l.b16 %v4496
        %v4529 = vpack.c.b16 %v4514, %v4513
        %v4530 = vpack.c.b16 %v4516, %v4515
        %v4531 = vpack.c.b16 %v4518, %v4517
        %v4532 = vpack.c.b16 %v4520, %v4519
        %v4533 = vpack.c.b16 %v4522, %v4521
        %v4534 = vpack.c.b16 %v4524, %v4523
        %v4535 = vpack.c.b16 %v4526, %v4525
        %v4536 = vpack.c.b16 %v4528, %v4527
        %4545 = vmatprep.subr.bf16.mxu0 0
        %4546 = vmatpush1.bf16.msra.mxu0 %v4529
        %4547 = vmatprep.subr.bf16.mxu0 0
        %4548 = vmatpush1.bf16.msra.mxu0 %v4530
        %4549 = vmatprep.subr.bf16.mxu0 0
        %4550 = vmatpush1.bf16.msra.mxu0 %v4531
        %4551 = vmatprep.subr.bf16.mxu0 0
        %4552 = vmatpush1.bf16.msra.mxu0 %v4532
        %4553 = vmatprep.subr.bf16.mxu0 0
        %4554 = vmatpush1.bf16.msra.mxu0 %v4533
        %4555 = vmatprep.subr.bf16.mxu0 0
        %4556 = vmatpush1.bf16.msra.mxu0 %v4534
        %4557 = vmatprep.subr.bf16.mxu0 0
        %4558 = vmatpush1.bf16.msra.mxu0 %v4535
        %4559 = vmatprep.subr.bf16.mxu0 0
        %4560 = vmatpush1.bf16.msra.mxu0 %v4536
        %4561 = vmatprep.subr.bf16.mxu0 0
        %4562 = vmatpush1.bf16.msra.mxu0 0
        %4563 = vmatprep.subr.bf16.mxu0 0
        %4564 = vmatpush1.bf16.msra.mxu0 0
        %4565 = vmatprep.subr.bf16.mxu0 0
        %4566 = vmatpush1.bf16.msra.mxu0 0
        %4567 = vmatprep.subr.bf16.mxu0 0
        %4568 = vmatpush1.bf16.msra.mxu0 0
        %4569 = vmatprep.subr.bf16.mxu0 0
        %4570 = vmatpush1.bf16.msra.mxu0 0
        %4571 = vmatprep.subr.bf16.mxu0 0
        %4572 = vmatpush1.bf16.msra.mxu0 0
        %4573 = vmatprep.subr.bf16.mxu0 0
        %4574 = vmatpush1.bf16.msra.mxu0 0
        %4575 = vmatprep.subr.bf16.mxu0 0
        %4576 = vmatpush1.bf16.msra.mxu0 0
        %4577 = vmatprep.mubr.bf16.mxu0 0
        %4578 = vmatmul.mubr.bf16.gmra.mrb[0].mxu0 %v4011
        %v4579 = vpop.f32.mrb[0].mxu0
        %v4580 = vadd.f32 0.0, %v4579
        %v4581 = vpop.f32.mrb[0].mxu0
        %v4582 = vpop.f32.mrb[0].mxu0
        %v4583 = vadd.f32 0.0, %v4582
        %v4584 = vpop.f32.mrb[0].mxu0
        %4585 = vmatprep.mubr.bf16.mxu0 0
        %4586 = vmatmul.mubr.bf16.gmra.mrb[0].mxu0 %v4012
        %v4587 = vpop.f32.mrb[0].mxu0
        %v4588 = vadd.f32 0.0, %v4587
        %v4589 = vpop.f32.mrb[0].mxu0
        %v4590 = vpop.f32.mrb[0].mxu0
        %v4591 = vadd.f32 0.0, %v4590
        %v4592 = vpop.f32.mrb[0].mxu0
        %4593 = vmatprep.mubr.bf16.mxu0 0
        %4594 = vmatmul.mubr.bf16.gmra.mrb[0].mxu0 %v4013
        %v4595 = vpop.f32.mrb[0].mxu0
        %v4596 = vadd.f32 0.0, %v4595
        %v4597 = vpop.f32.mrb[0].mxu0
        %v4598 = vpop.f32.mrb[0].mxu0
        %v4599 = vadd.f32 0.0, %v4598
        %v4600 = vpop.f32.mrb[0].mxu0
        %4601 = vmatprep.mubr.bf16.mxu0 0
        %4602 = vmatmul.mubr.bf16.gmra.mrb[0].mxu0 %v4014
        %v4603 = vpop.f32.mrb[0].mxu0
        %v4604 = vadd.f32 0.0, %v4603
        %v4605 = vpop.f32.mrb[0].mxu0
        %v4606 = vpop.f32.mrb[0].mxu0
        %v4607 = vadd.f32 0.0, %v4606
        %v4608 = vpop.f32.mrb[0].mxu0
        %4609 = vmatprep.mubr.bf16.mxu0 0
        %4610 = vmatmul.mubr.bf16.gmra.mrb[0].mxu0 %v4015
        %v4611 = vpop.f32.mrb[0].mxu0
        %v4612 = vadd.f32 0.0, %v4611
        %v4613 = vpop.f32.mrb[0].mxu0
        %v4614 = vpop.f32.mrb[0].mxu0
        %v4615 = vadd.f32 0.0, %v4614
        %v4616 = vpop.f32.mrb[0].mxu0
        %4617 = vmatprep.mubr.bf16.mxu0 0
        %4618 = vmatmul.mubr.bf16.gmra.mrb[0].mxu0 %v4016
        %v4619 = vpop.f32.mrb[0].mxu0
        %v4620 = vadd.f32 0.0, %v4619
        %v4621 = vpop.f32.mrb[0].mxu0
        %v4622 = vpop.f32.mrb[0].mxu0
        %v4623 = vadd.f32 0.0, %v4622
        %v4624 = vpop.f32.mrb[0].mxu0
        %4625 = vmatprep.mubr.bf16.mxu0 0
        %4626 = vmatmul.mubr.bf16.gmra.mrb[0].mxu0 %v4017
        %v4627 = vpop.f32.mrb[0].mxu0
        %v4628 = vadd.f32 0.0, %v4627
        %v4629 = vpop.f32.mrb[0].mxu0
        %v4630 = vpop.f32.mrb[0].mxu0
        %v4631 = vadd.f32 0.0, %v4630
        %v4632 = vpop.f32.mrb[0].mxu0
        %4633 = vmatprep.mubr.bf16.mxu0 0
        %4634 = vmatmul.mubr.bf16.gmra.mrb[0].mxu0 %v4018
        %v4635 = vpop.f32.mrb[0].mxu0
        %v4636 = vadd.f32 0.0, %v4635
        %v4637 = vpop.f32.mrb[0].mxu0
        %v4638 = vpop.f32.mrb[0].mxu0
        %v4639 = vadd.f32 0.0, %v4638
        %v4640 = vpop.f32.mrb[0].mxu0
        %4641 = vmatprep.mubr.bf16.mxu0 0
        %4642 = vmatmul.mubr.bf16.gmra.mrb[0].mxu0 %v4019
        %v4643 = vpop.f32.mrb[0].mxu0
        %v4644 = vadd.f32 0.0, %v4643
        %v4645 = vpop.f32.mrb[0].mxu0
        %v4646 = vpop.f32.mrb[0].mxu0
        %v4647 = vadd.f32 0.0, %v4646
        %v4648 = vpop.f32.mrb[0].mxu0
        %4649 = vmatprep.mubr.bf16.mxu0 0
        %4650 = vmatmul.mubr.bf16.gmra.mrb[0].mxu0 %v4020
        %v4651 = vpop.f32.mrb[0].mxu0
        %v4652 = vadd.f32 0.0, %v4651
        %v4653 = vpop.f32.mrb[0].mxu0
        %v4654 = vpop.f32.mrb[0].mxu0
        %v4655 = vadd.f32 0.0, %v4654
        %v4656 = vpop.f32.mrb[0].mxu0
        %4657 = vmatprep.mubr.bf16.mxu0 0
        %4658 = vmatmul.mubr.bf16.gmra.mrb[0].mxu0 %v4021
        %v4659 = vpop.f32.mrb[0].mxu0
        %v4660 = vadd.f32 0.0, %v4659
        %v4661 = vpop.f32.mrb[0].mxu0
        %v4662 = vpop.f32.mrb[0].mxu0
        %v4663 = vadd.f32 0.0, %v4662
        %v4664 = vpop.f32.mrb[0].mxu0
        %4665 = vmatprep.mubr.bf16.mxu0 0
        %4666 = vmatmul.mubr.bf16.gmra.mrb[0].mxu0 %v4022
        %v4667 = vpop.f32.mrb[0].mxu0
        %v4668 = vadd.f32 0.0, %v4667
        %v4669 = vpop.f32.mrb[0].mxu0
        %v4670 = vpop.f32.mrb[0].mxu0
        %v4671 = vadd.f32 0.0, %v4670
        %v4672 = vpop.f32.mrb[0].mxu0
        %4673 = vmatprep.mubr.bf16.mxu0 0
        %4674 = vmatmul.mubr.bf16.gmra.mrb[0].mxu0 %v4023
        %v4675 = vpop.f32.mrb[0].mxu0
        %v4676 = vadd.f32 0.0, %v4675
        %v4677 = vpop.f32.mrb[0].mxu0
        %v4678 = vpop.f32.mrb[0].mxu0
        %v4679 = vadd.f32 0.0, %v4678
        %v4680 = vpop.f32.mrb[0].mxu0
        %4681 = vmatprep.mubr.bf16.mxu0 0
        %4682 = vmatmul.mubr.bf16.gmra.mrb[0].mxu0 %v4024
        %v4683 = vpop.f32.mrb[0].mxu0
        %v4684 = vadd.f32 0.0, %v4683
        %v4685 = vpop.f32.mrb[0].mxu0
        %v4686 = vpop.f32.mrb[0].mxu0
        %v4687 = vadd.f32 0.0, %v4686
        %v4688 = vpop.f32.mrb[0].mxu0
        %4689 = vmatprep.mubr.bf16.mxu0 0
        %4690 = vmatmul.mubr.bf16.gmra.mrb[0].mxu0 %v4025
        %v4691 = vpop.f32.mrb[0].mxu0
        %v4692 = vadd.f32 0.0, %v4691
        %v4693 = vpop.f32.mrb[0].mxu0
        %v4694 = vpop.f32.mrb[0].mxu0
        %v4695 = vadd.f32 0.0, %v4694
        %v4696 = vpop.f32.mrb[0].mxu0
        %4697 = vmatprep.mubr.bf16.mxu0 0
        %4698 = vmatmul.mubr.bf16.gmra.mrb[0].mxu0 %v4026
        %v4699 = vpop.f32.mrb[0].mxu0
        %v4700 = vadd.f32 0.0, %v4699
        %v4701 = vpop.f32.mrb[0].mxu0
        %v4702 = vpop.f32.mrb[0].mxu0
        %v4703 = vadd.f32 0.0, %v4702
        %v4704 = vpop.f32.mrb[0].mxu0
        %4705 = vdwg.mxu0
        %v4706 = vadd.f32 %v4354, %v4580
        %v4707 = vadd.f32 %v4357, %v4583
        %v4708 = vadd.f32 %v4362, %v4588
        %v4709 = vadd.f32 %v4365, %v4591
        %v4710 = vadd.f32 %v4370, %v4596
        %v4711 = vadd.f32 %v4373, %v4599
        %v4712 = vadd.f32 %v4378, %v4604
        %v4713 = vadd.f32 %v4381, %v4607
        %v4714 = vadd.f32 %v4386, %v4612
        %v4715 = vadd.f32 %v4389, %v4615
        %v4716 = vadd.f32 %v4394, %v4620
        %v4717 = vadd.f32 %v4397, %v4623
        %v4718 = vadd.f32 %v4402, %v4628
        %v4719 = vadd.f32 %v4405, %v4631
        %v4720 = vadd.f32 %v4410, %v4636
        %v4721 = vadd.f32 %v4413, %v4639
        %v4722 = vadd.f32 %v4418, %v4644
        %v4723 = vadd.f32 %v4421, %v4647
        %v4724 = vadd.f32 %v4426, %v4652
        %v4725 = vadd.f32 %v4429, %v4655
        %v4726 = vadd.f32 %v4434, %v4660
        %v4727 = vadd.f32 %v4437, %v4663
        %v4728 = vadd.f32 %v4442, %v4668
        %v4729 = vadd.f32 %v4445, %v4671
        %v4730 = vadd.f32 %v4450, %v4676
        %v4731 = vadd.f32 %v4453, %v4679
        %v4732 = vadd.f32 %v4458, %v4684
        %v4733 = vadd.f32 %v4461, %v4687
        %v4734 = vadd.f32 %v4466, %v4692
        %v4735 = vadd.f32 %v4469, %v4695
        %v4736 = vadd.f32 %v4474, %v4700
        %v4737 = vadd.f32 %v4477, %v4703
        %s4738 = scalar_lea.vmem [#allocation8], 192
        %v4739 = vld [vmem:[%s4738] sm:$0xf]
        %v4740 = vld [vmem:[%s4738 + $0x4] sm:$0xf]
        %v4741 = vld [vmem:[%s4738 + $0x8] sm:$0xf]
        %v4742 = vld [vmem:[%s4738 + $0xc] sm:$0xf]
        %v4743 = vld [vmem:[%s4738 + $0x10] sm:$0xf]
        %v4744 = vld [vmem:[%s4738 + $0x14] sm:$0xf]
        %v4745 = vld [vmem:[%s4738 + $0x18] sm:$0xf]
        %v4746 = vld [vmem:[%s4738 + $0x1c] sm:$0xf]
        %v4747 = vld [vmem:[%s4738 + $0x20] sm:$0xf]
        %v4748 = vld [vmem:[%s4738 + $0x24] sm:$0xf]
        %v4749 = vld [vmem:[%s4738 + $0x28] sm:$0xf]
        %v4750 = vld [vmem:[%s4738 + $0x2c] sm:$0xf]
        %v4751 = vld [vmem:[%s4738 + $0x30] sm:$0xf]
        %v4752 = vld [vmem:[%s4738 + $0x34] sm:$0xf]
        %v4753 = vld [vmem:[%s4738 + $0x38] sm:$0xf]
        %v4754 = vld [vmem:[%s4738 + $0x3c] sm:$0xf]
        %v4771 = vunpack.c.l.b16 %v4739
        %v4772 = vunpack.c.l.b16 %v4740
        %v4773 = vunpack.c.l.b16 %v4741
        %v4774 = vunpack.c.l.b16 %v4742
        %v4775 = vunpack.c.l.b16 %v4743
        %v4776 = vunpack.c.l.b16 %v4744
        %v4777 = vunpack.c.l.b16 %v4745
        %v4778 = vunpack.c.l.b16 %v4746
        %v4779 = vunpack.c.l.b16 %v4747
        %v4780 = vunpack.c.l.b16 %v4748
        %v4781 = vunpack.c.l.b16 %v4749
        %v4782 = vunpack.c.l.b16 %v4750
        %v4783 = vunpack.c.l.b16 %v4751
        %v4784 = vunpack.c.l.b16 %v4752
        %v4785 = vunpack.c.l.b16 %v4753
        %v4786 = vunpack.c.l.b16 %v4754
        %v4787 = vpack.c.b16 %v4772, %v4771
        %v4788 = vpack.c.b16 %v4774, %v4773
        %v4789 = vpack.c.b16 %v4776, %v4775
        %v4790 = vpack.c.b16 %v4778, %v4777
        %v4791 = vpack.c.b16 %v4780, %v4779
        %v4792 = vpack.c.b16 %v4782, %v4781
        %v4793 = vpack.c.b16 %v4784, %v4783
        %v4794 = vpack.c.b16 %v4786, %v4785
        %4803 = vmatprep.subr.bf16.mxu0 0
        %4804 = vmatpush1.bf16.msra.mxu0 %v4787
        %4805 = vmatprep.subr.bf16.mxu0 0
        %4806 = vmatpush1.bf16.msra.mxu0 %v4788
        %4807 = vmatprep.subr.bf16.mxu0 0
        %4808 = vmatpush1.bf16.msra.mxu0 %v4789
        %4809 = vmatprep.subr.bf16.mxu0 0
        %4810 = vmatpush1.bf16.msra.mxu0 %v4790
        %4811 = vmatprep.subr.bf16.mxu0 0
        %4812 = vmatpush1.bf16.msra.mxu0 %v4791
        %4813 = vmatprep.subr.bf16.mxu0 0
        %4814 = vmatpush1.bf16.msra.mxu0 %v4792
        %4815 = vmatprep.subr.bf16.mxu0 0
        %4816 = vmatpush1.bf16.msra.mxu0 %v4793
        %4817 = vmatprep.subr.bf16.mxu0 0
        %4818 = vmatpush1.bf16.msra.mxu0 %v4794
        %4819 = vmatprep.subr.bf16.mxu0 0
        %4820 = vmatpush1.bf16.msra.mxu0 0
        %4821 = vmatprep.subr.bf16.mxu0 0
        %4822 = vmatpush1.bf16.msra.mxu0 0
        %4823 = vmatprep.subr.bf16.mxu0 0
        %4824 = vmatpush1.bf16.msra.mxu0 0
        %4825 = vmatprep.subr.bf16.mxu0 0
        %4826 = vmatpush1.bf16.msra.mxu0 0
        %4827 = vmatprep.subr.bf16.mxu0 0
        %4828 = vmatpush1.bf16.msra.mxu0 0
        %4829 = vmatprep.subr.bf16.mxu0 0
        %4830 = vmatpush1.bf16.msra.mxu0 0
        %4831 = vmatprep.subr.bf16.mxu0 0
        %4832 = vmatpush1.bf16.msra.mxu0 0
        %4833 = vmatprep.subr.bf16.mxu0 0
        %4834 = vmatpush1.bf16.msra.mxu0 0
        %4835 = vmatprep.mubr.bf16.mxu0 0
        %4836 = vmatmul.mubr.bf16.gmra.mrb[0].mxu0 %v3976
        %v4837 = vpop.f32.mrb[0].mxu0
        %v4838 = vadd.f32 0.0, %v4837
        %v4839 = vpop.f32.mrb[0].mxu0
        %v4840 = vpop.f32.mrb[0].mxu0
        %v4841 = vadd.f32 0.0, %v4840
        %v4842 = vpop.f32.mrb[0].mxu0
        %4843 = vmatprep.mubr.bf16.mxu0 0
        %4844 = vmatmul.mubr.bf16.gmra.mrb[0].mxu0 %v3977
        %v4845 = vpop.f32.mrb[0].mxu0
        %v4846 = vadd.f32 0.0, %v4845
        %v4847 = vpop.f32.mrb[0].mxu0
        %v4848 = vpop.f32.mrb[0].mxu0
        %v4849 = vadd.f32 0.0, %v4848
        %v4850 = vpop.f32.mrb[0].mxu0
        %4851 = vmatprep.mubr.bf16.mxu0 0
        %4852 = vmatmul.mubr.bf16.gmra.mrb[0].mxu0 %v3978
        %v4853 = vpop.f32.mrb[0].mxu0
        %v4854 = vadd.f32 0.0, %v4853
        %v4855 = vpop.f32.mrb[0].mxu0
        %v4856 = vpop.f32.mrb[0].mxu0
        %v4857 = vadd.f32 0.0, %v4856
        %v4858 = vpop.f32.mrb[0].mxu0
        %4859 = vmatprep.mubr.bf16.mxu0 0
        %4860 = vmatmul.mubr.bf16.gmra.mrb[0].mxu0 %v3979
        %v4861 = vpop.f32.mrb[0].mxu0
        %v4862 = vadd.f32 0.0, %v4861
        %v4863 = vpop.f32.mrb[0].mxu0
        %v4864 = vpop.f32.mrb[0].mxu0
        %v4865 = vadd.f32 0.0, %v4864
        %v4866 = vpop.f32.mrb[0].mxu0
        %4867 = vmatprep.mubr.bf16.mxu0 0
        %4868 = vmatmul.mubr.bf16.gmra.mrb[0].mxu0 %v3980
        %v4869 = vpop.f32.mrb[0].mxu0
        %v4870 = vadd.f32 0.0, %v4869
        %v4871 = vpop.f32.mrb[0].mxu0
        %v4872 = vpop.f32.mrb[0].mxu0
        %v4873 = vadd.f32 0.0, %v4872
        %v4874 = vpop.f32.mrb[0].mxu0
        %4875 = vmatprep.mubr.bf16.mxu0 0
        %4876 = vmatmul.mubr.bf16.gmra.mrb[0].mxu0 %v3981
        %v4877 = vpop.f32.mrb[0].mxu0
        %v4878 = vadd.f32 0.0, %v4877
        %v4879 = vpop.f32.mrb[0].mxu0
        %v4880 = vpop.f32.mrb[0].mxu0
        %v4881 = vadd.f32 0.0, %v4880
        %v4882 = vpop.f32.mrb[0].mxu0
        %4883 = vmatprep.mubr.bf16.mxu0 0
        %4884 = vmatmul.mubr.bf16.gmra.mrb[0].mxu0 %v3982
        %v4885 = vpop.f32.mrb[0].mxu0
        %v4886 = vadd.f32 0.0, %v4885
        %v4887 = vpop.f32.mrb[0].mxu0
        %v4888 = vpop.f32.mrb[0].mxu0
        %v4889 = vadd.f32 0.0, %v4888
        %v4890 = vpop.f32.mrb[0].mxu0
        %4891 = vmatprep.mubr.bf16.mxu0 0
        %4892 = vmatmul.mubr.bf16.gmra.mrb[0].mxu0 %v3983
        %v4893 = vpop.f32.mrb[0].mxu0
        %v4894 = vadd.f32 0.0, %v4893
        %v4895 = vpop.f32.mrb[0].mxu0
        %v4896 = vpop.f32.mrb[0].mxu0
        %v4897 = vadd.f32 0.0, %v4896
        %v4898 = vpop.f32.mrb[0].mxu0
        %4899 = vmatprep.mubr.bf16.mxu0 0
        %4900 = vmatmul.mubr.bf16.gmra.mrb[0].mxu0 %v3984
        %v4901 = vpop.f32.mrb[0].mxu0
        %v4902 = vadd.f32 0.0, %v4901
        %v4903 = vpop.f32.mrb[0].mxu0
        %v4904 = vpop.f32.mrb[0].mxu0
        %v4905 = vadd.f32 0.0, %v4904
        %v4906 = vpop.f32.mrb[0].mxu0
        %4907 = vmatprep.mubr.bf16.mxu0 0
        %4908 = vmatmul.mubr.bf16.gmra.mrb[0].mxu0 %v3985
        %v4909 = vpop.f32.mrb[0].mxu0
        %v4910 = vadd.f32 0.0, %v4909
        %v4911 = vpop.f32.mrb[0].mxu0
        %v4912 = vpop.f32.mrb[0].mxu0
        %v4913 = vadd.f32 0.0, %v4912
        %v4914 = vpop.f32.mrb[0].mxu0
        %4915 = vmatprep.mubr.bf16.mxu0 0
        %4916 = vmatmul.mubr.bf16.gmra.mrb[0].mxu0 %v3986
        %v4917 = vpop.f32.mrb[0].mxu0
        %v4918 = vadd.f32 0.0, %v4917
        %v4919 = vpop.f32.mrb[0].mxu0
        %v4920 = vpop.f32.mrb[0].mxu0
        %v4921 = vadd.f32 0.0, %v4920
        %v4922 = vpop.f32.mrb[0].mxu0
        %4923 = vmatprep.mubr.bf16.mxu0 0
        %4924 = vmatmul.mubr.bf16.gmra.mrb[0].mxu0 %v3987
        %v4925 = vpop.f32.mrb[0].mxu0
        %v4926 = vadd.f32 0.0, %v4925
        %v4927 = vpop.f32.mrb[0].mxu0
        %v4928 = vpop.f32.mrb[0].mxu0
        %v4929 = vadd.f32 0.0, %v4928
        %v4930 = vpop.f32.mrb[0].mxu0
        %4931 = vmatprep.mubr.bf16.mxu0 0
        %4932 = vmatmul.mubr.bf16.gmra.mrb[0].mxu0 %v3988
        %v4933 = vpop.f32.mrb[0].mxu0
        %v4934 = vadd.f32 0.0, %v4933
        %v4935 = vpop.f32.mrb[0].mxu0
        %v4936 = vpop.f32.mrb[0].mxu0
        %v4937 = vadd.f32 0.0, %v4936
        %v4938 = vpop.f32.mrb[0].mxu0
        %4939 = vmatprep.mubr.bf16.mxu0 0
        %4940 = vmatmul.mubr.bf16.gmra.mrb[0].mxu0 %v3989
        %v4941 = vpop.f32.mrb[0].mxu0
        %v4942 = vadd.f32 0.0, %v4941
        %v4943 = vpop.f32.mrb[0].mxu0
        %v4944 = vpop.f32.mrb[0].mxu0
        %v4945 = vadd.f32 0.0, %v4944
        %v4946 = vpop.f32.mrb[0].mxu0
        %4947 = vmatprep.mubr.bf16.mxu0 0
        %4948 = vmatmul.mubr.bf16.gmra.mrb[0].mxu0 %v3990
        %v4949 = vpop.f32.mrb[0].mxu0
        %v4950 = vadd.f32 0.0, %v4949
        %v4951 = vpop.f32.mrb[0].mxu0
        %v4952 = vpop.f32.mrb[0].mxu0
        %v4953 = vadd.f32 0.0, %v4952
        %v4954 = vpop.f32.mrb[0].mxu0
        %4955 = vmatprep.mubr.bf16.mxu0 0
        %4956 = vmatmul.mubr.bf16.gmra.mrb[0].mxu0 %v3991
        %v4957 = vpop.f32.mrb[0].mxu0
        %v4958 = vadd.f32 0.0, %v4957
        %v4959 = vpop.f32.mrb[0].mxu0
        %v4960 = vpop.f32.mrb[0].mxu0
        %v4961 = vadd.f32 0.0, %v4960
        %v4962 = vpop.f32.mrb[0].mxu0
        %4963 = vdwg.mxu0
        %v4964 = vadd.f32 %v4706, %v4838
        %v4965 = vadd.f32 %v4707, %v4841
        %v4966 = vadd.f32 %v4708, %v4846
        %v4967 = vadd.f32 %v4709, %v4849
        %v4968 = vadd.f32 %v4710, %v4854
        %v4969 = vadd.f32 %v4711, %v4857
        %v4970 = vadd.f32 %v4712, %v4862
        %v4971 = vadd.f32 %v4713, %v4865
        %v4972 = vadd.f32 %v4714, %v4870
        %v4973 = vadd.f32 %v4715, %v4873
        %v4974 = vadd.f32 %v4716, %v4878
        %v4975 = vadd.f32 %v4717, %v4881
        %v4976 = vadd.f32 %v4718, %v4886
        %v4977 = vadd.f32 %v4719, %v4889
        %v4978 = vadd.f32 %v4720, %v4894
        %v4979 = vadd.f32 %v4721, %v4897
        %v4980 = vadd.f32 %v4722, %v4902
        %v4981 = vadd.f32 %v4723, %v4905
        %v4982 = vadd.f32 %v4724, %v4910
        %v4983 = vadd.f32 %v4725, %v4913
        %v4984 = vadd.f32 %v4726, %v4918
        %v4985 = vadd.f32 %v4727, %v4921
        %v4986 = vadd.f32 %v4728, %v4926
        %v4987 = vadd.f32 %v4729, %v4929
        %v4988 = vadd.f32 %v4730, %v4934
        %v4989 = vadd.f32 %v4731, %v4937
        %v4990 = vadd.f32 %v4732, %v4942
        %v4991 = vadd.f32 %v4733, %v4945
        %v4992 = vadd.f32 %v4734, %v4950
        %v4993 = vadd.f32 %v4735, %v4953
        %v4994 = vadd.f32 %v4736, %v4958
        %v4995 = vadd.f32 %v4737, %v4961
        %s4996 = scalar_lea.vmem [#allocation8], 256
        %v4997 = vld [vmem:[%s4996] sm:$0xf]
        %v4998 = vld [vmem:[%s4996 + $0x4] sm:$0xf]
        %v4999 = vld [vmem:[%s4996 + $0x8] sm:$0xf]
        %v5000 = vld [vmem:[%s4996 + $0xc] sm:$0xf]
        %v5001 = vld [vmem:[%s4996 + $0x10] sm:$0xf]
        %v5002 = vld [vmem:[%s4996 + $0x14] sm:$0xf]
        %v5003 = vld [vmem:[%s4996 + $0x18] sm:$0xf]
        %v5004 = vld [vmem:[%s4996 + $0x1c] sm:$0xf]
        %v5005 = vld [vmem:[%s4996 + $0x20] sm:$0xf]
        %v5006 = vld [vmem:[%s4996 + $0x24] sm:$0xf]
        %v5007 = vld [vmem:[%s4996 + $0x28] sm:$0xf]
        %v5008 = vld [vmem:[%s4996 + $0x2c] sm:$0xf]
        %v5009 = vld [vmem:[%s4996 + $0x30] sm:$0xf]
        %v5010 = vld [vmem:[%s4996 + $0x34] sm:$0xf]
        %v5011 = vld [vmem:[%s4996 + $0x38] sm:$0xf]
        %v5012 = vld [vmem:[%s4996 + $0x3c] sm:$0xf]
        %v5029 = vunpack.c.l.b16 %v4997
        %v5030 = vunpack.c.l.b16 %v4998
        %v5031 = vunpack.c.l.b16 %v4999
        %v5032 = vunpack.c.l.b16 %v5000
        %v5033 = vunpack.c.l.b16 %v5001
        %v5034 = vunpack.c.l.b16 %v5002
        %v5035 = vunpack.c.l.b16 %v5003
        %v5036 = vunpack.c.l.b16 %v5004
        %v5037 = vunpack.c.l.b16 %v5005
        %v5038 = vunpack.c.l.b16 %v5006
        %v5039 = vunpack.c.l.b16 %v5007
        %v5040 = vunpack.c.l.b16 %v5008
        %v5041 = vunpack.c.l.b16 %v5009
        %v5042 = vunpack.c.l.b16 %v5010
        %v5043 = vunpack.c.l.b16 %v5011
        %v5044 = vunpack.c.l.b16 %v5012
        %v5045 = vpack.c.b16 %v5030, %v5029
        %v5046 = vpack.c.b16 %v5032, %v5031
        %v5047 = vpack.c.b16 %v5034, %v5033
        %v5048 = vpack.c.b16 %v5036, %v5035
        %v5049 = vpack.c.b16 %v5038, %v5037
        %v5050 = vpack.c.b16 %v5040, %v5039
        %v5051 = vpack.c.b16 %v5042, %v5041
        %v5052 = vpack.c.b16 %v5044, %v5043
        %5061 = vmatprep.subr.bf16.mxu0 0
        %5062 = vmatpush1.bf16.msra.mxu0 %v5045
        %5063 = vmatprep.subr.bf16.mxu0 0
        %5064 = vmatpush1.bf16.msra.mxu0 %v5046
        %5065 = vmatprep.subr.bf16.mxu0 0
        %5066 = vmatpush1.bf16.msra.mxu0 %v5047
        %5067 = vmatprep.subr.bf16.mxu0 0
        %5068 = vmatpush1.bf16.msra.mxu0 %v5048
        %5069 = vmatprep.subr.bf16.mxu0 0
        %5070 = vmatpush1.bf16.msra.mxu0 %v5049
        %5071 = vmatprep.subr.bf16.mxu0 0
        %5072 = vmatpush1.bf16.msra.mxu0 %v5050
        %5073 = vmatprep.subr.bf16.mxu0 0
        %5074 = vmatpush1.bf16.msra.mxu0 %v5051
        %5075 = vmatprep.subr.bf16.mxu0 0
        %5076 = vmatpush1.bf16.msra.mxu0 %v5052
        %5077 = vmatprep.subr.bf16.mxu0 0
        %5078 = vmatpush1.bf16.msra.mxu0 0
        %5079 = vmatprep.subr.bf16.mxu0 0
        %5080 = vmatpush1.bf16.msra.mxu0 0
        %5081 = vmatprep.subr.bf16.mxu0 0
        %5082 = vmatpush1.bf16.msra.mxu0 0
        %5083 = vmatprep.subr.bf16.mxu0 0
        %5084 = vmatpush1.bf16.msra.mxu0 0
        %5085 = vmatprep.subr.bf16.mxu0 0
        %5086 = vmatpush1.bf16.msra.mxu0 0
        %5087 = vmatprep.subr.bf16.mxu0 0
        %5088 = vmatpush1.bf16.msra.mxu0 0
        %5089 = vmatprep.subr.bf16.mxu0 0
        %5090 = vmatpush1.bf16.msra.mxu0 0
        %5091 = vmatprep.subr.bf16.mxu0 0
        %5092 = vmatpush1.bf16.msra.mxu0 0
        %5093 = vmatprep.mubr.bf16.mxu0 0
        %5094 = vmatmul.mubr.bf16.gmra.mrb[0].mxu0 %v3994
        %v5095 = vpop.f32.mrb[0].mxu0
        %v5096 = vadd.f32 0.0, %v5095
        %v5097 = vpop.f32.mrb[0].mxu0
        %v5098 = vpop.f32.mrb[0].mxu0
        %v5099 = vadd.f32 0.0, %v5098
        %v5100 = vpop.f32.mrb[0].mxu0
        %5101 = vmatprep.mubr.bf16.mxu0 0
        %5102 = vmatmul.mubr.bf16.gmra.mrb[0].mxu0 %v3995
        %v5103 = vpop.f32.mrb[0].mxu0
        %v5104 = vadd.f32 0.0, %v5103
        %v5105 = vpop.f32.mrb[0].mxu0
        %v5106 = vpop.f32.mrb[0].mxu0
        %v5107 = vadd.f32 0.0, %v5106
        %v5108 = vpop.f32.mrb[0].mxu0
        %5109 = vmatprep.mubr.bf16.mxu0 0
        %5110 = vmatmul.mubr.bf16.gmra.mrb[0].mxu0 %v3996
        %v5111 = vpop.f32.mrb[0].mxu0
        %v5112 = vadd.f32 0.0, %v5111
        %v5113 = vpop.f32.mrb[0].mxu0
        %v5114 = vpop.f32.mrb[0].mxu0
        %v5115 = vadd.f32 0.0, %v5114
        %v5116 = vpop.f32.mrb[0].mxu0
        %5117 = vmatprep.mubr.bf16.mxu0 0
        %5118 = vmatmul.mubr.bf16.gmra.mrb[0].mxu0 %v3997
        %v5119 = vpop.f32.mrb[0].mxu0
        %v5120 = vadd.f32 0.0, %v5119
        %v5121 = vpop.f32.mrb[0].mxu0
        %v5122 = vpop.f32.mrb[0].mxu0
        %v5123 = vadd.f32 0.0, %v5122
        %v5124 = vpop.f32.mrb[0].mxu0
        %5125 = vmatprep.mubr.bf16.mxu0 0
        %5126 = vmatmul.mubr.bf16.gmra.mrb[0].mxu0 %v3998
        %v5127 = vpop.f32.mrb[0].mxu0
        %v5128 = vadd.f32 0.0, %v5127
        %v5129 = vpop.f32.mrb[0].mxu0
        %v5130 = vpop.f32.mrb[0].mxu0
        %v5131 = vadd.f32 0.0, %v5130
        %v5132 = vpop.f32.mrb[0].mxu0
        %5133 = vmatprep.mubr.bf16.mxu0 0
        %5134 = vmatmul.mubr.bf16.gmra.mrb[0].mxu0 %v3999
        %v5135 = vpop.f32.mrb[0].mxu0
        %v5136 = vadd.f32 0.0, %v5135
        %v5137 = vpop.f32.mrb[0].mxu0
        %v5138 = vpop.f32.mrb[0].mxu0
        %v5139 = vadd.f32 0.0, %v5138
        %v5140 = vpop.f32.mrb[0].mxu0
        %5141 = vmatprep.mubr.bf16.mxu0 0
        %5142 = vmatmul.mubr.bf16.gmra.mrb[0].mxu0 %v4000
        %v5143 = vpop.f32.mrb[0].mxu0
        %v5144 = vadd.f32 0.0, %v5143
        %v5145 = vpop.f32.mrb[0].mxu0
        %v5146 = vpop.f32.mrb[0].mxu0
        %v5147 = vadd.f32 0.0, %v5146
        %v5148 = vpop.f32.mrb[0].mxu0
        %5149 = vmatprep.mubr.bf16.mxu0 0
        %5150 = vmatmul.mubr.bf16.gmra.mrb[0].mxu0 %v4001
        %v5151 = vpop.f32.mrb[0].mxu0
        %v5152 = vadd.f32 0.0, %v5151
        %v5153 = vpop.f32.mrb[0].mxu0
        %v5154 = vpop.f32.mrb[0].mxu0
        %v5155 = vadd.f32 0.0, %v5154
        %v5156 = vpop.f32.mrb[0].mxu0
        %5157 = vmatprep.mubr.bf16.mxu0 0
        %5158 = vmatmul.mubr.bf16.gmra.mrb[0].mxu0 %v4002
        %v5159 = vpop.f32.mrb[0].mxu0
        %v5160 = vadd.f32 0.0, %v5159
        %v5161 = vpop.f32.mrb[0].mxu0
        %v5162 = vpop.f32.mrb[0].mxu0
        %v5163 = vadd.f32 0.0, %v5162
        %v5164 = vpop.f32.mrb[0].mxu0
        %5165 = vmatprep.mubr.bf16.mxu0 0
        %5166 = vmatmul.mubr.bf16.gmra.mrb[0].mxu0 %v4003
        %v5167 = vpop.f32.mrb[0].mxu0
        %v5168 = vadd.f32 0.0, %v5167
        %v5169 = vpop.f32.mrb[0].mxu0
        %v5170 = vpop.f32.mrb[0].mxu0
        %v5171 = vadd.f32 0.0, %v5170
        %v5172 = vpop.f32.mrb[0].mxu0
        %5173 = vmatprep.mubr.bf16.mxu0 0
        %5174 = vmatmul.mubr.bf16.gmra.mrb[0].mxu0 %v4004
        %v5175 = vpop.f32.mrb[0].mxu0
        %v5176 = vadd.f32 0.0, %v5175
        %v5177 = vpop.f32.mrb[0].mxu0
        %v5178 = vpop.f32.mrb[0].mxu0
        %v5179 = vadd.f32 0.0, %v5178
        %v5180 = vpop.f32.mrb[0].mxu0
        %5181 = vmatprep.mubr.bf16.mxu0 0
        %5182 = vmatmul.mubr.bf16.gmra.mrb[0].mxu0 %v4005
        %v5183 = vpop.f32.mrb[0].mxu0
        %v5184 = vadd.f32 0.0, %v5183
        %v5185 = vpop.f32.mrb[0].mxu0
        %v5186 = vpop.f32.mrb[0].mxu0
        %v5187 = vadd.f32 0.0, %v5186
        %v5188 = vpop.f32.mrb[0].mxu0
        %5189 = vmatprep.mubr.bf16.mxu0 0
        %5190 = vmatmul.mubr.bf16.gmra.mrb[0].mxu0 %v4006
        %v5191 = vpop.f32.mrb[0].mxu0
        %v5192 = vadd.f32 0.0, %v5191
        %v5193 = vpop.f32.mrb[0].mxu0
        %v5194 = vpop.f32.mrb[0].mxu0
        %v5195 = vadd.f32 0.0, %v5194
        %v5196 = vpop.f32.mrb[0].mxu0
        %5197 = vmatprep.mubr.bf16.mxu0 0
        %5198 = vmatmul.mubr.bf16.gmra.mrb[0].mxu0 %v4007
        %v5199 = vpop.f32.mrb[0].mxu0
        %v5200 = vadd.f32 0.0, %v5199
        %v5201 = vpop.f32.mrb[0].mxu0
        %v5202 = vpop.f32.mrb[0].mxu0
        %v5203 = vadd.f32 0.0, %v5202
        %v5204 = vpop.f32.mrb[0].mxu0
        %5205 = vmatprep.mubr.bf16.mxu0 0
        %5206 = vmatmul.mubr.bf16.gmra.mrb[0].mxu0 %v4008
        %v5207 = vpop.f32.mrb[0].mxu0
        %v5208 = vadd.f32 0.0, %v5207
        %v5209 = vpop.f32.mrb[0].mxu0
        %v5210 = vpop.f32.mrb[0].mxu0
        %v5211 = vadd.f32 0.0, %v5210
        %v5212 = vpop.f32.mrb[0].mxu0
        %5213 = vmatprep.mubr.bf16.mxu0 0
        %5214 = vmatmul.mubr.bf16.gmra.mrb[0].mxu0 %v4009
        %v5215 = vpop.f32.mrb[0].mxu0
        %v5216 = vadd.f32 0.0, %v5215
        %v5217 = vpop.f32.mrb[0].mxu0
        %v5218 = vpop.f32.mrb[0].mxu0
        %v5219 = vadd.f32 0.0, %v5218
        %v5220 = vpop.f32.mrb[0].mxu0
        %5221 = vdwg.mxu0
        %v5222 = vadd.f32 %v4964, %v5096
        %v5223 = vadd.f32 %v4965, %v5099
        %v5224 = vadd.f32 %v4966, %v5104
        %v5225 = vadd.f32 %v4967, %v5107
        %v5226 = vadd.f32 %v4968, %v5112
        %v5227 = vadd.f32 %v4969, %v5115
        %v5228 = vadd.f32 %v4970, %v5120
        %v5229 = vadd.f32 %v4971, %v5123
        %v5230 = vadd.f32 %v4972, %v5128
        %v5231 = vadd.f32 %v4973, %v5131
        %v5232 = vadd.f32 %v4974, %v5136
        %v5233 = vadd.f32 %v4975, %v5139
        %v5234 = vadd.f32 %v4976, %v5144
        %v5235 = vadd.f32 %v4977, %v5147
        %v5236 = vadd.f32 %v4978, %v5152
        %v5237 = vadd.f32 %v4979, %v5155
        %v5238 = vadd.f32 %v4980, %v5160
        %v5239 = vadd.f32 %v4981, %v5163
        %v5240 = vadd.f32 %v4982, %v5168
        %v5241 = vadd.f32 %v4983, %v5171
        %v5242 = vadd.f32 %v4984, %v5176
        %v5243 = vadd.f32 %v4985, %v5179
        %v5244 = vadd.f32 %v4986, %v5184
        %v5245 = vadd.f32 %v4987, %v5187
        %v5246 = vadd.f32 %v4988, %v5192
        %v5247 = vadd.f32 %v4989, %v5195
        %v5248 = vadd.f32 %v4990, %v5200
        %v5249 = vadd.f32 %v4991, %v5203
        %v5250 = vadd.f32 %v4992, %v5208
        %v5251 = vadd.f32 %v4993, %v5211
        %v5252 = vadd.f32 %v4994, %v5216
        %v5253 = vadd.f32 %v4995, %v5219
        %s5254 = scalar_lea.vmem [#allocation8], 320
        %v5255 = vld [vmem:[%s5254] sm:$0xf]
        %v5256 = vld [vmem:[%s5254 + $0x4] sm:$0xf]
        %v5257 = vld [vmem:[%s5254 + $0x8] sm:$0xf]
        %v5258 = vld [vmem:[%s5254 + $0xc] sm:$0xf]
        %v5259 = vld [vmem:[%s5254 + $0x10] sm:$0xf]
        %v5260 = vld [vmem:[%s5254 + $0x14] sm:$0xf]
        %v5261 = vld [vmem:[%s5254 + $0x18] sm:$0xf]
        %v5262 = vld [vmem:[%s5254 + $0x1c] sm:$0xf]
        %v5263 = vld [vmem:[%s5254 + $0x20] sm:$0xf]
        %v5264 = vld [vmem:[%s5254 + $0x24] sm:$0xf]
        %v5265 = vld [vmem:[%s5254 + $0x28] sm:$0xf]
        %v5266 = vld [vmem:[%s5254 + $0x2c] sm:$0xf]
        %v5267 = vld [vmem:[%s5254 + $0x30] sm:$0xf]
        %v5268 = vld [vmem:[%s5254 + $0x34] sm:$0xf]
        %v5269 = vld [vmem:[%s5254 + $0x38] sm:$0xf]
        %v5270 = vld [vmem:[%s5254 + $0x3c] sm:$0xf]
        %v5287 = vunpack.c.l.b16 %v5255
        %v5288 = vunpack.c.l.b16 %v5256
        %v5289 = vunpack.c.l.b16 %v5257
        %v5290 = vunpack.c.l.b16 %v5258
        %v5291 = vunpack.c.l.b16 %v5259
        %v5292 = vunpack.c.l.b16 %v5260
        %v5293 = vunpack.c.l.b16 %v5261
        %v5294 = vunpack.c.l.b16 %v5262
        %v5295 = vunpack.c.l.b16 %v5263
        %v5296 = vunpack.c.l.b16 %v5264
        %v5297 = vunpack.c.l.b16 %v5265
        %v5298 = vunpack.c.l.b16 %v5266
        %v5299 = vunpack.c.l.b16 %v5267
        %v5300 = vunpack.c.l.b16 %v5268
        %v5301 = vunpack.c.l.b16 %v5269
        %v5302 = vunpack.c.l.b16 %v5270
        %v5303 = vpack.c.b16 %v5288, %v5287
        %v5304 = vpack.c.b16 %v5290, %v5289
        %v5305 = vpack.c.b16 %v5292, %v5291
        %v5306 = vpack.c.b16 %v5294, %v5293
        %v5307 = vpack.c.b16 %v5296, %v5295
        %v5308 = vpack.c.b16 %v5298, %v5297
        %v5309 = vpack.c.b16 %v5300, %v5299
        %v5310 = vpack.c.b16 %v5302, %v5301
        %5319 = vmatprep.subr.bf16.mxu0 0
        %5320 = vmatpush1.bf16.msra.mxu0 %v5303
        %5321 = vmatprep.subr.bf16.mxu0 0
        %5322 = vmatpush1.bf16.msra.mxu0 %v5304
        %5323 = vmatprep.subr.bf16.mxu0 0
        %5324 = vmatpush1.bf16.msra.mxu0 %v5305
        %5325 = vmatprep.subr.bf16.mxu0 0
        %5326 = vmatpush1.bf16.msra.mxu0 %v5306
        %5327 = vmatprep.subr.bf16.mxu0 0
        %5328 = vmatpush1.bf16.msra.mxu0 %v5307
        %5329 = vmatprep.subr.bf16.mxu0 0
        %5330 = vmatpush1.bf16.msra.mxu0 %v5308
        %5331 = vmatprep.subr.bf16.mxu0 0
        %5332 = vmatpush1.bf16.msra.mxu0 %v5309
        %5333 = vmatprep.subr.bf16.mxu0 0
        %5334 = vmatpush1.bf16.msra.mxu0 %v5310
        %5335 = vmatprep.subr.bf16.mxu0 0
        %5336 = vmatpush1.bf16.msra.mxu0 0
        %5337 = vmatprep.subr.bf16.mxu0 0
        %5338 = vmatpush1.bf16.msra.mxu0 0
        %5339 = vmatprep.subr.bf16.mxu0 0
        %5340 = vmatpush1.bf16.msra.mxu0 0
        %5341 = vmatprep.subr.bf16.mxu0 0
        %5342 = vmatpush1.bf16.msra.mxu0 0
        %5343 = vmatprep.subr.bf16.mxu0 0
        %5344 = vmatpush1.bf16.msra.mxu0 0
        %5345 = vmatprep.subr.bf16.mxu0 0
        %5346 = vmatpush1.bf16.msra.mxu0 0
        %5347 = vmatprep.subr.bf16.mxu0 0
        %5348 = vmatpush1.bf16.msra.mxu0 0
        %5349 = vmatprep.subr.bf16.mxu0 0
        %5350 = vmatpush1.bf16.msra.mxu0 0
        %5351 = vmatprep.mubr.bf16.mxu0 0
        %5352 = vmatmul.mubr.bf16.gmra.mrb[0].mxu0 %v4012
        %v5353 = vpop.f32.mrb[0].mxu0
        %v5354 = vadd.f32 0.0, %v5353
        %v5355 = vpop.f32.mrb[0].mxu0
        %v5356 = vpop.f32.mrb[0].mxu0
        %v5357 = vadd.f32 0.0, %v5356
        %v5358 = vpop.f32.mrb[0].mxu0
        %5359 = vmatprep.mubr.bf16.mxu0 0
        %5360 = vmatmul.mubr.bf16.gmra.mrb[0].mxu0 %v4013
        %v5361 = vpop.f32.mrb[0].mxu0
        %v5362 = vadd.f32 0.0, %v5361
        %v5363 = vpop.f32.mrb[0].mxu0
        %v5364 = vpop.f32.mrb[0].mxu0
        %v5365 = vadd.f32 0.0, %v5364
        %v5366 = vpop.f32.mrb[0].mxu0
        %5367 = vmatprep.mubr.bf16.mxu0 0
        %5368 = vmatmul.mubr.bf16.gmra.mrb[0].mxu0 %v4014
        %v5369 = vpop.f32.mrb[0].mxu0
        %v5370 = vadd.f32 0.0, %v5369
        %v5371 = vpop.f32.mrb[0].mxu0
        %v5372 = vpop.f32.mrb[0].mxu0
        %v5373 = vadd.f32 0.0, %v5372
        %v5374 = vpop.f32.mrb[0].mxu0
        %5375 = vmatprep.mubr.bf16.mxu0 0
        %5376 = vmatmul.mubr.bf16.gmra.mrb[0].mxu0 %v4015
        %v5377 = vpop.f32.mrb[0].mxu0
        %v5378 = vadd.f32 0.0, %v5377
        %v5379 = vpop.f32.mrb[0].mxu0
        %v5380 = vpop.f32.mrb[0].mxu0
        %v5381 = vadd.f32 0.0, %v5380
        %v5382 = vpop.f32.mrb[0].mxu0
        %5383 = vmatprep.mubr.bf16.mxu0 0
        %5384 = vmatmul.mubr.bf16.gmra.mrb[0].mxu0 %v4016
        %v5385 = vpop.f32.mrb[0].mxu0
        %v5386 = vadd.f32 0.0, %v5385
        %v5387 = vpop.f32.mrb[0].mxu0
        %v5388 = vpop.f32.mrb[0].mxu0
        %v5389 = vadd.f32 0.0, %v5388
        %v5390 = vpop.f32.mrb[0].mxu0
        %5391 = vmatprep.mubr.bf16.mxu0 0
        %5392 = vmatmul.mubr.bf16.gmra.mrb[0].mxu0 %v4017
        %v5393 = vpop.f32.mrb[0].mxu0
        %v5394 = vadd.f32 0.0, %v5393
        %v5395 = vpop.f32.mrb[0].mxu0
        %v5396 = vpop.f32.mrb[0].mxu0
        %v5397 = vadd.f32 0.0, %v5396
        %v5398 = vpop.f32.mrb[0].mxu0
        %5399 = vmatprep.mubr.bf16.mxu0 0
        %5400 = vmatmul.mubr.bf16.gmra.mrb[0].mxu0 %v4018
        %v5401 = vpop.f32.mrb[0].mxu0
        %v5402 = vadd.f32 0.0, %v5401
        %v5403 = vpop.f32.mrb[0].mxu0
        %v5404 = vpop.f32.mrb[0].mxu0
        %v5405 = vadd.f32 0.0, %v5404
        %v5406 = vpop.f32.mrb[0].mxu0
        %5407 = vmatprep.mubr.bf16.mxu0 0
        %5408 = vmatmul.mubr.bf16.gmra.mrb[0].mxu0 %v4019
        %v5409 = vpop.f32.mrb[0].mxu0
        %v5410 = vadd.f32 0.0, %v5409
        %v5411 = vpop.f32.mrb[0].mxu0
        %v5412 = vpop.f32.mrb[0].mxu0
        %v5413 = vadd.f32 0.0, %v5412
        %v5414 = vpop.f32.mrb[0].mxu0
        %5415 = vmatprep.mubr.bf16.mxu0 0
        %5416 = vmatmul.mubr.bf16.gmra.mrb[0].mxu0 %v4020
        %v5417 = vpop.f32.mrb[0].mxu0
        %v5418 = vadd.f32 0.0, %v5417
        %v5419 = vpop.f32.mrb[0].mxu0
        %v5420 = vpop.f32.mrb[0].mxu0
        %v5421 = vadd.f32 0.0, %v5420
        %v5422 = vpop.f32.mrb[0].mxu0
        %5423 = vmatprep.mubr.bf16.mxu0 0
        %5424 = vmatmul.mubr.bf16.gmra.mrb[0].mxu0 %v4021
        %v5425 = vpop.f32.mrb[0].mxu0
        %v5426 = vadd.f32 0.0, %v5425
        %v5427 = vpop.f32.mrb[0].mxu0
        %v5428 = vpop.f32.mrb[0].mxu0
        %v5429 = vadd.f32 0.0, %v5428
        %v5430 = vpop.f32.mrb[0].mxu0
        %5431 = vmatprep.mubr.bf16.mxu0 0
        %5432 = vmatmul.mubr.bf16.gmra.mrb[0].mxu0 %v4022
        %v5433 = vpop.f32.mrb[0].mxu0
        %v5434 = vadd.f32 0.0, %v5433
        %v5435 = vpop.f32.mrb[0].mxu0
        %v5436 = vpop.f32.mrb[0].mxu0
        %v5437 = vadd.f32 0.0, %v5436
        %v5438 = vpop.f32.mrb[0].mxu0
        %5439 = vmatprep.mubr.bf16.mxu0 0
        %5440 = vmatmul.mubr.bf16.gmra.mrb[0].mxu0 %v4023
        %v5441 = vpop.f32.mrb[0].mxu0
        %v5442 = vadd.f32 0.0, %v5441
        %v5443 = vpop.f32.mrb[0].mxu0
        %v5444 = vpop.f32.mrb[0].mxu0
        %v5445 = vadd.f32 0.0, %v5444
        %v5446 = vpop.f32.mrb[0].mxu0
        %5447 = vmatprep.mubr.bf16.mxu0 0
        %5448 = vmatmul.mubr.bf16.gmra.mrb[0].mxu0 %v4024
        %v5449 = vpop.f32.mrb[0].mxu0
        %v5450 = vadd.f32 0.0, %v5449
        %v5451 = vpop.f32.mrb[0].mxu0
        %v5452 = vpop.f32.mrb[0].mxu0
        %v5453 = vadd.f32 0.0, %v5452
        %v5454 = vpop.f32.mrb[0].mxu0
        %5455 = vmatprep.mubr.bf16.mxu0 0
        %5456 = vmatmul.mubr.bf16.gmra.mrb[0].mxu0 %v4025
        %v5457 = vpop.f32.mrb[0].mxu0
        %v5458 = vadd.f32 0.0, %v5457
        %v5459 = vpop.f32.mrb[0].mxu0
        %v5460 = vpop.f32.mrb[0].mxu0
        %v5461 = vadd.f32 0.0, %v5460
        %v5462 = vpop.f32.mrb[0].mxu0
        %5463 = vmatprep.mubr.bf16.mxu0 0
        %5464 = vmatmul.mubr.bf16.gmra.mrb[0].mxu0 %v4026
        %v5465 = vpop.f32.mrb[0].mxu0
        %v5466 = vadd.f32 0.0, %v5465
        %v5467 = vpop.f32.mrb[0].mxu0
        %v5468 = vpop.f32.mrb[0].mxu0
        %v5469 = vadd.f32 0.0, %v5468
        %v5470 = vpop.f32.mrb[0].mxu0
        %5471 = vmatprep.mubr.bf16.mxu0 0
        %5472 = vmatmul.mubr.bf16.gmra.mrb[0].mxu0 %v4027
        %v5473 = vpop.f32.mrb[0].mxu0
        %v5474 = vadd.f32 0.0, %v5473
        %v5475 = vpop.f32.mrb[0].mxu0
        %v5476 = vpop.f32.mrb[0].mxu0
        %v5477 = vadd.f32 0.0, %v5476
        %v5478 = vpop.f32.mrb[0].mxu0
        %5479 = vdwg.mxu0
        %v5480 = vadd.f32 %v5222, %v5354
        %v5481 = vadd.f32 %v5223, %v5357
        %v5482 = vadd.f32 %v5224, %v5362
        %v5483 = vadd.f32 %v5225, %v5365
        %v5484 = vadd.f32 %v5226, %v5370
        %v5485 = vadd.f32 %v5227, %v5373
        %v5486 = vadd.f32 %v5228, %v5378
        %v5487 = vadd.f32 %v5229, %v5381
        %v5488 = vadd.f32 %v5230, %v5386
        %v5489 = vadd.f32 %v5231, %v5389
        %v5490 = vadd.f32 %v5232, %v5394
        %v5491 = vadd.f32 %v5233, %v5397
        %v5492 = vadd.f32 %v5234, %v5402
        %v5493 = vadd.f32 %v5235, %v5405
        %v5494 = vadd.f32 %v5236, %v5410
        %v5495 = vadd.f32 %v5237, %v5413
        %v5496 = vadd.f32 %v5238, %v5418
        %v5497 = vadd.f32 %v5239, %v5421
        %v5498 = vadd.f32 %v5240, %v5426
        %v5499 = vadd.f32 %v5241, %v5429
        %v5500 = vadd.f32 %v5242, %v5434
        %v5501 = vadd.f32 %v5243, %v5437
        %v5502 = vadd.f32 %v5244, %v5442
        %v5503 = vadd.f32 %v5245, %v5445
        %v5504 = vadd.f32 %v5246, %v5450
        %v5505 = vadd.f32 %v5247, %v5453
        %v5506 = vadd.f32 %v5248, %v5458
        %v5507 = vadd.f32 %v5249, %v5461
        %v5508 = vadd.f32 %v5250, %v5466
        %v5509 = vadd.f32 %v5251, %v5469
        %v5510 = vadd.f32 %v5252, %v5474
        %v5511 = vadd.f32 %v5253, %v5477
        %s5512 = scalar_lea.vmem [#allocation8], 384
        %v5513 = vld [vmem:[%s5512] sm:$0xf]
        %v5514 = vld [vmem:[%s5512 + $0x4] sm:$0xf]
        %v5515 = vld [vmem:[%s5512 + $0x8] sm:$0xf]
        %v5516 = vld [vmem:[%s5512 + $0xc] sm:$0xf]
        %v5517 = vld [vmem:[%s5512 + $0x10] sm:$0xf]
        %v5518 = vld [vmem:[%s5512 + $0x14] sm:$0xf]
        %v5519 = vld [vmem:[%s5512 + $0x18] sm:$0xf]
        %v5520 = vld [vmem:[%s5512 + $0x1c] sm:$0xf]
        %v5521 = vld [vmem:[%s5512 + $0x20] sm:$0xf]
        %v5522 = vld [vmem:[%s5512 + $0x24] sm:$0xf]
        %v5523 = vld [vmem:[%s5512 + $0x28] sm:$0xf]
        %v5524 = vld [vmem:[%s5512 + $0x2c] sm:$0xf]
        %v5525 = vld [vmem:[%s5512 + $0x30] sm:$0xf]
        %v5526 = vld [vmem:[%s5512 + $0x34] sm:$0xf]
        %v5527 = vld [vmem:[%s5512 + $0x38] sm:$0xf]
        %v5528 = vld [vmem:[%s5512 + $0x3c] sm:$0xf]
        %v5545 = vunpack.c.l.b16 %v5513
        %v5546 = vunpack.c.l.b16 %v5514
        %v5547 = vunpack.c.l.b16 %v5515
        %v5548 = vunpack.c.l.b16 %v5516
        %v5549 = vunpack.c.l.b16 %v5517
        %v5550 = vunpack.c.l.b16 %v5518
        %v5551 = vunpack.c.l.b16 %v5519
        %v5552 = vunpack.c.l.b16 %v5520
        %v5553 = vunpack.c.l.b16 %v5521
        %v5554 = vunpack.c.l.b16 %v5522
        %v5555 = vunpack.c.l.b16 %v5523
        %v5556 = vunpack.c.l.b16 %v5524
        %v5557 = vunpack.c.l.b16 %v5525
        %v5558 = vunpack.c.l.b16 %v5526
        %v5559 = vunpack.c.l.b16 %v5527
        %v5560 = vunpack.c.l.b16 %v5528
        %v5561 = vpack.c.b16 %v5546, %v5545
        %v5562 = vpack.c.b16 %v5548, %v5547
        %v5563 = vpack.c.b16 %v5550, %v5549
        %v5564 = vpack.c.b16 %v5552, %v5551
        %v5565 = vpack.c.b16 %v5554, %v5553
        %v5566 = vpack.c.b16 %v5556, %v5555
        %v5567 = vpack.c.b16 %v5558, %v5557
        %v5568 = vpack.c.b16 %v5560, %v5559
        %5577 = vmatprep.subr.bf16.mxu0 0
        %5578 = vmatpush1.bf16.msra.mxu0 %v5561
        %5579 = vmatprep.subr.bf16.mxu0 0
        %5580 = vmatpush1.bf16.msra.mxu0 %v5562
        %5581 = vmatprep.subr.bf16.mxu0 0
        %5582 = vmatpush1.bf16.msra.mxu0 %v5563
        %5583 = vmatprep.subr.bf16.mxu0 0
        %5584 = vmatpush1.bf16.msra.mxu0 %v5564
        %5585 = vmatprep.subr.bf16.mxu0 0
        %5586 = vmatpush1.bf16.msra.mxu0 %v5565
        %5587 = vmatprep.subr.bf16.mxu0 0
        %5588 = vmatpush1.bf16.msra.mxu0 %v5566
        %5589 = vmatprep.subr.bf16.mxu0 0
        %5590 = vmatpush1.bf16.msra.mxu0 %v5567
        %5591 = vmatprep.subr.bf16.mxu0 0
        %5592 = vmatpush1.bf16.msra.mxu0 %v5568
        %5593 = vmatprep.subr.bf16.mxu0 0
        %5594 = vmatpush1.bf16.msra.mxu0 0
        %5595 = vmatprep.subr.bf16.mxu0 0
        %5596 = vmatpush1.bf16.msra.mxu0 0
        %5597 = vmatprep.subr.bf16.mxu0 0
        %5598 = vmatpush1.bf16.msra.mxu0 0
        %5599 = vmatprep.subr.bf16.mxu0 0
        %5600 = vmatpush1.bf16.msra.mxu0 0
        %5601 = vmatprep.subr.bf16.mxu0 0
        %5602 = vmatpush1.bf16.msra.mxu0 0
        %5603 = vmatprep.subr.bf16.mxu0 0
        %5604 = vmatpush1.bf16.msra.mxu0 0
        %5605 = vmatprep.subr.bf16.mxu0 0
        %5606 = vmatpush1.bf16.msra.mxu0 0
        %5607 = vmatprep.subr.bf16.mxu0 0
        %5608 = vmatpush1.bf16.msra.mxu0 0
        %5609 = vmatprep.mubr.bf16.mxu0 0
        %5610 = vmatmul.mubr.bf16.gmra.mrb[0].mxu0 %v3977
        %v5611 = vpop.f32.mrb[0].mxu0
        %v5612 = vadd.f32 0.0, %v5611
        %v5613 = vpop.f32.mrb[0].mxu0
        %v5614 = vpop.f32.mrb[0].mxu0
        %v5615 = vadd.f32 0.0, %v5614
        %v5616 = vpop.f32.mrb[0].mxu0
        %5617 = vmatprep.mubr.bf16.mxu0 0
        %5618 = vmatmul.mubr.bf16.gmra.mrb[0].mxu0 %v3978
        %v5619 = vpop.f32.mrb[0].mxu0
        %v5620 = vadd.f32 0.0, %v5619
        %v5621 = vpop.f32.mrb[0].mxu0
        %v5622 = vpop.f32.mrb[0].mxu0
        %v5623 = vadd.f32 0.0, %v5622
        %v5624 = vpop.f32.mrb[0].mxu0
        %5625 = vmatprep.mubr.bf16.mxu0 0
        %5626 = vmatmul.mubr.bf16.gmra.mrb[0].mxu0 %v3979
        %v5627 = vpop.f32.mrb[0].mxu0
        %v5628 = vadd.f32 0.0, %v5627
        %v5629 = vpop.f32.mrb[0].mxu0
        %v5630 = vpop.f32.mrb[0].mxu0
        %v5631 = vadd.f32 0.0, %v5630
        %v5632 = vpop.f32.mrb[0].mxu0
        %5633 = vmatprep.mubr.bf16.mxu0 0
        %5634 = vmatmul.mubr.bf16.gmra.mrb[0].mxu0 %v3980
        %v5635 = vpop.f32.mrb[0].mxu0
        %v5636 = vadd.f32 0.0, %v5635
        %v5637 = vpop.f32.mrb[0].mxu0
        %v5638 = vpop.f32.mrb[0].mxu0
        %v5639 = vadd.f32 0.0, %v5638
        %v5640 = vpop.f32.mrb[0].mxu0
        %5641 = vmatprep.mubr.bf16.mxu0 0
        %5642 = vmatmul.mubr.bf16.gmra.mrb[0].mxu0 %v3981
        %v5643 = vpop.f32.mrb[0].mxu0
        %v5644 = vadd.f32 0.0, %v5643
        %v5645 = vpop.f32.mrb[0].mxu0
        %v5646 = vpop.f32.mrb[0].mxu0
        %v5647 = vadd.f32 0.0, %v5646
        %v5648 = vpop.f32.mrb[0].mxu0
        %5649 = vmatprep.mubr.bf16.mxu0 0
        %5650 = vmatmul.mubr.bf16.gmra.mrb[0].mxu0 %v3982
        %v5651 = vpop.f32.mrb[0].mxu0
        %v5652 = vadd.f32 0.0, %v5651
        %v5653 = vpop.f32.mrb[0].mxu0
        %v5654 = vpop.f32.mrb[0].mxu0
        %v5655 = vadd.f32 0.0, %v5654
        %v5656 = vpop.f32.mrb[0].mxu0
        %5657 = vmatprep.mubr.bf16.mxu0 0
        %5658 = vmatmul.mubr.bf16.gmra.mrb[0].mxu0 %v3983
        %v5659 = vpop.f32.mrb[0].mxu0
        %v5660 = vadd.f32 0.0, %v5659
        %v5661 = vpop.f32.mrb[0].mxu0
        %v5662 = vpop.f32.mrb[0].mxu0
        %v5663 = vadd.f32 0.0, %v5662
        %v5664 = vpop.f32.mrb[0].mxu0
        %5665 = vmatprep.mubr.bf16.mxu0 0
        %5666 = vmatmul.mubr.bf16.gmra.mrb[0].mxu0 %v3984
        %v5667 = vpop.f32.mrb[0].mxu0
        %v5668 = vadd.f32 0.0, %v5667
        %v5669 = vpop.f32.mrb[0].mxu0
        %v5670 = vpop.f32.mrb[0].mxu0
        %v5671 = vadd.f32 0.0, %v5670
        %v5672 = vpop.f32.mrb[0].mxu0
        %5673 = vmatprep.mubr.bf16.mxu0 0
        %5674 = vmatmul.mubr.bf16.gmra.mrb[0].mxu0 %v3985
        %v5675 = vpop.f32.mrb[0].mxu0
        %v5676 = vadd.f32 0.0, %v5675
        %v5677 = vpop.f32.mrb[0].mxu0
        %v5678 = vpop.f32.mrb[0].mxu0
        %v5679 = vadd.f32 0.0, %v5678
        %v5680 = vpop.f32.mrb[0].mxu0
        %5681 = vmatprep.mubr.bf16.mxu0 0
        %5682 = vmatmul.mubr.bf16.gmra.mrb[0].mxu0 %v3986
        %v5683 = vpop.f32.mrb[0].mxu0
        %v5684 = vadd.f32 0.0, %v5683
        %v5685 = vpop.f32.mrb[0].mxu0
        %v5686 = vpop.f32.mrb[0].mxu0
        %v5687 = vadd.f32 0.0, %v5686
        %v5688 = vpop.f32.mrb[0].mxu0
        %5689 = vmatprep.mubr.bf16.mxu0 0
        %5690 = vmatmul.mubr.bf16.gmra.mrb[0].mxu0 %v3987
        %v5691 = vpop.f32.mrb[0].mxu0
        %v5692 = vadd.f32 0.0, %v5691
        %v5693 = vpop.f32.mrb[0].mxu0
        %v5694 = vpop.f32.mrb[0].mxu0
        %v5695 = vadd.f32 0.0, %v5694
        %v5696 = vpop.f32.mrb[0].mxu0
        %5697 = vmatprep.mubr.bf16.mxu0 0
        %5698 = vmatmul.mubr.bf16.gmra.mrb[0].mxu0 %v3988
        %v5699 = vpop.f32.mrb[0].mxu0
        %v5700 = vadd.f32 0.0, %v5699
        %v5701 = vpop.f32.mrb[0].mxu0
        %v5702 = vpop.f32.mrb[0].mxu0
        %v5703 = vadd.f32 0.0, %v5702
        %v5704 = vpop.f32.mrb[0].mxu0
        %5705 = vmatprep.mubr.bf16.mxu0 0
        %5706 = vmatmul.mubr.bf16.gmra.mrb[0].mxu0 %v3989
        %v5707 = vpop.f32.mrb[0].mxu0
        %v5708 = vadd.f32 0.0, %v5707
        %v5709 = vpop.f32.mrb[0].mxu0
        %v5710 = vpop.f32.mrb[0].mxu0
        %v5711 = vadd.f32 0.0, %v5710
        %v5712 = vpop.f32.mrb[0].mxu0
        %5713 = vmatprep.mubr.bf16.mxu0 0
        %5714 = vmatmul.mubr.bf16.gmra.mrb[0].mxu0 %v3990
        %v5715 = vpop.f32.mrb[0].mxu0
        %v5716 = vadd.f32 0.0, %v5715
        %v5717 = vpop.f32.mrb[0].mxu0
        %v5718 = vpop.f32.mrb[0].mxu0
        %v5719 = vadd.f32 0.0, %v5718
        %v5720 = vpop.f32.mrb[0].mxu0
        %5721 = vmatprep.mubr.bf16.mxu0 0
        %5722 = vmatmul.mubr.bf16.gmra.mrb[0].mxu0 %v3991
        %v5723 = vpop.f32.mrb[0].mxu0
        %v5724 = vadd.f32 0.0, %v5723
        %v5725 = vpop.f32.mrb[0].mxu0
        %v5726 = vpop.f32.mrb[0].mxu0
        %v5727 = vadd.f32 0.0, %v5726
        %v5728 = vpop.f32.mrb[0].mxu0
        %5729 = vmatprep.mubr.bf16.mxu0 0
        %5730 = vmatmul.mubr.bf16.gmra.mrb[0].mxu0 %v3992
        %v5731 = vpop.f32.mrb[0].mxu0
        %v5732 = vadd.f32 0.0, %v5731
        %v5733 = vpop.f32.mrb[0].mxu0
        %v5734 = vpop.f32.mrb[0].mxu0
        %v5735 = vadd.f32 0.0, %v5734
        %v5736 = vpop.f32.mrb[0].mxu0
        %5737 = vdwg.mxu0
        %v5738 = vadd.f32 %v5480, %v5612
        %v5739 = vadd.f32 %v5481, %v5615
        %v5740 = vadd.f32 %v5482, %v5620
        %v5741 = vadd.f32 %v5483, %v5623
        %v5742 = vadd.f32 %v5484, %v5628
        %v5743 = vadd.f32 %v5485, %v5631
        %v5744 = vadd.f32 %v5486, %v5636
        %v5745 = vadd.f32 %v5487, %v5639
        %v5746 = vadd.f32 %v5488, %v5644
        %v5747 = vadd.f32 %v5489, %v5647
        %v5748 = vadd.f32 %v5490, %v5652
        %v5749 = vadd.f32 %v5491, %v5655
        %v5750 = vadd.f32 %v5492, %v5660
        %v5751 = vadd.f32 %v5493, %v5663
        %v5752 = vadd.f32 %v5494, %v5668
        %v5753 = vadd.f32 %v5495, %v5671
        %v5754 = vadd.f32 %v5496, %v5676
        %v5755 = vadd.f32 %v5497, %v5679
        %v5756 = vadd.f32 %v5498, %v5684
        %v5757 = vadd.f32 %v5499, %v5687
        %v5758 = vadd.f32 %v5500, %v5692
        %v5759 = vadd.f32 %v5501, %v5695
        %v5760 = vadd.f32 %v5502, %v5700
        %v5761 = vadd.f32 %v5503, %v5703
        %v5762 = vadd.f32 %v5504, %v5708
        %v5763 = vadd.f32 %v5505, %v5711
        %v5764 = vadd.f32 %v5506, %v5716
        %v5765 = vadd.f32 %v5507, %v5719
        %v5766 = vadd.f32 %v5508, %v5724
        %v5767 = vadd.f32 %v5509, %v5727
        %v5768 = vadd.f32 %v5510, %v5732
        %v5769 = vadd.f32 %v5511, %v5735
        %s5770 = scalar_lea.vmem [#allocation8], 448
        %v5771 = vld [vmem:[%s5770] sm:$0xf]
        %v5772 = vld [vmem:[%s5770 + $0x4] sm:$0xf]
        %v5773 = vld [vmem:[%s5770 + $0x8] sm:$0xf]
        %v5774 = vld [vmem:[%s5770 + $0xc] sm:$0xf]
        %v5775 = vld [vmem:[%s5770 + $0x10] sm:$0xf]
        %v5776 = vld [vmem:[%s5770 + $0x14] sm:$0xf]
        %v5777 = vld [vmem:[%s5770 + $0x18] sm:$0xf]
        %v5778 = vld [vmem:[%s5770 + $0x1c] sm:$0xf]
        %v5779 = vld [vmem:[%s5770 + $0x20] sm:$0xf]
        %v5780 = vld [vmem:[%s5770 + $0x24] sm:$0xf]
        %v5781 = vld [vmem:[%s5770 + $0x28] sm:$0xf]
        %v5782 = vld [vmem:[%s5770 + $0x2c] sm:$0xf]
        %v5783 = vld [vmem:[%s5770 + $0x30] sm:$0xf]
        %v5784 = vld [vmem:[%s5770 + $0x34] sm:$0xf]
        %v5785 = vld [vmem:[%s5770 + $0x38] sm:$0xf]
        %v5786 = vld [vmem:[%s5770 + $0x3c] sm:$0xf]
        %v5803 = vunpack.c.l.b16 %v5771
        %v5804 = vunpack.c.l.b16 %v5772
        %v5805 = vunpack.c.l.b16 %v5773
        %v5806 = vunpack.c.l.b16 %v5774
        %v5807 = vunpack.c.l.b16 %v5775
        %v5808 = vunpack.c.l.b16 %v5776
        %v5809 = vunpack.c.l.b16 %v5777
        %v5810 = vunpack.c.l.b16 %v5778
        %v5811 = vunpack.c.l.b16 %v5779
        %v5812 = vunpack.c.l.b16 %v5780
        %v5813 = vunpack.c.l.b16 %v5781
        %v5814 = vunpack.c.l.b16 %v5782
        %v5815 = vunpack.c.l.b16 %v5783
        %v5816 = vunpack.c.l.b16 %v5784
        %v5817 = vunpack.c.l.b16 %v5785
        %v5818 = vunpack.c.l.b16 %v5786
        %v5819 = vpack.c.b16 %v5804, %v5803
        %v5820 = vpack.c.b16 %v5806, %v5805
        %v5821 = vpack.c.b16 %v5808, %v5807
        %v5822 = vpack.c.b16 %v5810, %v5809
        %v5823 = vpack.c.b16 %v5812, %v5811
        %v5824 = vpack.c.b16 %v5814, %v5813
        %v5825 = vpack.c.b16 %v5816, %v5815
        %v5826 = vpack.c.b16 %v5818, %v5817
        %5835 = vmatprep.subr.bf16.mxu0 0
        %5836 = vmatpush1.bf16.msra.mxu0 %v5819
        %5837 = vmatprep.subr.bf16.mxu0 0
        %5838 = vmatpush1.bf16.msra.mxu0 %v5820
        %5839 = vmatprep.subr.bf16.mxu0 0
        %5840 = vmatpush1.bf16.msra.mxu0 %v5821
        %5841 = vmatprep.subr.bf16.mxu0 0
        %5842 = vmatpush1.bf16.msra.mxu0 %v5822
        %5843 = vmatprep.subr.bf16.mxu0 0
        %5844 = vmatpush1.bf16.msra.mxu0 %v5823
        %5845 = vmatprep.subr.bf16.mxu0 0
        %5846 = vmatpush1.bf16.msra.mxu0 %v5824
        %5847 = vmatprep.subr.bf16.mxu0 0
        %5848 = vmatpush1.bf16.msra.mxu0 %v5825
        %5849 = vmatprep.subr.bf16.mxu0 0
        %5850 = vmatpush1.bf16.msra.mxu0 %v5826
        %5851 = vmatprep.subr.bf16.mxu0 0
        %5852 = vmatpush1.bf16.msra.mxu0 0
        %5853 = vmatprep.subr.bf16.mxu0 0
        %5854 = vmatpush1.bf16.msra.mxu0 0
        %5855 = vmatprep.subr.bf16.mxu0 0
        %5856 = vmatpush1.bf16.msra.mxu0 0
        %5857 = vmatprep.subr.bf16.mxu0 0
        %5858 = vmatpush1.bf16.msra.mxu0 0
        %5859 = vmatprep.subr.bf16.mxu0 0
        %5860 = vmatpush1.bf16.msra.mxu0 0
        %5861 = vmatprep.subr.bf16.mxu0 0
        %5862 = vmatpush1.bf16.msra.mxu0 0
        %5863 = vmatprep.subr.bf16.mxu0 0
        %5864 = vmatpush1.bf16.msra.mxu0 0
        %5865 = vmatprep.subr.bf16.mxu0 0
        %5866 = vmatpush1.bf16.msra.mxu0 0
        %5867 = vmatprep.mubr.bf16.mxu0 0
        %5868 = vmatmul.mubr.bf16.gmra.mrb[0].mxu0 %v3995
        %v5869 = vpop.f32.mrb[0].mxu0
        %v5870 = vadd.f32 0.0, %v5869
        %v5871 = vpop.f32.mrb[0].mxu0
        %v5872 = vpop.f32.mrb[0].mxu0
        %v5873 = vadd.f32 0.0, %v5872
        %v5874 = vpop.f32.mrb[0].mxu0
        %5875 = vmatprep.mubr.bf16.mxu0 0
        %5876 = vmatmul.mubr.bf16.gmra.mrb[0].mxu0 %v3996
        %v5877 = vpop.f32.mrb[0].mxu0
        %v5878 = vadd.f32 0.0, %v5877
        %v5879 = vpop.f32.mrb[0].mxu0
        %v5880 = vpop.f32.mrb[0].mxu0
        %v5881 = vadd.f32 0.0, %v5880
        %v5882 = vpop.f32.mrb[0].mxu0
        %5883 = vmatprep.mubr.bf16.mxu0 0
        %5884 = vmatmul.mubr.bf16.gmra.mrb[0].mxu0 %v3997
        %v5885 = vpop.f32.mrb[0].mxu0
        %v5886 = vadd.f32 0.0, %v5885
        %v5887 = vpop.f32.mrb[0].mxu0
        %v5888 = vpop.f32.mrb[0].mxu0
        %v5889 = vadd.f32 0.0, %v5888
        %v5890 = vpop.f32.mrb[0].mxu0
        %5891 = vmatprep.mubr.bf16.mxu0 0
        %5892 = vmatmul.mubr.bf16.gmra.mrb[0].mxu0 %v3998
        %v5893 = vpop.f32.mrb[0].mxu0
        %v5894 = vadd.f32 0.0, %v5893
        %v5895 = vpop.f32.mrb[0].mxu0
        %v5896 = vpop.f32.mrb[0].mxu0
        %v5897 = vadd.f32 0.0, %v5896
        %v5898 = vpop.f32.mrb[0].mxu0
        %5899 = vmatprep.mubr.bf16.mxu0 0
        %5900 = vmatmul.mubr.bf16.gmra.mrb[0].mxu0 %v3999
        %v5901 = vpop.f32.mrb[0].mxu0
        %v5902 = vadd.f32 0.0, %v5901
        %v5903 = vpop.f32.mrb[0].mxu0
        %v5904 = vpop.f32.mrb[0].mxu0
        %v5905 = vadd.f32 0.0, %v5904
        %v5906 = vpop.f32.mrb[0].mxu0
        %5907 = vmatprep.mubr.bf16.mxu0 0
        %5908 = vmatmul.mubr.bf16.gmra.mrb[0].mxu0 %v4000
        %v5909 = vpop.f32.mrb[0].mxu0
        %v5910 = vadd.f32 0.0, %v5909
        %v5911 = vpop.f32.mrb[0].mxu0
        %v5912 = vpop.f32.mrb[0].mxu0
        %v5913 = vadd.f32 0.0, %v5912
        %v5914 = vpop.f32.mrb[0].mxu0
        %5915 = vmatprep.mubr.bf16.mxu0 0
        %5916 = vmatmul.mubr.bf16.gmra.mrb[0].mxu0 %v4001
        %v5917 = vpop.f32.mrb[0].mxu0
        %v5918 = vadd.f32 0.0, %v5917
        %v5919 = vpop.f32.mrb[0].mxu0
        %v5920 = vpop.f32.mrb[0].mxu0
        %v5921 = vadd.f32 0.0, %v5920
        %v5922 = vpop.f32.mrb[0].mxu0
        %5923 = vmatprep.mubr.bf16.mxu0 0
        %5924 = vmatmul.mubr.bf16.gmra.mrb[0].mxu0 %v4002
        %v5925 = vpop.f32.mrb[0].mxu0
        %v5926 = vadd.f32 0.0, %v5925
        %v5927 = vpop.f32.mrb[0].mxu0
        %v5928 = vpop.f32.mrb[0].mxu0
        %v5929 = vadd.f32 0.0, %v5928
        %v5930 = vpop.f32.mrb[0].mxu0
        %5931 = vmatprep.mubr.bf16.mxu0 0
        %5932 = vmatmul.mubr.bf16.gmra.mrb[0].mxu0 %v4003
        %v5933 = vpop.f32.mrb[0].mxu0
        %v5934 = vadd.f32 0.0, %v5933
        %v5935 = vpop.f32.mrb[0].mxu0
        %v5936 = vpop.f32.mrb[0].mxu0
        %v5937 = vadd.f32 0.0, %v5936
        %v5938 = vpop.f32.mrb[0].mxu0
        %5939 = vmatprep.mubr.bf16.mxu0 0
        %5940 = vmatmul.mubr.bf16.gmra.mrb[0].mxu0 %v4004
        %v5941 = vpop.f32.mrb[0].mxu0
        %v5942 = vadd.f32 0.0, %v5941
        %v5943 = vpop.f32.mrb[0].mxu0
        %v5944 = vpop.f32.mrb[0].mxu0
        %v5945 = vadd.f32 0.0, %v5944
        %v5946 = vpop.f32.mrb[0].mxu0
        %5947 = vmatprep.mubr.bf16.mxu0 0
        %5948 = vmatmul.mubr.bf16.gmra.mrb[0].mxu0 %v4005
        %v5949 = vpop.f32.mrb[0].mxu0
        %v5950 = vadd.f32 0.0, %v5949
        %v5951 = vpop.f32.mrb[0].mxu0
        %v5952 = vpop.f32.mrb[0].mxu0
        %v5953 = vadd.f32 0.0, %v5952
        %v5954 = vpop.f32.mrb[0].mxu0
        %5955 = vmatprep.mubr.bf16.mxu0 0
        %5956 = vmatmul.mubr.bf16.gmra.mrb[0].mxu0 %v4006
        %v5957 = vpop.f32.mrb[0].mxu0
        %v5958 = vadd.f32 0.0, %v5957
        %v5959 = vpop.f32.mrb[0].mxu0
        %v5960 = vpop.f32.mrb[0].mxu0
        %v5961 = vadd.f32 0.0, %v5960
        %v5962 = vpop.f32.mrb[0].mxu0
        %5963 = vmatprep.mubr.bf16.mxu0 0
        %5964 = vmatmul.mubr.bf16.gmra.mrb[0].mxu0 %v4007
        %v5965 = vpop.f32.mrb[0].mxu0
        %v5966 = vadd.f32 0.0, %v5965
        %v5967 = vpop.f32.mrb[0].mxu0
        %v5968 = vpop.f32.mrb[0].mxu0
        %v5969 = vadd.f32 0.0, %v5968
        %v5970 = vpop.f32.mrb[0].mxu0
        %5971 = vmatprep.mubr.bf16.mxu0 0
        %5972 = vmatmul.mubr.bf16.gmra.mrb[0].mxu0 %v4008
        %v5973 = vpop.f32.mrb[0].mxu0
        %v5974 = vadd.f32 0.0, %v5973
        %v5975 = vpop.f32.mrb[0].mxu0
        %v5976 = vpop.f32.mrb[0].mxu0
        %v5977 = vadd.f32 0.0, %v5976
        %v5978 = vpop.f32.mrb[0].mxu0
        %5979 = vmatprep.mubr.bf16.mxu0 0
        %5980 = vmatmul.mubr.bf16.gmra.mrb[0].mxu0 %v4009
        %v5981 = vpop.f32.mrb[0].mxu0
        %v5982 = vadd.f32 0.0, %v5981
        %v5983 = vpop.f32.mrb[0].mxu0
        %v5984 = vpop.f32.mrb[0].mxu0
        %v5985 = vadd.f32 0.0, %v5984
        %v5986 = vpop.f32.mrb[0].mxu0
        %5987 = vmatprep.mubr.bf16.mxu0 0
        %5988 = vmatmul.mubr.bf16.gmra.mrb[0].mxu0 %v4010
        %v5989 = vpop.f32.mrb[0].mxu0
        %v5990 = vadd.f32 0.0, %v5989
        %v5991 = vpop.f32.mrb[0].mxu0
        %v5992 = vpop.f32.mrb[0].mxu0
        %v5993 = vadd.f32 0.0, %v5992
        %v5994 = vpop.f32.mrb[0].mxu0
        %5995 = vdwg.mxu0
        %v5996 = vadd.f32 %v5738, %v5870
        %v5997 = vadd.f32 %v5739, %v5873
        %v5998 = vadd.f32 %v5740, %v5878
        %v5999 = vadd.f32 %v5741, %v5881
        %v6000 = vadd.f32 %v5742, %v5886
        %v6001 = vadd.f32 %v5743, %v5889
        %v6002 = vadd.f32 %v5744, %v5894
        %v6003 = vadd.f32 %v5745, %v5897
        %v6004 = vadd.f32 %v5746, %v5902
        %v6005 = vadd.f32 %v5747, %v5905
        %v6006 = vadd.f32 %v5748, %v5910
        %v6007 = vadd.f32 %v5749, %v5913
        %v6008 = vadd.f32 %v5750, %v5918
        %v6009 = vadd.f32 %v5751, %v5921
        %v6010 = vadd.f32 %v5752, %v5926
        %v6011 = vadd.f32 %v5753, %v5929
        %v6012 = vadd.f32 %v5754, %v5934
        %v6013 = vadd.f32 %v5755, %v5937
        %v6014 = vadd.f32 %v5756, %v5942
        %v6015 = vadd.f32 %v5757, %v5945
        %v6016 = vadd.f32 %v5758, %v5950
        %v6017 = vadd.f32 %v5759, %v5953
        %v6018 = vadd.f32 %v5760, %v5958
        %v6019 = vadd.f32 %v5761, %v5961
        %v6020 = vadd.f32 %v5762, %v5966
        %v6021 = vadd.f32 %v5763, %v5969
        %v6022 = vadd.f32 %v5764, %v5974
        %v6023 = vadd.f32 %v5765, %v5977
        %v6024 = vadd.f32 %v5766, %v5982
        %v6025 = vadd.f32 %v5767, %v5985
        %v6026 = vadd.f32 %v5768, %v5990
        %v6027 = vadd.f32 %v5769, %v5993
        %s6028 = scalar_lea.vmem [#allocation8], 512
        %v6029 = vld [vmem:[%s6028] sm:$0xf]
        %v6030 = vld [vmem:[%s6028 + $0x4] sm:$0xf]
        %v6031 = vld [vmem:[%s6028 + $0x8] sm:$0xf]
        %v6032 = vld [vmem:[%s6028 + $0xc] sm:$0xf]
        %v6033 = vld [vmem:[%s6028 + $0x10] sm:$0xf]
        %v6034 = vld [vmem:[%s6028 + $0x14] sm:$0xf]
        %v6035 = vld [vmem:[%s6028 + $0x18] sm:$0xf]
        %v6036 = vld [vmem:[%s6028 + $0x1c] sm:$0xf]
        %v6037 = vld [vmem:[%s6028 + $0x20] sm:$0xf]
        %v6038 = vld [vmem:[%s6028 + $0x24] sm:$0xf]
        %v6039 = vld [vmem:[%s6028 + $0x28] sm:$0xf]
        %v6040 = vld [vmem:[%s6028 + $0x2c] sm:$0xf]
        %v6041 = vld [vmem:[%s6028 + $0x30] sm:$0xf]
        %v6042 = vld [vmem:[%s6028 + $0x34] sm:$0xf]
        %v6043 = vld [vmem:[%s6028 + $0x38] sm:$0xf]
        %v6044 = vld [vmem:[%s6028 + $0x3c] sm:$0xf]
        %v6061 = vunpack.c.l.b16 %v6029
        %v6062 = vunpack.c.l.b16 %v6030
        %v6063 = vunpack.c.l.b16 %v6031
        %v6064 = vunpack.c.l.b16 %v6032
        %v6065 = vunpack.c.l.b16 %v6033
        %v6066 = vunpack.c.l.b16 %v6034
        %v6067 = vunpack.c.l.b16 %v6035
        %v6068 = vunpack.c.l.b16 %v6036
        %v6069 = vunpack.c.l.b16 %v6037
        %v6070 = vunpack.c.l.b16 %v6038
        %v6071 = vunpack.c.l.b16 %v6039
        %v6072 = vunpack.c.l.b16 %v6040
        %v6073 = vunpack.c.l.b16 %v6041
        %v6074 = vunpack.c.l.b16 %v6042
        %v6075 = vunpack.c.l.b16 %v6043
        %v6076 = vunpack.c.l.b16 %v6044
        %v6077 = vpack.c.b16 %v6062, %v6061
        %v6078 = vpack.c.b16 %v6064, %v6063
        %v6079 = vpack.c.b16 %v6066, %v6065
        %v6080 = vpack.c.b16 %v6068, %v6067
        %v6081 = vpack.c.b16 %v6070, %v6069
        %v6082 = vpack.c.b16 %v6072, %v6071
        %v6083 = vpack.c.b16 %v6074, %v6073
        %v6084 = vpack.c.b16 %v6076, %v6075
        %6093 = vmatprep.subr.bf16.mxu0 0
        %6094 = vmatpush1.bf16.msra.mxu0 %v6077
        %6095 = vmatprep.subr.bf16.mxu0 0
        %6096 = vmatpush1.bf16.msra.mxu0 %v6078
        %6097 = vmatprep.subr.bf16.mxu0 0
        %6098 = vmatpush1.bf16.msra.mxu0 %v6079
        %6099 = vmatprep.subr.bf16.mxu0 0
        %6100 = vmatpush1.bf16.msra.mxu0 %v6080
        %6101 = vmatprep.subr.bf16.mxu0 0
        %6102 = vmatpush1.bf16.msra.mxu0 %v6081
        %6103 = vmatprep.subr.bf16.mxu0 0
        %6104 = vmatpush1.bf16.msra.mxu0 %v6082
        %6105 = vmatprep.subr.bf16.mxu0 0
        %6106 = vmatpush1.bf16.msra.mxu0 %v6083
        %6107 = vmatprep.subr.bf16.mxu0 0
        %6108 = vmatpush1.bf16.msra.mxu0 %v6084
        %6109 = vmatprep.subr.bf16.mxu0 0
        %6110 = vmatpush1.bf16.msra.mxu0 0
        %6111 = vmatprep.subr.bf16.mxu0 0
        %6112 = vmatpush1.bf16.msra.mxu0 0
        %6113 = vmatprep.subr.bf16.mxu0 0
        %6114 = vmatpush1.bf16.msra.mxu0 0
        %6115 = vmatprep.subr.bf16.mxu0 0
        %6116 = vmatpush1.bf16.msra.mxu0 0
        %6117 = vmatprep.subr.bf16.mxu0 0
        %6118 = vmatpush1.bf16.msra.mxu0 0
        %6119 = vmatprep.subr.bf16.mxu0 0
        %6120 = vmatpush1.bf16.msra.mxu0 0
        %6121 = vmatprep.subr.bf16.mxu0 0
        %6122 = vmatpush1.bf16.msra.mxu0 0
        %6123 = vmatprep.subr.bf16.mxu0 0
        %6124 = vmatpush1.bf16.msra.mxu0 0
        %6125 = vmatprep.mubr.bf16.mxu0 0
        %6126 = vmatmul.mubr.bf16.gmra.mrb[0].mxu0 %v4013
        %v6127 = vpop.f32.mrb[0].mxu0
        %v6128 = vadd.f32 0.0, %v6127
        %v6129 = vpop.f32.mrb[0].mxu0
        %v6130 = vpop.f32.mrb[0].mxu0
        %v6131 = vadd.f32 0.0, %v6130
        %v6132 = vpop.f32.mrb[0].mxu0
        %6133 = vmatprep.mubr.bf16.mxu0 0
        %6134 = vmatmul.mubr.bf16.gmra.mrb[0].mxu0 %v4014
        %v6135 = vpop.f32.mrb[0].mxu0
        %v6136 = vadd.f32 0.0, %v6135
        %v6137 = vpop.f32.mrb[0].mxu0
        %v6138 = vpop.f32.mrb[0].mxu0
        %v6139 = vadd.f32 0.0, %v6138
        %v6140 = vpop.f32.mrb[0].mxu0
        %6141 = vmatprep.mubr.bf16.mxu0 0
        %6142 = vmatmul.mubr.bf16.gmra.mrb[0].mxu0 %v4015
        %v6143 = vpop.f32.mrb[0].mxu0
        %v6144 = vadd.f32 0.0, %v6143
        %v6145 = vpop.f32.mrb[0].mxu0
        %v6146 = vpop.f32.mrb[0].mxu0
        %v6147 = vadd.f32 0.0, %v6146
        %v6148 = vpop.f32.mrb[0].mxu0
        %6149 = vmatprep.mubr.bf16.mxu0 0
        %6150 = vmatmul.mubr.bf16.gmra.mrb[0].mxu0 %v4016
        %v6151 = vpop.f32.mrb[0].mxu0
        %v6152 = vadd.f32 0.0, %v6151
        %v6153 = vpop.f32.mrb[0].mxu0
        %v6154 = vpop.f32.mrb[0].mxu0
        %v6155 = vadd.f32 0.0, %v6154
        %v6156 = vpop.f32.mrb[0].mxu0
        %6157 = vmatprep.mubr.bf16.mxu0 0
        %6158 = vmatmul.mubr.bf16.gmra.mrb[0].mxu0 %v4017
        %v6159 = vpop.f32.mrb[0].mxu0
        %v6160 = vadd.f32 0.0, %v6159
        %v6161 = vpop.f32.mrb[0].mxu0
        %v6162 = vpop.f32.mrb[0].mxu0
        %v6163 = vadd.f32 0.0, %v6162
        %v6164 = vpop.f32.mrb[0].mxu0
        %6165 = vmatprep.mubr.bf16.mxu0 0
        %6166 = vmatmul.mubr.bf16.gmra.mrb[0].mxu0 %v4018
        %v6167 = vpop.f32.mrb[0].mxu0
        %v6168 = vadd.f32 0.0, %v6167
        %v6169 = vpop.f32.mrb[0].mxu0
        %v6170 = vpop.f32.mrb[0].mxu0
        %v6171 = vadd.f32 0.0, %v6170
        %v6172 = vpop.f32.mrb[0].mxu0
        %6173 = vmatprep.mubr.bf16.mxu0 0
        %6174 = vmatmul.mubr.bf16.gmra.mrb[0].mxu0 %v4019
        %v6175 = vpop.f32.mrb[0].mxu0
        %v6176 = vadd.f32 0.0, %v6175
        %v6177 = vpop.f32.mrb[0].mxu0
        %v6178 = vpop.f32.mrb[0].mxu0
        %v6179 = vadd.f32 0.0, %v6178
        %v6180 = vpop.f32.mrb[0].mxu0
        %6181 = vmatprep.mubr.bf16.mxu0 0
        %6182 = vmatmul.mubr.bf16.gmra.mrb[0].mxu0 %v4020
        %v6183 = vpop.f32.mrb[0].mxu0
        %v6184 = vadd.f32 0.0, %v6183
        %v6185 = vpop.f32.mrb[0].mxu0
        %v6186 = vpop.f32.mrb[0].mxu0
        %v6187 = vadd.f32 0.0, %v6186
        %v6188 = vpop.f32.mrb[0].mxu0
        %6189 = vmatprep.mubr.bf16.mxu0 0
        %6190 = vmatmul.mubr.bf16.gmra.mrb[0].mxu0 %v4021
        %v6191 = vpop.f32.mrb[0].mxu0
        %v6192 = vadd.f32 0.0, %v6191
        %v6193 = vpop.f32.mrb[0].mxu0
        %v6194 = vpop.f32.mrb[0].mxu0
        %v6195 = vadd.f32 0.0, %v6194
        %v6196 = vpop.f32.mrb[0].mxu0
        %6197 = vmatprep.mubr.bf16.mxu0 0
        %6198 = vmatmul.mubr.bf16.gmra.mrb[0].mxu0 %v4022
        %v6199 = vpop.f32.mrb[0].mxu0
        %v6200 = vadd.f32 0.0, %v6199
        %v6201 = vpop.f32.mrb[0].mxu0
        %v6202 = vpop.f32.mrb[0].mxu0
        %v6203 = vadd.f32 0.0, %v6202
        %v6204 = vpop.f32.mrb[0].mxu0
        %6205 = vmatprep.mubr.bf16.mxu0 0
        %6206 = vmatmul.mubr.bf16.gmra.mrb[0].mxu0 %v4023
        %v6207 = vpop.f32.mrb[0].mxu0
        %v6208 = vadd.f32 0.0, %v6207
        %v6209 = vpop.f32.mrb[0].mxu0
        %v6210 = vpop.f32.mrb[0].mxu0
        %v6211 = vadd.f32 0.0, %v6210
        %v6212 = vpop.f32.mrb[0].mxu0
        %6213 = vmatprep.mubr.bf16.mxu0 0
        %6214 = vmatmul.mubr.bf16.gmra.mrb[0].mxu0 %v4024
        %v6215 = vpop.f32.mrb[0].mxu0
        %v6216 = vadd.f32 0.0, %v6215
        %v6217 = vpop.f32.mrb[0].mxu0
        %v6218 = vpop.f32.mrb[0].mxu0
        %v6219 = vadd.f32 0.0, %v6218
        %v6220 = vpop.f32.mrb[0].mxu0
        %6221 = vmatprep.mubr.bf16.mxu0 0
        %6222 = vmatmul.mubr.bf16.gmra.mrb[0].mxu0 %v4025
        %v6223 = vpop.f32.mrb[0].mxu0
        %v6224 = vadd.f32 0.0, %v6223
        %v6225 = vpop.f32.mrb[0].mxu0
        %v6226 = vpop.f32.mrb[0].mxu0
        %v6227 = vadd.f32 0.0, %v6226
        %v6228 = vpop.f32.mrb[0].mxu0
        %6229 = vmatprep.mubr.bf16.mxu0 0
        %6230 = vmatmul.mubr.bf16.gmra.mrb[0].mxu0 %v4026
        %v6231 = vpop.f32.mrb[0].mxu0
        %v6232 = vadd.f32 0.0, %v6231
        %v6233 = vpop.f32.mrb[0].mxu0
        %v6234 = vpop.f32.mrb[0].mxu0
        %v6235 = vadd.f32 0.0, %v6234
        %v6236 = vpop.f32.mrb[0].mxu0
        %6237 = vmatprep.mubr.bf16.mxu0 0
        %6238 = vmatmul.mubr.bf16.gmra.mrb[0].mxu0 %v4027
        %v6239 = vpop.f32.mrb[0].mxu0
        %v6240 = vadd.f32 0.0, %v6239
        %v6241 = vpop.f32.mrb[0].mxu0
        %v6242 = vpop.f32.mrb[0].mxu0
        %v6243 = vadd.f32 0.0, %v6242
        %v6244 = vpop.f32.mrb[0].mxu0
        %6245 = vmatprep.mubr.bf16.mxu0 0
        %6246 = vmatmul.mubr.bf16.gmra.mrb[0].mxu0 %v4028
        %v6247 = vpop.f32.mrb[0].mxu0
        %v6248 = vadd.f32 0.0, %v6247
        %v6249 = vpop.f32.mrb[0].mxu0
        %v6250 = vpop.f32.mrb[0].mxu0
        %v6251 = vadd.f32 0.0, %v6250
        %v6252 = vpop.f32.mrb[0].mxu0
        %6253 = vdwg.mxu0
        %v6254 = vadd.f32 %v5996, %v6128
        %v6255 = vadd.f32 %v5997, %v6131
        %v6256 = vadd.f32 %v5998, %v6136
        %v6257 = vadd.f32 %v5999, %v6139
        %v6258 = vadd.f32 %v6000, %v6144
        %v6259 = vadd.f32 %v6001, %v6147
        %v6260 = vadd.f32 %v6002, %v6152
        %v6261 = vadd.f32 %v6003, %v6155
        %v6262 = vadd.f32 %v6004, %v6160
        %v6263 = vadd.f32 %v6005, %v6163
        %v6264 = vadd.f32 %v6006, %v6168
        %v6265 = vadd.f32 %v6007, %v6171
        %v6266 = vadd.f32 %v6008, %v6176
        %v6267 = vadd.f32 %v6009, %v6179
        %v6268 = vadd.f32 %v6010, %v6184
        %v6269 = vadd.f32 %v6011, %v6187
        %v6270 = vadd.f32 %v6012, %v6192
        %v6271 = vadd.f32 %v6013, %v6195
        %v6272 = vadd.f32 %v6014, %v6200
        %v6273 = vadd.f32 %v6015, %v6203
        %v6274 = vadd.f32 %v6016, %v6208
        %v6275 = vadd.f32 %v6017, %v6211
        %v6276 = vadd.f32 %v6018, %v6216
        %v6277 = vadd.f32 %v6019, %v6219
        %v6278 = vadd.f32 %v6020, %v6224
        %v6279 = vadd.f32 %v6021, %v6227
        %v6280 = vadd.f32 %v6022, %v6232
        %v6281 = vadd.f32 %v6023, %v6235
        %v6282 = vadd.f32 %v6024, %v6240
        %v6283 = vadd.f32 %v6025, %v6243
        %v6284 = vadd.f32 %v6026, %v6248
        %v6285 = vadd.f32 %v6027, %v6251
        %v6286 = vld [vmem:[%s287 + $0x10] sm:$0xff]
        %v6287 = vld [vmem:[%s287 + $0x18] sm:$0xff]
        %v6288 = vld [vmem:[%s287 + $0x20] sm:$0xff]
        %v6289 = vld [vmem:[%s287 + $0x28] sm:$0xff]
        %v6290 = vld [vmem:[%s287 + $0x30] sm:$0xff]
        %v6291 = vld [vmem:[%s287 + $0x38] sm:$0xff]
        %v6292 = vld [vmem:[%s287 + $0x40] sm:$0xff]
        %v6293 = vld [vmem:[%s287 + $0x48] sm:$0xff]
        %v6294 = vld [vmem:[%s287 + $0x50] sm:$0xff]
        %v6295 = vld [vmem:[%s287 + $0x58] sm:$0xff]
        %v6296 = vld [vmem:[%s287 + $0x60] sm:$0xff]
        %v6297 = vld [vmem:[%s287 + $0x68] sm:$0xff]
        %v6298 = vld [vmem:[%s287 + $0x70] sm:$0xff]
        %v6299 = vld [vmem:[%s287 + $0x78] sm:$0xff]
        %v6300 = vld [vmem:[%s287 + $0x80] sm:$0xff]
        %v6301 = vld [vmem:[%s287 + $0x88] sm:$0xff]
        %v6302 = vld [vmem:[%s287 + $0x90] sm:$0xff]
        %v6303 = vld [vmem:[%s287 + $0x98] sm:$0xff]
        %v6304 = vld [vmem:[%s287 + $0xa0] sm:$0xff]
        %v6305 = vld [vmem:[%s287 + $0xa8] sm:$0xff]
        %v6306 = vld [vmem:[%s287 + $0xb0] sm:$0xff]
        %v6307 = vld [vmem:[%s287 + $0xb8] sm:$0xff]
        %v6308 = vld [vmem:[%s287 + $0xc0] sm:$0xff]
        %v6309 = vld [vmem:[%s287 + $0xc8] sm:$0xff]
        %v6310 = vld [vmem:[%s287 + $0xd0] sm:$0xff]
        %v6311 = vld [vmem:[%s287 + $0xd8] sm:$0xff]
        %v6312 = vld [vmem:[%s287 + $0xe0] sm:$0xff]
        %v6313 = vld [vmem:[%s287 + $0xe8] sm:$0xff]
        %v6314 = vld [vmem:[%s287 + $0xf0] sm:$0xff]
        %v6315 = vld [vmem:[%s287 + $0xf8] sm:$0xff]
        %v6316 = vld [vmem:[%s287 + $0x100] sm:$0xff]
        %v6317 = vld [vmem:[%s287 + $0x108] sm:$0xff]
        %v6318 = vld [vmem:[%s5] sm:$0x1]
        %v6320 = vlaneseq
        %v6321 = vshrl.u32 %v6320, 7
        %v6322 = vsub.s32 0, %v6321
        %v6323 = vrot.slane %v6318, %v6322
        %v6325 = vmul.f32 %v6254, %v6323
        %v6326 = vmul.f32 %v6255, %v6323
        %v6327 = vmul.f32 %v6256, %v6323
        %v6328 = vmul.f32 %v6257, %v6323
        %v6329 = vmul.f32 %v6258, %v6323
        %v6330 = vmul.f32 %v6259, %v6323
        %v6331 = vmul.f32 %v6260, %v6323
        %v6332 = vmul.f32 %v6261, %v6323
        %v6333 = vmul.f32 %v6262, %v6323
        %v6334 = vmul.f32 %v6263, %v6323
        %v6335 = vmul.f32 %v6264, %v6323
        %v6336 = vmul.f32 %v6265, %v6323
        %v6337 = vmul.f32 %v6266, %v6323
        %v6338 = vmul.f32 %v6267, %v6323
        %v6339 = vmul.f32 %v6268, %v6323
        %v6340 = vmul.f32 %v6269, %v6323
        %v6341 = vmul.f32 %v6270, %v6323
        %v6342 = vmul.f32 %v6271, %v6323
        %v6343 = vmul.f32 %v6272, %v6323
        %v6344 = vmul.f32 %v6273, %v6323
        %v6345 = vmul.f32 %v6274, %v6323
        %v6346 = vmul.f32 %v6275, %v6323
        %v6347 = vmul.f32 %v6276, %v6323
        %v6348 = vmul.f32 %v6277, %v6323
        %v6349 = vmul.f32 %v6278, %v6323
        %v6350 = vmul.f32 %v6279, %v6323
        %v6351 = vmul.f32 %v6280, %v6323
        %v6352 = vmul.f32 %v6281, %v6323
        %v6353 = vmul.f32 %v6282, %v6323
        %v6354 = vmul.f32 %v6283, %v6323
        %v6355 = vmul.f32 %v6284, %v6323
        %v6356 = vmul.f32 %v6285, %v6323
        %v6357 = vld [vmem:[%s6] sm:$0x1]
        %v6359 = vlaneseq
        %v6360 = vshrl.u32 %v6359, 7
        %v6361 = vsub.s32 0, %v6360
        %v6362 = vrot.slane %v6357, %v6361
        %v6364 = vadd.f32 %v6325, %v6362
        %v6365 = vadd.f32 %v6326, %v6362
        %v6366 = vadd.f32 %v6327, %v6362
        %v6367 = vadd.f32 %v6328, %v6362
        %v6368 = vadd.f32 %v6329, %v6362
        %v6369 = vadd.f32 %v6330, %v6362
        %v6370 = vadd.f32 %v6331, %v6362
        %v6371 = vadd.f32 %v6332, %v6362
        %v6372 = vadd.f32 %v6333, %v6362
        %v6373 = vadd.f32 %v6334, %v6362
        %v6374 = vadd.f32 %v6335, %v6362
        %v6375 = vadd.f32 %v6336, %v6362
        %v6376 = vadd.f32 %v6337, %v6362
        %v6377 = vadd.f32 %v6338, %v6362
        %v6378 = vadd.f32 %v6339, %v6362
        %v6379 = vadd.f32 %v6340, %v6362
        %v6380 = vadd.f32 %v6341, %v6362
        %v6381 = vadd.f32 %v6342, %v6362
        %v6382 = vadd.f32 %v6343, %v6362
        %v6383 = vadd.f32 %v6344, %v6362
        %v6384 = vadd.f32 %v6345, %v6362
        %v6385 = vadd.f32 %v6346, %v6362
        %v6386 = vadd.f32 %v6347, %v6362
        %v6387 = vadd.f32 %v6348, %v6362
        %v6388 = vadd.f32 %v6349, %v6362
        %v6389 = vadd.f32 %v6350, %v6362
        %v6390 = vadd.f32 %v6351, %v6362
        %v6391 = vadd.f32 %v6352, %v6362
        %v6392 = vadd.f32 %v6353, %v6362
        %v6393 = vadd.f32 %v6354, %v6362
        %v6394 = vadd.f32 %v6355, %v6362
        %v6395 = vadd.f32 %v6356, %v6362
        %v6396 = vadd.f32 %v6364, %v6286
        %v6397 = vadd.f32 %v6365, %v6287
        %v6398 = vadd.f32 %v6366, %v6288
        %v6399 = vadd.f32 %v6367, %v6289
        %v6400 = vadd.f32 %v6368, %v6290
        %v6401 = vadd.f32 %v6369, %v6291
        %v6402 = vadd.f32 %v6370, %v6292
        %v6403 = vadd.f32 %v6371, %v6293
        %v6404 = vadd.f32 %v6372, %v6294
        %v6405 = vadd.f32 %v6373, %v6295
        %v6406 = vadd.f32 %v6374, %v6296
        %v6407 = vadd.f32 %v6375, %v6297
        %v6408 = vadd.f32 %v6376, %v6298
        %v6409 = vadd.f32 %v6377, %v6299
        %v6410 = vadd.f32 %v6378, %v6300
        %v6411 = vadd.f32 %v6379, %v6301
        %v6412 = vadd.f32 %v6380, %v6302
        %v6413 = vadd.f32 %v6381, %v6303
        %v6414 = vadd.f32 %v6382, %v6304
        %v6415 = vadd.f32 %v6383, %v6305
        %v6416 = vadd.f32 %v6384, %v6306
        %v6417 = vadd.f32 %v6385, %v6307
        %v6418 = vadd.f32 %v6386, %v6308
        %v6419 = vadd.f32 %v6387, %v6309
        %v6420 = vadd.f32 %v6388, %v6310
        %v6421 = vadd.f32 %v6389, %v6311
        %v6422 = vadd.f32 %v6390, %v6312
        %v6423 = vadd.f32 %v6391, %v6313
        %v6424 = vadd.f32 %v6392, %v6314
        %v6425 = vadd.f32 %v6393, %v6315
        %v6426 = vadd.f32 %v6394, %v6316
        %v6427 = vadd.f32 %v6395, %v6317
        %v6428 = vmax.f32 %v6396, 0.0
        %v6429 = vmax.f32 %v6397, 0.0
        %v6430 = vmax.f32 %v6398, 0.0
        %v6431 = vmax.f32 %v6399, 0.0
        %v6432 = vmax.f32 %v6400, 0.0
        %v6433 = vmax.f32 %v6401, 0.0
        %v6434 = vmax.f32 %v6402, 0.0
        %v6435 = vmax.f32 %v6403, 0.0
        %v6436 = vmax.f32 %v6404, 0.0
        %v6437 = vmax.f32 %v6405, 0.0
        %v6438 = vmax.f32 %v6406, 0.0
        %v6439 = vmax.f32 %v6407, 0.0
        %v6440 = vmax.f32 %v6408, 0.0
        %v6441 = vmax.f32 %v6409, 0.0
        %v6442 = vmax.f32 %v6410, 0.0
        %v6443 = vmax.f32 %v6411, 0.0
        %v6444 = vmax.f32 %v6412, 0.0
        %v6445 = vmax.f32 %v6413, 0.0
        %v6446 = vmax.f32 %v6414, 0.0
        %v6447 = vmax.f32 %v6415, 0.0
        %v6448 = vmax.f32 %v6416, 0.0
        %v6449 = vmax.f32 %v6417, 0.0
        %v6450 = vmax.f32 %v6418, 0.0
        %v6451 = vmax.f32 %v6419, 0.0
        %v6452 = vmax.f32 %v6420, 0.0
        %v6453 = vmax.f32 %v6421, 0.0
        %v6454 = vmax.f32 %v6422, 0.0
        %v6455 = vmax.f32 %v6423, 0.0
        %v6456 = vmax.f32 %v6424, 0.0
        %v6457 = vmax.f32 %v6425, 0.0
        %v6458 = vmax.f32 %v6426, 0.0
        %v6459 = vmax.f32 %v6427, 0.0
        %6460 = vst [vmem:[%s325] sm:$0xff] %v6428
        %6461 = vst [vmem:[%s325 + $0x8] sm:$0xff] %v6429
        %6462 = vst [vmem:[%s325 + $0x10] sm:$0xff] %v6430
        %6463 = vst [vmem:[%s325 + $0x18] sm:$0xff] %v6431
        %6464 = vst [vmem:[%s325 + $0x20] sm:$0xff] %v6432
        %6465 = vst [vmem:[%s325 + $0x28] sm:$0xff] %v6433
        %6466 = vst [vmem:[%s325 + $0x30] sm:$0xff] %v6434
        %6467 = vst [vmem:[%s325 + $0x38] sm:$0xff] %v6435
        %6468 = vst [vmem:[%s325 + $0x40] sm:$0xff] %v6436
        %6469 = vst [vmem:[%s325 + $0x48] sm:$0xff] %v6437
        %6470 = vst [vmem:[%s325 + $0x50] sm:$0xff] %v6438
        %6471 = vst [vmem:[%s325 + $0x58] sm:$0xff] %v6439
        %6472 = vst [vmem:[%s325 + $0x60] sm:$0xff] %v6440
        %6473 = vst [vmem:[%s325 + $0x68] sm:$0xff] %v6441
        %6474 = vst [vmem:[%s325 + $0x70] sm:$0xff] %v6442
        %6475 = vst [vmem:[%s325 + $0x78] sm:$0xff] %v6443
        %6476 = vst [vmem:[%s325 + $0x80] sm:$0xff] %v6444
        %6477 = vst [vmem:[%s325 + $0x88] sm:$0xff] %v6445
        %6478 = vst [vmem:[%s325 + $0x90] sm:$0xff] %v6446
        %6479 = vst [vmem:[%s325 + $0x98] sm:$0xff] %v6447
        %6480 = vst [vmem:[%s325 + $0xa0] sm:$0xff] %v6448
        %6481 = vst [vmem:[%s325 + $0xa8] sm:$0xff] %v6449
        %6482 = vst [vmem:[%s325 + $0xb0] sm:$0xff] %v6450
        %6483 = vst [vmem:[%s325 + $0xb8] sm:$0xff] %v6451
        %6484 = vst [vmem:[%s325 + $0xc0] sm:$0xff] %v6452
        %6485 = vst [vmem:[%s325 + $0xc8] sm:$0xff] %v6453
        %6486 = vst [vmem:[%s325 + $0xd0] sm:$0xff] %v6454
        %6487 = vst [vmem:[%s325 + $0xd8] sm:$0xff] %v6455
        %6488 = vst [vmem:[%s325 + $0xe0] sm:$0xff] %v6456
        %6489 = vst [vmem:[%s325 + $0xe8] sm:$0xff] %v6457
        %6490 = vst [vmem:[%s325 + $0xf0] sm:$0xff] %v6458
        %6491 = vst [vmem:[%s325 + $0xf8] sm:$0xff] %v6459
        %s6492 = sand.u32 %s185, 1
        %s6493 = scalar_lea.sflag [#allocation5], %s6492
        %s6494 = sand.u32 %s185, 1
        %s6495 = smul.addr %s6494, 256
        %s6496 = scalar_lea.vmem [#allocation9], %s6495
        // Predicated region
        $region61: #{tpu_custom_call.1} parent=47 // pred_check
          %p6497 = pneg %p195
        $region62: #{tpu_custom_call.1} parent=47 // pred_check_branch
          %6499 = sbr.rel (%p6497) target = $region64
        $region63: #{tpu_custom_call.1} parent=47 // pred_region
          %s6501 = ssub.s32 4096, 4096
          %6502 = vsyncadd %s6493, %s6501
          %s6503 = smul.addr %s25, 32
          %s6504 = smul.addr %s6503, 128
          %s6505 = scalar_lea.hbm %s7, %s6504
          %s6506 = sshll.u32 %s6496, 4
          %s6507 = int_to_ptr.vmem [resolvable:$true] %s6506
          %6512 = dma.vmem_to_hbm [thread:$0]  %s6507, 4096, %s6505, %s6493, 128, 128, 8
        $region64: #{tpu_custom_call.1} parent=47 // pred_fallthru
          _
      $region48: #{tpu_custom_call.1} parent=5 // pred_fallthru
        _
      %p6513 = scmp.le.s32.totalorder 2, %s20
      // Predicated region
      $region65: #{tpu_custom_call.1} parent=5 // pred_check
        %p6514 = pneg %p6513
      $region66: #{tpu_custom_call.1} parent=5 // pred_check_branch
        %6516 = sbr.rel (%p6514) target = $region68
      $region67: #{tpu_custom_call.1} parent=5 // pred_region
        %s6517 = ssub.s32 %s20, 2
        // Predicated region
        $region69: #{tpu_custom_call.1} parent=67 // pred_check
          %p6518 = pneg %p201
        $region70: #{tpu_custom_call.1} parent=67 // pred_check_branch
          %6520 = sbr.rel (%p6518) target = $region72
        $region71: #{tpu_custom_call.1} parent=67 // pred_region
          %s6521 = sand.u32 %s186, 1
          %s6522 = scalar_lea.sflag [#allocation5], %s6521
          %s6523 = sand.u32 %s186, 1
          %s6524 = smul.addr %s6523, 256
          %s6525 = scalar_lea.vmem [#allocation9], %s6524
          %6526 = dma.done %s6522, 4096
        $region72: #{tpu_custom_call.1} parent=67 // pred_fallthru
          _
      $region68: #{tpu_custom_call.1} parent=5 // pred_fallthru
        _
    $region6: #{tpu_custom_call.1} parent=1 // loop_footer
      %s24 = sadd.s32 1, %s20
    $region7: #{tpu_custom_call.1} parent=1 // loop_footer_branch
      %19 = sbr.rel target = $region3
    $region8: #{tpu_custom_call.1} parent=1 // loop_exit
      _
    %6527 = vsyncpa [#allocation4], 1
    %s6528 = scalar_lea.sflag [#allocation4], 1
    %6529 = vsyncpa %s6528, 1
    %6530 = vsyncpa [#allocation7], 1
    %6531 = vsyncpa [#allocation5], 1
    %s6532 = scalar_lea.sflag [#allocation5], 1
    %6533 = vsyncpa %s6532, 1

</llo_original>
